<compile_context>
chip_gen: v6e
topology: v6e:2x2x1
jax: 0.10.0
libtpu: 0.0.40
codegen_flags: <defaults>
</compile_context>

<pallas_src>
import functools

import jax
import jax.numpy as jnp
from jax.experimental import pallas as pl
from jax.experimental.pallas import tpu as pltpu

K = 5            # conv kernel size (both layers)
C1 = 10          # conv1 output channels
C2 = 20          # conv2 output channels
CPAD = 128       # lane-dense padded channel width used inside the kernel
NCLS = 10        # classifier outputs

MXU_DTYPE = jnp.bfloat16   # matmul operand dtype (accumulation stays f32)


def _relu_maxpool2x2(y2d, full_ref, half_ref, oh, ow):
    """ReLU + 2x2/stride-2 max pool, fully in VMEM.

    y2d      : (oh*ow, CPAD) conv+bias output, row index = h*ow + w
    full_ref : VMEM scratch (oh, ow, CPAD)
    half_ref : VMEM scratch (oh//2, ow, CPAD)
    returns  : (oh//2, ow//2, CPAD)

    relu commutes with max, so it is applied once before the pool.  The 2x2
    reduction uses stride-2 ref reads (leading axis for H, sublane axis for W),
    so no HBM strided views and no extra elementwise pass are needed.
    """
    full_ref[...] = jnp.maximum(y2d, 0.0).reshape(oh, ow, CPAD)
    half_ref[...] = jnp.maximum(full_ref[pl.ds(0, oh // 2, 2), :, :],
                                full_ref[pl.ds(1, oh // 2, 2), :, :])
    return jnp.maximum(half_ref[:, pl.ds(0, ow // 2, 2), :],
                       half_ref[:, pl.ds(1, ow // 2, 2), :])


def _net_kernel(x_ref, w1_ref, b1_ref, w2_ref, b2_ref, wf_ref, bf_ref, o_ref,
                a1_ref, h1_ref, a2_ref, h2_ref, *, img_h, img_w):
    oh1, ow1 = img_h - K + 1, img_w - K + 1        # 24, 24
    ph1, pw1 = oh1 // 2, ow1 // 2                  # 12, 12
    oh2, ow2 = ph1 - K + 1, pw1 - K + 1            # 8, 8
    ph2, pw2 = oh2 // 2, ow2 // 2                  # 4, 4

    # ---- layer 1: conv(1->10,5x5)+bias (in-kernel im2col), relu + maxpool ----
    x = x_ref[0]                                                    # (28, 28)
    taps = [x[kh:kh + oh1, kw:kw + ow1]                             # 25 x (24,24)
            for kh in range(K) for kw in range(K)]
    patches1 = jnp.stack(taps, axis=-1).reshape(oh1 * ow1, K * K)   # (576, 25)
    y1 = jnp.dot(patches1.astype(MXU_DTYPE), w1_ref[...],
                 preferred_element_type=jnp.float32) + b1_ref[...]  # (576, 128)
    p1 = _relu_maxpool2x2(y1, a1_ref, h1_ref, oh1, ow1)             # (12,12,128)

    # ---- layer 2: conv(10->20,5x5) as 25 tap-accumulated matmuls -------------
    p1c = p1[:, :, :C1]                                             # (12,12,10)
    acc2 = jnp.zeros((oh2 * ow2, CPAD), jnp.float32)
    for kh in range(K):
        for kw in range(K):
            win = p1c[kh:kh + oh2, kw:kw + ow2, :].reshape(oh2 * ow2, C1)
            acc2 = acc2 + jnp.dot(win.astype(MXU_DTYPE),
                                  w2_ref[kh * K + kw],
                                  preferred_element_type=jnp.float32)
    y2 = acc2 + b2_ref[...]                                         # (64, 128)
    p2 = _relu_maxpool2x2(y2, a2_ref, h2_ref, oh2, ow2)             # (4,4,128)

    # ---- fc(320->10) + log_softmax (flatten folded into fc weight layout) ----
    z = jnp.zeros((1, NCLS), jnp.float32)
    for hh in range(ph2):
        for ww in range(pw2):
            row = p2[hh, ww:ww + 1, :]                              # (1, 128)
            z = z + jnp.dot(row.astype(MXU_DTYPE), wf_ref[hh * pw2 + ww],
                            preferred_element_type=jnp.float32)
    z = z + bf_ref[...]
    zs = z - jnp.max(z, axis=-1, keepdims=True)
    o_ref[0] = zs - jnp.log(jnp.sum(jnp.exp(zs), axis=-1, keepdims=True))


def _pack_params(params, spatial2):
    """One-time (trace-time) repack of PyTorch-layout weights into the kernel's
    lane-padded, tap-major layout.  Everything here is KB-sized."""
    # conv1: (Cout,1,K,K) -> (K*K, CPAD), zero-padded columns
    w1 = jnp.zeros((K * K, CPAD), MXU_DTYPE)
    w1 = w1.at[:, :C1].set(params["conv1_w"].reshape(C1, K * K).T.astype(MXU_DTYPE))
    b1 = jnp.zeros((1, CPAD), jnp.float32)
    b1 = b1.at[:, :C1].set(params["conv1_b"].reshape(1, C1).astype(jnp.float32))

    # conv2: (Cout,Cin,K,K) -> (K*K taps, Cin, CPAD)
    w2t = jnp.transpose(params["conv2_w"], (2, 3, 1, 0)).reshape(K * K, C1, C2)
    w2 = jnp.zeros((K * K, C1, CPAD), MXU_DTYPE)
    w2 = w2.at[:, :, :C2].set(w2t.astype(MXU_DTYPE))
    b2 = jnp.zeros((1, CPAD), jnp.float32)
    b2 = b2.at[:, :C2].set(params["conv2_b"].reshape(1, C2).astype(jnp.float32))

    # fc: PyTorch columns are NCHW-flatten c*spatial + s; kernel consumes one
    # (channel -> class) block per spatial position s = h*pw2 + w.
    wft = params["fc_w"].reshape(NCLS, C2, spatial2).transpose(2, 1, 0)  # (s,c,o)
    wf = jnp.zeros((spatial2, CPAD, NCLS), MXU_DTYPE)
    wf = wf.at[:, :C2, :].set(wft.astype(MXU_DTYPE))
    bf = params["fc_b"].reshape(1, NCLS).astype(jnp.float32)
    return w1, b1, w2, b2, wf, bf


def net_forward(params, x_nchw):
    B, cin, img_h, img_w = x_nchw.shape
    assert cin == 1
    oh1, ow1 = img_h - K + 1, img_w - K + 1
    ph1, pw1 = oh1 // 2, ow1 // 2
    oh2, ow2 = ph1 - K + 1, pw1 - K + 1
    ph2, pw2 = oh2 // 2, ow2 // 2
    spatial2 = ph2 * pw2
    assert spatial2 * C2 == params["fc_w"].shape[1]

    x = x_nchw.reshape(B, img_h, img_w).astype(jnp.float32)
    w1, b1, w2, b2, wf, bf = _pack_params(params, spatial2)

    kernel = functools.partial(_net_kernel, img_h=img_h, img_w=img_w)
    out = pl.pallas_call(
        kernel,
        out_shape=jax.ShapeDtypeStruct((B, 1, NCLS), jnp.float32),
        grid=(B,),
        in_specs=[
            pl.BlockSpec((1, img_h, img_w), lambda b: (b, 0, 0)),      # image
            pl.BlockSpec((K * K, CPAD), lambda b: (0, 0)),             # conv1 w
            pl.BlockSpec((1, CPAD), lambda b: (0, 0)),                 # conv1 b
            pl.BlockSpec((K * K, C1, CPAD), lambda b: (0, 0, 0)),      # conv2 w
            pl.BlockSpec((1, CPAD), lambda b: (0, 0)),                 # conv2 b
            pl.BlockSpec((spatial2, CPAD, NCLS), lambda b: (0, 0, 0)), # fc w
            pl.BlockSpec((1, NCLS), lambda b: (0, 0)),                 # fc b
        ],
        out_specs=pl.BlockSpec((1, 1, NCLS), lambda b: (b, 0, 0)),
        scratch_shapes=[
            pltpu.VMEM((oh1, ow1, CPAD), jnp.float32),       # conv1 pre-pool
            pltpu.VMEM((oh1 // 2, ow1, CPAD), jnp.float32),  # conv1 H-pooled
            pltpu.VMEM((oh2, ow2, CPAD), jnp.float32),       # conv2 pre-pool
            pltpu.VMEM((oh2 // 2, ow2, CPAD), jnp.float32),  # conv2 H-pooled
        ],
        compiler_params=pltpu.CompilerParams(
            dimension_semantics=("parallel",)),
    )(x, w1, b1, w2, b2, wf, bf)
    return out.reshape(B, NCLS)


def init_params(key):
    # Same shapes as the PyTorch module; deterministic synthetic init.
    k1, k2, k3, k4, k5, k6 = jax.random.split(key, 6)
    s = 0.1
    return {
        "conv1_w": jax.random.normal(k1, (10, 1, 5, 5), jnp.float32) * s,
        "conv1_b": jax.random.normal(k2, (10,), jnp.float32) * s,
        "conv2_w": jax.random.normal(k3, (20, 10, 5, 5), jnp.float32) * s,
        "conv2_b": jax.random.normal(k4, (20,), jnp.float32) * s,
        "fc_w":    jax.random.normal(k5, (10, 320), jnp.float32) * s,
        "fc_b":    jax.random.normal(k6, (10,), jnp.float32) * s,
    }


def reference_forward(params, x):
    # Pure-XLA reference matching the PyTorch module semantics (f32).
    dn = ("NCHW", "OIHW", "NCHW")
    y = jax.lax.conv_general_dilated(x, params["conv1_w"], (1, 1), "VALID",
                                     dimension_numbers=dn)
    y = y + params["conv1_b"][None, :, None, None]
    y = jax.lax.reduce_window(y, -jnp.inf, jax.lax.max,
                              (1, 1, 2, 2), (1, 1, 2, 2), "VALID")
    y = jax.nn.relu(y)
    y = jax.lax.conv_general_dilated(y, params["conv2_w"], (1, 1), "VALID",
                                     dimension_numbers=dn)
    y = y + params["conv2_b"][None, :, None, None]
    y = jax.lax.reduce_window(y, -jnp.inf, jax.lax.max,
                              (1, 1, 2, 2), (1, 1, 2, 2), "VALID")
    y = jax.nn.relu(y)
    y = y.reshape(x.shape[0], -1)
    z = y @ params["fc_w"].T + params["fc_b"]
    return jax.nn.log_softmax(z, axis=-1)


if __name__ == "__main__":
    key = jax.random.PRNGKey(0)
    kx, kp = jax.random.split(key)
    # MNIST-shaped input implied by fc(320, 10): (B, 1, 28, 28)
    x = jax.random.normal(kx, (2, 1, 28, 28), jnp.float32)
    params = init_params(kp)

    out = jax.jit(net_forward)(params, x)
    out = jax.block_until_ready(out)

    assert out.shape == (2, 10) and out.dtype == jnp.float32
    # log_softmax rows must (log-)sum to ~0
    assert bool(jnp.all(jnp.abs(jax.nn.logsumexp(out, axis=1)) < 1e-4))
    # numerics vs pure-XLA reference (loose tol: kernel feeds the MXU bf16)
    ref = reference_forward(params, x)
    assert bool(jnp.max(jnp.abs(out - ref)) < 0.1)
    print("KERNEL_OK")
</pallas_src>

<mosaic_0001>
module attributes {stable_mosaic.version = 11 : i64} {
  func.func @_net_kernel(%arg0: i32, %arg1: memref<1x28x28xf32, #tpu.memory_space<vmem>>, %arg2: memref<25x128xbf16, #tpu.memory_space<vmem>>, %arg3: memref<1x128xf32, #tpu.memory_space<vmem>>, %arg4: memref<25x10x128xbf16, #tpu.memory_space<vmem>>, %arg5: memref<1x128xf32, #tpu.memory_space<vmem>>, %arg6: memref<16x128x10xbf16, #tpu.memory_space<vmem>>, %arg7: memref<1x10xf32, #tpu.memory_space<vmem>>, %arg8: memref<1x1x10xf32, #tpu.memory_space<vmem>>, %arg9: memref<24x24x128xf32, #tpu.memory_space<vmem>>, %arg10: memref<12x24x128xf32, #tpu.memory_space<vmem>>, %arg11: memref<8x8x128xf32, #tpu.memory_space<vmem>>, %arg12: memref<4x8x128xf32, #tpu.memory_space<vmem>>) attributes {dimension_semantics = [#tpu.dimension_semantics<parallel>], iteration_bounds = array<i64: 2>, scalar_prefetch = 0 : i64, scratch_operands = 4 : i64, tpu.core_type = #tpu.core_type<tc>, window_params = [{transform_indices = @transform_0, window_bounds = array<i64: 1, 28, 28>}, {pipeline_mode = #tpu.pipeline_mode<synchronous>, transform_indices = @transform_1, window_bounds = array<i64: 25, 128>}, {pipeline_mode = #tpu.pipeline_mode<synchronous>, transform_indices = @transform_2, window_bounds = array<i64: 1, 128>}, {pipeline_mode = #tpu.pipeline_mode<synchronous>, transform_indices = @transform_3, window_bounds = array<i64: 25, 10, 128>}, {pipeline_mode = #tpu.pipeline_mode<synchronous>, transform_indices = @transform_4, window_bounds = array<i64: 1, 128>}, {pipeline_mode = #tpu.pipeline_mode<synchronous>, transform_indices = @transform_5, window_bounds = array<i64: 16, 128, 10>}, {pipeline_mode = #tpu.pipeline_mode<synchronous>, transform_indices = @transform_6, window_bounds = array<i64: 1, 10>}, {transform_indices = @transform_7, window_bounds = array<i64: 1, 1, 10>}]} {
    %c0 = arith.constant 0 : index
    %c0_0 = arith.constant 0 : index
    %c0_1 = arith.constant 0 : index
    %0 = vector.load %arg1[%c0, %c0_0, %c0_1] : memref<1x28x28xf32, #tpu.memory_space<vmem>>, vector<1x28x28xf32>
    %1 = vector.shape_cast %0 : vector<1x28x28xf32> to vector<28x28xf32>
    %2 = vector.extract_strided_slice %1 {offsets = [0, 0], sizes = [24, 24], strides = [1, 1]} : vector<28x28xf32> to vector<24x24xf32>
    %3 = vector.extract_strided_slice %1 {offsets = [0, 1], sizes = [24, 24], strides = [1, 1]} : vector<28x28xf32> to vector<24x24xf32>
    %4 = vector.extract_strided_slice %1 {offsets = [0, 2], sizes = [24, 24], strides = [1, 1]} : vector<28x28xf32> to vector<24x24xf32>
    %5 = vector.extract_strided_slice %1 {offsets = [0, 3], sizes = [24, 24], strides = [1, 1]} : vector<28x28xf32> to vector<24x24xf32>
    %6 = vector.extract_strided_slice %1 {offsets = [0, 4], sizes = [24, 24], strides = [1, 1]} : vector<28x28xf32> to vector<24x24xf32>
    %7 = vector.extract_strided_slice %1 {offsets = [1, 0], sizes = [24, 24], strides = [1, 1]} : vector<28x28xf32> to vector<24x24xf32>
    %8 = vector.extract_strided_slice %1 {offsets = [1, 1], sizes = [24, 24], strides = [1, 1]} : vector<28x28xf32> to vector<24x24xf32>
    %9 = vector.extract_strided_slice %1 {offsets = [1, 2], sizes = [24, 24], strides = [1, 1]} : vector<28x28xf32> to vector<24x24xf32>
    %10 = vector.extract_strided_slice %1 {offsets = [1, 3], sizes = [24, 24], strides = [1, 1]} : vector<28x28xf32> to vector<24x24xf32>
    %11 = vector.extract_strided_slice %1 {offsets = [1, 4], sizes = [24, 24], strides = [1, 1]} : vector<28x28xf32> to vector<24x24xf32>
    %12 = vector.extract_strided_slice %1 {offsets = [2, 0], sizes = [24, 24], strides = [1, 1]} : vector<28x28xf32> to vector<24x24xf32>
    %13 = vector.extract_strided_slice %1 {offsets = [2, 1], sizes = [24, 24], strides = [1, 1]} : vector<28x28xf32> to vector<24x24xf32>
    %14 = vector.extract_strided_slice %1 {offsets = [2, 2], sizes = [24, 24], strides = [1, 1]} : vector<28x28xf32> to vector<24x24xf32>
    %15 = vector.extract_strided_slice %1 {offsets = [2, 3], sizes = [24, 24], strides = [1, 1]} : vector<28x28xf32> to vector<24x24xf32>
    %16 = vector.extract_strided_slice %1 {offsets = [2, 4], sizes = [24, 24], strides = [1, 1]} : vector<28x28xf32> to vector<24x24xf32>
    %17 = vector.extract_strided_slice %1 {offsets = [3, 0], sizes = [24, 24], strides = [1, 1]} : vector<28x28xf32> to vector<24x24xf32>
    %18 = vector.extract_strided_slice %1 {offsets = [3, 1], sizes = [24, 24], strides = [1, 1]} : vector<28x28xf32> to vector<24x24xf32>
    %19 = vector.extract_strided_slice %1 {offsets = [3, 2], sizes = [24, 24], strides = [1, 1]} : vector<28x28xf32> to vector<24x24xf32>
    %20 = vector.extract_strided_slice %1 {offsets = [3, 3], sizes = [24, 24], strides = [1, 1]} : vector<28x28xf32> to vector<24x24xf32>
    %21 = vector.extract_strided_slice %1 {offsets = [3, 4], sizes = [24, 24], strides = [1, 1]} : vector<28x28xf32> to vector<24x24xf32>
    %22 = vector.extract_strided_slice %1 {offsets = [4, 0], sizes = [24, 24], strides = [1, 1]} : vector<28x28xf32> to vector<24x24xf32>
    %23 = vector.extract_strided_slice %1 {offsets = [4, 1], sizes = [24, 24], strides = [1, 1]} : vector<28x28xf32> to vector<24x24xf32>
    %24 = vector.extract_strided_slice %1 {offsets = [4, 2], sizes = [24, 24], strides = [1, 1]} : vector<28x28xf32> to vector<24x24xf32>
    %25 = vector.extract_strided_slice %1 {offsets = [4, 3], sizes = [24, 24], strides = [1, 1]} : vector<28x28xf32> to vector<24x24xf32>
    %26 = vector.extract_strided_slice %1 {offsets = [4, 4], sizes = [24, 24], strides = [1, 1]} : vector<28x28xf32> to vector<24x24xf32>
    %27 = vector.shape_cast %2 : vector<24x24xf32> to vector<24x24x1xf32>
    %28 = vector.shape_cast %3 : vector<24x24xf32> to vector<24x24x1xf32>
    %29 = vector.shape_cast %4 : vector<24x24xf32> to vector<24x24x1xf32>
    %30 = vector.shape_cast %5 : vector<24x24xf32> to vector<24x24x1xf32>
    %31 = vector.shape_cast %6 : vector<24x24xf32> to vector<24x24x1xf32>
    %32 = vector.shape_cast %7 : vector<24x24xf32> to vector<24x24x1xf32>
    %33 = vector.shape_cast %8 : vector<24x24xf32> to vector<24x24x1xf32>
    %34 = vector.shape_cast %9 : vector<24x24xf32> to vector<24x24x1xf32>
    %35 = vector.shape_cast %10 : vector<24x24xf32> to vector<24x24x1xf32>
    %36 = vector.shape_cast %11 : vector<24x24xf32> to vector<24x24x1xf32>
    %37 = vector.shape_cast %12 : vector<24x24xf32> to vector<24x24x1xf32>
    %38 = vector.shape_cast %13 : vector<24x24xf32> to vector<24x24x1xf32>
    %39 = vector.shape_cast %14 : vector<24x24xf32> to vector<24x24x1xf32>
    %40 = vector.shape_cast %15 : vector<24x24xf32> to vector<24x24x1xf32>
    %41 = vector.shape_cast %16 : vector<24x24xf32> to vector<24x24x1xf32>
    %42 = vector.shape_cast %17 : vector<24x24xf32> to vector<24x24x1xf32>
    %43 = vector.shape_cast %18 : vector<24x24xf32> to vector<24x24x1xf32>
    %44 = vector.shape_cast %19 : vector<24x24xf32> to vector<24x24x1xf32>
    %45 = vector.shape_cast %20 : vector<24x24xf32> to vector<24x24x1xf32>
    %46 = vector.shape_cast %21 : vector<24x24xf32> to vector<24x24x1xf32>
    %47 = vector.shape_cast %22 : vector<24x24xf32> to vector<24x24x1xf32>
    %48 = vector.shape_cast %23 : vector<24x24xf32> to vector<24x24x1xf32>
    %49 = vector.shape_cast %24 : vector<24x24xf32> to vector<24x24x1xf32>
    %50 = vector.shape_cast %25 : vector<24x24xf32> to vector<24x24x1xf32>
    %51 = vector.shape_cast %26 : vector<24x24xf32> to vector<24x24x1xf32>
    %52 = tpu.concatenate %27, %28, %29, %30, %31, %32, %33, %34, %35, %36, %37, %38, %39, %40, %41, %42 in 2 : vector<24x24x1xf32>, vector<24x24x1xf32>, vector<24x24x1xf32>, vector<24x24x1xf32>, vector<24x24x1xf32>, vector<24x24x1xf32>, vector<24x24x1xf32>, vector<24x24x1xf32>, vector<24x24x1xf32>, vector<24x24x1xf32>, vector<24x24x1xf32>, vector<24x24x1xf32>, vector<24x24x1xf32>, vector<24x24x1xf32>, vector<24x24x1xf32>, vector<24x24x1xf32> -> vector<24x24x16xf32>
    %53 = tpu.concatenate %43, %44, %45, %46, %47, %48, %49, %50, %51 in 2 : vector<24x24x1xf32>, vector<24x24x1xf32>, vector<24x24x1xf32>, vector<24x24x1xf32>, vector<24x24x1xf32>, vector<24x24x1xf32>, vector<24x24x1xf32>, vector<24x24x1xf32>, vector<24x24x1xf32> -> vector<24x24x9xf32>
    %54 = tpu.concatenate %52, %53 in 2 : vector<24x24x16xf32>, vector<24x24x9xf32> -> vector<24x24x25xf32>
    %55 = vector.shape_cast %54 : vector<24x24x25xf32> to vector<576x25xf32>
    %56 = arith.truncf %55 : vector<576x25xf32> to vector<576x25xbf16>
    %c0_2 = arith.constant 0 : index
    %c0_3 = arith.constant 0 : index
    %57 = vector.load %arg2[%c0_2, %c0_3] : memref<25x128xbf16, #tpu.memory_space<vmem>>, vector<25x128xbf16>
    %cst = arith.constant dense<0.000000e+00> : vector<576x128xf32>
    %58 = tpu.matmul %56, %57, %cst {dimension_numbers = #tpu.dot_dimension_numbers<[1], [0], [0], [1], [0, 0, 1, 1], [], []>} : vector<576x25xbf16>, vector<25x128xbf16>, vector<576x128xf32> -> vector<576x128xf32>
    %c0_4 = arith.constant 0 : index
    %c0_5 = arith.constant 0 : index
    %59 = vector.load %arg3[%c0_4, %c0_5] : memref<1x128xf32, #tpu.memory_space<vmem>>, vector<1x128xf32>
    %60 = vector.broadcast %59 : vector<1x128xf32> to vector<576x128xf32>
    %61 = arith.addf %58, %60 : vector<576x128xf32>
    %cst_6 = arith.constant 0.000000e+00 : f32
    %62 = vector.broadcast %cst_6 : f32 to vector<576x128xf32>
    %63 = arith.maximumf %61, %62 : vector<576x128xf32>
    %64 = vector.shape_cast %63 : vector<576x128xf32> to vector<24x24x128xf32>
    %c0_7 = arith.constant 0 : index
    %c0_8 = arith.constant 0 : index
    %c0_9 = arith.constant 0 : index
    %65 = vector.load %arg9[%c0_7, %c0_8, %c0_9] : memref<24x24x128xf32, #tpu.memory_space<vmem>>, vector<24x24x128xf32>
    tpu.vector_store %arg9[%c0_7, %c0_8, %c0_9], %64 {strides = array<i32>} : memref<24x24x128xf32, #tpu.memory_space<vmem>>, vector<24x24x128xf32>,
    %c0_10 = arith.constant 0 : index
    %c0_11 = arith.constant 0 : index
    %c0_12 = arith.constant 0 : index
    %66 = tpu.strided_load %arg9[%c0_10, %c0_11, %c0_12] {strides = array<i32: 2, 1, 1>} : memref<24x24x128xf32, #tpu.memory_space<vmem>>, vector<12x24x128xf32>
    %c1 = arith.constant 1 : index
    %c0_13 = arith.constant 0 : index
    %c0_14 = arith.constant 0 : index
    %67 = tpu.strided_load %arg9[%c1, %c0_13, %c0_14] {strides = array<i32: 2, 1, 1>} : memref<24x24x128xf32, #tpu.memory_space<vmem>>, vector<12x24x128xf32>
    %68 = arith.maximumf %66, %67 : vector<12x24x128xf32>
    %c0_15 = arith.constant 0 : index
    %c0_16 = arith.constant 0 : index
    %c0_17 = arith.constant 0 : index
    %69 = vector.load %arg10[%c0_15, %c0_16, %c0_17] : memref<12x24x128xf32, #tpu.memory_space<vmem>>, vector<12x24x128xf32>
    tpu.vector_store %arg10[%c0_15, %c0_16, %c0_17], %68 {strides = array<i32>} : memref<12x24x128xf32, #tpu.memory_space<vmem>>, vector<12x24x128xf32>,
    %c0_18 = arith.constant 0 : index
    %c0_19 = arith.constant 0 : index
    %c0_20 = arith.constant 0 : index
    %70 = tpu.strided_load %arg10[%c0_18, %c0_19, %c0_20] {strides = array<i32: 1, 2, 1>} : memref<12x24x128xf32, #tpu.memory_space<vmem>>, vector<12x12x128xf32>
    %c0_21 = arith.constant 0 : index
    %c1_22 = arith.constant 1 : index
    %c0_23 = arith.constant 0 : index
    %71 = tpu.strided_load %arg10[%c0_21, %c1_22, %c0_23] {strides = array<i32: 1, 2, 1>} : memref<12x24x128xf32, #tpu.memory_space<vmem>>, vector<12x12x128xf32>
    %72 = arith.maximumf %70, %71 : vector<12x12x128xf32>
    %73 = vector.extract_strided_slice %72 {offsets = [0, 0, 0], sizes = [12, 12, 10], strides = [1, 1, 1]} : vector<12x12x128xf32> to vector<12x12x10xf32>
    %cst_24 = arith.constant 0.000000e+00 : f32
    %74 = vector.broadcast %cst_24 : f32 to vector<64x128xf32>
    %75 = vector.extract_strided_slice %73 {offsets = [0, 0, 0], sizes = [8, 8, 10], strides = [1, 1, 1]} : vector<12x12x10xf32> to vector<8x8x10xf32>
    %76 = vector.shape_cast %75 : vector<8x8x10xf32> to vector<64x10xf32>
    %77 = arith.truncf %76 : vector<64x10xf32> to vector<64x10xbf16>
    %c0_25 = arith.constant 0 : index
    %c0_26 = arith.constant 0 : index
    %c0_27 = arith.constant 0 : index
    %78 = vector.load %arg4[%c0_25, %c0_26, %c0_27] : memref<25x10x128xbf16, #tpu.memory_space<vmem>>, vector<1x10x128xbf16>
    %79 = vector.shape_cast %78 : vector<1x10x128xbf16> to vector<10x128xbf16>
    %cst_28 = arith.constant dense<0.000000e+00> : vector<64x128xf32>
    %80 = tpu.matmul %77, %79, %cst_28 {dimension_numbers = #tpu.dot_dimension_numbers<[1], [0], [0], [1], [0, 0, 1, 1], [], []>} : vector<64x10xbf16>, vector<10x128xbf16>, vector<64x128xf32> -> vector<64x128xf32>
    %81 = arith.addf %74, %80 : vector<64x128xf32>
    %82 = vector.extract_strided_slice %73 {offsets = [0, 1, 0], sizes = [8, 8, 10], strides = [1, 1, 1]} : vector<12x12x10xf32> to vector<8x8x10xf32>
    %83 = vector.shape_cast %82 : vector<8x8x10xf32> to vector<64x10xf32>
    %84 = arith.truncf %83 : vector<64x10xf32> to vector<64x10xbf16>
    %c1_29 = arith.constant 1 : index
    %c0_30 = arith.constant 0 : index
    %c0_31 = arith.constant 0 : index
    %85 = vector.load %arg4[%c1_29, %c0_30, %c0_31] : memref<25x10x128xbf16, #tpu.memory_space<vmem>>, vector<1x10x128xbf16>
    %86 = vector.shape_cast %85 : vector<1x10x128xbf16> to vector<10x128xbf16>
    %cst_32 = arith.constant dense<0.000000e+00> : vector<64x128xf32>
    %87 = tpu.matmul %84, %86, %cst_32 {dimension_numbers = #tpu.dot_dimension_numbers<[1], [0], [0], [1], [0, 0, 1, 1], [], []>} : vector<64x10xbf16>, vector<10x128xbf16>, vector<64x128xf32> -> vector<64x128xf32>
    %88 = arith.addf %81, %87 : vector<64x128xf32>
    %89 = vector.extract_strided_slice %73 {offsets = [0, 2, 0], sizes = [8, 8, 10], strides = [1, 1, 1]} : vector<12x12x10xf32> to vector<8x8x10xf32>
    %90 = vector.shape_cast %89 : vector<8x8x10xf32> to vector<64x10xf32>
    %91 = arith.truncf %90 : vector<64x10xf32> to vector<64x10xbf16>
    %c2 = arith.constant 2 : index
    %c0_33 = arith.constant 0 : index
    %c0_34 = arith.constant 0 : index
    %92 = vector.load %arg4[%c2, %c0_33, %c0_34] : memref<25x10x128xbf16, #tpu.memory_space<vmem>>, vector<1x10x128xbf16>
    %93 = vector.shape_cast %92 : vector<1x10x128xbf16> to vector<10x128xbf16>
    %cst_35 = arith.constant dense<0.000000e+00> : vector<64x128xf32>
    %94 = tpu.matmul %91, %93, %cst_35 {dimension_numbers = #tpu.dot_dimension_numbers<[1], [0], [0], [1], [0, 0, 1, 1], [], []>} : vector<64x10xbf16>, vector<10x128xbf16>, vector<64x128xf32> -> vector<64x128xf32>
    %95 = arith.addf %88, %94 : vector<64x128xf32>
    %96 = vector.extract_strided_slice %73 {offsets = [0, 3, 0], sizes = [8, 8, 10], strides = [1, 1, 1]} : vector<12x12x10xf32> to vector<8x8x10xf32>
    %97 = vector.shape_cast %96 : vector<8x8x10xf32> to vector<64x10xf32>
    %98 = arith.truncf %97 : vector<64x10xf32> to vector<64x10xbf16>
    %c3 = arith.constant 3 : index
    %c0_36 = arith.constant 0 : index
    %c0_37 = arith.constant 0 : index
    %99 = vector.load %arg4[%c3, %c0_36, %c0_37] : memref<25x10x128xbf16, #tpu.memory_space<vmem>>, vector<1x10x128xbf16>
    %100 = vector.shape_cast %99 : vector<1x10x128xbf16> to vector<10x128xbf16>
    %cst_38 = arith.constant dense<0.000000e+00> : vector<64x128xf32>
    %101 = tpu.matmul %98, %100, %cst_38 {dimension_numbers = #tpu.dot_dimension_numbers<[1], [0], [0], [1], [0, 0, 1, 1], [], []>} : vector<64x10xbf16>, vector<10x128xbf16>, vector<64x128xf32> -> vector<64x128xf32>
    %102 = arith.addf %95, %101 : vector<64x128xf32>
    %103 = vector.extract_strided_slice %73 {offsets = [0, 4, 0], sizes = [8, 8, 10], strides = [1, 1, 1]} : vector<12x12x10xf32> to vector<8x8x10xf32>
    %104 = vector.shape_cast %103 : vector<8x8x10xf32> to vector<64x10xf32>
    %105 = arith.truncf %104 : vector<64x10xf32> to vector<64x10xbf16>
    %c4 = arith.constant 4 : index
    %c0_39 = arith.constant 0 : index
    %c0_40 = arith.constant 0 : index
    %106 = vector.load %arg4[%c4, %c0_39, %c0_40] : memref<25x10x128xbf16, #tpu.memory_space<vmem>>, vector<1x10x128xbf16>
    %107 = vector.shape_cast %106 : vector<1x10x128xbf16> to vector<10x128xbf16>
    %cst_41 = arith.constant dense<0.000000e+00> : vector<64x128xf32>
    %108 = tpu.matmul %105, %107, %cst_41 {dimension_numbers = #tpu.dot_dimension_numbers<[1], [0], [0], [1], [0, 0, 1, 1], [], []>} : vector<64x10xbf16>, vector<10x128xbf16>, vector<64x128xf32> -> vector<64x128xf32>
    %109 = arith.addf %102, %108 : vector<64x128xf32>
    %110 = vector.extract_strided_slice %73 {offsets = [1, 0, 0], sizes = [8, 8, 10], strides = [1, 1, 1]} : vector<12x12x10xf32> to vector<8x8x10xf32>
    %111 = vector.shape_cast %110 : vector<8x8x10xf32> to vector<64x10xf32>
    %112 = arith.truncf %111 : vector<64x10xf32> to vector<64x10xbf16>
    %c5 = arith.constant 5 : index
    %c0_42 = arith.constant 0 : index
    %c0_43 = arith.constant 0 : index
    %113 = vector.load %arg4[%c5, %c0_42, %c0_43] : memref<25x10x128xbf16, #tpu.memory_space<vmem>>, vector<1x10x128xbf16>
    %114 = vector.shape_cast %113 : vector<1x10x128xbf16> to vector<10x128xbf16>
    %cst_44 = arith.constant dense<0.000000e+00> : vector<64x128xf32>
    %115 = tpu.matmul %112, %114, %cst_44 {dimension_numbers = #tpu.dot_dimension_numbers<[1], [0], [0], [1], [0, 0, 1, 1], [], []>} : vector<64x10xbf16>, vector<10x128xbf16>, vector<64x128xf32> -> vector<64x128xf32>
    %116 = arith.addf %109, %115 : vector<64x128xf32>
    %117 = vector.extract_strided_slice %73 {offsets = [1, 1, 0], sizes = [8, 8, 10], strides = [1, 1, 1]} : vector<12x12x10xf32> to vector<8x8x10xf32>
    %118 = vector.shape_cast %117 : vector<8x8x10xf32> to vector<64x10xf32>
    %119 = arith.truncf %118 : vector<64x10xf32> to vector<64x10xbf16>
    %c6 = arith.constant 6 : index
    %c0_45 = arith.constant 0 : index
    %c0_46 = arith.constant 0 : index
    %120 = vector.load %arg4[%c6, %c0_45, %c0_46] : memref<25x10x128xbf16, #tpu.memory_space<vmem>>, vector<1x10x128xbf16>
    %121 = vector.shape_cast %120 : vector<1x10x128xbf16> to vector<10x128xbf16>
    %cst_47 = arith.constant dense<0.000000e+00> : vector<64x128xf32>
    %122 = tpu.matmul %119, %121, %cst_47 {dimension_numbers = #tpu.dot_dimension_numbers<[1], [0], [0], [1], [0, 0, 1, 1], [], []>} : vector<64x10xbf16>, vector<10x128xbf16>, vector<64x128xf32> -> vector<64x128xf32>
    %123 = arith.addf %116, %122 : vector<64x128xf32>
    %124 = vector.extract_strided_slice %73 {offsets = [1, 2, 0], sizes = [8, 8, 10], strides = [1, 1, 1]} : vector<12x12x10xf32> to vector<8x8x10xf32>
    %125 = vector.shape_cast %124 : vector<8x8x10xf32> to vector<64x10xf32>
    %126 = arith.truncf %125 : vector<64x10xf32> to vector<64x10xbf16>
    %c7 = arith.constant 7 : index
    %c0_48 = arith.constant 0 : index
    %c0_49 = arith.constant 0 : index
    %127 = vector.load %arg4[%c7, %c0_48, %c0_49] : memref<25x10x128xbf16, #tpu.memory_space<vmem>>, vector<1x10x128xbf16>
    %128 = vector.shape_cast %127 : vector<1x10x128xbf16> to vector<10x128xbf16>
    %cst_50 = arith.constant dense<0.000000e+00> : vector<64x128xf32>
    %129 = tpu.matmul %126, %128, %cst_50 {dimension_numbers = #tpu.dot_dimension_numbers<[1], [0], [0], [1], [0, 0, 1, 1], [], []>} : vector<64x10xbf16>, vector<10x128xbf16>, vector<64x128xf32> -> vector<64x128xf32>
    %130 = arith.addf %123, %129 : vector<64x128xf32>
    %131 = vector.extract_strided_slice %73 {offsets = [1, 3, 0], sizes = [8, 8, 10], strides = [1, 1, 1]} : vector<12x12x10xf32> to vector<8x8x10xf32>
    %132 = vector.shape_cast %131 : vector<8x8x10xf32> to vector<64x10xf32>
    %133 = arith.truncf %132 : vector<64x10xf32> to vector<64x10xbf16>
    %c8 = arith.constant 8 : index
    %c0_51 = arith.constant 0 : index
    %c0_52 = arith.constant 0 : index
    %134 = vector.load %arg4[%c8, %c0_51, %c0_52] : memref<25x10x128xbf16, #tpu.memory_space<vmem>>, vector<1x10x128xbf16>
    %135 = vector.shape_cast %134 : vector<1x10x128xbf16> to vector<10x128xbf16>
    %cst_53 = arith.constant dense<0.000000e+00> : vector<64x128xf32>
    %136 = tpu.matmul %133, %135, %cst_53 {dimension_numbers = #tpu.dot_dimension_numbers<[1], [0], [0], [1], [0, 0, 1, 1], [], []>} : vector<64x10xbf16>, vector<10x128xbf16>, vector<64x128xf32> -> vector<64x128xf32>
    %137 = arith.addf %130, %136 : vector<64x128xf32>
    %138 = vector.extract_strided_slice %73 {offsets = [1, 4, 0], sizes = [8, 8, 10], strides = [1, 1, 1]} : vector<12x12x10xf32> to vector<8x8x10xf32>
    %139 = vector.shape_cast %138 : vector<8x8x10xf32> to vector<64x10xf32>
    %140 = arith.truncf %139 : vector<64x10xf32> to vector<64x10xbf16>
    %c9 = arith.constant 9 : index
    %c0_54 = arith.constant 0 : index
    %c0_55 = arith.constant 0 : index
    %141 = vector.load %arg4[%c9, %c0_54, %c0_55] : memref<25x10x128xbf16, #tpu.memory_space<vmem>>, vector<1x10x128xbf16>
    %142 = vector.shape_cast %141 : vector<1x10x128xbf16> to vector<10x128xbf16>
    %cst_56 = arith.constant dense<0.000000e+00> : vector<64x128xf32>
    %143 = tpu.matmul %140, %142, %cst_56 {dimension_numbers = #tpu.dot_dimension_numbers<[1], [0], [0], [1], [0, 0, 1, 1], [], []>} : vector<64x10xbf16>, vector<10x128xbf16>, vector<64x128xf32> -> vector<64x128xf32>
    %144 = arith.addf %137, %143 : vector<64x128xf32>
    %145 = vector.extract_strided_slice %73 {offsets = [2, 0, 0], sizes = [8, 8, 10], strides = [1, 1, 1]} : vector<12x12x10xf32> to vector<8x8x10xf32>
    %146 = vector.shape_cast %145 : vector<8x8x10xf32> to vector<64x10xf32>
    %147 = arith.truncf %146 : vector<64x10xf32> to vector<64x10xbf16>
    %c10 = arith.constant 10 : index
    %c0_57 = arith.constant 0 : index
    %c0_58 = arith.constant 0 : index
    %148 = vector.load %arg4[%c10, %c0_57, %c0_58] : memref<25x10x128xbf16, #tpu.memory_space<vmem>>, vector<1x10x128xbf16>
    %149 = vector.shape_cast %148 : vector<1x10x128xbf16> to vector<10x128xbf16>
    %cst_59 = arith.constant dense<0.000000e+00> : vector<64x128xf32>
    %150 = tpu.matmul %147, %149, %cst_59 {dimension_numbers = #tpu.dot_dimension_numbers<[1], [0], [0], [1], [0, 0, 1, 1], [], []>} : vector<64x10xbf16>, vector<10x128xbf16>, vector<64x128xf32> -> vector<64x128xf32>
    %151 = arith.addf %144, %150 : vector<64x128xf32>
    %152 = vector.extract_strided_slice %73 {offsets = [2, 1, 0], sizes = [8, 8, 10], strides = [1, 1, 1]} : vector<12x12x10xf32> to vector<8x8x10xf32>
    %153 = vector.shape_cast %152 : vector<8x8x10xf32> to vector<64x10xf32>
    %154 = arith.truncf %153 : vector<64x10xf32> to vector<64x10xbf16>
    %c11 = arith.constant 11 : index
    %c0_60 = arith.constant 0 : index
    %c0_61 = arith.constant 0 : index
    %155 = vector.load %arg4[%c11, %c0_60, %c0_61] : memref<25x10x128xbf16, #tpu.memory_space<vmem>>, vector<1x10x128xbf16>
    %156 = vector.shape_cast %155 : vector<1x10x128xbf16> to vector<10x128xbf16>
    %cst_62 = arith.constant dense<0.000000e+00> : vector<64x128xf32>
    %157 = tpu.matmul %154, %156, %cst_62 {dimension_numbers = #tpu.dot_dimension_numbers<[1], [0], [0], [1], [0, 0, 1, 1], [], []>} : vector<64x10xbf16>, vector<10x128xbf16>, vector<64x128xf32> -> vector<64x128xf32>
    %158 = arith.addf %151, %157 : vector<64x128xf32>
    %159 = vector.extract_strided_slice %73 {offsets = [2, 2, 0], sizes = [8, 8, 10], strides = [1, 1, 1]} : vector<12x12x10xf32> to vector<8x8x10xf32>
    %160 = vector.shape_cast %159 : vector<8x8x10xf32> to vector<64x10xf32>
    %161 = arith.truncf %160 : vector<64x10xf32> to vector<64x10xbf16>
    %c12 = arith.constant 12 : index
    %c0_63 = arith.constant 0 : index
    %c0_64 = arith.constant 0 : index
    %162 = vector.load %arg4[%c12, %c0_63, %c0_64] : memref<25x10x128xbf16, #tpu.memory_space<vmem>>, vector<1x10x128xbf16>
    %163 = vector.shape_cast %162 : vector<1x10x128xbf16> to vector<10x128xbf16>
    %cst_65 = arith.constant dense<0.000000e+00> : vector<64x128xf32>
    %164 = tpu.matmul %161, %163, %cst_65 {dimension_numbers = #tpu.dot_dimension_numbers<[1], [0], [0], [1], [0, 0, 1, 1], [], []>} : vector<64x10xbf16>, vector<10x128xbf16>, vector<64x128xf32> -> vector<64x128xf32>
    %165 = arith.addf %158, %164 : vector<64x128xf32>
    %166 = vector.extract_strided_slice %73 {offsets = [2, 3, 0], sizes = [8, 8, 10], strides = [1, 1, 1]} : vector<12x12x10xf32> to vector<8x8x10xf32>
    %167 = vector.shape_cast %166 : vector<8x8x10xf32> to vector<64x10xf32>
    %168 = arith.truncf %167 : vector<64x10xf32> to vector<64x10xbf16>
    %c13 = arith.constant 13 : index
    %c0_66 = arith.constant 0 : index
    %c0_67 = arith.constant 0 : index
    %169 = vector.load %arg4[%c13, %c0_66, %c0_67] : memref<25x10x128xbf16, #tpu.memory_space<vmem>>, vector<1x10x128xbf16>
    %170 = vector.shape_cast %169 : vector<1x10x128xbf16> to vector<10x128xbf16>
    %cst_68 = arith.constant dense<0.000000e+00> : vector<64x128xf32>
    %171 = tpu.matmul %168, %170, %cst_68 {dimension_numbers = #tpu.dot_dimension_numbers<[1], [0], [0], [1], [0, 0, 1, 1], [], []>} : vector<64x10xbf16>, vector<10x128xbf16>, vector<64x128xf32> -> vector<64x128xf32>
    %172 = arith.addf %165, %171 : vector<64x128xf32>
    %173 = vector.extract_strided_slice %73 {offsets = [2, 4, 0], sizes = [8, 8, 10], strides = [1, 1, 1]} : vector<12x12x10xf32> to vector<8x8x10xf32>
    %174 = vector.shape_cast %173 : vector<8x8x10xf32> to vector<64x10xf32>
    %175 = arith.truncf %174 : vector<64x10xf32> to vector<64x10xbf16>
    %c14 = arith.constant 14 : index
    %c0_69 = arith.constant 0 : index
    %c0_70 = arith.constant 0 : index
    %176 = vector.load %arg4[%c14, %c0_69, %c0_70] : memref<25x10x128xbf16, #tpu.memory_space<vmem>>, vector<1x10x128xbf16>
    %177 = vector.shape_cast %176 : vector<1x10x128xbf16> to vector<10x128xbf16>
    %cst_71 = arith.constant dense<0.000000e+00> : vector<64x128xf32>
    %178 = tpu.matmul %175, %177, %cst_71 {dimension_numbers = #tpu.dot_dimension_numbers<[1], [0], [0], [1], [0, 0, 1, 1], [], []>} : vector<64x10xbf16>, vector<10x128xbf16>, vector<64x128xf32> -> vector<64x128xf32>
    %179 = arith.addf %172, %178 : vector<64x128xf32>
    %180 = vector.extract_strided_slice %73 {offsets = [3, 0, 0], sizes = [8, 8, 10], strides = [1, 1, 1]} : vector<12x12x10xf32> to vector<8x8x10xf32>
    %181 = vector.shape_cast %180 : vector<8x8x10xf32> to vector<64x10xf32>
    %182 = arith.truncf %181 : vector<64x10xf32> to vector<64x10xbf16>
    %c15 = arith.constant 15 : index
    %c0_72 = arith.constant 0 : index
    %c0_73 = arith.constant 0 : index
    %183 = vector.load %arg4[%c15, %c0_72, %c0_73] : memref<25x10x128xbf16, #tpu.memory_space<vmem>>, vector<1x10x128xbf16>
    %184 = vector.shape_cast %183 : vector<1x10x128xbf16> to vector<10x128xbf16>
    %cst_74 = arith.constant dense<0.000000e+00> : vector<64x128xf32>
    %185 = tpu.matmul %182, %184, %cst_74 {dimension_numbers = #tpu.dot_dimension_numbers<[1], [0], [0], [1], [0, 0, 1, 1], [], []>} : vector<64x10xbf16>, vector<10x128xbf16>, vector<64x128xf32> -> vector<64x128xf32>
    %186 = arith.addf %179, %185 : vector<64x128xf32>
    %187 = vector.extract_strided_slice %73 {offsets = [3, 1, 0], sizes = [8, 8, 10], strides = [1, 1, 1]} : vector<12x12x10xf32> to vector<8x8x10xf32>
    %188 = vector.shape_cast %187 : vector<8x8x10xf32> to vector<64x10xf32>
    %189 = arith.truncf %188 : vector<64x10xf32> to vector<64x10xbf16>
    %c16 = arith.constant 16 : index
    %c0_75 = arith.constant 0 : index
    %c0_76 = arith.constant 0 : index
    %190 = vector.load %arg4[%c16, %c0_75, %c0_76] : memref<25x10x128xbf16, #tpu.memory_space<vmem>>, vector<1x10x128xbf16>
    %191 = vector.shape_cast %190 : vector<1x10x128xbf16> to vector<10x128xbf16>
    %cst_77 = arith.constant dense<0.000000e+00> : vector<64x128xf32>
    %192 = tpu.matmul %189, %191, %cst_77 {dimension_numbers = #tpu.dot_dimension_numbers<[1], [0], [0], [1], [0, 0, 1, 1], [], []>} : vector<64x10xbf16>, vector<10x128xbf16>, vector<64x128xf32> -> vector<64x128xf32>
    %193 = arith.addf %186, %192 : vector<64x128xf32>
    %194 = vector.extract_strided_slice %73 {offsets = [3, 2, 0], sizes = [8, 8, 10], strides = [1, 1, 1]} : vector<12x12x10xf32> to vector<8x8x10xf32>
    %195 = vector.shape_cast %194 : vector<8x8x10xf32> to vector<64x10xf32>
    %196 = arith.truncf %195 : vector<64x10xf32> to vector<64x10xbf16>
    %c17 = arith.constant 17 : index
    %c0_78 = arith.constant 0 : index
    %c0_79 = arith.constant 0 : index
    %197 = vector.load %arg4[%c17, %c0_78, %c0_79] : memref<25x10x128xbf16, #tpu.memory_space<vmem>>, vector<1x10x128xbf16>
    %198 = vector.shape_cast %197 : vector<1x10x128xbf16> to vector<10x128xbf16>
    %cst_80 = arith.constant dense<0.000000e+00> : vector<64x128xf32>
    %199 = tpu.matmul %196, %198, %cst_80 {dimension_numbers = #tpu.dot_dimension_numbers<[1], [0], [0], [1], [0, 0, 1, 1], [], []>} : vector<64x10xbf16>, vector<10x128xbf16>, vector<64x128xf32> -> vector<64x128xf32>
    %200 = arith.addf %193, %199 : vector<64x128xf32>
    %201 = vector.extract_strided_slice %73 {offsets = [3, 3, 0], sizes = [8, 8, 10], strides = [1, 1, 1]} : vector<12x12x10xf32> to vector<8x8x10xf32>
    %202 = vector.shape_cast %201 : vector<8x8x10xf32> to vector<64x10xf32>
    %203 = arith.truncf %202 : vector<64x10xf32> to vector<64x10xbf16>
    %c18 = arith.constant 18 : index
    %c0_81 = arith.constant 0 : index
    %c0_82 = arith.constant 0 : index
    %204 = vector.load %arg4[%c18, %c0_81, %c0_82] : memref<25x10x128xbf16, #tpu.memory_space<vmem>>, vector<1x10x128xbf16>
    %205 = vector.shape_cast %204 : vector<1x10x128xbf16> to vector<10x128xbf16>
    %cst_83 = arith.constant dense<0.000000e+00> : vector<64x128xf32>
    %206 = tpu.matmul %203, %205, %cst_83 {dimension_numbers = #tpu.dot_dimension_numbers<[1], [0], [0], [1], [0, 0, 1, 1], [], []>} : vector<64x10xbf16>, vector<10x128xbf16>, vector<64x128xf32> -> vector<64x128xf32>
    %207 = arith.addf %200, %206 : vector<64x128xf32>
    %208 = vector.extract_strided_slice %73 {offsets = [3, 4, 0], sizes = [8, 8, 10], strides = [1, 1, 1]} : vector<12x12x10xf32> to vector<8x8x10xf32>
    %209 = vector.shape_cast %208 : vector<8x8x10xf32> to vector<64x10xf32>
    %210 = arith.truncf %209 : vector<64x10xf32> to vector<64x10xbf16>
    %c19 = arith.constant 19 : index
    %c0_84 = arith.constant 0 : index
    %c0_85 = arith.constant 0 : index
    %211 = vector.load %arg4[%c19, %c0_84, %c0_85] : memref<25x10x128xbf16, #tpu.memory_space<vmem>>, vector<1x10x128xbf16>
    %212 = vector.shape_cast %211 : vector<1x10x128xbf16> to vector<10x128xbf16>
    %cst_86 = arith.constant dense<0.000000e+00> : vector<64x128xf32>
    %213 = tpu.matmul %210, %212, %cst_86 {dimension_numbers = #tpu.dot_dimension_numbers<[1], [0], [0], [1], [0, 0, 1, 1], [], []>} : vector<64x10xbf16>, vector<10x128xbf16>, vector<64x128xf32> -> vector<64x128xf32>
    %214 = arith.addf %207, %213 : vector<64x128xf32>
    %215 = vector.extract_strided_slice %73 {offsets = [4, 0, 0], sizes = [8, 8, 10], strides = [1, 1, 1]} : vector<12x12x10xf32> to vector<8x8x10xf32>
    %216 = vector.shape_cast %215 : vector<8x8x10xf32> to vector<64x10xf32>
    %217 = arith.truncf %216 : vector<64x10xf32> to vector<64x10xbf16>
    %c20 = arith.constant 20 : index
    %c0_87 = arith.constant 0 : index
    %c0_88 = arith.constant 0 : index
    %218 = vector.load %arg4[%c20, %c0_87, %c0_88] : memref<25x10x128xbf16, #tpu.memory_space<vmem>>, vector<1x10x128xbf16>
    %219 = vector.shape_cast %218 : vector<1x10x128xbf16> to vector<10x128xbf16>
    %cst_89 = arith.constant dense<0.000000e+00> : vector<64x128xf32>
    %220 = tpu.matmul %217, %219, %cst_89 {dimension_numbers = #tpu.dot_dimension_numbers<[1], [0], [0], [1], [0, 0, 1, 1], [], []>} : vector<64x10xbf16>, vector<10x128xbf16>, vector<64x128xf32> -> vector<64x128xf32>
    %221 = arith.addf %214, %220 : vector<64x128xf32>
    %222 = vector.extract_strided_slice %73 {offsets = [4, 1, 0], sizes = [8, 8, 10], strides = [1, 1, 1]} : vector<12x12x10xf32> to vector<8x8x10xf32>
    %223 = vector.shape_cast %222 : vector<8x8x10xf32> to vector<64x10xf32>
    %224 = arith.truncf %223 : vector<64x10xf32> to vector<64x10xbf16>
    %c21 = arith.constant 21 : index
    %c0_90 = arith.constant 0 : index
    %c0_91 = arith.constant 0 : index
    %225 = vector.load %arg4[%c21, %c0_90, %c0_91] : memref<25x10x128xbf16, #tpu.memory_space<vmem>>, vector<1x10x128xbf16>
    %226 = vector.shape_cast %225 : vector<1x10x128xbf16> to vector<10x128xbf16>
    %cst_92 = arith.constant dense<0.000000e+00> : vector<64x128xf32>
    %227 = tpu.matmul %224, %226, %cst_92 {dimension_numbers = #tpu.dot_dimension_numbers<[1], [0], [0], [1], [0, 0, 1, 1], [], []>} : vector<64x10xbf16>, vector<10x128xbf16>, vector<64x128xf32> -> vector<64x128xf32>
    %228 = arith.addf %221, %227 : vector<64x128xf32>
    %229 = vector.extract_strided_slice %73 {offsets = [4, 2, 0], sizes = [8, 8, 10], strides = [1, 1, 1]} : vector<12x12x10xf32> to vector<8x8x10xf32>
    %230 = vector.shape_cast %229 : vector<8x8x10xf32> to vector<64x10xf32>
    %231 = arith.truncf %230 : vector<64x10xf32> to vector<64x10xbf16>
    %c22 = arith.constant 22 : index
    %c0_93 = arith.constant 0 : index
    %c0_94 = arith.constant 0 : index
    %232 = vector.load %arg4[%c22, %c0_93, %c0_94] : memref<25x10x128xbf16, #tpu.memory_space<vmem>>, vector<1x10x128xbf16>
    %233 = vector.shape_cast %232 : vector<1x10x128xbf16> to vector<10x128xbf16>
    %cst_95 = arith.constant dense<0.000000e+00> : vector<64x128xf32>
    %234 = tpu.matmul %231, %233, %cst_95 {dimension_numbers = #tpu.dot_dimension_numbers<[1], [0], [0], [1], [0, 0, 1, 1], [], []>} : vector<64x10xbf16>, vector<10x128xbf16>, vector<64x128xf32> -> vector<64x128xf32>
    %235 = arith.addf %228, %234 : vector<64x128xf32>
    %236 = vector.extract_strided_slice %73 {offsets = [4, 3, 0], sizes = [8, 8, 10], strides = [1, 1, 1]} : vector<12x12x10xf32> to vector<8x8x10xf32>
    %237 = vector.shape_cast %236 : vector<8x8x10xf32> to vector<64x10xf32>
    %238 = arith.truncf %237 : vector<64x10xf32> to vector<64x10xbf16>
    %c23 = arith.constant 23 : index
    %c0_96 = arith.constant 0 : index
    %c0_97 = arith.constant 0 : index
    %239 = vector.load %arg4[%c23, %c0_96, %c0_97] : memref<25x10x128xbf16, #tpu.memory_space<vmem>>, vector<1x10x128xbf16>
    %240 = vector.shape_cast %239 : vector<1x10x128xbf16> to vector<10x128xbf16>
    %cst_98 = arith.constant dense<0.000000e+00> : vector<64x128xf32>
    %241 = tpu.matmul %238, %240, %cst_98 {dimension_numbers = #tpu.dot_dimension_numbers<[1], [0], [0], [1], [0, 0, 1, 1], [], []>} : vector<64x10xbf16>, vector<10x128xbf16>, vector<64x128xf32> -> vector<64x128xf32>
    %242 = arith.addf %235, %241 : vector<64x128xf32>
    %243 = vector.extract_strided_slice %73 {offsets = [4, 4, 0], sizes = [8, 8, 10], strides = [1, 1, 1]} : vector<12x12x10xf32> to vector<8x8x10xf32>
    %244 = vector.shape_cast %243 : vector<8x8x10xf32> to vector<64x10xf32>
    %245 = arith.truncf %244 : vector<64x10xf32> to vector<64x10xbf16>
    %c24 = arith.constant 24 : index
    %c0_99 = arith.constant 0 : index
    %c0_100 = arith.constant 0 : index
    %246 = vector.load %arg4[%c24, %c0_99, %c0_100] : memref<25x10x128xbf16, #tpu.memory_space<vmem>>, vector<1x10x128xbf16>
    %247 = vector.shape_cast %246 : vector<1x10x128xbf16> to vector<10x128xbf16>
    %cst_101 = arith.constant dense<0.000000e+00> : vector<64x128xf32>
    %248 = tpu.matmul %245, %247, %cst_101 {dimension_numbers = #tpu.dot_dimension_numbers<[1], [0], [0], [1], [0, 0, 1, 1], [], []>} : vector<64x10xbf16>, vector<10x128xbf16>, vector<64x128xf32> -> vector<64x128xf32>
    %249 = arith.addf %242, %248 : vector<64x128xf32>
    %c0_102 = arith.constant 0 : index
    %c0_103 = arith.constant 0 : index
    %250 = vector.load %arg5[%c0_102, %c0_103] : memref<1x128xf32, #tpu.memory_space<vmem>>, vector<1x128xf32>
    %251 = vector.broadcast %250 : vector<1x128xf32> to vector<64x128xf32>
    %252 = arith.addf %249, %251 : vector<64x128xf32>
    %cst_104 = arith.constant 0.000000e+00 : f32
    %253 = vector.broadcast %cst_104 : f32 to vector<64x128xf32>
    %254 = arith.maximumf %252, %253 : vector<64x128xf32>
    %255 = vector.shape_cast %254 : vector<64x128xf32> to vector<8x8x128xf32>
    %c0_105 = arith.constant 0 : index
    %c0_106 = arith.constant 0 : index
    %c0_107 = arith.constant 0 : index
    %256 = vector.load %arg11[%c0_105, %c0_106, %c0_107] : memref<8x8x128xf32, #tpu.memory_space<vmem>>, vector<8x8x128xf32>
    tpu.vector_store %arg11[%c0_105, %c0_106, %c0_107], %255 {strides = array<i32>} : memref<8x8x128xf32, #tpu.memory_space<vmem>>, vector<8x8x128xf32>,
    %c0_108 = arith.constant 0 : index
    %c0_109 = arith.constant 0 : index
    %c0_110 = arith.constant 0 : index
    %257 = tpu.strided_load %arg11[%c0_108, %c0_109, %c0_110] {strides = array<i32: 2, 1, 1>} : memref<8x8x128xf32, #tpu.memory_space<vmem>>, vector<4x8x128xf32>
    %c1_111 = arith.constant 1 : index
    %c0_112 = arith.constant 0 : index
    %c0_113 = arith.constant 0 : index
    %258 = tpu.strided_load %arg11[%c1_111, %c0_112, %c0_113] {strides = array<i32: 2, 1, 1>} : memref<8x8x128xf32, #tpu.memory_space<vmem>>, vector<4x8x128xf32>
    %259 = arith.maximumf %257, %258 : vector<4x8x128xf32>
    %c0_114 = arith.constant 0 : index
    %c0_115 = arith.constant 0 : index
    %c0_116 = arith.constant 0 : index
    %260 = vector.load %arg12[%c0_114, %c0_115, %c0_116] : memref<4x8x128xf32, #tpu.memory_space<vmem>>, vector<4x8x128xf32>
    tpu.vector_store %arg12[%c0_114, %c0_115, %c0_116], %259 {strides = array<i32>} : memref<4x8x128xf32, #tpu.memory_space<vmem>>, vector<4x8x128xf32>,
    %c0_117 = arith.constant 0 : index
    %c0_118 = arith.constant 0 : index
    %c0_119 = arith.constant 0 : index
    %261 = tpu.strided_load %arg12[%c0_117, %c0_118, %c0_119] {strides = array<i32: 1, 2, 1>} : memref<4x8x128xf32, #tpu.memory_space<vmem>>, vector<4x4x128xf32>
    %c0_120 = arith.constant 0 : index
    %c1_121 = arith.constant 1 : index
    %c0_122 = arith.constant 0 : index
    %262 = tpu.strided_load %arg12[%c0_120, %c1_121, %c0_122] {strides = array<i32: 1, 2, 1>} : memref<4x8x128xf32, #tpu.memory_space<vmem>>, vector<4x4x128xf32>
    %263 = arith.maximumf %261, %262 : vector<4x4x128xf32>
    %cst_123 = arith.constant 0.000000e+00 : f32
    %264 = vector.broadcast %cst_123 : f32 to vector<1x10xf32>
    %265 = vector.extract_strided_slice %263 {offsets = [0, 0, 0], sizes = [1, 1, 128], strides = [1, 1, 1]} : vector<4x4x128xf32> to vector<1x1x128xf32>
    %266 = vector.shape_cast %265 : vector<1x1x128xf32> to vector<1x128xf32>
    %267 = arith.truncf %266 : vector<1x128xf32> to vector<1x128xbf16>
    %c0_124 = arith.constant 0 : index
    %c0_125 = arith.constant 0 : index
    %c0_126 = arith.constant 0 : index
    %268 = vector.load %arg6[%c0_124, %c0_125, %c0_126] : memref<16x128x10xbf16, #tpu.memory_space<vmem>>, vector<1x128x10xbf16>
    %269 = vector.shape_cast %268 : vector<1x128x10xbf16> to vector<128x10xbf16>
    %cst_127 = arith.constant dense<0.000000e+00> : vector<1x10xf32>
    %270 = tpu.matmul %267, %269, %cst_127 {dimension_numbers = #tpu.dot_dimension_numbers<[1], [0], [0], [1], [0, 0, 1, 1], [], []>} : vector<1x128xbf16>, vector<128x10xbf16>, vector<1x10xf32> -> vector<1x10xf32>
    %271 = arith.addf %264, %270 : vector<1x10xf32>
    %272 = vector.extract_strided_slice %263 {offsets = [0, 1, 0], sizes = [1, 1, 128], strides = [1, 1, 1]} : vector<4x4x128xf32> to vector<1x1x128xf32>
    %273 = vector.shape_cast %272 : vector<1x1x128xf32> to vector<1x128xf32>
    %274 = arith.truncf %273 : vector<1x128xf32> to vector<1x128xbf16>
    %c1_128 = arith.constant 1 : index
    %c0_129 = arith.constant 0 : index
    %c0_130 = arith.constant 0 : index
    %275 = vector.load %arg6[%c1_128, %c0_129, %c0_130] : memref<16x128x10xbf16, #tpu.memory_space<vmem>>, vector<1x128x10xbf16>
    %276 = vector.shape_cast %275 : vector<1x128x10xbf16> to vector<128x10xbf16>
    %cst_131 = arith.constant dense<0.000000e+00> : vector<1x10xf32>
    %277 = tpu.matmul %274, %276, %cst_131 {dimension_numbers = #tpu.dot_dimension_numbers<[1], [0], [0], [1], [0, 0, 1, 1], [], []>} : vector<1x128xbf16>, vector<128x10xbf16>, vector<1x10xf32> -> vector<1x10xf32>
    %278 = arith.addf %271, %277 : vector<1x10xf32>
    %279 = vector.extract_strided_slice %263 {offsets = [0, 2, 0], sizes = [1, 1, 128], strides = [1, 1, 1]} : vector<4x4x128xf32> to vector<1x1x128xf32>
    %280 = vector.shape_cast %279 : vector<1x1x128xf32> to vector<1x128xf32>
    %281 = arith.truncf %280 : vector<1x128xf32> to vector<1x128xbf16>
    %c2_132 = arith.constant 2 : index
    %c0_133 = arith.constant 0 : index
    %c0_134 = arith.constant 0 : index
    %282 = vector.load %arg6[%c2_132, %c0_133, %c0_134] : memref<16x128x10xbf16, #tpu.memory_space<vmem>>, vector<1x128x10xbf16>
    %283 = vector.shape_cast %282 : vector<1x128x10xbf16> to vector<128x10xbf16>
    %cst_135 = arith.constant dense<0.000000e+00> : vector<1x10xf32>
    %284 = tpu.matmul %281, %283, %cst_135 {dimension_numbers = #tpu.dot_dimension_numbers<[1], [0], [0], [1], [0, 0, 1, 1], [], []>} : vector<1x128xbf16>, vector<128x10xbf16>, vector<1x10xf32> -> vector<1x10xf32>
    %285 = arith.addf %278, %284 : vector<1x10xf32>
    %286 = vector.extract_strided_slice %263 {offsets = [0, 3, 0], sizes = [1, 1, 128], strides = [1, 1, 1]} : vector<4x4x128xf32> to vector<1x1x128xf32>
    %287 = vector.shape_cast %286 : vector<1x1x128xf32> to vector<1x128xf32>
    %288 = arith.truncf %287 : vector<1x128xf32> to vector<1x128xbf16>
    %c3_136 = arith.constant 3 : index
    %c0_137 = arith.constant 0 : index
    %c0_138 = arith.constant 0 : index
    %289 = vector.load %arg6[%c3_136, %c0_137, %c0_138] : memref<16x128x10xbf16, #tpu.memory_space<vmem>>, vector<1x128x10xbf16>
    %290 = vector.shape_cast %289 : vector<1x128x10xbf16> to vector<128x10xbf16>
    %cst_139 = arith.constant dense<0.000000e+00> : vector<1x10xf32>
    %291 = tpu.matmul %288, %290, %cst_139 {dimension_numbers = #tpu.dot_dimension_numbers<[1], [0], [0], [1], [0, 0, 1, 1], [], []>} : vector<1x128xbf16>, vector<128x10xbf16>, vector<1x10xf32> -> vector<1x10xf32>
    %292 = arith.addf %285, %291 : vector<1x10xf32>
    %293 = vector.extract_strided_slice %263 {offsets = [1, 0, 0], sizes = [1, 1, 128], strides = [1, 1, 1]} : vector<4x4x128xf32> to vector<1x1x128xf32>
    %294 = vector.shape_cast %293 : vector<1x1x128xf32> to vector<1x128xf32>
    %295 = arith.truncf %294 : vector<1x128xf32> to vector<1x128xbf16>
    %c4_140 = arith.constant 4 : index
    %c0_141 = arith.constant 0 : index
    %c0_142 = arith.constant 0 : index
    %296 = vector.load %arg6[%c4_140, %c0_141, %c0_142] : memref<16x128x10xbf16, #tpu.memory_space<vmem>>, vector<1x128x10xbf16>
    %297 = vector.shape_cast %296 : vector<1x128x10xbf16> to vector<128x10xbf16>
    %cst_143 = arith.constant dense<0.000000e+00> : vector<1x10xf32>
    %298 = tpu.matmul %295, %297, %cst_143 {dimension_numbers = #tpu.dot_dimension_numbers<[1], [0], [0], [1], [0, 0, 1, 1], [], []>} : vector<1x128xbf16>, vector<128x10xbf16>, vector<1x10xf32> -> vector<1x10xf32>
    %299 = arith.addf %292, %298 : vector<1x10xf32>
    %300 = vector.extract_strided_slice %263 {offsets = [1, 1, 0], sizes = [1, 1, 128], strides = [1, 1, 1]} : vector<4x4x128xf32> to vector<1x1x128xf32>
    %301 = vector.shape_cast %300 : vector<1x1x128xf32> to vector<1x128xf32>
    %302 = arith.truncf %301 : vector<1x128xf32> to vector<1x128xbf16>
    %c5_144 = arith.constant 5 : index
    %c0_145 = arith.constant 0 : index
    %c0_146 = arith.constant 0 : index
    %303 = vector.load %arg6[%c5_144, %c0_145, %c0_146] : memref<16x128x10xbf16, #tpu.memory_space<vmem>>, vector<1x128x10xbf16>
    %304 = vector.shape_cast %303 : vector<1x128x10xbf16> to vector<128x10xbf16>
    %cst_147 = arith.constant dense<0.000000e+00> : vector<1x10xf32>
    %305 = tpu.matmul %302, %304, %cst_147 {dimension_numbers = #tpu.dot_dimension_numbers<[1], [0], [0], [1], [0, 0, 1, 1], [], []>} : vector<1x128xbf16>, vector<128x10xbf16>, vector<1x10xf32> -> vector<1x10xf32>
    %306 = arith.addf %299, %305 : vector<1x10xf32>
    %307 = vector.extract_strided_slice %263 {offsets = [1, 2, 0], sizes = [1, 1, 128], strides = [1, 1, 1]} : vector<4x4x128xf32> to vector<1x1x128xf32>
    %308 = vector.shape_cast %307 : vector<1x1x128xf32> to vector<1x128xf32>
    %309 = arith.truncf %308 : vector<1x128xf32> to vector<1x128xbf16>
    %c6_148 = arith.constant 6 : index
    %c0_149 = arith.constant 0 : index
    %c0_150 = arith.constant 0 : index
    %310 = vector.load %arg6[%c6_148, %c0_149, %c0_150] : memref<16x128x10xbf16, #tpu.memory_space<vmem>>, vector<1x128x10xbf16>
    %311 = vector.shape_cast %310 : vector<1x128x10xbf16> to vector<128x10xbf16>
    %cst_151 = arith.constant dense<0.000000e+00> : vector<1x10xf32>
    %312 = tpu.matmul %309, %311, %cst_151 {dimension_numbers = #tpu.dot_dimension_numbers<[1], [0], [0], [1], [0, 0, 1, 1], [], []>} : vector<1x128xbf16>, vector<128x10xbf16>, vector<1x10xf32> -> vector<1x10xf32>
    %313 = arith.addf %306, %312 : vector<1x10xf32>
    %314 = vector.extract_strided_slice %263 {offsets = [1, 3, 0], sizes = [1, 1, 128], strides = [1, 1, 1]} : vector<4x4x128xf32> to vector<1x1x128xf32>
    %315 = vector.shape_cast %314 : vector<1x1x128xf32> to vector<1x128xf32>
    %316 = arith.truncf %315 : vector<1x128xf32> to vector<1x128xbf16>
    %c7_152 = arith.constant 7 : index
    %c0_153 = arith.constant 0 : index
    %c0_154 = arith.constant 0 : index
    %317 = vector.load %arg6[%c7_152, %c0_153, %c0_154] : memref<16x128x10xbf16, #tpu.memory_space<vmem>>, vector<1x128x10xbf16>
    %318 = vector.shape_cast %317 : vector<1x128x10xbf16> to vector<128x10xbf16>
    %cst_155 = arith.constant dense<0.000000e+00> : vector<1x10xf32>
    %319 = tpu.matmul %316, %318, %cst_155 {dimension_numbers = #tpu.dot_dimension_numbers<[1], [0], [0], [1], [0, 0, 1, 1], [], []>} : vector<1x128xbf16>, vector<128x10xbf16>, vector<1x10xf32> -> vector<1x10xf32>
    %320 = arith.addf %313, %319 : vector<1x10xf32>
    %321 = vector.extract_strided_slice %263 {offsets = [2, 0, 0], sizes = [1, 1, 128], strides = [1, 1, 1]} : vector<4x4x128xf32> to vector<1x1x128xf32>
    %322 = vector.shape_cast %321 : vector<1x1x128xf32> to vector<1x128xf32>
    %323 = arith.truncf %322 : vector<1x128xf32> to vector<1x128xbf16>
    %c8_156 = arith.constant 8 : index
    %c0_157 = arith.constant 0 : index
    %c0_158 = arith.constant 0 : index
    %324 = vector.load %arg6[%c8_156, %c0_157, %c0_158] : memref<16x128x10xbf16, #tpu.memory_space<vmem>>, vector<1x128x10xbf16>
    %325 = vector.shape_cast %324 : vector<1x128x10xbf16> to vector<128x10xbf16>
    %cst_159 = arith.constant dense<0.000000e+00> : vector<1x10xf32>
    %326 = tpu.matmul %323, %325, %cst_159 {dimension_numbers = #tpu.dot_dimension_numbers<[1], [0], [0], [1], [0, 0, 1, 1], [], []>} : vector<1x128xbf16>, vector<128x10xbf16>, vector<1x10xf32> -> vector<1x10xf32>
    %327 = arith.addf %320, %326 : vector<1x10xf32>
    %328 = vector.extract_strided_slice %263 {offsets = [2, 1, 0], sizes = [1, 1, 128], strides = [1, 1, 1]} : vector<4x4x128xf32> to vector<1x1x128xf32>
    %329 = vector.shape_cast %328 : vector<1x1x128xf32> to vector<1x128xf32>
    %330 = arith.truncf %329 : vector<1x128xf32> to vector<1x128xbf16>
    %c9_160 = arith.constant 9 : index
    %c0_161 = arith.constant 0 : index
    %c0_162 = arith.constant 0 : index
    %331 = vector.load %arg6[%c9_160, %c0_161, %c0_162] : memref<16x128x10xbf16, #tpu.memory_space<vmem>>, vector<1x128x10xbf16>
    %332 = vector.shape_cast %331 : vector<1x128x10xbf16> to vector<128x10xbf16>
    %cst_163 = arith.constant dense<0.000000e+00> : vector<1x10xf32>
    %333 = tpu.matmul %330, %332, %cst_163 {dimension_numbers = #tpu.dot_dimension_numbers<[1], [0], [0], [1], [0, 0, 1, 1], [], []>} : vector<1x128xbf16>, vector<128x10xbf16>, vector<1x10xf32> -> vector<1x10xf32>
    %334 = arith.addf %327, %333 : vector<1x10xf32>
    %335 = vector.extract_strided_slice %263 {offsets = [2, 2, 0], sizes = [1, 1, 128], strides = [1, 1, 1]} : vector<4x4x128xf32> to vector<1x1x128xf32>
    %336 = vector.shape_cast %335 : vector<1x1x128xf32> to vector<1x128xf32>
    %337 = arith.truncf %336 : vector<1x128xf32> to vector<1x128xbf16>
    %c10_164 = arith.constant 10 : index
    %c0_165 = arith.constant 0 : index
    %c0_166 = arith.constant 0 : index
    %338 = vector.load %arg6[%c10_164, %c0_165, %c0_166] : memref<16x128x10xbf16, #tpu.memory_space<vmem>>, vector<1x128x10xbf16>
    %339 = vector.shape_cast %338 : vector<1x128x10xbf16> to vector<128x10xbf16>
    %cst_167 = arith.constant dense<0.000000e+00> : vector<1x10xf32>
    %340 = tpu.matmul %337, %339, %cst_167 {dimension_numbers = #tpu.dot_dimension_numbers<[1], [0], [0], [1], [0, 0, 1, 1], [], []>} : vector<1x128xbf16>, vector<128x10xbf16>, vector<1x10xf32> -> vector<1x10xf32>
    %341 = arith.addf %334, %340 : vector<1x10xf32>
    %342 = vector.extract_strided_slice %263 {offsets = [2, 3, 0], sizes = [1, 1, 128], strides = [1, 1, 1]} : vector<4x4x128xf32> to vector<1x1x128xf32>
    %343 = vector.shape_cast %342 : vector<1x1x128xf32> to vector<1x128xf32>
    %344 = arith.truncf %343 : vector<1x128xf32> to vector<1x128xbf16>
    %c11_168 = arith.constant 11 : index
    %c0_169 = arith.constant 0 : index
    %c0_170 = arith.constant 0 : index
    %345 = vector.load %arg6[%c11_168, %c0_169, %c0_170] : memref<16x128x10xbf16, #tpu.memory_space<vmem>>, vector<1x128x10xbf16>
    %346 = vector.shape_cast %345 : vector<1x128x10xbf16> to vector<128x10xbf16>
    %cst_171 = arith.constant dense<0.000000e+00> : vector<1x10xf32>
    %347 = tpu.matmul %344, %346, %cst_171 {dimension_numbers = #tpu.dot_dimension_numbers<[1], [0], [0], [1], [0, 0, 1, 1], [], []>} : vector<1x128xbf16>, vector<128x10xbf16>, vector<1x10xf32> -> vector<1x10xf32>
    %348 = arith.addf %341, %347 : vector<1x10xf32>
    %349 = vector.extract_strided_slice %263 {offsets = [3, 0, 0], sizes = [1, 1, 128], strides = [1, 1, 1]} : vector<4x4x128xf32> to vector<1x1x128xf32>
    %350 = vector.shape_cast %349 : vector<1x1x128xf32> to vector<1x128xf32>
    %351 = arith.truncf %350 : vector<1x128xf32> to vector<1x128xbf16>
    %c12_172 = arith.constant 12 : index
    %c0_173 = arith.constant 0 : index
    %c0_174 = arith.constant 0 : index
    %352 = vector.load %arg6[%c12_172, %c0_173, %c0_174] : memref<16x128x10xbf16, #tpu.memory_space<vmem>>, vector<1x128x10xbf16>
    %353 = vector.shape_cast %352 : vector<1x128x10xbf16> to vector<128x10xbf16>
    %cst_175 = arith.constant dense<0.000000e+00> : vector<1x10xf32>
    %354 = tpu.matmul %351, %353, %cst_175 {dimension_numbers = #tpu.dot_dimension_numbers<[1], [0], [0], [1], [0, 0, 1, 1], [], []>} : vector<1x128xbf16>, vector<128x10xbf16>, vector<1x10xf32> -> vector<1x10xf32>
    %355 = arith.addf %348, %354 : vector<1x10xf32>
    %356 = vector.extract_strided_slice %263 {offsets = [3, 1, 0], sizes = [1, 1, 128], strides = [1, 1, 1]} : vector<4x4x128xf32> to vector<1x1x128xf32>
    %357 = vector.shape_cast %356 : vector<1x1x128xf32> to vector<1x128xf32>
    %358 = arith.truncf %357 : vector<1x128xf32> to vector<1x128xbf16>
    %c13_176 = arith.constant 13 : index
    %c0_177 = arith.constant 0 : index
    %c0_178 = arith.constant 0 : index
    %359 = vector.load %arg6[%c13_176, %c0_177, %c0_178] : memref<16x128x10xbf16, #tpu.memory_space<vmem>>, vector<1x128x10xbf16>
    %360 = vector.shape_cast %359 : vector<1x128x10xbf16> to vector<128x10xbf16>
    %cst_179 = arith.constant dense<0.000000e+00> : vector<1x10xf32>
    %361 = tpu.matmul %358, %360, %cst_179 {dimension_numbers = #tpu.dot_dimension_numbers<[1], [0], [0], [1], [0, 0, 1, 1], [], []>} : vector<1x128xbf16>, vector<128x10xbf16>, vector<1x10xf32> -> vector<1x10xf32>
    %362 = arith.addf %355, %361 : vector<1x10xf32>
    %363 = vector.extract_strided_slice %263 {offsets = [3, 2, 0], sizes = [1, 1, 128], strides = [1, 1, 1]} : vector<4x4x128xf32> to vector<1x1x128xf32>
    %364 = vector.shape_cast %363 : vector<1x1x128xf32> to vector<1x128xf32>
    %365 = arith.truncf %364 : vector<1x128xf32> to vector<1x128xbf16>
    %c14_180 = arith.constant 14 : index
    %c0_181 = arith.constant 0 : index
    %c0_182 = arith.constant 0 : index
    %366 = vector.load %arg6[%c14_180, %c0_181, %c0_182] : memref<16x128x10xbf16, #tpu.memory_space<vmem>>, vector<1x128x10xbf16>
    %367 = vector.shape_cast %366 : vector<1x128x10xbf16> to vector<128x10xbf16>
    %cst_183 = arith.constant dense<0.000000e+00> : vector<1x10xf32>
    %368 = tpu.matmul %365, %367, %cst_183 {dimension_numbers = #tpu.dot_dimension_numbers<[1], [0], [0], [1], [0, 0, 1, 1], [], []>} : vector<1x128xbf16>, vector<128x10xbf16>, vector<1x10xf32> -> vector<1x10xf32>
    %369 = arith.addf %362, %368 : vector<1x10xf32>
    %370 = vector.extract_strided_slice %263 {offsets = [3, 3, 0], sizes = [1, 1, 128], strides = [1, 1, 1]} : vector<4x4x128xf32> to vector<1x1x128xf32>
    %371 = vector.shape_cast %370 : vector<1x1x128xf32> to vector<1x128xf32>
    %372 = arith.truncf %371 : vector<1x128xf32> to vector<1x128xbf16>
    %c15_184 = arith.constant 15 : index
    %c0_185 = arith.constant 0 : index
    %c0_186 = arith.constant 0 : index
    %373 = vector.load %arg6[%c15_184, %c0_185, %c0_186] : memref<16x128x10xbf16, #tpu.memory_space<vmem>>, vector<1x128x10xbf16>
    %374 = vector.shape_cast %373 : vector<1x128x10xbf16> to vector<128x10xbf16>
    %cst_187 = arith.constant dense<0.000000e+00> : vector<1x10xf32>
    %375 = tpu.matmul %372, %374, %cst_187 {dimension_numbers = #tpu.dot_dimension_numbers<[1], [0], [0], [1], [0, 0, 1, 1], [], []>} : vector<1x128xbf16>, vector<128x10xbf16>, vector<1x10xf32> -> vector<1x10xf32>
    %376 = arith.addf %369, %375 : vector<1x10xf32>
    %c0_188 = arith.constant 0 : index
    %c0_189 = arith.constant 0 : index
    %377 = vector.load %arg7[%c0_188, %c0_189] : memref<1x10xf32, #tpu.memory_space<vmem>>, vector<1x10xf32>
    %378 = arith.addf %376, %377 : vector<1x10xf32>
    %cst_190 = arith.constant dense<0xFF800000> : vector<1xf32>
    %379 = vector.multi_reduction <maximumf>, %378, %cst_190 [1] : vector<1x10xf32> to vector<1xf32>
    %380 = vector.shape_cast %379 : vector<1xf32> to vector<1x1xf32>
    %381 = vector.broadcast %380 : vector<1x1xf32> to vector<1x10xf32>
    %382 = arith.subf %378, %381 : vector<1x10xf32>
    %383 = math.exp %382 : vector<1x10xf32>
    %cst_191 = arith.constant dense<0.000000e+00> : vector<1xf32>
    %384 = vector.multi_reduction <add>, %383, %cst_191 [1] : vector<1x10xf32> to vector<1xf32>
    %385 = vector.shape_cast %384 : vector<1xf32> to vector<1x1xf32>
    %386 = math.log %385 : vector<1x1xf32>
    %387 = vector.broadcast %386 : vector<1x1xf32> to vector<1x10xf32>
    %388 = arith.subf %382, %387 : vector<1x10xf32>
    %c0_192 = arith.constant 0 : index
    %c0_193 = arith.constant 0 : index
    %c0_194 = arith.constant 0 : index
    %389 = vector.load %arg8[%c0_192, %c0_193, %c0_194] : memref<1x1x10xf32, #tpu.memory_space<vmem>>, vector<1x1x10xf32>
    %390 = vector.shape_cast %389 : vector<1x1x10xf32> to vector<1x10xf32>
    %391 = vector.shape_cast %388 : vector<1x10xf32> to vector<1x1x10xf32>
    tpu.vector_store %arg8[%c0_192, %c0_193, %c0_194], %391 {strides = array<i32>} : memref<1x1x10xf32, #tpu.memory_space<vmem>>, vector<1x1x10xf32>,
    return
  }
  func.func @transform_0(%arg0: i32) -> (i32, i32, i32) {
    %c0_i32 = arith.constant 0 : i32
    %c0_i32_0 = arith.constant 0 : i32
    %c0_i32_1 = arith.constant 0 : i32
    return %arg0, %c0_i32, %c0_i32_0 : i32, i32, i32
  }
  func.func @transform_1(%arg0: i32) -> (i32, i32) {
    %c0_i32 = arith.constant 0 : i32
    %c0_i32_0 = arith.constant 0 : i32
    %c0_i32_1 = arith.constant 0 : i32
    return %c0_i32, %c0_i32_0 : i32, i32
  }
  func.func @transform_2(%arg0: i32) -> (i32, i32) {
    %c0_i32 = arith.constant 0 : i32
    %c0_i32_0 = arith.constant 0 : i32
    %c0_i32_1 = arith.constant 0 : i32
    return %c0_i32, %c0_i32_0 : i32, i32
  }
  func.func @transform_3(%arg0: i32) -> (i32, i32, i32) {
    %c0_i32 = arith.constant 0 : i32
    %c0_i32_0 = arith.constant 0 : i32
    %c0_i32_1 = arith.constant 0 : i32
    %c0_i32_2 = arith.constant 0 : i32
    return %c0_i32, %c0_i32_0, %c0_i32_1 : i32, i32, i32
  }
  func.func @transform_4(%arg0: i32) -> (i32, i32) {
    %c0_i32 = arith.constant 0 : i32
    %c0_i32_0 = arith.constant 0 : i32
    %c0_i32_1 = arith.constant 0 : i32
    return %c0_i32, %c0_i32_0 : i32, i32
  }
  func.func @transform_5(%arg0: i32) -> (i32, i32, i32) {
    %c0_i32 = arith.constant 0 : i32
    %c0_i32_0 = arith.constant 0 : i32
    %c0_i32_1 = arith.constant 0 : i32
    %c0_i32_2 = arith.constant 0 : i32
    return %c0_i32, %c0_i32_0, %c0_i32_1 : i32, i32, i32
  }
  func.func @transform_6(%arg0: i32) -> (i32, i32) {
    %c0_i32 = arith.constant 0 : i32
    %c0_i32_0 = arith.constant 0 : i32
    %c0_i32_1 = arith.constant 0 : i32
    return %c0_i32, %c0_i32_0 : i32, i32
  }
  func.func @transform_7(%arg0: i32) -> (i32, i32, i32) {
    %c0_i32 = arith.constant 0 : i32
    %c0_i32_0 = arith.constant 0 : i32
    %c0_i32_1 = arith.constant 0 : i32
    return %arg0, %c0_i32, %c0_i32_0 : i32, i32, i32
  }
}

</mosaic_0001>

<llo_original>
// kernel: net_forward.1
$region0: #{net_forward.1}
  #allocation0 [shape = 'u32[]', space=smem, size = 0x4, offset = 0x4, fixed_abs, tag = 'smem constant byte address 0x4 - core index']
  #allocation1 [shape = 'u32[144,128]{1,0:T(1,128)}', space=vmem, size = 0x12000, scoped, tag = 'internal scratch']
  #allocation2 [shape = 'f32[24,24,128]{2,1,0:T(8,128)}', space=vmem, size = 0x48000, scoped, tag = 'scratch operand']
  #allocation3 [shape = 'f32[12,24,128]{2,1,0:T(8,128)}', space=vmem, size = 0x24000, scoped, tag = 'scratch operand']
  #allocation4 [shape = 'f32[8,8,128]{2,1,0:T(8,128)}', space=vmem, size = 0x8000, scoped, tag = 'scratch operand']
  #allocation5 [shape = 'f32[4,8,128]{2,1,0:T(8,128)}', space=vmem, size = 0x4000, scoped, tag = 'scratch operand']
  %s0 = inlined_call_operand.vmem [shape: f32[2,28,28], index: 0, kind: input, shape index: {}]
  %s1 = inlined_call_operand.vmem [shape: bf16[25,128], index: 1, kind: input, shape index: {}]
  %s2 = inlined_call_operand.vmem [shape: f32[1,128], index: 2, kind: input, shape index: {}]
  %s3 = inlined_call_operand.vmem [shape: bf16[25,10,128], index: 3, kind: input, shape index: {}]
  %s4 = inlined_call_operand.vmem [shape: f32[1,128], index: 4, kind: input, shape index: {}]
  %s5 = inlined_call_operand.vmem [shape: bf16[16,128,10], index: 5, kind: input, shape index: {}]
  %s6 = inlined_call_operand.vmem [shape: f32[1,10], index: 6, kind: input, shape index: {}]
  %s7 = inlined_call_operand.hbm [shape: f32[2,1,10], index: 7, kind: output, shape index: {}]
  %s8 = sld [smem:[#allocation0]]
  $region61: #{net_forward.1} parent=0
    _
  %s10 = ssub.s32 1, %s8
  %s11 = scalar_select 0, %s10, %s8
  $region1: #{net_forward.1} parent=0
    #allocation6 [shape = 'u8[1024]{0}', space=vmem, size = 0x400, scoped, tag = 'output window, operand 0']
    #allocation7 [shape = 's32[2]{0}', space=sflag, size = 0x8, scoped, tag = 'scoped memory for net_forward.1']
    %12 = vsyncpa [#allocation7], 0
    %s13 = scalar_lea.sflag [#allocation7], 1
    %14 = vsyncpa %s13, 0
    loop: start=0, step=1, limit=4
    $region2: #{net_forward.1} parent=1 // loop_pre_header
      _
    $region3: #{net_forward.1} parent=1 // loop_header
      %s16 = sphi 0, %s20
      %p17 = scmp.ge.s32.totalorder %s16, 4
      %s26 = sphi 0, %s28
      %s29 = sphi 0, %s26
      %s30 = sphi 0, %s29
      %s46 = sphi 0, %s30
      %s50 = sphi 0, %s50
      %s52 = sphi 0, %s50
      %s53 = sphi 0, %s52
      %s67 = sphi 0, %s53
      %s71 = sphi 0, %s71
      %s73 = sphi 0, %s71
      %s74 = sphi 0, %s73
      %s88 = sphi 0, %s74
      %s92 = sphi 0, %s92
      %s94 = sphi 0, %s92
      %s95 = sphi 0, %s94
      %s109 = sphi 0, %s95
      %s113 = sphi 0, %s113
      %s115 = sphi 0, %s113
      %s116 = sphi 0, %s115
      %s130 = sphi 0, %s116
      %s134 = sphi 0, %s134
      %s136 = sphi 0, %s134
      %s137 = sphi 0, %s136
      %s151 = sphi 0, %s137
      %s155 = sphi 0, %s155
      %s157 = sphi 0, %s155
      %s158 = sphi 0, %s157
      %s172 = sphi 0, %s158
      %s178 = sphi 0, %s180
      %s181 = sphi 0, %s178
      %s182 = sphi 0, %s181
      %s198 = sphi 0, %s182
    $region4: #{net_forward.1} parent=1 // loop_header_branch
      %19 = sbr.rel (%p17) target = $region8
    $region5: #{net_forward.1} parent=1 // loop_body
      %s21 = ssub.s32 %s16, 1
      %s22 = ssub.s32 %s16, 2
      %s23 = sadd.s32 %s16, 1
      %s24 = ssub.s32 %s16, %s23
      %p25 = scmp.eq.s32.totalorder %s24, 0
      %s27 = sadd.s32 %s26, 1
      %s28 = scalar_select %p25, %s26, %s27
      %p31 = pneg %p25
      %p32 = scmp.eq.s32.totalorder %s16, 1
      %p33 = por %p31, %p32
      %p34 = scmp.ne.s32.totalorder %s26, %s29
      %p35 = scmp.eq.s32.totalorder %s16, 0
      %p36 = por %p34, %p35
      %p37 = scmp.ne.s32.totalorder %s26, %s29
      %p38 = scmp.eq.s32.totalorder %s21, 1
      %p39 = por %p37, %p38
      %p40 = scmp.ne.s32.totalorder %s29, %s30
      %p41 = scmp.eq.s32.totalorder %s21, 0
      %p42 = por %p40, %p41
      %p43 = scmp.ne.s32.totalorder %s29, %s30
      %p44 = scmp.eq.s32.totalorder %s22, 1
      %p45 = por %p43, %p44
      %p47 = scmp.ne.s32.totalorder %s30, %s46
      %p48 = scmp.eq.s32.totalorder %s22, 0
      %p49 = por %p47, %p48
      %s51 = sadd.s32 %s50, 1
      %p54 = scmp.eq.s32.totalorder %s16, 1
      %p55 = scmp.ne.s32.totalorder %s50, %s52
      %p56 = scmp.eq.s32.totalorder %s16, 0
      %p57 = por %p55, %p56
      %p58 = scmp.ne.s32.totalorder %s50, %s52
      %p59 = scmp.eq.s32.totalorder %s21, 1
      %p60 = por %p58, %p59
      %p61 = scmp.ne.s32.totalorder %s52, %s53
      %p62 = scmp.eq.s32.totalorder %s21, 0
      %p63 = por %p61, %p62
      %p64 = scmp.ne.s32.totalorder %s52, %s53
      %p65 = scmp.eq.s32.totalorder %s22, 1
      %p66 = por %p64, %p65
      %p68 = scmp.ne.s32.totalorder %s53, %s67
      %p69 = scmp.eq.s32.totalorder %s22, 0
      %p70 = por %p68, %p69
      %s72 = sadd.s32 %s71, 1
      %p75 = scmp.eq.s32.totalorder %s16, 1
      %p76 = scmp.ne.s32.totalorder %s71, %s73
      %p77 = scmp.eq.s32.totalorder %s16, 0
      %p78 = por %p76, %p77
      %p79 = scmp.ne.s32.totalorder %s71, %s73
      %p80 = scmp.eq.s32.totalorder %s21, 1
      %p81 = por %p79, %p80
      %p82 = scmp.ne.s32.totalorder %s73, %s74
      %p83 = scmp.eq.s32.totalorder %s21, 0
      %p84 = por %p82, %p83
      %p85 = scmp.ne.s32.totalorder %s73, %s74
      %p86 = scmp.eq.s32.totalorder %s22, 1
      %p87 = por %p85, %p86
      %p89 = scmp.ne.s32.totalorder %s74, %s88
      %p90 = scmp.eq.s32.totalorder %s22, 0
      %p91 = por %p89, %p90
      %s93 = sadd.s32 %s92, 1
      %p96 = scmp.eq.s32.totalorder %s16, 1
      %p97 = scmp.ne.s32.totalorder %s92, %s94
      %p98 = scmp.eq.s32.totalorder %s16, 0
      %p99 = por %p97, %p98
      %p100 = scmp.ne.s32.totalorder %s92, %s94
      %p101 = scmp.eq.s32.totalorder %s21, 1
      %p102 = por %p100, %p101
      %p103 = scmp.ne.s32.totalorder %s94, %s95
      %p104 = scmp.eq.s32.totalorder %s21, 0
      %p105 = por %p103, %p104
      %p106 = scmp.ne.s32.totalorder %s94, %s95
      %p107 = scmp.eq.s32.totalorder %s22, 1
      %p108 = por %p106, %p107
      %p110 = scmp.ne.s32.totalorder %s95, %s109
      %p111 = scmp.eq.s32.totalorder %s22, 0
      %p112 = por %p110, %p111
      %s114 = sadd.s32 %s113, 1
      %p117 = scmp.eq.s32.totalorder %s16, 1
      %p118 = scmp.ne.s32.totalorder %s113, %s115
      %p119 = scmp.eq.s32.totalorder %s16, 0
      %p120 = por %p118, %p119
      %p121 = scmp.ne.s32.totalorder %s113, %s115
      %p122 = scmp.eq.s32.totalorder %s21, 1
      %p123 = por %p121, %p122
      %p124 = scmp.ne.s32.totalorder %s115, %s116
      %p125 = scmp.eq.s32.totalorder %s21, 0
      %p126 = por %p124, %p125
      %p127 = scmp.ne.s32.totalorder %s115, %s116
      %p128 = scmp.eq.s32.totalorder %s22, 1
      %p129 = por %p127, %p128
      %p131 = scmp.ne.s32.totalorder %s116, %s130
      %p132 = scmp.eq.s32.totalorder %s22, 0
      %p133 = por %p131, %p132
      %s135 = sadd.s32 %s134, 1
      %p138 = scmp.eq.s32.totalorder %s16, 1
      %p139 = scmp.ne.s32.totalorder %s134, %s136
      %p140 = scmp.eq.s32.totalorder %s16, 0
      %p141 = por %p139, %p140
      %p142 = scmp.ne.s32.totalorder %s134, %s136
      %p143 = scmp.eq.s32.totalorder %s21, 1
      %p144 = por %p142, %p143
      %p145 = scmp.ne.s32.totalorder %s136, %s137
      %p146 = scmp.eq.s32.totalorder %s21, 0
      %p147 = por %p145, %p146
      %p148 = scmp.ne.s32.totalorder %s136, %s137
      %p149 = scmp.eq.s32.totalorder %s22, 1
      %p150 = por %p148, %p149
      %p152 = scmp.ne.s32.totalorder %s137, %s151
      %p153 = scmp.eq.s32.totalorder %s22, 0
      %p154 = por %p152, %p153
      %s156 = sadd.s32 %s155, 1
      %p159 = scmp.eq.s32.totalorder %s16, 1
      %p160 = scmp.ne.s32.totalorder %s155, %s157
      %p161 = scmp.eq.s32.totalorder %s16, 0
      %p162 = por %p160, %p161
      %p163 = scmp.ne.s32.totalorder %s155, %s157
      %p164 = scmp.eq.s32.totalorder %s21, 1
      %p165 = por %p163, %p164
      %p166 = scmp.ne.s32.totalorder %s157, %s158
      %p167 = scmp.eq.s32.totalorder %s21, 0
      %p168 = por %p166, %p167
      %p169 = scmp.ne.s32.totalorder %s157, %s158
      %p170 = scmp.eq.s32.totalorder %s22, 1
      %p171 = por %p169, %p170
      %p173 = scmp.ne.s32.totalorder %s158, %s172
      %p174 = scmp.eq.s32.totalorder %s22, 0
      %p175 = por %p173, %p174
      %s176 = ssub.s32 %s16, %s23
      %p177 = scmp.eq.s32.totalorder %s176, 0
      %s179 = sadd.s32 %s178, 1
      %s180 = scalar_select %p177, %s178, %s179
      %p183 = pneg %p177
      %p184 = scmp.eq.s32.totalorder %s16, 1
      %p185 = por %p183, %p184
      %p186 = scmp.ne.s32.totalorder %s178, %s181
      %p187 = scmp.eq.s32.totalorder %s16, 0
      %p188 = por %p186, %p187
      %p189 = scmp.ne.s32.totalorder %s178, %s181
      %p190 = scmp.eq.s32.totalorder %s21, 1
      %p191 = por %p189, %p190
      %p192 = scmp.ne.s32.totalorder %s181, %s182
      %p193 = scmp.eq.s32.totalorder %s21, 0
      %p194 = por %p192, %p193
      %p195 = scmp.ne.s32.totalorder %s181, %s182
      %p196 = scmp.eq.s32.totalorder %s22, 1
      %p197 = por %p195, %p196
      %p199 = scmp.ne.s32.totalorder %s182, %s198
      %p200 = scmp.eq.s32.totalorder %s22, 0
      %p201 = por %p199, %p200
      %p202 = scmp.le.s32.totalorder 1, %s16
      %p203 = scmp.lt.s32.totalorder %s16, 3
      %p204 = pnand %p202, %p203
      %p205 = pneg %p204
      // Predicated region
      $region9: #{net_forward.1} parent=5 // pred_check
        _
      $region10: #{net_forward.1} parent=5 // pred_check_branch
        %207 = sbr.rel (%p204) target = $region12
      $region11: #{net_forward.1} parent=5 // pred_region
        %s208 = ssub.s32 %s16, 1
        // Predicated region
        $region13: #{net_forward.1} parent=11 // pred_check
          %p209 = pneg %p63
        $region14: #{net_forward.1} parent=11 // pred_check_branch
          %211 = sbr.rel (%p209) target = $region16
        $region15: #{net_forward.1} parent=11 // pred_region
          _
        $region16: #{net_forward.1} parent=11 // pred_fallthru
          _
        // Predicated region
        $region17: #{net_forward.1} parent=11 // pred_check
          %p212 = pneg %p84
        $region18: #{net_forward.1} parent=11 // pred_check_branch
          %214 = sbr.rel (%p212) target = $region20
        $region19: #{net_forward.1} parent=11 // pred_region
          _
        $region20: #{net_forward.1} parent=11 // pred_fallthru
          _
        // Predicated region
        $region21: #{net_forward.1} parent=11 // pred_check
          %p215 = pneg %p105
        $region22: #{net_forward.1} parent=11 // pred_check_branch
          %217 = sbr.rel (%p215) target = $region24
        $region23: #{net_forward.1} parent=11 // pred_region
          _
        $region24: #{net_forward.1} parent=11 // pred_fallthru
          _
        // Predicated region
        $region25: #{net_forward.1} parent=11 // pred_check
          %p218 = pneg %p126
        $region26: #{net_forward.1} parent=11 // pred_check_branch
          %220 = sbr.rel (%p218) target = $region28
        $region27: #{net_forward.1} parent=11 // pred_region
          _
        $region28: #{net_forward.1} parent=11 // pred_fallthru
          _
        // Predicated region
        $region29: #{net_forward.1} parent=11 // pred_check
          %p221 = pneg %p147
        $region30: #{net_forward.1} parent=11 // pred_check_branch
          %223 = sbr.rel (%p221) target = $region32
        $region31: #{net_forward.1} parent=11 // pred_region
          _
        $region32: #{net_forward.1} parent=11 // pred_fallthru
          _
        // Predicated region
        $region33: #{net_forward.1} parent=11 // pred_check
          %p224 = pneg %p168
        $region34: #{net_forward.1} parent=11 // pred_check_branch
          %226 = sbr.rel (%p224) target = $region36
        $region35: #{net_forward.1} parent=11 // pred_region
          _
        $region36: #{net_forward.1} parent=11 // pred_fallthru
          _
      $region12: #{net_forward.1} parent=5 // pred_fallthru
        _
      %p227 = scmp.lt.s32.totalorder %s16, 2
      // Predicated region
      $region37: #{net_forward.1} parent=5 // pred_check
        %p228 = pneg %p227
      $region38: #{net_forward.1} parent=5 // pred_check_branch
        %230 = sbr.rel (%p228) target = $region40
      $region39: #{net_forward.1} parent=5 // pred_region
        // Predicated region
        $region41: #{net_forward.1} parent=39 // pred_check
          %p231 = pneg %p36
        $region42: #{net_forward.1} parent=39 // pred_check_branch
          %233 = sbr.rel (%p231) target = $region44
        $region43: #{net_forward.1} parent=39 // pred_region
          %p234 = scmp.lt.s32.totalorder %s16, 1
          %s235 = scalar_select %p234, %s16, 1
          %s236 = smul.addr %s235, 4
          %s237 = smul.addr %s236, 8
          %s238 = scalar_lea.vmem %s0, %s237
        $region44: #{net_forward.1} parent=39 // pred_fallthru
          _
      $region40: #{net_forward.1} parent=5 // pred_fallthru
        _
      %p239 = scmp.le.s32.totalorder 1, %s16
      %p240 = scmp.lt.s32.totalorder %s16, 3
      %p241 = pnand %p239, %p240
      %p242 = pneg %p241
      // Predicated region
      $region45: #{net_forward.1} parent=5 // pred_check
        _
      $region46: #{net_forward.1} parent=5 // pred_check_branch
        %244 = sbr.rel (%p241) target = $region48
      $region47: #{net_forward.1} parent=5 // pred_region
        %s245 = ssub.s32 %s16, 1
        %p246 = scmp.lt.s32.totalorder %s21, 1
        %s247 = scalar_select %p246, %s21, 1
        %s248 = smul.addr %s247, 4
        %s249 = smul.addr %s248, 8
        %s250 = scalar_lea.vmem %s0, %s249
        %p251 = pneg %p42
        %p252 = pneg %p39
        %p253 = pneg %p63
        %p254 = pneg %p60
        %p255 = pneg %p84
        %p256 = pneg %p81
        %p257 = pneg %p105
        %p258 = pneg %p102
        %p259 = pneg %p126
        %p260 = pneg %p123
        %p261 = pneg %p147
        %p262 = pneg %p144
        %p263 = pneg %p168
        %p264 = pneg %p165
        %p265 = pneg %p194
        %p266 = pneg %p191
        %s267 = sand.u32 %s181, 1
        %s268 = scalar_lea.sflag [#allocation7], %s267
        %s269 = sand.u32 %s181, 1
        %s270 = scalar_lea.vmem [#allocation6], %s269
        %p271 = scmp.lt.s32.totalorder %s21, 1
        %s272 = scalar_select %p271, %s21, 1
        %s273 = smul.addr %s272, 4
        %s274 = smul.addr %s273, 8
        %s275 = scalar_lea.vmem %s0, %s274
        %v277 = vld [vmem:[%s275] sm:$0xff]
        %v278 = vld [vmem:[%s275 + $0x8] sm:$0xff]
        %v279 = vld [vmem:[%s275 + $0x10] sm:$0xff]
        %v280 = vld [vmem:[%s275 + $0x18] sm:$0xf]
        %v281 = vlaneseq
        %v282 = vshrl.u32 %v281, 7
        %v283 = vsub.s32 0, %v282
        %v284 = vrot.slane %v277, %v283
        %286 = vbcast.lane.b32.xlu0 %v284, 256
        %v287 = vpop.permute.xlu0 %286
        %s289 = sor.u32 256, 8
        %290 = vbcast.lane.b32.xlu0 %v284, %s289
        %v291 = vpop.permute.xlu0 %290
        %s293 = sor.u32 256, 16
        %294 = vbcast.lane.b32.xlu0 %v284, %s293
        %v295 = vpop.permute.xlu0 %294
        %v296 = vlaneseq
        %v297 = vshrl.u32 %v296, 7
        %v298 = vsub.s32 1, %v297
        %v299 = vrot.slane %v277, %v298
        %301 = vbcast.lane.b32.xlu0 %v299, 256
        %v302 = vpop.permute.xlu0 %301
        %s304 = sor.u32 256, 8
        %305 = vbcast.lane.b32.xlu0 %v299, %s304
        %v306 = vpop.permute.xlu0 %305
        %s308 = sor.u32 256, 16
        %309 = vbcast.lane.b32.xlu0 %v299, %s308
        %v310 = vpop.permute.xlu0 %309
        %v311 = vlaneseq
        %v312 = vshrl.u32 %v311, 7
        %v313 = vsub.s32 2, %v312
        %v314 = vrot.slane %v277, %v313
        %316 = vbcast.lane.b32.xlu0 %v314, 256
        %v317 = vpop.permute.xlu0 %316
        %s319 = sor.u32 256, 8
        %320 = vbcast.lane.b32.xlu0 %v314, %s319
        %v321 = vpop.permute.xlu0 %320
        %s323 = sor.u32 256, 16
        %324 = vbcast.lane.b32.xlu0 %v314, %s323
        %v325 = vpop.permute.xlu0 %324
        %v326 = vlaneseq
        %v327 = vshrl.u32 %v326, 7
        %v328 = vsub.s32 3, %v327
        %v329 = vrot.slane %v277, %v328
        %331 = vbcast.lane.b32.xlu0 %v329, 256
        %v332 = vpop.permute.xlu0 %331
        %s334 = sor.u32 256, 8
        %335 = vbcast.lane.b32.xlu0 %v329, %s334
        %v336 = vpop.permute.xlu0 %335
        %s338 = sor.u32 256, 16
        %339 = vbcast.lane.b32.xlu0 %v329, %s338
        %v340 = vpop.permute.xlu0 %339
        %v341 = vlaneseq
        %v342 = vshrl.u32 %v341, 7
        %v343 = vsub.s32 4, %v342
        %v344 = vrot.slane %v277, %v343
        %346 = vbcast.lane.b32.xlu0 %v344, 256
        %v347 = vpop.permute.xlu0 %346
        %s349 = sor.u32 256, 8
        %350 = vbcast.lane.b32.xlu0 %v344, %s349
        %v351 = vpop.permute.xlu0 %350
        %s353 = sor.u32 256, 16
        %354 = vbcast.lane.b32.xlu0 %v344, %s353
        %v355 = vpop.permute.xlu0 %354
        %v356 = vlaneseq
        %v357 = vshrl.u32 %v356, 7
        %v358 = vsub.s32 5, %v357
        %v359 = vrot.slane %v277, %v358
        %361 = vbcast.lane.b32.xlu0 %v359, 256
        %v362 = vpop.permute.xlu0 %361
        %s364 = sor.u32 256, 8
        %365 = vbcast.lane.b32.xlu0 %v359, %s364
        %v366 = vpop.permute.xlu0 %365
        %s368 = sor.u32 256, 16
        %369 = vbcast.lane.b32.xlu0 %v359, %s368
        %v370 = vpop.permute.xlu0 %369
        %v371 = vlaneseq
        %v372 = vshrl.u32 %v371, 7
        %v373 = vsub.s32 6, %v372
        %v374 = vrot.slane %v277, %v373
        %376 = vbcast.lane.b32.xlu0 %v374, 256
        %v377 = vpop.permute.xlu0 %376
        %s379 = sor.u32 256, 8
        %380 = vbcast.lane.b32.xlu0 %v374, %s379
        %v381 = vpop.permute.xlu0 %380
        %s383 = sor.u32 256, 16
        %384 = vbcast.lane.b32.xlu0 %v374, %s383
        %v385 = vpop.permute.xlu0 %384
        %v386 = vlaneseq
        %v387 = vshrl.u32 %v386, 7
        %v388 = vsub.s32 7, %v387
        %v389 = vrot.slane %v277, %v388
        %391 = vbcast.lane.b32.xlu0 %v389, 256
        %v392 = vpop.permute.xlu0 %391
        %s394 = sor.u32 256, 8
        %395 = vbcast.lane.b32.xlu0 %v389, %s394
        %v396 = vpop.permute.xlu0 %395
        %s398 = sor.u32 256, 16
        %399 = vbcast.lane.b32.xlu0 %v389, %s398
        %v400 = vpop.permute.xlu0 %399
        %v401 = vlaneseq
        %v402 = vshrl.u32 %v401, 7
        %v403 = vsub.s32 0, %v402
        %v404 = vrot.slane %v278, %v403
        %406 = vbcast.lane.b32.xlu0 %v404, 256
        %v407 = vpop.permute.xlu0 %406
        %s409 = sor.u32 256, 8
        %410 = vbcast.lane.b32.xlu0 %v404, %s409
        %v411 = vpop.permute.xlu0 %410
        %s413 = sor.u32 256, 16
        %414 = vbcast.lane.b32.xlu0 %v404, %s413
        %v415 = vpop.permute.xlu0 %414
        %v416 = vlaneseq
        %v417 = vshrl.u32 %v416, 7
        %v418 = vsub.s32 1, %v417
        %v419 = vrot.slane %v278, %v418
        %421 = vbcast.lane.b32.xlu0 %v419, 256
        %v422 = vpop.permute.xlu0 %421
        %s424 = sor.u32 256, 8
        %425 = vbcast.lane.b32.xlu0 %v419, %s424
        %v426 = vpop.permute.xlu0 %425
        %s428 = sor.u32 256, 16
        %429 = vbcast.lane.b32.xlu0 %v419, %s428
        %v430 = vpop.permute.xlu0 %429
        %v431 = vlaneseq
        %v432 = vshrl.u32 %v431, 7
        %v433 = vsub.s32 2, %v432
        %v434 = vrot.slane %v278, %v433
        %436 = vbcast.lane.b32.xlu0 %v434, 256
        %v437 = vpop.permute.xlu0 %436
        %s439 = sor.u32 256, 8
        %440 = vbcast.lane.b32.xlu0 %v434, %s439
        %v441 = vpop.permute.xlu0 %440
        %s443 = sor.u32 256, 16
        %444 = vbcast.lane.b32.xlu0 %v434, %s443
        %v445 = vpop.permute.xlu0 %444
        %v446 = vlaneseq
        %v447 = vshrl.u32 %v446, 7
        %v448 = vsub.s32 3, %v447
        %v449 = vrot.slane %v278, %v448
        %451 = vbcast.lane.b32.xlu0 %v449, 256
        %v452 = vpop.permute.xlu0 %451
        %s454 = sor.u32 256, 8
        %455 = vbcast.lane.b32.xlu0 %v449, %s454
        %v456 = vpop.permute.xlu0 %455
        %s458 = sor.u32 256, 16
        %459 = vbcast.lane.b32.xlu0 %v449, %s458
        %v460 = vpop.permute.xlu0 %459
        %v461 = vlaneseq
        %v462 = vshrl.u32 %v461, 7
        %v463 = vsub.s32 4, %v462
        %v464 = vrot.slane %v278, %v463
        %466 = vbcast.lane.b32.xlu0 %v464, 256
        %v467 = vpop.permute.xlu0 %466
        %s469 = sor.u32 256, 8
        %470 = vbcast.lane.b32.xlu0 %v464, %s469
        %v471 = vpop.permute.xlu0 %470
        %s473 = sor.u32 256, 16
        %474 = vbcast.lane.b32.xlu0 %v464, %s473
        %v475 = vpop.permute.xlu0 %474
        %v476 = vlaneseq
        %v477 = vshrl.u32 %v476, 7
        %v478 = vsub.s32 5, %v477
        %v479 = vrot.slane %v278, %v478
        %481 = vbcast.lane.b32.xlu0 %v479, 256
        %v482 = vpop.permute.xlu0 %481
        %s484 = sor.u32 256, 8
        %485 = vbcast.lane.b32.xlu0 %v479, %s484
        %v486 = vpop.permute.xlu0 %485
        %s488 = sor.u32 256, 16
        %489 = vbcast.lane.b32.xlu0 %v479, %s488
        %v490 = vpop.permute.xlu0 %489
        %v491 = vlaneseq
        %v492 = vshrl.u32 %v491, 7
        %v493 = vsub.s32 6, %v492
        %v494 = vrot.slane %v278, %v493
        %496 = vbcast.lane.b32.xlu0 %v494, 256
        %v497 = vpop.permute.xlu0 %496
        %s499 = sor.u32 256, 8
        %500 = vbcast.lane.b32.xlu0 %v494, %s499
        %v501 = vpop.permute.xlu0 %500
        %s503 = sor.u32 256, 16
        %504 = vbcast.lane.b32.xlu0 %v494, %s503
        %v505 = vpop.permute.xlu0 %504
        %v506 = vlaneseq
        %v507 = vshrl.u32 %v506, 7
        %v508 = vsub.s32 7, %v507
        %v509 = vrot.slane %v278, %v508
        %511 = vbcast.lane.b32.xlu0 %v509, 256
        %v512 = vpop.permute.xlu0 %511
        %s514 = sor.u32 256, 8
        %515 = vbcast.lane.b32.xlu0 %v509, %s514
        %v516 = vpop.permute.xlu0 %515
        %s518 = sor.u32 256, 16
        %519 = vbcast.lane.b32.xlu0 %v509, %s518
        %v520 = vpop.permute.xlu0 %519
        %v521 = vlaneseq
        %v522 = vshrl.u32 %v521, 7
        %v523 = vsub.s32 0, %v522
        %v524 = vrot.slane %v279, %v523
        %526 = vbcast.lane.b32.xlu0 %v524, 256
        %v527 = vpop.permute.xlu0 %526
        %s529 = sor.u32 256, 8
        %530 = vbcast.lane.b32.xlu0 %v524, %s529
        %v531 = vpop.permute.xlu0 %530
        %s533 = sor.u32 256, 16
        %534 = vbcast.lane.b32.xlu0 %v524, %s533
        %v535 = vpop.permute.xlu0 %534
        %v536 = vlaneseq
        %v537 = vshrl.u32 %v536, 7
        %v538 = vsub.s32 1, %v537
        %v539 = vrot.slane %v279, %v538
        %541 = vbcast.lane.b32.xlu0 %v539, 256
        %v542 = vpop.permute.xlu0 %541
        %s544 = sor.u32 256, 8
        %545 = vbcast.lane.b32.xlu0 %v539, %s544
        %v546 = vpop.permute.xlu0 %545
        %s548 = sor.u32 256, 16
        %549 = vbcast.lane.b32.xlu0 %v539, %s548
        %v550 = vpop.permute.xlu0 %549
        %v551 = vlaneseq
        %v552 = vshrl.u32 %v551, 7
        %v553 = vsub.s32 2, %v552
        %v554 = vrot.slane %v279, %v553
        %556 = vbcast.lane.b32.xlu0 %v554, 256
        %v557 = vpop.permute.xlu0 %556
        %s559 = sor.u32 256, 8
        %560 = vbcast.lane.b32.xlu0 %v554, %s559
        %v561 = vpop.permute.xlu0 %560
        %s563 = sor.u32 256, 16
        %564 = vbcast.lane.b32.xlu0 %v554, %s563
        %v565 = vpop.permute.xlu0 %564
        %v566 = vlaneseq
        %v567 = vshrl.u32 %v566, 7
        %v568 = vsub.s32 3, %v567
        %v569 = vrot.slane %v279, %v568
        %571 = vbcast.lane.b32.xlu0 %v569, 256
        %v572 = vpop.permute.xlu0 %571
        %s574 = sor.u32 256, 8
        %575 = vbcast.lane.b32.xlu0 %v569, %s574
        %v576 = vpop.permute.xlu0 %575
        %s578 = sor.u32 256, 16
        %579 = vbcast.lane.b32.xlu0 %v569, %s578
        %v580 = vpop.permute.xlu0 %579
        %v581 = vlaneseq
        %v582 = vshrl.u32 %v581, 7
        %v583 = vsub.s32 4, %v582
        %v584 = vrot.slane %v279, %v583
        %586 = vbcast.lane.b32.xlu0 %v584, 256
        %v587 = vpop.permute.xlu0 %586
        %s589 = sor.u32 256, 8
        %590 = vbcast.lane.b32.xlu0 %v584, %s589
        %v591 = vpop.permute.xlu0 %590
        %s593 = sor.u32 256, 16
        %594 = vbcast.lane.b32.xlu0 %v584, %s593
        %v595 = vpop.permute.xlu0 %594
        %v596 = vlaneseq
        %v597 = vshrl.u32 %v596, 7
        %v598 = vsub.s32 5, %v597
        %v599 = vrot.slane %v279, %v598
        %601 = vbcast.lane.b32.xlu0 %v599, 256
        %v602 = vpop.permute.xlu0 %601
        %s604 = sor.u32 256, 8
        %605 = vbcast.lane.b32.xlu0 %v599, %s604
        %v606 = vpop.permute.xlu0 %605
        %s608 = sor.u32 256, 16
        %609 = vbcast.lane.b32.xlu0 %v599, %s608
        %v610 = vpop.permute.xlu0 %609
        %v611 = vlaneseq
        %v612 = vshrl.u32 %v611, 7
        %v613 = vsub.s32 6, %v612
        %v614 = vrot.slane %v279, %v613
        %616 = vbcast.lane.b32.xlu0 %v614, 256
        %v617 = vpop.permute.xlu0 %616
        %s619 = sor.u32 256, 8
        %620 = vbcast.lane.b32.xlu0 %v614, %s619
        %v621 = vpop.permute.xlu0 %620
        %s623 = sor.u32 256, 16
        %624 = vbcast.lane.b32.xlu0 %v614, %s623
        %v625 = vpop.permute.xlu0 %624
        %v626 = vlaneseq
        %v627 = vshrl.u32 %v626, 7
        %v628 = vsub.s32 7, %v627
        %v629 = vrot.slane %v279, %v628
        %631 = vbcast.lane.b32.xlu0 %v629, 256
        %v632 = vpop.permute.xlu0 %631
        %s634 = sor.u32 256, 8
        %635 = vbcast.lane.b32.xlu0 %v629, %s634
        %v636 = vpop.permute.xlu0 %635
        %s638 = sor.u32 256, 16
        %639 = vbcast.lane.b32.xlu0 %v629, %s638
        %v640 = vpop.permute.xlu0 %639
        %s642 = sor.u32 256, 1
        %643 = vbcast.lane.b32.xlu0 %v284, %s642
        %v644 = vpop.permute.xlu0 %643
        %s646 = sor.u32 256, 9
        %647 = vbcast.lane.b32.xlu0 %v284, %s646
        %v648 = vpop.permute.xlu0 %647
        %s650 = sor.u32 256, 17
        %651 = vbcast.lane.b32.xlu0 %v284, %s650
        %v652 = vpop.permute.xlu0 %651
        %s654 = sor.u32 256, 1
        %655 = vbcast.lane.b32.xlu0 %v299, %s654
        %v656 = vpop.permute.xlu0 %655
        %s658 = sor.u32 256, 9
        %659 = vbcast.lane.b32.xlu0 %v299, %s658
        %v660 = vpop.permute.xlu0 %659
        %s662 = sor.u32 256, 17
        %663 = vbcast.lane.b32.xlu0 %v299, %s662
        %v664 = vpop.permute.xlu0 %663
        %s666 = sor.u32 256, 1
        %667 = vbcast.lane.b32.xlu0 %v314, %s666
        %v668 = vpop.permute.xlu0 %667
        %s670 = sor.u32 256, 9
        %671 = vbcast.lane.b32.xlu0 %v314, %s670
        %v672 = vpop.permute.xlu0 %671
        %s674 = sor.u32 256, 17
        %675 = vbcast.lane.b32.xlu0 %v314, %s674
        %v676 = vpop.permute.xlu0 %675
        %s678 = sor.u32 256, 1
        %679 = vbcast.lane.b32.xlu0 %v329, %s678
        %v680 = vpop.permute.xlu0 %679
        %s682 = sor.u32 256, 9
        %683 = vbcast.lane.b32.xlu0 %v329, %s682
        %v684 = vpop.permute.xlu0 %683
        %s686 = sor.u32 256, 17
        %687 = vbcast.lane.b32.xlu0 %v329, %s686
        %v688 = vpop.permute.xlu0 %687
        %s690 = sor.u32 256, 1
        %691 = vbcast.lane.b32.xlu0 %v344, %s690
        %v692 = vpop.permute.xlu0 %691
        %s694 = sor.u32 256, 9
        %695 = vbcast.lane.b32.xlu0 %v344, %s694
        %v696 = vpop.permute.xlu0 %695
        %s698 = sor.u32 256, 17
        %699 = vbcast.lane.b32.xlu0 %v344, %s698
        %v700 = vpop.permute.xlu0 %699
        %s702 = sor.u32 256, 1
        %703 = vbcast.lane.b32.xlu0 %v359, %s702
        %v704 = vpop.permute.xlu0 %703
        %s706 = sor.u32 256, 9
        %707 = vbcast.lane.b32.xlu0 %v359, %s706
        %v708 = vpop.permute.xlu0 %707
        %s710 = sor.u32 256, 17
        %711 = vbcast.lane.b32.xlu0 %v359, %s710
        %v712 = vpop.permute.xlu0 %711
        %s714 = sor.u32 256, 1
        %715 = vbcast.lane.b32.xlu0 %v374, %s714
        %v716 = vpop.permute.xlu0 %715
        %s718 = sor.u32 256, 9
        %719 = vbcast.lane.b32.xlu0 %v374, %s718
        %v720 = vpop.permute.xlu0 %719
        %s722 = sor.u32 256, 17
        %723 = vbcast.lane.b32.xlu0 %v374, %s722
        %v724 = vpop.permute.xlu0 %723
        %s726 = sor.u32 256, 1
        %727 = vbcast.lane.b32.xlu0 %v389, %s726
        %v728 = vpop.permute.xlu0 %727
        %s730 = sor.u32 256, 9
        %731 = vbcast.lane.b32.xlu0 %v389, %s730
        %v732 = vpop.permute.xlu0 %731
        %s734 = sor.u32 256, 17
        %735 = vbcast.lane.b32.xlu0 %v389, %s734
        %v736 = vpop.permute.xlu0 %735
        %s738 = sor.u32 256, 1
        %739 = vbcast.lane.b32.xlu0 %v404, %s738
        %v740 = vpop.permute.xlu0 %739
        %s742 = sor.u32 256, 9
        %743 = vbcast.lane.b32.xlu0 %v404, %s742
        %v744 = vpop.permute.xlu0 %743
        %s746 = sor.u32 256, 17
        %747 = vbcast.lane.b32.xlu0 %v404, %s746
        %v748 = vpop.permute.xlu0 %747
        %s750 = sor.u32 256, 1
        %751 = vbcast.lane.b32.xlu0 %v419, %s750
        %v752 = vpop.permute.xlu0 %751
        %s754 = sor.u32 256, 9
        %755 = vbcast.lane.b32.xlu0 %v419, %s754
        %v756 = vpop.permute.xlu0 %755
        %s758 = sor.u32 256, 17
        %759 = vbcast.lane.b32.xlu0 %v419, %s758
        %v760 = vpop.permute.xlu0 %759
        %s762 = sor.u32 256, 1
        %763 = vbcast.lane.b32.xlu0 %v434, %s762
        %v764 = vpop.permute.xlu0 %763
        %s766 = sor.u32 256, 9
        %767 = vbcast.lane.b32.xlu0 %v434, %s766
        %v768 = vpop.permute.xlu0 %767
        %s770 = sor.u32 256, 17
        %771 = vbcast.lane.b32.xlu0 %v434, %s770
        %v772 = vpop.permute.xlu0 %771
        %s774 = sor.u32 256, 1
        %775 = vbcast.lane.b32.xlu0 %v449, %s774
        %v776 = vpop.permute.xlu0 %775
        %s778 = sor.u32 256, 9
        %779 = vbcast.lane.b32.xlu0 %v449, %s778
        %v780 = vpop.permute.xlu0 %779
        %s782 = sor.u32 256, 17
        %783 = vbcast.lane.b32.xlu0 %v449, %s782
        %v784 = vpop.permute.xlu0 %783
        %s786 = sor.u32 256, 1
        %787 = vbcast.lane.b32.xlu0 %v464, %s786
        %v788 = vpop.permute.xlu0 %787
        %s790 = sor.u32 256, 9
        %791 = vbcast.lane.b32.xlu0 %v464, %s790
        %v792 = vpop.permute.xlu0 %791
        %s794 = sor.u32 256, 17
        %795 = vbcast.lane.b32.xlu0 %v464, %s794
        %v796 = vpop.permute.xlu0 %795
        %s798 = sor.u32 256, 1
        %799 = vbcast.lane.b32.xlu0 %v479, %s798
        %v800 = vpop.permute.xlu0 %799
        %s802 = sor.u32 256, 9
        %803 = vbcast.lane.b32.xlu0 %v479, %s802
        %v804 = vpop.permute.xlu0 %803
        %s806 = sor.u32 256, 17
        %807 = vbcast.lane.b32.xlu0 %v479, %s806
        %v808 = vpop.permute.xlu0 %807
        %s810 = sor.u32 256, 1
        %811 = vbcast.lane.b32.xlu0 %v494, %s810
        %v812 = vpop.permute.xlu0 %811
        %s814 = sor.u32 256, 9
        %815 = vbcast.lane.b32.xlu0 %v494, %s814
        %v816 = vpop.permute.xlu0 %815
        %s818 = sor.u32 256, 17
        %819 = vbcast.lane.b32.xlu0 %v494, %s818
        %v820 = vpop.permute.xlu0 %819
        %s822 = sor.u32 256, 1
        %823 = vbcast.lane.b32.xlu0 %v509, %s822
        %v824 = vpop.permute.xlu0 %823
        %s826 = sor.u32 256, 9
        %827 = vbcast.lane.b32.xlu0 %v509, %s826
        %v828 = vpop.permute.xlu0 %827
        %s830 = sor.u32 256, 17
        %831 = vbcast.lane.b32.xlu0 %v509, %s830
        %v832 = vpop.permute.xlu0 %831
        %s834 = sor.u32 256, 1
        %835 = vbcast.lane.b32.xlu0 %v524, %s834
        %v836 = vpop.permute.xlu0 %835
        %s838 = sor.u32 256, 9
        %839 = vbcast.lane.b32.xlu0 %v524, %s838
        %v840 = vpop.permute.xlu0 %839
        %s842 = sor.u32 256, 17
        %843 = vbcast.lane.b32.xlu0 %v524, %s842
        %v844 = vpop.permute.xlu0 %843
        %s846 = sor.u32 256, 1
        %847 = vbcast.lane.b32.xlu0 %v539, %s846
        %v848 = vpop.permute.xlu0 %847
        %s850 = sor.u32 256, 9
        %851 = vbcast.lane.b32.xlu0 %v539, %s850
        %v852 = vpop.permute.xlu0 %851
        %s854 = sor.u32 256, 17
        %855 = vbcast.lane.b32.xlu0 %v539, %s854
        %v856 = vpop.permute.xlu0 %855
        %s858 = sor.u32 256, 1
        %859 = vbcast.lane.b32.xlu0 %v554, %s858
        %v860 = vpop.permute.xlu0 %859
        %s862 = sor.u32 256, 9
        %863 = vbcast.lane.b32.xlu0 %v554, %s862
        %v864 = vpop.permute.xlu0 %863
        %s866 = sor.u32 256, 17
        %867 = vbcast.lane.b32.xlu0 %v554, %s866
        %v868 = vpop.permute.xlu0 %867
        %s870 = sor.u32 256, 1
        %871 = vbcast.lane.b32.xlu0 %v569, %s870
        %v872 = vpop.permute.xlu0 %871
        %s874 = sor.u32 256, 9
        %875 = vbcast.lane.b32.xlu0 %v569, %s874
        %v876 = vpop.permute.xlu0 %875
        %s878 = sor.u32 256, 17
        %879 = vbcast.lane.b32.xlu0 %v569, %s878
        %v880 = vpop.permute.xlu0 %879
        %s882 = sor.u32 256, 1
        %883 = vbcast.lane.b32.xlu0 %v584, %s882
        %v884 = vpop.permute.xlu0 %883
        %s886 = sor.u32 256, 9
        %887 = vbcast.lane.b32.xlu0 %v584, %s886
        %v888 = vpop.permute.xlu0 %887
        %s890 = sor.u32 256, 17
        %891 = vbcast.lane.b32.xlu0 %v584, %s890
        %v892 = vpop.permute.xlu0 %891
        %s894 = sor.u32 256, 1
        %895 = vbcast.lane.b32.xlu0 %v599, %s894
        %v896 = vpop.permute.xlu0 %895
        %s898 = sor.u32 256, 9
        %899 = vbcast.lane.b32.xlu0 %v599, %s898
        %v900 = vpop.permute.xlu0 %899
        %s902 = sor.u32 256, 17
        %903 = vbcast.lane.b32.xlu0 %v599, %s902
        %v904 = vpop.permute.xlu0 %903
        %s906 = sor.u32 256, 1
        %907 = vbcast.lane.b32.xlu0 %v614, %s906
        %v908 = vpop.permute.xlu0 %907
        %s910 = sor.u32 256, 9
        %911 = vbcast.lane.b32.xlu0 %v614, %s910
        %v912 = vpop.permute.xlu0 %911
        %s914 = sor.u32 256, 17
        %915 = vbcast.lane.b32.xlu0 %v614, %s914
        %v916 = vpop.permute.xlu0 %915
        %s918 = sor.u32 256, 1
        %919 = vbcast.lane.b32.xlu0 %v629, %s918
        %v920 = vpop.permute.xlu0 %919
        %s922 = sor.u32 256, 9
        %923 = vbcast.lane.b32.xlu0 %v629, %s922
        %v924 = vpop.permute.xlu0 %923
        %s926 = sor.u32 256, 17
        %927 = vbcast.lane.b32.xlu0 %v629, %s926
        %v928 = vpop.permute.xlu0 %927
        %s930 = sor.u32 256, 2
        %931 = vbcast.lane.b32.xlu0 %v284, %s930
        %v932 = vpop.permute.xlu0 %931
        %s934 = sor.u32 256, 10
        %935 = vbcast.lane.b32.xlu0 %v284, %s934
        %v936 = vpop.permute.xlu0 %935
        %s938 = sor.u32 256, 18
        %939 = vbcast.lane.b32.xlu0 %v284, %s938
        %v940 = vpop.permute.xlu0 %939
        %s942 = sor.u32 256, 2
        %943 = vbcast.lane.b32.xlu0 %v299, %s942
        %v944 = vpop.permute.xlu0 %943
        %s946 = sor.u32 256, 10
        %947 = vbcast.lane.b32.xlu0 %v299, %s946
        %v948 = vpop.permute.xlu0 %947
        %s950 = sor.u32 256, 18
        %951 = vbcast.lane.b32.xlu0 %v299, %s950
        %v952 = vpop.permute.xlu0 %951
        %s954 = sor.u32 256, 2
        %955 = vbcast.lane.b32.xlu0 %v314, %s954
        %v956 = vpop.permute.xlu0 %955
        %s958 = sor.u32 256, 10
        %959 = vbcast.lane.b32.xlu0 %v314, %s958
        %v960 = vpop.permute.xlu0 %959
        %s962 = sor.u32 256, 18
        %963 = vbcast.lane.b32.xlu0 %v314, %s962
        %v964 = vpop.permute.xlu0 %963
        %s966 = sor.u32 256, 2
        %967 = vbcast.lane.b32.xlu0 %v329, %s966
        %v968 = vpop.permute.xlu0 %967
        %s970 = sor.u32 256, 10
        %971 = vbcast.lane.b32.xlu0 %v329, %s970
        %v972 = vpop.permute.xlu0 %971
        %s974 = sor.u32 256, 18
        %975 = vbcast.lane.b32.xlu0 %v329, %s974
        %v976 = vpop.permute.xlu0 %975
        %s978 = sor.u32 256, 2
        %979 = vbcast.lane.b32.xlu0 %v344, %s978
        %v980 = vpop.permute.xlu0 %979
        %s982 = sor.u32 256, 10
        %983 = vbcast.lane.b32.xlu0 %v344, %s982
        %v984 = vpop.permute.xlu0 %983
        %s986 = sor.u32 256, 18
        %987 = vbcast.lane.b32.xlu0 %v344, %s986
        %v988 = vpop.permute.xlu0 %987
        %s990 = sor.u32 256, 2
        %991 = vbcast.lane.b32.xlu0 %v359, %s990
        %v992 = vpop.permute.xlu0 %991
        %s994 = sor.u32 256, 10
        %995 = vbcast.lane.b32.xlu0 %v359, %s994
        %v996 = vpop.permute.xlu0 %995
        %s998 = sor.u32 256, 18
        %999 = vbcast.lane.b32.xlu0 %v359, %s998
        %v1000 = vpop.permute.xlu0 %999
        %s1002 = sor.u32 256, 2
        %1003 = vbcast.lane.b32.xlu0 %v374, %s1002
        %v1004 = vpop.permute.xlu0 %1003
        %s1006 = sor.u32 256, 10
        %1007 = vbcast.lane.b32.xlu0 %v374, %s1006
        %v1008 = vpop.permute.xlu0 %1007
        %s1010 = sor.u32 256, 18
        %1011 = vbcast.lane.b32.xlu0 %v374, %s1010
        %v1012 = vpop.permute.xlu0 %1011
        %s1014 = sor.u32 256, 2
        %1015 = vbcast.lane.b32.xlu0 %v389, %s1014
        %v1016 = vpop.permute.xlu0 %1015
        %s1018 = sor.u32 256, 10
        %1019 = vbcast.lane.b32.xlu0 %v389, %s1018
        %v1020 = vpop.permute.xlu0 %1019
        %s1022 = sor.u32 256, 18
        %1023 = vbcast.lane.b32.xlu0 %v389, %s1022
        %v1024 = vpop.permute.xlu0 %1023
        %s1026 = sor.u32 256, 2
        %1027 = vbcast.lane.b32.xlu0 %v404, %s1026
        %v1028 = vpop.permute.xlu0 %1027
        %s1030 = sor.u32 256, 10
        %1031 = vbcast.lane.b32.xlu0 %v404, %s1030
        %v1032 = vpop.permute.xlu0 %1031
        %s1034 = sor.u32 256, 18
        %1035 = vbcast.lane.b32.xlu0 %v404, %s1034
        %v1036 = vpop.permute.xlu0 %1035
        %s1038 = sor.u32 256, 2
        %1039 = vbcast.lane.b32.xlu0 %v419, %s1038
        %v1040 = vpop.permute.xlu0 %1039
        %s1042 = sor.u32 256, 10
        %1043 = vbcast.lane.b32.xlu0 %v419, %s1042
        %v1044 = vpop.permute.xlu0 %1043
        %s1046 = sor.u32 256, 18
        %1047 = vbcast.lane.b32.xlu0 %v419, %s1046
        %v1048 = vpop.permute.xlu0 %1047
        %s1050 = sor.u32 256, 2
        %1051 = vbcast.lane.b32.xlu0 %v434, %s1050
        %v1052 = vpop.permute.xlu0 %1051
        %s1054 = sor.u32 256, 10
        %1055 = vbcast.lane.b32.xlu0 %v434, %s1054
        %v1056 = vpop.permute.xlu0 %1055
        %s1058 = sor.u32 256, 18
        %1059 = vbcast.lane.b32.xlu0 %v434, %s1058
        %v1060 = vpop.permute.xlu0 %1059
        %s1062 = sor.u32 256, 2
        %1063 = vbcast.lane.b32.xlu0 %v449, %s1062
        %v1064 = vpop.permute.xlu0 %1063
        %s1066 = sor.u32 256, 10
        %1067 = vbcast.lane.b32.xlu0 %v449, %s1066
        %v1068 = vpop.permute.xlu0 %1067
        %s1070 = sor.u32 256, 18
        %1071 = vbcast.lane.b32.xlu0 %v449, %s1070
        %v1072 = vpop.permute.xlu0 %1071
        %s1074 = sor.u32 256, 2
        %1075 = vbcast.lane.b32.xlu0 %v464, %s1074
        %v1076 = vpop.permute.xlu0 %1075
        %s1078 = sor.u32 256, 10
        %1079 = vbcast.lane.b32.xlu0 %v464, %s1078
        %v1080 = vpop.permute.xlu0 %1079
        %s1082 = sor.u32 256, 18
        %1083 = vbcast.lane.b32.xlu0 %v464, %s1082
        %v1084 = vpop.permute.xlu0 %1083
        %s1086 = sor.u32 256, 2
        %1087 = vbcast.lane.b32.xlu0 %v479, %s1086
        %v1088 = vpop.permute.xlu0 %1087
        %s1090 = sor.u32 256, 10
        %1091 = vbcast.lane.b32.xlu0 %v479, %s1090
        %v1092 = vpop.permute.xlu0 %1091
        %s1094 = sor.u32 256, 18
        %1095 = vbcast.lane.b32.xlu0 %v479, %s1094
        %v1096 = vpop.permute.xlu0 %1095
        %s1098 = sor.u32 256, 2
        %1099 = vbcast.lane.b32.xlu0 %v494, %s1098
        %v1100 = vpop.permute.xlu0 %1099
        %s1102 = sor.u32 256, 10
        %1103 = vbcast.lane.b32.xlu0 %v494, %s1102
        %v1104 = vpop.permute.xlu0 %1103
        %s1106 = sor.u32 256, 18
        %1107 = vbcast.lane.b32.xlu0 %v494, %s1106
        %v1108 = vpop.permute.xlu0 %1107
        %s1110 = sor.u32 256, 2
        %1111 = vbcast.lane.b32.xlu0 %v509, %s1110
        %v1112 = vpop.permute.xlu0 %1111
        %s1114 = sor.u32 256, 10
        %1115 = vbcast.lane.b32.xlu0 %v509, %s1114
        %v1116 = vpop.permute.xlu0 %1115
        %s1118 = sor.u32 256, 18
        %1119 = vbcast.lane.b32.xlu0 %v509, %s1118
        %v1120 = vpop.permute.xlu0 %1119
        %s1122 = sor.u32 256, 2
        %1123 = vbcast.lane.b32.xlu0 %v524, %s1122
        %v1124 = vpop.permute.xlu0 %1123
        %s1126 = sor.u32 256, 10
        %1127 = vbcast.lane.b32.xlu0 %v524, %s1126
        %v1128 = vpop.permute.xlu0 %1127
        %s1130 = sor.u32 256, 18
        %1131 = vbcast.lane.b32.xlu0 %v524, %s1130
        %v1132 = vpop.permute.xlu0 %1131
        %s1134 = sor.u32 256, 2
        %1135 = vbcast.lane.b32.xlu0 %v539, %s1134
        %v1136 = vpop.permute.xlu0 %1135
        %s1138 = sor.u32 256, 10
        %1139 = vbcast.lane.b32.xlu0 %v539, %s1138
        %v1140 = vpop.permute.xlu0 %1139
        %s1142 = sor.u32 256, 18
        %1143 = vbcast.lane.b32.xlu0 %v539, %s1142
        %v1144 = vpop.permute.xlu0 %1143
        %s1146 = sor.u32 256, 2
        %1147 = vbcast.lane.b32.xlu0 %v554, %s1146
        %v1148 = vpop.permute.xlu0 %1147
        %s1150 = sor.u32 256, 10
        %1151 = vbcast.lane.b32.xlu0 %v554, %s1150
        %v1152 = vpop.permute.xlu0 %1151
        %s1154 = sor.u32 256, 18
        %1155 = vbcast.lane.b32.xlu0 %v554, %s1154
        %v1156 = vpop.permute.xlu0 %1155
        %s1158 = sor.u32 256, 2
        %1159 = vbcast.lane.b32.xlu0 %v569, %s1158
        %v1160 = vpop.permute.xlu0 %1159
        %s1162 = sor.u32 256, 10
        %1163 = vbcast.lane.b32.xlu0 %v569, %s1162
        %v1164 = vpop.permute.xlu0 %1163
        %s1166 = sor.u32 256, 18
        %1167 = vbcast.lane.b32.xlu0 %v569, %s1166
        %v1168 = vpop.permute.xlu0 %1167
        %s1170 = sor.u32 256, 2
        %1171 = vbcast.lane.b32.xlu0 %v584, %s1170
        %v1172 = vpop.permute.xlu0 %1171
        %s1174 = sor.u32 256, 10
        %1175 = vbcast.lane.b32.xlu0 %v584, %s1174
        %v1176 = vpop.permute.xlu0 %1175
        %s1178 = sor.u32 256, 18
        %1179 = vbcast.lane.b32.xlu0 %v584, %s1178
        %v1180 = vpop.permute.xlu0 %1179
        %s1182 = sor.u32 256, 2
        %1183 = vbcast.lane.b32.xlu0 %v599, %s1182
        %v1184 = vpop.permute.xlu0 %1183
        %s1186 = sor.u32 256, 10
        %1187 = vbcast.lane.b32.xlu0 %v599, %s1186
        %v1188 = vpop.permute.xlu0 %1187
        %s1190 = sor.u32 256, 18
        %1191 = vbcast.lane.b32.xlu0 %v599, %s1190
        %v1192 = vpop.permute.xlu0 %1191
        %s1194 = sor.u32 256, 2
        %1195 = vbcast.lane.b32.xlu0 %v614, %s1194
        %v1196 = vpop.permute.xlu0 %1195
        %s1198 = sor.u32 256, 10
        %1199 = vbcast.lane.b32.xlu0 %v614, %s1198
        %v1200 = vpop.permute.xlu0 %1199
        %s1202 = sor.u32 256, 18
        %1203 = vbcast.lane.b32.xlu0 %v614, %s1202
        %v1204 = vpop.permute.xlu0 %1203
        %s1206 = sor.u32 256, 2
        %1207 = vbcast.lane.b32.xlu0 %v629, %s1206
        %v1208 = vpop.permute.xlu0 %1207
        %s1210 = sor.u32 256, 10
        %1211 = vbcast.lane.b32.xlu0 %v629, %s1210
        %v1212 = vpop.permute.xlu0 %1211
        %s1214 = sor.u32 256, 18
        %1215 = vbcast.lane.b32.xlu0 %v629, %s1214
        %v1216 = vpop.permute.xlu0 %1215
        %s1218 = sor.u32 256, 3
        %1219 = vbcast.lane.b32.xlu0 %v284, %s1218
        %v1220 = vpop.permute.xlu0 %1219
        %s1222 = sor.u32 256, 11
        %1223 = vbcast.lane.b32.xlu0 %v284, %s1222
        %v1224 = vpop.permute.xlu0 %1223
        %s1226 = sor.u32 256, 19
        %1227 = vbcast.lane.b32.xlu0 %v284, %s1226
        %v1228 = vpop.permute.xlu0 %1227
        %s1230 = sor.u32 256, 3
        %1231 = vbcast.lane.b32.xlu0 %v299, %s1230
        %v1232 = vpop.permute.xlu0 %1231
        %s1234 = sor.u32 256, 11
        %1235 = vbcast.lane.b32.xlu0 %v299, %s1234
        %v1236 = vpop.permute.xlu0 %1235
        %s1238 = sor.u32 256, 19
        %1239 = vbcast.lane.b32.xlu0 %v299, %s1238
        %v1240 = vpop.permute.xlu0 %1239
        %s1242 = sor.u32 256, 3
        %1243 = vbcast.lane.b32.xlu0 %v314, %s1242
        %v1244 = vpop.permute.xlu0 %1243
        %s1246 = sor.u32 256, 11
        %1247 = vbcast.lane.b32.xlu0 %v314, %s1246
        %v1248 = vpop.permute.xlu0 %1247
        %s1250 = sor.u32 256, 19
        %1251 = vbcast.lane.b32.xlu0 %v314, %s1250
        %v1252 = vpop.permute.xlu0 %1251
        %s1254 = sor.u32 256, 3
        %1255 = vbcast.lane.b32.xlu0 %v329, %s1254
        %v1256 = vpop.permute.xlu0 %1255
        %s1258 = sor.u32 256, 11
        %1259 = vbcast.lane.b32.xlu0 %v329, %s1258
        %v1260 = vpop.permute.xlu0 %1259
        %s1262 = sor.u32 256, 19
        %1263 = vbcast.lane.b32.xlu0 %v329, %s1262
        %v1264 = vpop.permute.xlu0 %1263
        %s1266 = sor.u32 256, 3
        %1267 = vbcast.lane.b32.xlu0 %v344, %s1266
        %v1268 = vpop.permute.xlu0 %1267
        %s1270 = sor.u32 256, 11
        %1271 = vbcast.lane.b32.xlu0 %v344, %s1270
        %v1272 = vpop.permute.xlu0 %1271
        %s1274 = sor.u32 256, 19
        %1275 = vbcast.lane.b32.xlu0 %v344, %s1274
        %v1276 = vpop.permute.xlu0 %1275
        %s1278 = sor.u32 256, 3
        %1279 = vbcast.lane.b32.xlu0 %v359, %s1278
        %v1280 = vpop.permute.xlu0 %1279
        %s1282 = sor.u32 256, 11
        %1283 = vbcast.lane.b32.xlu0 %v359, %s1282
        %v1284 = vpop.permute.xlu0 %1283
        %s1286 = sor.u32 256, 19
        %1287 = vbcast.lane.b32.xlu0 %v359, %s1286
        %v1288 = vpop.permute.xlu0 %1287
        %s1290 = sor.u32 256, 3
        %1291 = vbcast.lane.b32.xlu0 %v374, %s1290
        %v1292 = vpop.permute.xlu0 %1291
        %s1294 = sor.u32 256, 11
        %1295 = vbcast.lane.b32.xlu0 %v374, %s1294
        %v1296 = vpop.permute.xlu0 %1295
        %s1298 = sor.u32 256, 19
        %1299 = vbcast.lane.b32.xlu0 %v374, %s1298
        %v1300 = vpop.permute.xlu0 %1299
        %s1302 = sor.u32 256, 3
        %1303 = vbcast.lane.b32.xlu0 %v389, %s1302
        %v1304 = vpop.permute.xlu0 %1303
        %s1306 = sor.u32 256, 11
        %1307 = vbcast.lane.b32.xlu0 %v389, %s1306
        %v1308 = vpop.permute.xlu0 %1307
        %s1310 = sor.u32 256, 19
        %1311 = vbcast.lane.b32.xlu0 %v389, %s1310
        %v1312 = vpop.permute.xlu0 %1311
        %s1314 = sor.u32 256, 3
        %1315 = vbcast.lane.b32.xlu0 %v404, %s1314
        %v1316 = vpop.permute.xlu0 %1315
        %s1318 = sor.u32 256, 11
        %1319 = vbcast.lane.b32.xlu0 %v404, %s1318
        %v1320 = vpop.permute.xlu0 %1319
        %s1322 = sor.u32 256, 19
        %1323 = vbcast.lane.b32.xlu0 %v404, %s1322
        %v1324 = vpop.permute.xlu0 %1323
        %s1326 = sor.u32 256, 3
        %1327 = vbcast.lane.b32.xlu0 %v419, %s1326
        %v1328 = vpop.permute.xlu0 %1327
        %s1330 = sor.u32 256, 11
        %1331 = vbcast.lane.b32.xlu0 %v419, %s1330
        %v1332 = vpop.permute.xlu0 %1331
        %s1334 = sor.u32 256, 19
        %1335 = vbcast.lane.b32.xlu0 %v419, %s1334
        %v1336 = vpop.permute.xlu0 %1335
        %s1338 = sor.u32 256, 3
        %1339 = vbcast.lane.b32.xlu0 %v434, %s1338
        %v1340 = vpop.permute.xlu0 %1339
        %s1342 = sor.u32 256, 11
        %1343 = vbcast.lane.b32.xlu0 %v434, %s1342
        %v1344 = vpop.permute.xlu0 %1343
        %s1346 = sor.u32 256, 19
        %1347 = vbcast.lane.b32.xlu0 %v434, %s1346
        %v1348 = vpop.permute.xlu0 %1347
        %s1350 = sor.u32 256, 3
        %1351 = vbcast.lane.b32.xlu0 %v449, %s1350
        %v1352 = vpop.permute.xlu0 %1351
        %s1354 = sor.u32 256, 11
        %1355 = vbcast.lane.b32.xlu0 %v449, %s1354
        %v1356 = vpop.permute.xlu0 %1355
        %s1358 = sor.u32 256, 19
        %1359 = vbcast.lane.b32.xlu0 %v449, %s1358
        %v1360 = vpop.permute.xlu0 %1359
        %s1362 = sor.u32 256, 3
        %1363 = vbcast.lane.b32.xlu0 %v464, %s1362
        %v1364 = vpop.permute.xlu0 %1363
        %s1366 = sor.u32 256, 11
        %1367 = vbcast.lane.b32.xlu0 %v464, %s1366
        %v1368 = vpop.permute.xlu0 %1367
        %s1370 = sor.u32 256, 19
        %1371 = vbcast.lane.b32.xlu0 %v464, %s1370
        %v1372 = vpop.permute.xlu0 %1371
        %s1374 = sor.u32 256, 3
        %1375 = vbcast.lane.b32.xlu0 %v479, %s1374
        %v1376 = vpop.permute.xlu0 %1375
        %s1378 = sor.u32 256, 11
        %1379 = vbcast.lane.b32.xlu0 %v479, %s1378
        %v1380 = vpop.permute.xlu0 %1379
        %s1382 = sor.u32 256, 19
        %1383 = vbcast.lane.b32.xlu0 %v479, %s1382
        %v1384 = vpop.permute.xlu0 %1383
        %s1386 = sor.u32 256, 3
        %1387 = vbcast.lane.b32.xlu0 %v494, %s1386
        %v1388 = vpop.permute.xlu0 %1387
        %s1390 = sor.u32 256, 11
        %1391 = vbcast.lane.b32.xlu0 %v494, %s1390
        %v1392 = vpop.permute.xlu0 %1391
        %s1394 = sor.u32 256, 19
        %1395 = vbcast.lane.b32.xlu0 %v494, %s1394
        %v1396 = vpop.permute.xlu0 %1395
        %s1398 = sor.u32 256, 3
        %1399 = vbcast.lane.b32.xlu0 %v509, %s1398
        %v1400 = vpop.permute.xlu0 %1399
        %s1402 = sor.u32 256, 11
        %1403 = vbcast.lane.b32.xlu0 %v509, %s1402
        %v1404 = vpop.permute.xlu0 %1403
        %s1406 = sor.u32 256, 19
        %1407 = vbcast.lane.b32.xlu0 %v509, %s1406
        %v1408 = vpop.permute.xlu0 %1407
        %s1410 = sor.u32 256, 3
        %1411 = vbcast.lane.b32.xlu0 %v524, %s1410
        %v1412 = vpop.permute.xlu0 %1411
        %s1414 = sor.u32 256, 11
        %1415 = vbcast.lane.b32.xlu0 %v524, %s1414
        %v1416 = vpop.permute.xlu0 %1415
        %s1418 = sor.u32 256, 19
        %1419 = vbcast.lane.b32.xlu0 %v524, %s1418
        %v1420 = vpop.permute.xlu0 %1419
        %s1422 = sor.u32 256, 3
        %1423 = vbcast.lane.b32.xlu0 %v539, %s1422
        %v1424 = vpop.permute.xlu0 %1423
        %s1426 = sor.u32 256, 11
        %1427 = vbcast.lane.b32.xlu0 %v539, %s1426
        %v1428 = vpop.permute.xlu0 %1427
        %s1430 = sor.u32 256, 19
        %1431 = vbcast.lane.b32.xlu0 %v539, %s1430
        %v1432 = vpop.permute.xlu0 %1431
        %s1434 = sor.u32 256, 3
        %1435 = vbcast.lane.b32.xlu0 %v554, %s1434
        %v1436 = vpop.permute.xlu0 %1435
        %s1438 = sor.u32 256, 11
        %1439 = vbcast.lane.b32.xlu0 %v554, %s1438
        %v1440 = vpop.permute.xlu0 %1439
        %s1442 = sor.u32 256, 19
        %1443 = vbcast.lane.b32.xlu0 %v554, %s1442
        %v1444 = vpop.permute.xlu0 %1443
        %s1446 = sor.u32 256, 3
        %1447 = vbcast.lane.b32.xlu0 %v569, %s1446
        %v1448 = vpop.permute.xlu0 %1447
        %s1450 = sor.u32 256, 11
        %1451 = vbcast.lane.b32.xlu0 %v569, %s1450
        %v1452 = vpop.permute.xlu0 %1451
        %s1454 = sor.u32 256, 19
        %1455 = vbcast.lane.b32.xlu0 %v569, %s1454
        %v1456 = vpop.permute.xlu0 %1455
        %s1458 = sor.u32 256, 3
        %1459 = vbcast.lane.b32.xlu0 %v584, %s1458
        %v1460 = vpop.permute.xlu0 %1459
        %s1462 = sor.u32 256, 11
        %1463 = vbcast.lane.b32.xlu0 %v584, %s1462
        %v1464 = vpop.permute.xlu0 %1463
        %s1466 = sor.u32 256, 19
        %1467 = vbcast.lane.b32.xlu0 %v584, %s1466
        %v1468 = vpop.permute.xlu0 %1467
        %s1470 = sor.u32 256, 3
        %1471 = vbcast.lane.b32.xlu0 %v599, %s1470
        %v1472 = vpop.permute.xlu0 %1471
        %s1474 = sor.u32 256, 11
        %1475 = vbcast.lane.b32.xlu0 %v599, %s1474
        %v1476 = vpop.permute.xlu0 %1475
        %s1478 = sor.u32 256, 19
        %1479 = vbcast.lane.b32.xlu0 %v599, %s1478
        %v1480 = vpop.permute.xlu0 %1479
        %s1482 = sor.u32 256, 3
        %1483 = vbcast.lane.b32.xlu0 %v614, %s1482
        %v1484 = vpop.permute.xlu0 %1483
        %s1486 = sor.u32 256, 11
        %1487 = vbcast.lane.b32.xlu0 %v614, %s1486
        %v1488 = vpop.permute.xlu0 %1487
        %s1490 = sor.u32 256, 19
        %1491 = vbcast.lane.b32.xlu0 %v614, %s1490
        %v1492 = vpop.permute.xlu0 %1491
        %s1494 = sor.u32 256, 3
        %1495 = vbcast.lane.b32.xlu0 %v629, %s1494
        %v1496 = vpop.permute.xlu0 %1495
        %s1498 = sor.u32 256, 11
        %1499 = vbcast.lane.b32.xlu0 %v629, %s1498
        %v1500 = vpop.permute.xlu0 %1499
        %s1502 = sor.u32 256, 19
        %1503 = vbcast.lane.b32.xlu0 %v629, %s1502
        %v1504 = vpop.permute.xlu0 %1503
        %s1506 = sor.u32 256, 4
        %1507 = vbcast.lane.b32.xlu0 %v284, %s1506
        %v1508 = vpop.permute.xlu0 %1507
        %s1510 = sor.u32 256, 12
        %1511 = vbcast.lane.b32.xlu0 %v284, %s1510
        %v1512 = vpop.permute.xlu0 %1511
        %s1514 = sor.u32 256, 20
        %1515 = vbcast.lane.b32.xlu0 %v284, %s1514
        %v1516 = vpop.permute.xlu0 %1515
        %s1518 = sor.u32 256, 4
        %1519 = vbcast.lane.b32.xlu0 %v299, %s1518
        %v1520 = vpop.permute.xlu0 %1519
        %s1522 = sor.u32 256, 12
        %1523 = vbcast.lane.b32.xlu0 %v299, %s1522
        %v1524 = vpop.permute.xlu0 %1523
        %s1526 = sor.u32 256, 20
        %1527 = vbcast.lane.b32.xlu0 %v299, %s1526
        %v1528 = vpop.permute.xlu0 %1527
        %s1530 = sor.u32 256, 4
        %1531 = vbcast.lane.b32.xlu0 %v314, %s1530
        %v1532 = vpop.permute.xlu0 %1531
        %s1534 = sor.u32 256, 12
        %1535 = vbcast.lane.b32.xlu0 %v314, %s1534
        %v1536 = vpop.permute.xlu0 %1535
        %s1538 = sor.u32 256, 20
        %1539 = vbcast.lane.b32.xlu0 %v314, %s1538
        %v1540 = vpop.permute.xlu0 %1539
        %s1542 = sor.u32 256, 4
        %1543 = vbcast.lane.b32.xlu0 %v329, %s1542
        %v1544 = vpop.permute.xlu0 %1543
        %s1546 = sor.u32 256, 12
        %1547 = vbcast.lane.b32.xlu0 %v329, %s1546
        %v1548 = vpop.permute.xlu0 %1547
        %s1550 = sor.u32 256, 20
        %1551 = vbcast.lane.b32.xlu0 %v329, %s1550
        %v1552 = vpop.permute.xlu0 %1551
        %s1554 = sor.u32 256, 4
        %1555 = vbcast.lane.b32.xlu0 %v344, %s1554
        %v1556 = vpop.permute.xlu0 %1555
        %s1558 = sor.u32 256, 12
        %1559 = vbcast.lane.b32.xlu0 %v344, %s1558
        %v1560 = vpop.permute.xlu0 %1559
        %s1562 = sor.u32 256, 20
        %1563 = vbcast.lane.b32.xlu0 %v344, %s1562
        %v1564 = vpop.permute.xlu0 %1563
        %s1566 = sor.u32 256, 4
        %1567 = vbcast.lane.b32.xlu0 %v359, %s1566
        %v1568 = vpop.permute.xlu0 %1567
        %s1570 = sor.u32 256, 12
        %1571 = vbcast.lane.b32.xlu0 %v359, %s1570
        %v1572 = vpop.permute.xlu0 %1571
        %s1574 = sor.u32 256, 20
        %1575 = vbcast.lane.b32.xlu0 %v359, %s1574
        %v1576 = vpop.permute.xlu0 %1575
        %s1578 = sor.u32 256, 4
        %1579 = vbcast.lane.b32.xlu0 %v374, %s1578
        %v1580 = vpop.permute.xlu0 %1579
        %s1582 = sor.u32 256, 12
        %1583 = vbcast.lane.b32.xlu0 %v374, %s1582
        %v1584 = vpop.permute.xlu0 %1583
        %s1586 = sor.u32 256, 20
        %1587 = vbcast.lane.b32.xlu0 %v374, %s1586
        %v1588 = vpop.permute.xlu0 %1587
        %s1590 = sor.u32 256, 4
        %1591 = vbcast.lane.b32.xlu0 %v389, %s1590
        %v1592 = vpop.permute.xlu0 %1591
        %s1594 = sor.u32 256, 12
        %1595 = vbcast.lane.b32.xlu0 %v389, %s1594
        %v1596 = vpop.permute.xlu0 %1595
        %s1598 = sor.u32 256, 20
        %1599 = vbcast.lane.b32.xlu0 %v389, %s1598
        %v1600 = vpop.permute.xlu0 %1599
        %s1602 = sor.u32 256, 4
        %1603 = vbcast.lane.b32.xlu0 %v404, %s1602
        %v1604 = vpop.permute.xlu0 %1603
        %s1606 = sor.u32 256, 12
        %1607 = vbcast.lane.b32.xlu0 %v404, %s1606
        %v1608 = vpop.permute.xlu0 %1607
        %s1610 = sor.u32 256, 20
        %1611 = vbcast.lane.b32.xlu0 %v404, %s1610
        %v1612 = vpop.permute.xlu0 %1611
        %s1614 = sor.u32 256, 4
        %1615 = vbcast.lane.b32.xlu0 %v419, %s1614
        %v1616 = vpop.permute.xlu0 %1615
        %s1618 = sor.u32 256, 12
        %1619 = vbcast.lane.b32.xlu0 %v419, %s1618
        %v1620 = vpop.permute.xlu0 %1619
        %s1622 = sor.u32 256, 20
        %1623 = vbcast.lane.b32.xlu0 %v419, %s1622
        %v1624 = vpop.permute.xlu0 %1623
        %s1626 = sor.u32 256, 4
        %1627 = vbcast.lane.b32.xlu0 %v434, %s1626
        %v1628 = vpop.permute.xlu0 %1627
        %s1630 = sor.u32 256, 12
        %1631 = vbcast.lane.b32.xlu0 %v434, %s1630
        %v1632 = vpop.permute.xlu0 %1631
        %s1634 = sor.u32 256, 20
        %1635 = vbcast.lane.b32.xlu0 %v434, %s1634
        %v1636 = vpop.permute.xlu0 %1635
        %s1638 = sor.u32 256, 4
        %1639 = vbcast.lane.b32.xlu0 %v449, %s1638
        %v1640 = vpop.permute.xlu0 %1639
        %s1642 = sor.u32 256, 12
        %1643 = vbcast.lane.b32.xlu0 %v449, %s1642
        %v1644 = vpop.permute.xlu0 %1643
        %s1646 = sor.u32 256, 20
        %1647 = vbcast.lane.b32.xlu0 %v449, %s1646
        %v1648 = vpop.permute.xlu0 %1647
        %s1650 = sor.u32 256, 4
        %1651 = vbcast.lane.b32.xlu0 %v464, %s1650
        %v1652 = vpop.permute.xlu0 %1651
        %s1654 = sor.u32 256, 12
        %1655 = vbcast.lane.b32.xlu0 %v464, %s1654
        %v1656 = vpop.permute.xlu0 %1655
        %s1658 = sor.u32 256, 20
        %1659 = vbcast.lane.b32.xlu0 %v464, %s1658
        %v1660 = vpop.permute.xlu0 %1659
        %s1662 = sor.u32 256, 4
        %1663 = vbcast.lane.b32.xlu0 %v479, %s1662
        %v1664 = vpop.permute.xlu0 %1663
        %s1666 = sor.u32 256, 12
        %1667 = vbcast.lane.b32.xlu0 %v479, %s1666
        %v1668 = vpop.permute.xlu0 %1667
        %s1670 = sor.u32 256, 20
        %1671 = vbcast.lane.b32.xlu0 %v479, %s1670
        %v1672 = vpop.permute.xlu0 %1671
        %s1674 = sor.u32 256, 4
        %1675 = vbcast.lane.b32.xlu0 %v494, %s1674
        %v1676 = vpop.permute.xlu0 %1675
        %s1678 = sor.u32 256, 12
        %1679 = vbcast.lane.b32.xlu0 %v494, %s1678
        %v1680 = vpop.permute.xlu0 %1679
        %s1682 = sor.u32 256, 20
        %1683 = vbcast.lane.b32.xlu0 %v494, %s1682
        %v1684 = vpop.permute.xlu0 %1683
        %s1686 = sor.u32 256, 4
        %1687 = vbcast.lane.b32.xlu0 %v509, %s1686
        %v1688 = vpop.permute.xlu0 %1687
        %s1690 = sor.u32 256, 12
        %1691 = vbcast.lane.b32.xlu0 %v509, %s1690
        %v1692 = vpop.permute.xlu0 %1691
        %s1694 = sor.u32 256, 20
        %1695 = vbcast.lane.b32.xlu0 %v509, %s1694
        %v1696 = vpop.permute.xlu0 %1695
        %s1698 = sor.u32 256, 4
        %1699 = vbcast.lane.b32.xlu0 %v524, %s1698
        %v1700 = vpop.permute.xlu0 %1699
        %s1702 = sor.u32 256, 12
        %1703 = vbcast.lane.b32.xlu0 %v524, %s1702
        %v1704 = vpop.permute.xlu0 %1703
        %s1706 = sor.u32 256, 20
        %1707 = vbcast.lane.b32.xlu0 %v524, %s1706
        %v1708 = vpop.permute.xlu0 %1707
        %s1710 = sor.u32 256, 4
        %1711 = vbcast.lane.b32.xlu0 %v539, %s1710
        %v1712 = vpop.permute.xlu0 %1711
        %s1714 = sor.u32 256, 12
        %1715 = vbcast.lane.b32.xlu0 %v539, %s1714
        %v1716 = vpop.permute.xlu0 %1715
        %s1718 = sor.u32 256, 20
        %1719 = vbcast.lane.b32.xlu0 %v539, %s1718
        %v1720 = vpop.permute.xlu0 %1719
        %s1722 = sor.u32 256, 4
        %1723 = vbcast.lane.b32.xlu0 %v554, %s1722
        %v1724 = vpop.permute.xlu0 %1723
        %s1726 = sor.u32 256, 12
        %1727 = vbcast.lane.b32.xlu0 %v554, %s1726
        %v1728 = vpop.permute.xlu0 %1727
        %s1730 = sor.u32 256, 20
        %1731 = vbcast.lane.b32.xlu0 %v554, %s1730
        %v1732 = vpop.permute.xlu0 %1731
        %s1734 = sor.u32 256, 4
        %1735 = vbcast.lane.b32.xlu0 %v569, %s1734
        %v1736 = vpop.permute.xlu0 %1735
        %s1738 = sor.u32 256, 12
        %1739 = vbcast.lane.b32.xlu0 %v569, %s1738
        %v1740 = vpop.permute.xlu0 %1739
        %s1742 = sor.u32 256, 20
        %1743 = vbcast.lane.b32.xlu0 %v569, %s1742
        %v1744 = vpop.permute.xlu0 %1743
        %s1746 = sor.u32 256, 4
        %1747 = vbcast.lane.b32.xlu0 %v584, %s1746
        %v1748 = vpop.permute.xlu0 %1747
        %s1750 = sor.u32 256, 12
        %1751 = vbcast.lane.b32.xlu0 %v584, %s1750
        %v1752 = vpop.permute.xlu0 %1751
        %s1754 = sor.u32 256, 20
        %1755 = vbcast.lane.b32.xlu0 %v584, %s1754
        %v1756 = vpop.permute.xlu0 %1755
        %s1758 = sor.u32 256, 4
        %1759 = vbcast.lane.b32.xlu0 %v599, %s1758
        %v1760 = vpop.permute.xlu0 %1759
        %s1762 = sor.u32 256, 12
        %1763 = vbcast.lane.b32.xlu0 %v599, %s1762
        %v1764 = vpop.permute.xlu0 %1763
        %s1766 = sor.u32 256, 20
        %1767 = vbcast.lane.b32.xlu0 %v599, %s1766
        %v1768 = vpop.permute.xlu0 %1767
        %s1770 = sor.u32 256, 4
        %1771 = vbcast.lane.b32.xlu0 %v614, %s1770
        %v1772 = vpop.permute.xlu0 %1771
        %s1774 = sor.u32 256, 12
        %1775 = vbcast.lane.b32.xlu0 %v614, %s1774
        %v1776 = vpop.permute.xlu0 %1775
        %s1778 = sor.u32 256, 20
        %1779 = vbcast.lane.b32.xlu0 %v614, %s1778
        %v1780 = vpop.permute.xlu0 %1779
        %s1782 = sor.u32 256, 4
        %1783 = vbcast.lane.b32.xlu0 %v629, %s1782
        %v1784 = vpop.permute.xlu0 %1783
        %s1786 = sor.u32 256, 12
        %1787 = vbcast.lane.b32.xlu0 %v629, %s1786
        %v1788 = vpop.permute.xlu0 %1787
        %s1790 = sor.u32 256, 20
        %1791 = vbcast.lane.b32.xlu0 %v629, %s1790
        %v1792 = vpop.permute.xlu0 %1791
        %v1793 = vlaneseq
        %v1794 = vshrl.u32 %v1793, 7
        %v1795 = vsub.s32 0, %v1794
        %v1796 = vrot.slane %v280, %v1795
        %1798 = vbcast.lane.b32.xlu0 %v1796, 256
        %v1799 = vpop.permute.xlu0 %1798
        %s1801 = sor.u32 256, 8
        %1802 = vbcast.lane.b32.xlu0 %v1796, %s1801
        %v1803 = vpop.permute.xlu0 %1802
        %s1805 = sor.u32 256, 16
        %1806 = vbcast.lane.b32.xlu0 %v1796, %s1805
        %v1807 = vpop.permute.xlu0 %1806
        %s1809 = sor.u32 256, 1
        %1810 = vbcast.lane.b32.xlu0 %v1796, %s1809
        %v1811 = vpop.permute.xlu0 %1810
        %s1813 = sor.u32 256, 9
        %1814 = vbcast.lane.b32.xlu0 %v1796, %s1813
        %v1815 = vpop.permute.xlu0 %1814
        %s1817 = sor.u32 256, 17
        %1818 = vbcast.lane.b32.xlu0 %v1796, %s1817
        %v1819 = vpop.permute.xlu0 %1818
        %s1821 = sor.u32 256, 2
        %1822 = vbcast.lane.b32.xlu0 %v1796, %s1821
        %v1823 = vpop.permute.xlu0 %1822
        %s1825 = sor.u32 256, 10
        %1826 = vbcast.lane.b32.xlu0 %v1796, %s1825
        %v1827 = vpop.permute.xlu0 %1826
        %s1829 = sor.u32 256, 18
        %1830 = vbcast.lane.b32.xlu0 %v1796, %s1829
        %v1831 = vpop.permute.xlu0 %1830
        %s1833 = sor.u32 256, 3
        %1834 = vbcast.lane.b32.xlu0 %v1796, %s1833
        %v1835 = vpop.permute.xlu0 %1834
        %s1837 = sor.u32 256, 11
        %1838 = vbcast.lane.b32.xlu0 %v1796, %s1837
        %v1839 = vpop.permute.xlu0 %1838
        %s1841 = sor.u32 256, 19
        %1842 = vbcast.lane.b32.xlu0 %v1796, %s1841
        %v1843 = vpop.permute.xlu0 %1842
        %s1845 = sor.u32 256, 4
        %1846 = vbcast.lane.b32.xlu0 %v1796, %s1845
        %v1847 = vpop.permute.xlu0 %1846
        %s1849 = sor.u32 256, 12
        %1850 = vbcast.lane.b32.xlu0 %v1796, %s1849
        %v1851 = vpop.permute.xlu0 %1850
        %s1853 = sor.u32 256, 20
        %1854 = vbcast.lane.b32.xlu0 %v1796, %s1853
        %v1855 = vpop.permute.xlu0 %1854
        %v1856 = vlaneseq
        %v1857 = vshrl.u32 %v1856, 7
        %v1858 = vsub.s32 1, %v1857
        %v1859 = vrot.slane %v280, %v1858
        %1861 = vbcast.lane.b32.xlu0 %v1859, 256
        %v1862 = vpop.permute.xlu0 %1861
        %s1864 = sor.u32 256, 8
        %1865 = vbcast.lane.b32.xlu0 %v1859, %s1864
        %v1866 = vpop.permute.xlu0 %1865
        %s1868 = sor.u32 256, 16
        %1869 = vbcast.lane.b32.xlu0 %v1859, %s1868
        %v1870 = vpop.permute.xlu0 %1869
        %s1872 = sor.u32 256, 1
        %1873 = vbcast.lane.b32.xlu0 %v1859, %s1872
        %v1874 = vpop.permute.xlu0 %1873
        %s1876 = sor.u32 256, 9
        %1877 = vbcast.lane.b32.xlu0 %v1859, %s1876
        %v1878 = vpop.permute.xlu0 %1877
        %s1880 = sor.u32 256, 17
        %1881 = vbcast.lane.b32.xlu0 %v1859, %s1880
        %v1882 = vpop.permute.xlu0 %1881
        %s1884 = sor.u32 256, 2
        %1885 = vbcast.lane.b32.xlu0 %v1859, %s1884
        %v1886 = vpop.permute.xlu0 %1885
        %s1888 = sor.u32 256, 10
        %1889 = vbcast.lane.b32.xlu0 %v1859, %s1888
        %v1890 = vpop.permute.xlu0 %1889
        %s1892 = sor.u32 256, 18
        %1893 = vbcast.lane.b32.xlu0 %v1859, %s1892
        %v1894 = vpop.permute.xlu0 %1893
        %s1896 = sor.u32 256, 3
        %1897 = vbcast.lane.b32.xlu0 %v1859, %s1896
        %v1898 = vpop.permute.xlu0 %1897
        %s1900 = sor.u32 256, 11
        %1901 = vbcast.lane.b32.xlu0 %v1859, %s1900
        %v1902 = vpop.permute.xlu0 %1901
        %s1904 = sor.u32 256, 19
        %1905 = vbcast.lane.b32.xlu0 %v1859, %s1904
        %v1906 = vpop.permute.xlu0 %1905
        %s1908 = sor.u32 256, 4
        %1909 = vbcast.lane.b32.xlu0 %v1859, %s1908
        %v1910 = vpop.permute.xlu0 %1909
        %s1912 = sor.u32 256, 12
        %1913 = vbcast.lane.b32.xlu0 %v1859, %s1912
        %v1914 = vpop.permute.xlu0 %1913
        %s1916 = sor.u32 256, 20
        %1917 = vbcast.lane.b32.xlu0 %v1859, %s1916
        %v1918 = vpop.permute.xlu0 %1917
        %v1919 = vlaneseq
        %v1920 = vshrl.u32 %v1919, 7
        %v1921 = vsub.s32 2, %v1920
        %v1922 = vrot.slane %v280, %v1921
        %1924 = vbcast.lane.b32.xlu0 %v1922, 256
        %v1925 = vpop.permute.xlu0 %1924
        %s1927 = sor.u32 256, 8
        %1928 = vbcast.lane.b32.xlu0 %v1922, %s1927
        %v1929 = vpop.permute.xlu0 %1928
        %s1931 = sor.u32 256, 16
        %1932 = vbcast.lane.b32.xlu0 %v1922, %s1931
        %v1933 = vpop.permute.xlu0 %1932
        %s1935 = sor.u32 256, 1
        %1936 = vbcast.lane.b32.xlu0 %v1922, %s1935
        %v1937 = vpop.permute.xlu0 %1936
        %s1939 = sor.u32 256, 9
        %1940 = vbcast.lane.b32.xlu0 %v1922, %s1939
        %v1941 = vpop.permute.xlu0 %1940
        %s1943 = sor.u32 256, 17
        %1944 = vbcast.lane.b32.xlu0 %v1922, %s1943
        %v1945 = vpop.permute.xlu0 %1944
        %s1947 = sor.u32 256, 2
        %1948 = vbcast.lane.b32.xlu0 %v1922, %s1947
        %v1949 = vpop.permute.xlu0 %1948
        %s1951 = sor.u32 256, 10
        %1952 = vbcast.lane.b32.xlu0 %v1922, %s1951
        %v1953 = vpop.permute.xlu0 %1952
        %s1955 = sor.u32 256, 18
        %1956 = vbcast.lane.b32.xlu0 %v1922, %s1955
        %v1957 = vpop.permute.xlu0 %1956
        %s1959 = sor.u32 256, 3
        %1960 = vbcast.lane.b32.xlu0 %v1922, %s1959
        %v1961 = vpop.permute.xlu0 %1960
        %s1963 = sor.u32 256, 11
        %1964 = vbcast.lane.b32.xlu0 %v1922, %s1963
        %v1965 = vpop.permute.xlu0 %1964
        %s1967 = sor.u32 256, 19
        %1968 = vbcast.lane.b32.xlu0 %v1922, %s1967
        %v1969 = vpop.permute.xlu0 %1968
        %s1971 = sor.u32 256, 4
        %1972 = vbcast.lane.b32.xlu0 %v1922, %s1971
        %v1973 = vpop.permute.xlu0 %1972
        %s1975 = sor.u32 256, 12
        %1976 = vbcast.lane.b32.xlu0 %v1922, %s1975
        %v1977 = vpop.permute.xlu0 %1976
        %s1979 = sor.u32 256, 20
        %1980 = vbcast.lane.b32.xlu0 %v1922, %s1979
        %v1981 = vpop.permute.xlu0 %1980
        %v1982 = vlaneseq
        %v1983 = vshrl.u32 %v1982, 7
        %v1984 = vsub.s32 3, %v1983
        %v1985 = vrot.slane %v280, %v1984
        %1987 = vbcast.lane.b32.xlu0 %v1985, 256
        %v1988 = vpop.permute.xlu0 %1987
        %s1990 = sor.u32 256, 8
        %1991 = vbcast.lane.b32.xlu0 %v1985, %s1990
        %v1992 = vpop.permute.xlu0 %1991
        %s1994 = sor.u32 256, 16
        %1995 = vbcast.lane.b32.xlu0 %v1985, %s1994
        %v1996 = vpop.permute.xlu0 %1995
        %s1998 = sor.u32 256, 1
        %1999 = vbcast.lane.b32.xlu0 %v1985, %s1998
        %v2000 = vpop.permute.xlu0 %1999
        %s2002 = sor.u32 256, 9
        %2003 = vbcast.lane.b32.xlu0 %v1985, %s2002
        %v2004 = vpop.permute.xlu0 %2003
        %s2006 = sor.u32 256, 17
        %2007 = vbcast.lane.b32.xlu0 %v1985, %s2006
        %v2008 = vpop.permute.xlu0 %2007
        %s2010 = sor.u32 256, 2
        %2011 = vbcast.lane.b32.xlu0 %v1985, %s2010
        %v2012 = vpop.permute.xlu0 %2011
        %s2014 = sor.u32 256, 10
        %2015 = vbcast.lane.b32.xlu0 %v1985, %s2014
        %v2016 = vpop.permute.xlu0 %2015
        %s2018 = sor.u32 256, 18
        %2019 = vbcast.lane.b32.xlu0 %v1985, %s2018
        %v2020 = vpop.permute.xlu0 %2019
        %s2022 = sor.u32 256, 3
        %2023 = vbcast.lane.b32.xlu0 %v1985, %s2022
        %v2024 = vpop.permute.xlu0 %2023
        %s2026 = sor.u32 256, 11
        %2027 = vbcast.lane.b32.xlu0 %v1985, %s2026
        %v2028 = vpop.permute.xlu0 %2027
        %s2030 = sor.u32 256, 19
        %2031 = vbcast.lane.b32.xlu0 %v1985, %s2030
        %v2032 = vpop.permute.xlu0 %2031
        %s2034 = sor.u32 256, 4
        %2035 = vbcast.lane.b32.xlu0 %v1985, %s2034
        %v2036 = vpop.permute.xlu0 %2035
        %s2038 = sor.u32 256, 12
        %2039 = vbcast.lane.b32.xlu0 %v1985, %s2038
        %v2040 = vpop.permute.xlu0 %2039
        %s2042 = sor.u32 256, 20
        %2043 = vbcast.lane.b32.xlu0 %v1985, %s2042
        %v2044 = vpop.permute.xlu0 %2043
        %vm2045 = vcmask 7168
        %v2046 = vsel %vm2045, %v287, %v644
        %v2047 = vsel %vm2045, %v291, %v648
        %v2048 = vsel %vm2045, %v295, %v652
        %v2049 = vsel %vm2045, %v302, %v656
        %v2050 = vsel %vm2045, %v306, %v660
        %v2051 = vsel %vm2045, %v310, %v664
        %v2052 = vsel %vm2045, %v317, %v668
        %v2053 = vsel %vm2045, %v321, %v672
        %v2054 = vsel %vm2045, %v325, %v676
        %v2055 = vsel %vm2045, %v332, %v680
        %v2056 = vsel %vm2045, %v336, %v684
        %v2057 = vsel %vm2045, %v340, %v688
        %v2058 = vsel %vm2045, %v347, %v692
        %v2059 = vsel %vm2045, %v351, %v696
        %v2060 = vsel %vm2045, %v355, %v700
        %v2061 = vsel %vm2045, %v362, %v704
        %v2062 = vsel %vm2045, %v366, %v708
        %v2063 = vsel %vm2045, %v370, %v712
        %v2064 = vsel %vm2045, %v377, %v716
        %v2065 = vsel %vm2045, %v381, %v720
        %v2066 = vsel %vm2045, %v385, %v724
        %v2067 = vsel %vm2045, %v392, %v728
        %v2068 = vsel %vm2045, %v396, %v732
        %v2069 = vsel %vm2045, %v400, %v736
        %v2070 = vsel %vm2045, %v407, %v740
        %v2071 = vsel %vm2045, %v411, %v744
        %v2072 = vsel %vm2045, %v415, %v748
        %v2073 = vsel %vm2045, %v422, %v752
        %v2074 = vsel %vm2045, %v426, %v756
        %v2075 = vsel %vm2045, %v430, %v760
        %v2076 = vsel %vm2045, %v437, %v764
        %v2077 = vsel %vm2045, %v441, %v768
        %v2078 = vsel %vm2045, %v445, %v772
        %v2079 = vsel %vm2045, %v452, %v776
        %v2080 = vsel %vm2045, %v456, %v780
        %v2081 = vsel %vm2045, %v460, %v784
        %v2082 = vsel %vm2045, %v467, %v788
        %v2083 = vsel %vm2045, %v471, %v792
        %v2084 = vsel %vm2045, %v475, %v796
        %v2085 = vsel %vm2045, %v482, %v800
        %v2086 = vsel %vm2045, %v486, %v804
        %v2087 = vsel %vm2045, %v490, %v808
        %v2088 = vsel %vm2045, %v497, %v812
        %v2089 = vsel %vm2045, %v501, %v816
        %v2090 = vsel %vm2045, %v505, %v820
        %v2091 = vsel %vm2045, %v512, %v824
        %v2092 = vsel %vm2045, %v516, %v828
        %v2093 = vsel %vm2045, %v520, %v832
        %v2094 = vsel %vm2045, %v527, %v836
        %v2095 = vsel %vm2045, %v531, %v840
        %v2096 = vsel %vm2045, %v535, %v844
        %v2097 = vsel %vm2045, %v542, %v848
        %v2098 = vsel %vm2045, %v546, %v852
        %v2099 = vsel %vm2045, %v550, %v856
        %v2100 = vsel %vm2045, %v557, %v860
        %v2101 = vsel %vm2045, %v561, %v864
        %v2102 = vsel %vm2045, %v565, %v868
        %v2103 = vsel %vm2045, %v572, %v872
        %v2104 = vsel %vm2045, %v576, %v876
        %v2105 = vsel %vm2045, %v580, %v880
        %v2106 = vsel %vm2045, %v587, %v884
        %v2107 = vsel %vm2045, %v591, %v888
        %v2108 = vsel %vm2045, %v595, %v892
        %v2109 = vsel %vm2045, %v602, %v896
        %v2110 = vsel %vm2045, %v606, %v900
        %v2111 = vsel %vm2045, %v610, %v904
        %v2112 = vsel %vm2045, %v617, %v908
        %v2113 = vsel %vm2045, %v621, %v912
        %v2114 = vsel %vm2045, %v625, %v916
        %v2115 = vsel %vm2045, %v632, %v920
        %v2116 = vsel %vm2045, %v636, %v924
        %v2117 = vsel %vm2045, %v640, %v928
        %vm2118 = vcmask 15360
        %v2119 = vsel %vm2118, %v2046, %v932
        %v2120 = vsel %vm2118, %v2047, %v936
        %v2121 = vsel %vm2118, %v2048, %v940
        %v2122 = vsel %vm2118, %v2049, %v944
        %v2123 = vsel %vm2118, %v2050, %v948
        %v2124 = vsel %vm2118, %v2051, %v952
        %v2125 = vsel %vm2118, %v2052, %v956
        %v2126 = vsel %vm2118, %v2053, %v960
        %v2127 = vsel %vm2118, %v2054, %v964
        %v2128 = vsel %vm2118, %v2055, %v968
        %v2129 = vsel %vm2118, %v2056, %v972
        %v2130 = vsel %vm2118, %v2057, %v976
        %v2131 = vsel %vm2118, %v2058, %v980
        %v2132 = vsel %vm2118, %v2059, %v984
        %v2133 = vsel %vm2118, %v2060, %v988
        %v2134 = vsel %vm2118, %v2061, %v992
        %v2135 = vsel %vm2118, %v2062, %v996
        %v2136 = vsel %vm2118, %v2063, %v1000
        %v2137 = vsel %vm2118, %v2064, %v1004
        %v2138 = vsel %vm2118, %v2065, %v1008
        %v2139 = vsel %vm2118, %v2066, %v1012
        %v2140 = vsel %vm2118, %v2067, %v1016
        %v2141 = vsel %vm2118, %v2068, %v1020
        %v2142 = vsel %vm2118, %v2069, %v1024
        %v2143 = vsel %vm2118, %v2070, %v1028
        %v2144 = vsel %vm2118, %v2071, %v1032
        %v2145 = vsel %vm2118, %v2072, %v1036
        %v2146 = vsel %vm2118, %v2073, %v1040
        %v2147 = vsel %vm2118, %v2074, %v1044
        %v2148 = vsel %vm2118, %v2075, %v1048
        %v2149 = vsel %vm2118, %v2076, %v1052
        %v2150 = vsel %vm2118, %v2077, %v1056
        %v2151 = vsel %vm2118, %v2078, %v1060
        %v2152 = vsel %vm2118, %v2079, %v1064
        %v2153 = vsel %vm2118, %v2080, %v1068
        %v2154 = vsel %vm2118, %v2081, %v1072
        %v2155 = vsel %vm2118, %v2082, %v1076
        %v2156 = vsel %vm2118, %v2083, %v1080
        %v2157 = vsel %vm2118, %v2084, %v1084
        %v2158 = vsel %vm2118, %v2085, %v1088
        %v2159 = vsel %vm2118, %v2086, %v1092
        %v2160 = vsel %vm2118, %v2087, %v1096
        %v2161 = vsel %vm2118, %v2088, %v1100
        %v2162 = vsel %vm2118, %v2089, %v1104
        %v2163 = vsel %vm2118, %v2090, %v1108
        %v2164 = vsel %vm2118, %v2091, %v1112
        %v2165 = vsel %vm2118, %v2092, %v1116
        %v2166 = vsel %vm2118, %v2093, %v1120
        %v2167 = vsel %vm2118, %v2094, %v1124
        %v2168 = vsel %vm2118, %v2095, %v1128
        %v2169 = vsel %vm2118, %v2096, %v1132
        %v2170 = vsel %vm2118, %v2097, %v1136
        %v2171 = vsel %vm2118, %v2098, %v1140
        %v2172 = vsel %vm2118, %v2099, %v1144
        %v2173 = vsel %vm2118, %v2100, %v1148
        %v2174 = vsel %vm2118, %v2101, %v1152
        %v2175 = vsel %vm2118, %v2102, %v1156
        %v2176 = vsel %vm2118, %v2103, %v1160
        %v2177 = vsel %vm2118, %v2104, %v1164
        %v2178 = vsel %vm2118, %v2105, %v1168
        %v2179 = vsel %vm2118, %v2106, %v1172
        %v2180 = vsel %vm2118, %v2107, %v1176
        %v2181 = vsel %vm2118, %v2108, %v1180
        %v2182 = vsel %vm2118, %v2109, %v1184
        %v2183 = vsel %vm2118, %v2110, %v1188
        %v2184 = vsel %vm2118, %v2111, %v1192
        %v2185 = vsel %vm2118, %v2112, %v1196
        %v2186 = vsel %vm2118, %v2113, %v1200
        %v2187 = vsel %vm2118, %v2114, %v1204
        %v2188 = vsel %vm2118, %v2115, %v1208
        %v2189 = vsel %vm2118, %v2116, %v1212
        %v2190 = vsel %vm2118, %v2117, %v1216
        %vm2191 = vcmask 23552
        %v2192 = vsel %vm2191, %v2119, %v1220
        %v2193 = vsel %vm2191, %v2120, %v1224
        %v2194 = vsel %vm2191, %v2121, %v1228
        %v2195 = vsel %vm2191, %v2122, %v1232
        %v2196 = vsel %vm2191, %v2123, %v1236
        %v2197 = vsel %vm2191, %v2124, %v1240
        %v2198 = vsel %vm2191, %v2125, %v1244
        %v2199 = vsel %vm2191, %v2126, %v1248
        %v2200 = vsel %vm2191, %v2127, %v1252
        %v2201 = vsel %vm2191, %v2128, %v1256
        %v2202 = vsel %vm2191, %v2129, %v1260
        %v2203 = vsel %vm2191, %v2130, %v1264
        %v2204 = vsel %vm2191, %v2131, %v1268
        %v2205 = vsel %vm2191, %v2132, %v1272
        %v2206 = vsel %vm2191, %v2133, %v1276
        %v2207 = vsel %vm2191, %v2134, %v1280
        %v2208 = vsel %vm2191, %v2135, %v1284
        %v2209 = vsel %vm2191, %v2136, %v1288
        %v2210 = vsel %vm2191, %v2137, %v1292
        %v2211 = vsel %vm2191, %v2138, %v1296
        %v2212 = vsel %vm2191, %v2139, %v1300
        %v2213 = vsel %vm2191, %v2140, %v1304
        %v2214 = vsel %vm2191, %v2141, %v1308
        %v2215 = vsel %vm2191, %v2142, %v1312
        %v2216 = vsel %vm2191, %v2143, %v1316
        %v2217 = vsel %vm2191, %v2144, %v1320
        %v2218 = vsel %vm2191, %v2145, %v1324
        %v2219 = vsel %vm2191, %v2146, %v1328
        %v2220 = vsel %vm2191, %v2147, %v1332
        %v2221 = vsel %vm2191, %v2148, %v1336
        %v2222 = vsel %vm2191, %v2149, %v1340
        %v2223 = vsel %vm2191, %v2150, %v1344
        %v2224 = vsel %vm2191, %v2151, %v1348
        %v2225 = vsel %vm2191, %v2152, %v1352
        %v2226 = vsel %vm2191, %v2153, %v1356
        %v2227 = vsel %vm2191, %v2154, %v1360
        %v2228 = vsel %vm2191, %v2155, %v1364
        %v2229 = vsel %vm2191, %v2156, %v1368
        %v2230 = vsel %vm2191, %v2157, %v1372
        %v2231 = vsel %vm2191, %v2158, %v1376
        %v2232 = vsel %vm2191, %v2159, %v1380
        %v2233 = vsel %vm2191, %v2160, %v1384
        %v2234 = vsel %vm2191, %v2161, %v1388
        %v2235 = vsel %vm2191, %v2162, %v1392
        %v2236 = vsel %vm2191, %v2163, %v1396
        %v2237 = vsel %vm2191, %v2164, %v1400
        %v2238 = vsel %vm2191, %v2165, %v1404
        %v2239 = vsel %vm2191, %v2166, %v1408
        %v2240 = vsel %vm2191, %v2167, %v1412
        %v2241 = vsel %vm2191, %v2168, %v1416
        %v2242 = vsel %vm2191, %v2169, %v1420
        %v2243 = vsel %vm2191, %v2170, %v1424
        %v2244 = vsel %vm2191, %v2171, %v1428
        %v2245 = vsel %vm2191, %v2172, %v1432
        %v2246 = vsel %vm2191, %v2173, %v1436
        %v2247 = vsel %vm2191, %v2174, %v1440
        %v2248 = vsel %vm2191, %v2175, %v1444
        %v2249 = vsel %vm2191, %v2176, %v1448
        %v2250 = vsel %vm2191, %v2177, %v1452
        %v2251 = vsel %vm2191, %v2178, %v1456
        %v2252 = vsel %vm2191, %v2179, %v1460
        %v2253 = vsel %vm2191, %v2180, %v1464
        %v2254 = vsel %vm2191, %v2181, %v1468
        %v2255 = vsel %vm2191, %v2182, %v1472
        %v2256 = vsel %vm2191, %v2183, %v1476
        %v2257 = vsel %vm2191, %v2184, %v1480
        %v2258 = vsel %vm2191, %v2185, %v1484
        %v2259 = vsel %vm2191, %v2186, %v1488
        %v2260 = vsel %vm2191, %v2187, %v1492
        %v2261 = vsel %vm2191, %v2188, %v1496
        %v2262 = vsel %vm2191, %v2189, %v1500
        %v2263 = vsel %vm2191, %v2190, %v1504
        %vm2264 = vcmask 31744
        %v2265 = vsel %vm2264, %v2192, %v1508
        %v2266 = vsel %vm2264, %v2193, %v1512
        %v2267 = vsel %vm2264, %v2194, %v1516
        %v2268 = vsel %vm2264, %v2195, %v1520
        %v2269 = vsel %vm2264, %v2196, %v1524
        %v2270 = vsel %vm2264, %v2197, %v1528
        %v2271 = vsel %vm2264, %v2198, %v1532
        %v2272 = vsel %vm2264, %v2199, %v1536
        %v2273 = vsel %vm2264, %v2200, %v1540
        %v2274 = vsel %vm2264, %v2201, %v1544
        %v2275 = vsel %vm2264, %v2202, %v1548
        %v2276 = vsel %vm2264, %v2203, %v1552
        %v2277 = vsel %vm2264, %v2204, %v1556
        %v2278 = vsel %vm2264, %v2205, %v1560
        %v2279 = vsel %vm2264, %v2206, %v1564
        %v2280 = vsel %vm2264, %v2207, %v1568
        %v2281 = vsel %vm2264, %v2208, %v1572
        %v2282 = vsel %vm2264, %v2209, %v1576
        %v2283 = vsel %vm2264, %v2210, %v1580
        %v2284 = vsel %vm2264, %v2211, %v1584
        %v2285 = vsel %vm2264, %v2212, %v1588
        %v2286 = vsel %vm2264, %v2213, %v1592
        %v2287 = vsel %vm2264, %v2214, %v1596
        %v2288 = vsel %vm2264, %v2215, %v1600
        %v2289 = vsel %vm2264, %v2216, %v1604
        %v2290 = vsel %vm2264, %v2217, %v1608
        %v2291 = vsel %vm2264, %v2218, %v1612
        %v2292 = vsel %vm2264, %v2219, %v1616
        %v2293 = vsel %vm2264, %v2220, %v1620
        %v2294 = vsel %vm2264, %v2221, %v1624
        %v2295 = vsel %vm2264, %v2222, %v1628
        %v2296 = vsel %vm2264, %v2223, %v1632
        %v2297 = vsel %vm2264, %v2224, %v1636
        %v2298 = vsel %vm2264, %v2225, %v1640
        %v2299 = vsel %vm2264, %v2226, %v1644
        %v2300 = vsel %vm2264, %v2227, %v1648
        %v2301 = vsel %vm2264, %v2228, %v1652
        %v2302 = vsel %vm2264, %v2229, %v1656
        %v2303 = vsel %vm2264, %v2230, %v1660
        %v2304 = vsel %vm2264, %v2231, %v1664
        %v2305 = vsel %vm2264, %v2232, %v1668
        %v2306 = vsel %vm2264, %v2233, %v1672
        %v2307 = vsel %vm2264, %v2234, %v1676
        %v2308 = vsel %vm2264, %v2235, %v1680
        %v2309 = vsel %vm2264, %v2236, %v1684
        %v2310 = vsel %vm2264, %v2237, %v1688
        %v2311 = vsel %vm2264, %v2238, %v1692
        %v2312 = vsel %vm2264, %v2239, %v1696
        %v2313 = vsel %vm2264, %v2240, %v1700
        %v2314 = vsel %vm2264, %v2241, %v1704
        %v2315 = vsel %vm2264, %v2242, %v1708
        %v2316 = vsel %vm2264, %v2243, %v1712
        %v2317 = vsel %vm2264, %v2244, %v1716
        %v2318 = vsel %vm2264, %v2245, %v1720
        %v2319 = vsel %vm2264, %v2246, %v1724
        %v2320 = vsel %vm2264, %v2247, %v1728
        %v2321 = vsel %vm2264, %v2248, %v1732
        %v2322 = vsel %vm2264, %v2249, %v1736
        %v2323 = vsel %vm2264, %v2250, %v1740
        %v2324 = vsel %vm2264, %v2251, %v1744
        %v2325 = vsel %vm2264, %v2252, %v1748
        %v2326 = vsel %vm2264, %v2253, %v1752
        %v2327 = vsel %vm2264, %v2254, %v1756
        %v2328 = vsel %vm2264, %v2255, %v1760
        %v2329 = vsel %vm2264, %v2256, %v1764
        %v2330 = vsel %vm2264, %v2257, %v1768
        %v2331 = vsel %vm2264, %v2258, %v1772
        %v2332 = vsel %vm2264, %v2259, %v1776
        %v2333 = vsel %vm2264, %v2260, %v1780
        %v2334 = vsel %vm2264, %v2261, %v1784
        %v2335 = vsel %vm2264, %v2262, %v1788
        %v2336 = vsel %vm2264, %v2263, %v1792
        %vm2337 = vcmask 39936
        %v2338 = vsel %vm2337, %v2265, %v302
        %v2339 = vsel %vm2337, %v2266, %v306
        %v2340 = vsel %vm2337, %v2267, %v310
        %v2341 = vsel %vm2337, %v2268, %v317
        %v2342 = vsel %vm2337, %v2269, %v321
        %v2343 = vsel %vm2337, %v2270, %v325
        %v2344 = vsel %vm2337, %v2271, %v332
        %v2345 = vsel %vm2337, %v2272, %v336
        %v2346 = vsel %vm2337, %v2273, %v340
        %v2347 = vsel %vm2337, %v2274, %v347
        %v2348 = vsel %vm2337, %v2275, %v351
        %v2349 = vsel %vm2337, %v2276, %v355
        %v2350 = vsel %vm2337, %v2277, %v362
        %v2351 = vsel %vm2337, %v2278, %v366
        %v2352 = vsel %vm2337, %v2279, %v370
        %v2353 = vsel %vm2337, %v2280, %v377
        %v2354 = vsel %vm2337, %v2281, %v381
        %v2355 = vsel %vm2337, %v2282, %v385
        %v2356 = vsel %vm2337, %v2283, %v392
        %v2357 = vsel %vm2337, %v2284, %v396
        %v2358 = vsel %vm2337, %v2285, %v400
        %v2359 = vsel %vm2337, %v2286, %v407
        %v2360 = vsel %vm2337, %v2287, %v411
        %v2361 = vsel %vm2337, %v2288, %v415
        %v2362 = vsel %vm2337, %v2289, %v422
        %v2363 = vsel %vm2337, %v2290, %v426
        %v2364 = vsel %vm2337, %v2291, %v430
        %v2365 = vsel %vm2337, %v2292, %v437
        %v2366 = vsel %vm2337, %v2293, %v441
        %v2367 = vsel %vm2337, %v2294, %v445
        %v2368 = vsel %vm2337, %v2295, %v452
        %v2369 = vsel %vm2337, %v2296, %v456
        %v2370 = vsel %vm2337, %v2297, %v460
        %v2371 = vsel %vm2337, %v2298, %v467
        %v2372 = vsel %vm2337, %v2299, %v471
        %v2373 = vsel %vm2337, %v2300, %v475
        %v2374 = vsel %vm2337, %v2301, %v482
        %v2375 = vsel %vm2337, %v2302, %v486
        %v2376 = vsel %vm2337, %v2303, %v490
        %v2377 = vsel %vm2337, %v2304, %v497
        %v2378 = vsel %vm2337, %v2305, %v501
        %v2379 = vsel %vm2337, %v2306, %v505
        %v2380 = vsel %vm2337, %v2307, %v512
        %v2381 = vsel %vm2337, %v2308, %v516
        %v2382 = vsel %vm2337, %v2309, %v520
        %v2383 = vsel %vm2337, %v2310, %v527
        %v2384 = vsel %vm2337, %v2311, %v531
        %v2385 = vsel %vm2337, %v2312, %v535
        %v2386 = vsel %vm2337, %v2313, %v542
        %v2387 = vsel %vm2337, %v2314, %v546
        %v2388 = vsel %vm2337, %v2315, %v550
        %v2389 = vsel %vm2337, %v2316, %v557
        %v2390 = vsel %vm2337, %v2317, %v561
        %v2391 = vsel %vm2337, %v2318, %v565
        %v2392 = vsel %vm2337, %v2319, %v572
        %v2393 = vsel %vm2337, %v2320, %v576
        %v2394 = vsel %vm2337, %v2321, %v580
        %v2395 = vsel %vm2337, %v2322, %v587
        %v2396 = vsel %vm2337, %v2323, %v591
        %v2397 = vsel %vm2337, %v2324, %v595
        %v2398 = vsel %vm2337, %v2325, %v602
        %v2399 = vsel %vm2337, %v2326, %v606
        %v2400 = vsel %vm2337, %v2327, %v610
        %v2401 = vsel %vm2337, %v2328, %v617
        %v2402 = vsel %vm2337, %v2329, %v621
        %v2403 = vsel %vm2337, %v2330, %v625
        %v2404 = vsel %vm2337, %v2331, %v632
        %v2405 = vsel %vm2337, %v2332, %v636
        %v2406 = vsel %vm2337, %v2333, %v640
        %v2407 = vsel %vm2337, %v2334, %v1799
        %v2408 = vsel %vm2337, %v2335, %v1803
        %v2409 = vsel %vm2337, %v2336, %v1807
        %vm2410 = vcmask 48128
        %v2411 = vsel %vm2410, %v2338, %v656
        %v2412 = vsel %vm2410, %v2339, %v660
        %v2413 = vsel %vm2410, %v2340, %v664
        %v2414 = vsel %vm2410, %v2341, %v668
        %v2415 = vsel %vm2410, %v2342, %v672
        %v2416 = vsel %vm2410, %v2343, %v676
        %v2417 = vsel %vm2410, %v2344, %v680
        %v2418 = vsel %vm2410, %v2345, %v684
        %v2419 = vsel %vm2410, %v2346, %v688
        %v2420 = vsel %vm2410, %v2347, %v692
        %v2421 = vsel %vm2410, %v2348, %v696
        %v2422 = vsel %vm2410, %v2349, %v700
        %v2423 = vsel %vm2410, %v2350, %v704
        %v2424 = vsel %vm2410, %v2351, %v708
        %v2425 = vsel %vm2410, %v2352, %v712
        %v2426 = vsel %vm2410, %v2353, %v716
        %v2427 = vsel %vm2410, %v2354, %v720
        %v2428 = vsel %vm2410, %v2355, %v724
        %v2429 = vsel %vm2410, %v2356, %v728
        %v2430 = vsel %vm2410, %v2357, %v732
        %v2431 = vsel %vm2410, %v2358, %v736
        %v2432 = vsel %vm2410, %v2359, %v740
        %v2433 = vsel %vm2410, %v2360, %v744
        %v2434 = vsel %vm2410, %v2361, %v748
        %v2435 = vsel %vm2410, %v2362, %v752
        %v2436 = vsel %vm2410, %v2363, %v756
        %v2437 = vsel %vm2410, %v2364, %v760
        %v2438 = vsel %vm2410, %v2365, %v764
        %v2439 = vsel %vm2410, %v2366, %v768
        %v2440 = vsel %vm2410, %v2367, %v772
        %v2441 = vsel %vm2410, %v2368, %v776
        %v2442 = vsel %vm2410, %v2369, %v780
        %v2443 = vsel %vm2410, %v2370, %v784
        %v2444 = vsel %vm2410, %v2371, %v788
        %v2445 = vsel %vm2410, %v2372, %v792
        %v2446 = vsel %vm2410, %v2373, %v796
        %v2447 = vsel %vm2410, %v2374, %v800
        %v2448 = vsel %vm2410, %v2375, %v804
        %v2449 = vsel %vm2410, %v2376, %v808
        %v2450 = vsel %vm2410, %v2377, %v812
        %v2451 = vsel %vm2410, %v2378, %v816
        %v2452 = vsel %vm2410, %v2379, %v820
        %v2453 = vsel %vm2410, %v2380, %v824
        %v2454 = vsel %vm2410, %v2381, %v828
        %v2455 = vsel %vm2410, %v2382, %v832
        %v2456 = vsel %vm2410, %v2383, %v836
        %v2457 = vsel %vm2410, %v2384, %v840
        %v2458 = vsel %vm2410, %v2385, %v844
        %v2459 = vsel %vm2410, %v2386, %v848
        %v2460 = vsel %vm2410, %v2387, %v852
        %v2461 = vsel %vm2410, %v2388, %v856
        %v2462 = vsel %vm2410, %v2389, %v860
        %v2463 = vsel %vm2410, %v2390, %v864
        %v2464 = vsel %vm2410, %v2391, %v868
        %v2465 = vsel %vm2410, %v2392, %v872
        %v2466 = vsel %vm2410, %v2393, %v876
        %v2467 = vsel %vm2410, %v2394, %v880
        %v2468 = vsel %vm2410, %v2395, %v884
        %v2469 = vsel %vm2410, %v2396, %v888
        %v2470 = vsel %vm2410, %v2397, %v892
        %v2471 = vsel %vm2410, %v2398, %v896
        %v2472 = vsel %vm2410, %v2399, %v900
        %v2473 = vsel %vm2410, %v2400, %v904
        %v2474 = vsel %vm2410, %v2401, %v908
        %v2475 = vsel %vm2410, %v2402, %v912
        %v2476 = vsel %vm2410, %v2403, %v916
        %v2477 = vsel %vm2410, %v2404, %v920
        %v2478 = vsel %vm2410, %v2405, %v924
        %v2479 = vsel %vm2410, %v2406, %v928
        %v2480 = vsel %vm2410, %v2407, %v1811
        %v2481 = vsel %vm2410, %v2408, %v1815
        %v2482 = vsel %vm2410, %v2409, %v1819
        %vm2483 = vcmask 56320
        %v2484 = vsel %vm2483, %v2411, %v944
        %v2485 = vsel %vm2483, %v2412, %v948
        %v2486 = vsel %vm2483, %v2413, %v952
        %v2487 = vsel %vm2483, %v2414, %v956
        %v2488 = vsel %vm2483, %v2415, %v960
        %v2489 = vsel %vm2483, %v2416, %v964
        %v2490 = vsel %vm2483, %v2417, %v968
        %v2491 = vsel %vm2483, %v2418, %v972
        %v2492 = vsel %vm2483, %v2419, %v976
        %v2493 = vsel %vm2483, %v2420, %v980
        %v2494 = vsel %vm2483, %v2421, %v984
        %v2495 = vsel %vm2483, %v2422, %v988
        %v2496 = vsel %vm2483, %v2423, %v992
        %v2497 = vsel %vm2483, %v2424, %v996
        %v2498 = vsel %vm2483, %v2425, %v1000
        %v2499 = vsel %vm2483, %v2426, %v1004
        %v2500 = vsel %vm2483, %v2427, %v1008
        %v2501 = vsel %vm2483, %v2428, %v1012
        %v2502 = vsel %vm2483, %v2429, %v1016
        %v2503 = vsel %vm2483, %v2430, %v1020
        %v2504 = vsel %vm2483, %v2431, %v1024
        %v2505 = vsel %vm2483, %v2432, %v1028
        %v2506 = vsel %vm2483, %v2433, %v1032
        %v2507 = vsel %vm2483, %v2434, %v1036
        %v2508 = vsel %vm2483, %v2435, %v1040
        %v2509 = vsel %vm2483, %v2436, %v1044
        %v2510 = vsel %vm2483, %v2437, %v1048
        %v2511 = vsel %vm2483, %v2438, %v1052
        %v2512 = vsel %vm2483, %v2439, %v1056
        %v2513 = vsel %vm2483, %v2440, %v1060
        %v2514 = vsel %vm2483, %v2441, %v1064
        %v2515 = vsel %vm2483, %v2442, %v1068
        %v2516 = vsel %vm2483, %v2443, %v1072
        %v2517 = vsel %vm2483, %v2444, %v1076
        %v2518 = vsel %vm2483, %v2445, %v1080
        %v2519 = vsel %vm2483, %v2446, %v1084
        %v2520 = vsel %vm2483, %v2447, %v1088
        %v2521 = vsel %vm2483, %v2448, %v1092
        %v2522 = vsel %vm2483, %v2449, %v1096
        %v2523 = vsel %vm2483, %v2450, %v1100
        %v2524 = vsel %vm2483, %v2451, %v1104
        %v2525 = vsel %vm2483, %v2452, %v1108
        %v2526 = vsel %vm2483, %v2453, %v1112
        %v2527 = vsel %vm2483, %v2454, %v1116
        %v2528 = vsel %vm2483, %v2455, %v1120
        %v2529 = vsel %vm2483, %v2456, %v1124
        %v2530 = vsel %vm2483, %v2457, %v1128
        %v2531 = vsel %vm2483, %v2458, %v1132
        %v2532 = vsel %vm2483, %v2459, %v1136
        %v2533 = vsel %vm2483, %v2460, %v1140
        %v2534 = vsel %vm2483, %v2461, %v1144
        %v2535 = vsel %vm2483, %v2462, %v1148
        %v2536 = vsel %vm2483, %v2463, %v1152
        %v2537 = vsel %vm2483, %v2464, %v1156
        %v2538 = vsel %vm2483, %v2465, %v1160
        %v2539 = vsel %vm2483, %v2466, %v1164
        %v2540 = vsel %vm2483, %v2467, %v1168
        %v2541 = vsel %vm2483, %v2468, %v1172
        %v2542 = vsel %vm2483, %v2469, %v1176
        %v2543 = vsel %vm2483, %v2470, %v1180
        %v2544 = vsel %vm2483, %v2471, %v1184
        %v2545 = vsel %vm2483, %v2472, %v1188
        %v2546 = vsel %vm2483, %v2473, %v1192
        %v2547 = vsel %vm2483, %v2474, %v1196
        %v2548 = vsel %vm2483, %v2475, %v1200
        %v2549 = vsel %vm2483, %v2476, %v1204
        %v2550 = vsel %vm2483, %v2477, %v1208
        %v2551 = vsel %vm2483, %v2478, %v1212
        %v2552 = vsel %vm2483, %v2479, %v1216
        %v2553 = vsel %vm2483, %v2480, %v1823
        %v2554 = vsel %vm2483, %v2481, %v1827
        %v2555 = vsel %vm2483, %v2482, %v1831
        %vm2556 = vcmask 64512
        %v2557 = vsel %vm2556, %v2484, %v1232
        %v2558 = vsel %vm2556, %v2485, %v1236
        %v2559 = vsel %vm2556, %v2486, %v1240
        %v2560 = vsel %vm2556, %v2487, %v1244
        %v2561 = vsel %vm2556, %v2488, %v1248
        %v2562 = vsel %vm2556, %v2489, %v1252
        %v2563 = vsel %vm2556, %v2490, %v1256
        %v2564 = vsel %vm2556, %v2491, %v1260
        %v2565 = vsel %vm2556, %v2492, %v1264
        %v2566 = vsel %vm2556, %v2493, %v1268
        %v2567 = vsel %vm2556, %v2494, %v1272
        %v2568 = vsel %vm2556, %v2495, %v1276
        %v2569 = vsel %vm2556, %v2496, %v1280
        %v2570 = vsel %vm2556, %v2497, %v1284
        %v2571 = vsel %vm2556, %v2498, %v1288
        %v2572 = vsel %vm2556, %v2499, %v1292
        %v2573 = vsel %vm2556, %v2500, %v1296
        %v2574 = vsel %vm2556, %v2501, %v1300
        %v2575 = vsel %vm2556, %v2502, %v1304
        %v2576 = vsel %vm2556, %v2503, %v1308
        %v2577 = vsel %vm2556, %v2504, %v1312
        %v2578 = vsel %vm2556, %v2505, %v1316
        %v2579 = vsel %vm2556, %v2506, %v1320
        %v2580 = vsel %vm2556, %v2507, %v1324
        %v2581 = vsel %vm2556, %v2508, %v1328
        %v2582 = vsel %vm2556, %v2509, %v1332
        %v2583 = vsel %vm2556, %v2510, %v1336
        %v2584 = vsel %vm2556, %v2511, %v1340
        %v2585 = vsel %vm2556, %v2512, %v1344
        %v2586 = vsel %vm2556, %v2513, %v1348
        %v2587 = vsel %vm2556, %v2514, %v1352
        %v2588 = vsel %vm2556, %v2515, %v1356
        %v2589 = vsel %vm2556, %v2516, %v1360
        %v2590 = vsel %vm2556, %v2517, %v1364
        %v2591 = vsel %vm2556, %v2518, %v1368
        %v2592 = vsel %vm2556, %v2519, %v1372
        %v2593 = vsel %vm2556, %v2520, %v1376
        %v2594 = vsel %vm2556, %v2521, %v1380
        %v2595 = vsel %vm2556, %v2522, %v1384
        %v2596 = vsel %vm2556, %v2523, %v1388
        %v2597 = vsel %vm2556, %v2524, %v1392
        %v2598 = vsel %vm2556, %v2525, %v1396
        %v2599 = vsel %vm2556, %v2526, %v1400
        %v2600 = vsel %vm2556, %v2527, %v1404
        %v2601 = vsel %vm2556, %v2528, %v1408
        %v2602 = vsel %vm2556, %v2529, %v1412
        %v2603 = vsel %vm2556, %v2530, %v1416
        %v2604 = vsel %vm2556, %v2531, %v1420
        %v2605 = vsel %vm2556, %v2532, %v1424
        %v2606 = vsel %vm2556, %v2533, %v1428
        %v2607 = vsel %vm2556, %v2534, %v1432
        %v2608 = vsel %vm2556, %v2535, %v1436
        %v2609 = vsel %vm2556, %v2536, %v1440
        %v2610 = vsel %vm2556, %v2537, %v1444
        %v2611 = vsel %vm2556, %v2538, %v1448
        %v2612 = vsel %vm2556, %v2539, %v1452
        %v2613 = vsel %vm2556, %v2540, %v1456
        %v2614 = vsel %vm2556, %v2541, %v1460
        %v2615 = vsel %vm2556, %v2542, %v1464
        %v2616 = vsel %vm2556, %v2543, %v1468
        %v2617 = vsel %vm2556, %v2544, %v1472
        %v2618 = vsel %vm2556, %v2545, %v1476
        %v2619 = vsel %vm2556, %v2546, %v1480
        %v2620 = vsel %vm2556, %v2547, %v1484
        %v2621 = vsel %vm2556, %v2548, %v1488
        %v2622 = vsel %vm2556, %v2549, %v1492
        %v2623 = vsel %vm2556, %v2550, %v1496
        %v2624 = vsel %vm2556, %v2551, %v1500
        %v2625 = vsel %vm2556, %v2552, %v1504
        %v2626 = vsel %vm2556, %v2553, %v1835
        %v2627 = vsel %vm2556, %v2554, %v1839
        %v2628 = vsel %vm2556, %v2555, %v1843
        %vm2629 = vcmask 72704
        %v2630 = vsel %vm2629, %v2557, %v1520
        %v2631 = vsel %vm2629, %v2558, %v1524
        %v2632 = vsel %vm2629, %v2559, %v1528
        %v2633 = vsel %vm2629, %v2560, %v1532
        %v2634 = vsel %vm2629, %v2561, %v1536
        %v2635 = vsel %vm2629, %v2562, %v1540
        %v2636 = vsel %vm2629, %v2563, %v1544
        %v2637 = vsel %vm2629, %v2564, %v1548
        %v2638 = vsel %vm2629, %v2565, %v1552
        %v2639 = vsel %vm2629, %v2566, %v1556
        %v2640 = vsel %vm2629, %v2567, %v1560
        %v2641 = vsel %vm2629, %v2568, %v1564
        %v2642 = vsel %vm2629, %v2569, %v1568
        %v2643 = vsel %vm2629, %v2570, %v1572
        %v2644 = vsel %vm2629, %v2571, %v1576
        %v2645 = vsel %vm2629, %v2572, %v1580
        %v2646 = vsel %vm2629, %v2573, %v1584
        %v2647 = vsel %vm2629, %v2574, %v1588
        %v2648 = vsel %vm2629, %v2575, %v1592
        %v2649 = vsel %vm2629, %v2576, %v1596
        %v2650 = vsel %vm2629, %v2577, %v1600
        %v2651 = vsel %vm2629, %v2578, %v1604
        %v2652 = vsel %vm2629, %v2579, %v1608
        %v2653 = vsel %vm2629, %v2580, %v1612
        %v2654 = vsel %vm2629, %v2581, %v1616
        %v2655 = vsel %vm2629, %v2582, %v1620
        %v2656 = vsel %vm2629, %v2583, %v1624
        %v2657 = vsel %vm2629, %v2584, %v1628
        %v2658 = vsel %vm2629, %v2585, %v1632
        %v2659 = vsel %vm2629, %v2586, %v1636
        %v2660 = vsel %vm2629, %v2587, %v1640
        %v2661 = vsel %vm2629, %v2588, %v1644
        %v2662 = vsel %vm2629, %v2589, %v1648
        %v2663 = vsel %vm2629, %v2590, %v1652
        %v2664 = vsel %vm2629, %v2591, %v1656
        %v2665 = vsel %vm2629, %v2592, %v1660
        %v2666 = vsel %vm2629, %v2593, %v1664
        %v2667 = vsel %vm2629, %v2594, %v1668
        %v2668 = vsel %vm2629, %v2595, %v1672
        %v2669 = vsel %vm2629, %v2596, %v1676
        %v2670 = vsel %vm2629, %v2597, %v1680
        %v2671 = vsel %vm2629, %v2598, %v1684
        %v2672 = vsel %vm2629, %v2599, %v1688
        %v2673 = vsel %vm2629, %v2600, %v1692
        %v2674 = vsel %vm2629, %v2601, %v1696
        %v2675 = vsel %vm2629, %v2602, %v1700
        %v2676 = vsel %vm2629, %v2603, %v1704
        %v2677 = vsel %vm2629, %v2604, %v1708
        %v2678 = vsel %vm2629, %v2605, %v1712
        %v2679 = vsel %vm2629, %v2606, %v1716
        %v2680 = vsel %vm2629, %v2607, %v1720
        %v2681 = vsel %vm2629, %v2608, %v1724
        %v2682 = vsel %vm2629, %v2609, %v1728
        %v2683 = vsel %vm2629, %v2610, %v1732
        %v2684 = vsel %vm2629, %v2611, %v1736
        %v2685 = vsel %vm2629, %v2612, %v1740
        %v2686 = vsel %vm2629, %v2613, %v1744
        %v2687 = vsel %vm2629, %v2614, %v1748
        %v2688 = vsel %vm2629, %v2615, %v1752
        %v2689 = vsel %vm2629, %v2616, %v1756
        %v2690 = vsel %vm2629, %v2617, %v1760
        %v2691 = vsel %vm2629, %v2618, %v1764
        %v2692 = vsel %vm2629, %v2619, %v1768
        %v2693 = vsel %vm2629, %v2620, %v1772
        %v2694 = vsel %vm2629, %v2621, %v1776
        %v2695 = vsel %vm2629, %v2622, %v1780
        %v2696 = vsel %vm2629, %v2623, %v1784
        %v2697 = vsel %vm2629, %v2624, %v1788
        %v2698 = vsel %vm2629, %v2625, %v1792
        %v2699 = vsel %vm2629, %v2626, %v1847
        %v2700 = vsel %vm2629, %v2627, %v1851
        %v2701 = vsel %vm2629, %v2628, %v1855
        %vm2702 = vcmask 80896
        %v2703 = vsel %vm2702, %v2630, %v317
        %v2704 = vsel %vm2702, %v2631, %v321
        %v2705 = vsel %vm2702, %v2632, %v325
        %v2706 = vsel %vm2702, %v2633, %v332
        %v2707 = vsel %vm2702, %v2634, %v336
        %v2708 = vsel %vm2702, %v2635, %v340
        %v2709 = vsel %vm2702, %v2636, %v347
        %v2710 = vsel %vm2702, %v2637, %v351
        %v2711 = vsel %vm2702, %v2638, %v355
        %v2712 = vsel %vm2702, %v2639, %v362
        %v2713 = vsel %vm2702, %v2640, %v366
        %v2714 = vsel %vm2702, %v2641, %v370
        %v2715 = vsel %vm2702, %v2642, %v377
        %v2716 = vsel %vm2702, %v2643, %v381
        %v2717 = vsel %vm2702, %v2644, %v385
        %v2718 = vsel %vm2702, %v2645, %v392
        %v2719 = vsel %vm2702, %v2646, %v396
        %v2720 = vsel %vm2702, %v2647, %v400
        %v2721 = vsel %vm2702, %v2648, %v407
        %v2722 = vsel %vm2702, %v2649, %v411
        %v2723 = vsel %vm2702, %v2650, %v415
        %v2724 = vsel %vm2702, %v2651, %v422
        %v2725 = vsel %vm2702, %v2652, %v426
        %v2726 = vsel %vm2702, %v2653, %v430
        %v2727 = vsel %vm2702, %v2654, %v437
        %v2728 = vsel %vm2702, %v2655, %v441
        %v2729 = vsel %vm2702, %v2656, %v445
        %v2730 = vsel %vm2702, %v2657, %v452
        %v2731 = vsel %vm2702, %v2658, %v456
        %v2732 = vsel %vm2702, %v2659, %v460
        %v2733 = vsel %vm2702, %v2660, %v467
        %v2734 = vsel %vm2702, %v2661, %v471
        %v2735 = vsel %vm2702, %v2662, %v475
        %v2736 = vsel %vm2702, %v2663, %v482
        %v2737 = vsel %vm2702, %v2664, %v486
        %v2738 = vsel %vm2702, %v2665, %v490
        %v2739 = vsel %vm2702, %v2666, %v497
        %v2740 = vsel %vm2702, %v2667, %v501
        %v2741 = vsel %vm2702, %v2668, %v505
        %v2742 = vsel %vm2702, %v2669, %v512
        %v2743 = vsel %vm2702, %v2670, %v516
        %v2744 = vsel %vm2702, %v2671, %v520
        %v2745 = vsel %vm2702, %v2672, %v527
        %v2746 = vsel %vm2702, %v2673, %v531
        %v2747 = vsel %vm2702, %v2674, %v535
        %v2748 = vsel %vm2702, %v2675, %v542
        %v2749 = vsel %vm2702, %v2676, %v546
        %v2750 = vsel %vm2702, %v2677, %v550
        %v2751 = vsel %vm2702, %v2678, %v557
        %v2752 = vsel %vm2702, %v2679, %v561
        %v2753 = vsel %vm2702, %v2680, %v565
        %v2754 = vsel %vm2702, %v2681, %v572
        %v2755 = vsel %vm2702, %v2682, %v576
        %v2756 = vsel %vm2702, %v2683, %v580
        %v2757 = vsel %vm2702, %v2684, %v587
        %v2758 = vsel %vm2702, %v2685, %v591
        %v2759 = vsel %vm2702, %v2686, %v595
        %v2760 = vsel %vm2702, %v2687, %v602
        %v2761 = vsel %vm2702, %v2688, %v606
        %v2762 = vsel %vm2702, %v2689, %v610
        %v2763 = vsel %vm2702, %v2690, %v617
        %v2764 = vsel %vm2702, %v2691, %v621
        %v2765 = vsel %vm2702, %v2692, %v625
        %v2766 = vsel %vm2702, %v2693, %v632
        %v2767 = vsel %vm2702, %v2694, %v636
        %v2768 = vsel %vm2702, %v2695, %v640
        %v2769 = vsel %vm2702, %v2696, %v1799
        %v2770 = vsel %vm2702, %v2697, %v1803
        %v2771 = vsel %vm2702, %v2698, %v1807
        %v2772 = vsel %vm2702, %v2699, %v1862
        %v2773 = vsel %vm2702, %v2700, %v1866
        %v2774 = vsel %vm2702, %v2701, %v1870
        %vm2775 = vcmask 89088
        %v2776 = vsel %vm2775, %v2703, %v668
        %v2777 = vsel %vm2775, %v2704, %v672
        %v2778 = vsel %vm2775, %v2705, %v676
        %v2779 = vsel %vm2775, %v2706, %v680
        %v2780 = vsel %vm2775, %v2707, %v684
        %v2781 = vsel %vm2775, %v2708, %v688
        %v2782 = vsel %vm2775, %v2709, %v692
        %v2783 = vsel %vm2775, %v2710, %v696
        %v2784 = vsel %vm2775, %v2711, %v700
        %v2785 = vsel %vm2775, %v2712, %v704
        %v2786 = vsel %vm2775, %v2713, %v708
        %v2787 = vsel %vm2775, %v2714, %v712
        %v2788 = vsel %vm2775, %v2715, %v716
        %v2789 = vsel %vm2775, %v2716, %v720
        %v2790 = vsel %vm2775, %v2717, %v724
        %v2791 = vsel %vm2775, %v2718, %v728
        %v2792 = vsel %vm2775, %v2719, %v732
        %v2793 = vsel %vm2775, %v2720, %v736
        %v2794 = vsel %vm2775, %v2721, %v740
        %v2795 = vsel %vm2775, %v2722, %v744
        %v2796 = vsel %vm2775, %v2723, %v748
        %v2797 = vsel %vm2775, %v2724, %v752
        %v2798 = vsel %vm2775, %v2725, %v756
        %v2799 = vsel %vm2775, %v2726, %v760
        %v2800 = vsel %vm2775, %v2727, %v764
        %v2801 = vsel %vm2775, %v2728, %v768
        %v2802 = vsel %vm2775, %v2729, %v772
        %v2803 = vsel %vm2775, %v2730, %v776
        %v2804 = vsel %vm2775, %v2731, %v780
        %v2805 = vsel %vm2775, %v2732, %v784
        %v2806 = vsel %vm2775, %v2733, %v788
        %v2807 = vsel %vm2775, %v2734, %v792
        %v2808 = vsel %vm2775, %v2735, %v796
        %v2809 = vsel %vm2775, %v2736, %v800
        %v2810 = vsel %vm2775, %v2737, %v804
        %v2811 = vsel %vm2775, %v2738, %v808
        %v2812 = vsel %vm2775, %v2739, %v812
        %v2813 = vsel %vm2775, %v2740, %v816
        %v2814 = vsel %vm2775, %v2741, %v820
        %v2815 = vsel %vm2775, %v2742, %v824
        %v2816 = vsel %vm2775, %v2743, %v828
        %v2817 = vsel %vm2775, %v2744, %v832
        %v2818 = vsel %vm2775, %v2745, %v836
        %v2819 = vsel %vm2775, %v2746, %v840
        %v2820 = vsel %vm2775, %v2747, %v844
        %v2821 = vsel %vm2775, %v2748, %v848
        %v2822 = vsel %vm2775, %v2749, %v852
        %v2823 = vsel %vm2775, %v2750, %v856
        %v2824 = vsel %vm2775, %v2751, %v860
        %v2825 = vsel %vm2775, %v2752, %v864
        %v2826 = vsel %vm2775, %v2753, %v868
        %v2827 = vsel %vm2775, %v2754, %v872
        %v2828 = vsel %vm2775, %v2755, %v876
        %v2829 = vsel %vm2775, %v2756, %v880
        %v2830 = vsel %vm2775, %v2757, %v884
        %v2831 = vsel %vm2775, %v2758, %v888
        %v2832 = vsel %vm2775, %v2759, %v892
        %v2833 = vsel %vm2775, %v2760, %v896
        %v2834 = vsel %vm2775, %v2761, %v900
        %v2835 = vsel %vm2775, %v2762, %v904
        %v2836 = vsel %vm2775, %v2763, %v908
        %v2837 = vsel %vm2775, %v2764, %v912
        %v2838 = vsel %vm2775, %v2765, %v916
        %v2839 = vsel %vm2775, %v2766, %v920
        %v2840 = vsel %vm2775, %v2767, %v924
        %v2841 = vsel %vm2775, %v2768, %v928
        %v2842 = vsel %vm2775, %v2769, %v1811
        %v2843 = vsel %vm2775, %v2770, %v1815
        %v2844 = vsel %vm2775, %v2771, %v1819
        %v2845 = vsel %vm2775, %v2772, %v1874
        %v2846 = vsel %vm2775, %v2773, %v1878
        %v2847 = vsel %vm2775, %v2774, %v1882
        %vm2848 = vcmask 97280
        %v2849 = vsel %vm2848, %v2776, %v956
        %v2850 = vsel %vm2848, %v2777, %v960
        %v2851 = vsel %vm2848, %v2778, %v964
        %v2852 = vsel %vm2848, %v2779, %v968
        %v2853 = vsel %vm2848, %v2780, %v972
        %v2854 = vsel %vm2848, %v2781, %v976
        %v2855 = vsel %vm2848, %v2782, %v980
        %v2856 = vsel %vm2848, %v2783, %v984
        %v2857 = vsel %vm2848, %v2784, %v988
        %v2858 = vsel %vm2848, %v2785, %v992
        %v2859 = vsel %vm2848, %v2786, %v996
        %v2860 = vsel %vm2848, %v2787, %v1000
        %v2861 = vsel %vm2848, %v2788, %v1004
        %v2862 = vsel %vm2848, %v2789, %v1008
        %v2863 = vsel %vm2848, %v2790, %v1012
        %v2864 = vsel %vm2848, %v2791, %v1016
        %v2865 = vsel %vm2848, %v2792, %v1020
        %v2866 = vsel %vm2848, %v2793, %v1024
        %v2867 = vsel %vm2848, %v2794, %v1028
        %v2868 = vsel %vm2848, %v2795, %v1032
        %v2869 = vsel %vm2848, %v2796, %v1036
        %v2870 = vsel %vm2848, %v2797, %v1040
        %v2871 = vsel %vm2848, %v2798, %v1044
        %v2872 = vsel %vm2848, %v2799, %v1048
        %v2873 = vsel %vm2848, %v2800, %v1052
        %v2874 = vsel %vm2848, %v2801, %v1056
        %v2875 = vsel %vm2848, %v2802, %v1060
        %v2876 = vsel %vm2848, %v2803, %v1064
        %v2877 = vsel %vm2848, %v2804, %v1068
        %v2878 = vsel %vm2848, %v2805, %v1072
        %v2879 = vsel %vm2848, %v2806, %v1076
        %v2880 = vsel %vm2848, %v2807, %v1080
        %v2881 = vsel %vm2848, %v2808, %v1084
        %v2882 = vsel %vm2848, %v2809, %v1088
        %v2883 = vsel %vm2848, %v2810, %v1092
        %v2884 = vsel %vm2848, %v2811, %v1096
        %v2885 = vsel %vm2848, %v2812, %v1100
        %v2886 = vsel %vm2848, %v2813, %v1104
        %v2887 = vsel %vm2848, %v2814, %v1108
        %v2888 = vsel %vm2848, %v2815, %v1112
        %v2889 = vsel %vm2848, %v2816, %v1116
        %v2890 = vsel %vm2848, %v2817, %v1120
        %v2891 = vsel %vm2848, %v2818, %v1124
        %v2892 = vsel %vm2848, %v2819, %v1128
        %v2893 = vsel %vm2848, %v2820, %v1132
        %v2894 = vsel %vm2848, %v2821, %v1136
        %v2895 = vsel %vm2848, %v2822, %v1140
        %v2896 = vsel %vm2848, %v2823, %v1144
        %v2897 = vsel %vm2848, %v2824, %v1148
        %v2898 = vsel %vm2848, %v2825, %v1152
        %v2899 = vsel %vm2848, %v2826, %v1156
        %v2900 = vsel %vm2848, %v2827, %v1160
        %v2901 = vsel %vm2848, %v2828, %v1164
        %v2902 = vsel %vm2848, %v2829, %v1168
        %v2903 = vsel %vm2848, %v2830, %v1172
        %v2904 = vsel %vm2848, %v2831, %v1176
        %v2905 = vsel %vm2848, %v2832, %v1180
        %v2906 = vsel %vm2848, %v2833, %v1184
        %v2907 = vsel %vm2848, %v2834, %v1188
        %v2908 = vsel %vm2848, %v2835, %v1192
        %v2909 = vsel %vm2848, %v2836, %v1196
        %v2910 = vsel %vm2848, %v2837, %v1200
        %v2911 = vsel %vm2848, %v2838, %v1204
        %v2912 = vsel %vm2848, %v2839, %v1208
        %v2913 = vsel %vm2848, %v2840, %v1212
        %v2914 = vsel %vm2848, %v2841, %v1216
        %v2915 = vsel %vm2848, %v2842, %v1823
        %v2916 = vsel %vm2848, %v2843, %v1827
        %v2917 = vsel %vm2848, %v2844, %v1831
        %v2918 = vsel %vm2848, %v2845, %v1886
        %v2919 = vsel %vm2848, %v2846, %v1890
        %v2920 = vsel %vm2848, %v2847, %v1894
        %vm2921 = vcmask 105472
        %v2922 = vsel %vm2921, %v2849, %v1244
        %v2923 = vsel %vm2921, %v2850, %v1248
        %v2924 = vsel %vm2921, %v2851, %v1252
        %v2925 = vsel %vm2921, %v2852, %v1256
        %v2926 = vsel %vm2921, %v2853, %v1260
        %v2927 = vsel %vm2921, %v2854, %v1264
        %v2928 = vsel %vm2921, %v2855, %v1268
        %v2929 = vsel %vm2921, %v2856, %v1272
        %v2930 = vsel %vm2921, %v2857, %v1276
        %v2931 = vsel %vm2921, %v2858, %v1280
        %v2932 = vsel %vm2921, %v2859, %v1284
        %v2933 = vsel %vm2921, %v2860, %v1288
        %v2934 = vsel %vm2921, %v2861, %v1292
        %v2935 = vsel %vm2921, %v2862, %v1296
        %v2936 = vsel %vm2921, %v2863, %v1300
        %v2937 = vsel %vm2921, %v2864, %v1304
        %v2938 = vsel %vm2921, %v2865, %v1308
        %v2939 = vsel %vm2921, %v2866, %v1312
        %v2940 = vsel %vm2921, %v2867, %v1316
        %v2941 = vsel %vm2921, %v2868, %v1320
        %v2942 = vsel %vm2921, %v2869, %v1324
        %v2943 = vsel %vm2921, %v2870, %v1328
        %v2944 = vsel %vm2921, %v2871, %v1332
        %v2945 = vsel %vm2921, %v2872, %v1336
        %v2946 = vsel %vm2921, %v2873, %v1340
        %v2947 = vsel %vm2921, %v2874, %v1344
        %v2948 = vsel %vm2921, %v2875, %v1348
        %v2949 = vsel %vm2921, %v2876, %v1352
        %v2950 = vsel %vm2921, %v2877, %v1356
        %v2951 = vsel %vm2921, %v2878, %v1360
        %v2952 = vsel %vm2921, %v2879, %v1364
        %v2953 = vsel %vm2921, %v2880, %v1368
        %v2954 = vsel %vm2921, %v2881, %v1372
        %v2955 = vsel %vm2921, %v2882, %v1376
        %v2956 = vsel %vm2921, %v2883, %v1380
        %v2957 = vsel %vm2921, %v2884, %v1384
        %v2958 = vsel %vm2921, %v2885, %v1388
        %v2959 = vsel %vm2921, %v2886, %v1392
        %v2960 = vsel %vm2921, %v2887, %v1396
        %v2961 = vsel %vm2921, %v2888, %v1400
        %v2962 = vsel %vm2921, %v2889, %v1404
        %v2963 = vsel %vm2921, %v2890, %v1408
        %v2964 = vsel %vm2921, %v2891, %v1412
        %v2965 = vsel %vm2921, %v2892, %v1416
        %v2966 = vsel %vm2921, %v2893, %v1420
        %v2967 = vsel %vm2921, %v2894, %v1424
        %v2968 = vsel %vm2921, %v2895, %v1428
        %v2969 = vsel %vm2921, %v2896, %v1432
        %v2970 = vsel %vm2921, %v2897, %v1436
        %v2971 = vsel %vm2921, %v2898, %v1440
        %v2972 = vsel %vm2921, %v2899, %v1444
        %v2973 = vsel %vm2921, %v2900, %v1448
        %v2974 = vsel %vm2921, %v2901, %v1452
        %v2975 = vsel %vm2921, %v2902, %v1456
        %v2976 = vsel %vm2921, %v2903, %v1460
        %v2977 = vsel %vm2921, %v2904, %v1464
        %v2978 = vsel %vm2921, %v2905, %v1468
        %v2979 = vsel %vm2921, %v2906, %v1472
        %v2980 = vsel %vm2921, %v2907, %v1476
        %v2981 = vsel %vm2921, %v2908, %v1480
        %v2982 = vsel %vm2921, %v2909, %v1484
        %v2983 = vsel %vm2921, %v2910, %v1488
        %v2984 = vsel %vm2921, %v2911, %v1492
        %v2985 = vsel %vm2921, %v2912, %v1496
        %v2986 = vsel %vm2921, %v2913, %v1500
        %v2987 = vsel %vm2921, %v2914, %v1504
        %v2988 = vsel %vm2921, %v2915, %v1835
        %v2989 = vsel %vm2921, %v2916, %v1839
        %v2990 = vsel %vm2921, %v2917, %v1843
        %v2991 = vsel %vm2921, %v2918, %v1898
        %v2992 = vsel %vm2921, %v2919, %v1902
        %v2993 = vsel %vm2921, %v2920, %v1906
        %vm2994 = vcmask 113664
        %v2995 = vsel %vm2994, %v2922, %v1532
        %v2996 = vsel %vm2994, %v2923, %v1536
        %v2997 = vsel %vm2994, %v2924, %v1540
        %v2998 = vsel %vm2994, %v2925, %v1544
        %v2999 = vsel %vm2994, %v2926, %v1548
        %v3000 = vsel %vm2994, %v2927, %v1552
        %v3001 = vsel %vm2994, %v2928, %v1556
        %v3002 = vsel %vm2994, %v2929, %v1560
        %v3003 = vsel %vm2994, %v2930, %v1564
        %v3004 = vsel %vm2994, %v2931, %v1568
        %v3005 = vsel %vm2994, %v2932, %v1572
        %v3006 = vsel %vm2994, %v2933, %v1576
        %v3007 = vsel %vm2994, %v2934, %v1580
        %v3008 = vsel %vm2994, %v2935, %v1584
        %v3009 = vsel %vm2994, %v2936, %v1588
        %v3010 = vsel %vm2994, %v2937, %v1592
        %v3011 = vsel %vm2994, %v2938, %v1596
        %v3012 = vsel %vm2994, %v2939, %v1600
        %v3013 = vsel %vm2994, %v2940, %v1604
        %v3014 = vsel %vm2994, %v2941, %v1608
        %v3015 = vsel %vm2994, %v2942, %v1612
        %v3016 = vsel %vm2994, %v2943, %v1616
        %v3017 = vsel %vm2994, %v2944, %v1620
        %v3018 = vsel %vm2994, %v2945, %v1624
        %v3019 = vsel %vm2994, %v2946, %v1628
        %v3020 = vsel %vm2994, %v2947, %v1632
        %v3021 = vsel %vm2994, %v2948, %v1636
        %v3022 = vsel %vm2994, %v2949, %v1640
        %v3023 = vsel %vm2994, %v2950, %v1644
        %v3024 = vsel %vm2994, %v2951, %v1648
        %v3025 = vsel %vm2994, %v2952, %v1652
        %v3026 = vsel %vm2994, %v2953, %v1656
        %v3027 = vsel %vm2994, %v2954, %v1660
        %v3028 = vsel %vm2994, %v2955, %v1664
        %v3029 = vsel %vm2994, %v2956, %v1668
        %v3030 = vsel %vm2994, %v2957, %v1672
        %v3031 = vsel %vm2994, %v2958, %v1676
        %v3032 = vsel %vm2994, %v2959, %v1680
        %v3033 = vsel %vm2994, %v2960, %v1684
        %v3034 = vsel %vm2994, %v2961, %v1688
        %v3035 = vsel %vm2994, %v2962, %v1692
        %v3036 = vsel %vm2994, %v2963, %v1696
        %v3037 = vsel %vm2994, %v2964, %v1700
        %v3038 = vsel %vm2994, %v2965, %v1704
        %v3039 = vsel %vm2994, %v2966, %v1708
        %v3040 = vsel %vm2994, %v2967, %v1712
        %v3041 = vsel %vm2994, %v2968, %v1716
        %v3042 = vsel %vm2994, %v2969, %v1720
        %v3043 = vsel %vm2994, %v2970, %v1724
        %v3044 = vsel %vm2994, %v2971, %v1728
        %v3045 = vsel %vm2994, %v2972, %v1732
        %v3046 = vsel %vm2994, %v2973, %v1736
        %v3047 = vsel %vm2994, %v2974, %v1740
        %v3048 = vsel %vm2994, %v2975, %v1744
        %v3049 = vsel %vm2994, %v2976, %v1748
        %v3050 = vsel %vm2994, %v2977, %v1752
        %v3051 = vsel %vm2994, %v2978, %v1756
        %v3052 = vsel %vm2994, %v2979, %v1760
        %v3053 = vsel %vm2994, %v2980, %v1764
        %v3054 = vsel %vm2994, %v2981, %v1768
        %v3055 = vsel %vm2994, %v2982, %v1772
        %v3056 = vsel %vm2994, %v2983, %v1776
        %v3057 = vsel %vm2994, %v2984, %v1780
        %v3058 = vsel %vm2994, %v2985, %v1784
        %v3059 = vsel %vm2994, %v2986, %v1788
        %v3060 = vsel %vm2994, %v2987, %v1792
        %v3061 = vsel %vm2994, %v2988, %v1847
        %v3062 = vsel %vm2994, %v2989, %v1851
        %v3063 = vsel %vm2994, %v2990, %v1855
        %v3064 = vsel %vm2994, %v2991, %v1910
        %v3065 = vsel %vm2994, %v2992, %v1914
        %v3066 = vsel %vm2994, %v2993, %v1918
        %vm3067 = vcmask 121856
        %v3068 = vsel %vm3067, %v2995, %v332
        %v3069 = vsel %vm3067, %v2996, %v336
        %v3070 = vsel %vm3067, %v2997, %v340
        %v3071 = vsel %vm3067, %v2998, %v347
        %v3072 = vsel %vm3067, %v2999, %v351
        %v3073 = vsel %vm3067, %v3000, %v355
        %v3074 = vsel %vm3067, %v3001, %v362
        %v3075 = vsel %vm3067, %v3002, %v366
        %v3076 = vsel %vm3067, %v3003, %v370
        %v3077 = vsel %vm3067, %v3004, %v377
        %v3078 = vsel %vm3067, %v3005, %v381
        %v3079 = vsel %vm3067, %v3006, %v385
        %v3080 = vsel %vm3067, %v3007, %v392
        %v3081 = vsel %vm3067, %v3008, %v396
        %v3082 = vsel %vm3067, %v3009, %v400
        %v3083 = vsel %vm3067, %v3010, %v407
        %v3084 = vsel %vm3067, %v3011, %v411
        %v3085 = vsel %vm3067, %v3012, %v415
        %v3086 = vsel %vm3067, %v3013, %v422
        %v3087 = vsel %vm3067, %v3014, %v426
        %v3088 = vsel %vm3067, %v3015, %v430
        %v3089 = vsel %vm3067, %v3016, %v437
        %v3090 = vsel %vm3067, %v3017, %v441
        %v3091 = vsel %vm3067, %v3018, %v445
        %v3092 = vsel %vm3067, %v3019, %v452
        %v3093 = vsel %vm3067, %v3020, %v456
        %v3094 = vsel %vm3067, %v3021, %v460
        %v3095 = vsel %vm3067, %v3022, %v467
        %v3096 = vsel %vm3067, %v3023, %v471
        %v3097 = vsel %vm3067, %v3024, %v475
        %v3098 = vsel %vm3067, %v3025, %v482
        %v3099 = vsel %vm3067, %v3026, %v486
        %v3100 = vsel %vm3067, %v3027, %v490
        %v3101 = vsel %vm3067, %v3028, %v497
        %v3102 = vsel %vm3067, %v3029, %v501
        %v3103 = vsel %vm3067, %v3030, %v505
        %v3104 = vsel %vm3067, %v3031, %v512
        %v3105 = vsel %vm3067, %v3032, %v516
        %v3106 = vsel %vm3067, %v3033, %v520
        %v3107 = vsel %vm3067, %v3034, %v527
        %v3108 = vsel %vm3067, %v3035, %v531
        %v3109 = vsel %vm3067, %v3036, %v535
        %v3110 = vsel %vm3067, %v3037, %v542
        %v3111 = vsel %vm3067, %v3038, %v546
        %v3112 = vsel %vm3067, %v3039, %v550
        %v3113 = vsel %vm3067, %v3040, %v557
        %v3114 = vsel %vm3067, %v3041, %v561
        %v3115 = vsel %vm3067, %v3042, %v565
        %v3116 = vsel %vm3067, %v3043, %v572
        %v3117 = vsel %vm3067, %v3044, %v576
        %v3118 = vsel %vm3067, %v3045, %v580
        %v3119 = vsel %vm3067, %v3046, %v587
        %v3120 = vsel %vm3067, %v3047, %v591
        %v3121 = vsel %vm3067, %v3048, %v595
        %v3122 = vsel %vm3067, %v3049, %v602
        %v3123 = vsel %vm3067, %v3050, %v606
        %v3124 = vsel %vm3067, %v3051, %v610
        %v3125 = vsel %vm3067, %v3052, %v617
        %v3126 = vsel %vm3067, %v3053, %v621
        %v3127 = vsel %vm3067, %v3054, %v625
        %v3128 = vsel %vm3067, %v3055, %v632
        %v3129 = vsel %vm3067, %v3056, %v636
        %v3130 = vsel %vm3067, %v3057, %v640
        %v3131 = vsel %vm3067, %v3058, %v1799
        %v3132 = vsel %vm3067, %v3059, %v1803
        %v3133 = vsel %vm3067, %v3060, %v1807
        %v3134 = vsel %vm3067, %v3061, %v1862
        %v3135 = vsel %vm3067, %v3062, %v1866
        %v3136 = vsel %vm3067, %v3063, %v1870
        %v3137 = vsel %vm3067, %v3064, %v1925
        %v3138 = vsel %vm3067, %v3065, %v1929
        %v3139 = vsel %vm3067, %v3066, %v1933
        %v3140 = vsel %vm2045, %v680, %v968
        %v3141 = vsel %vm2045, %v684, %v972
        %v3142 = vsel %vm2045, %v688, %v976
        %v3143 = vsel %vm2045, %v692, %v980
        %v3144 = vsel %vm2045, %v696, %v984
        %v3145 = vsel %vm2045, %v700, %v988
        %v3146 = vsel %vm2045, %v704, %v992
        %v3147 = vsel %vm2045, %v708, %v996
        %v3148 = vsel %vm2045, %v712, %v1000
        %v3149 = vsel %vm2045, %v716, %v1004
        %v3150 = vsel %vm2045, %v720, %v1008
        %v3151 = vsel %vm2045, %v724, %v1012
        %v3152 = vsel %vm2045, %v728, %v1016
        %v3153 = vsel %vm2045, %v732, %v1020
        %v3154 = vsel %vm2045, %v736, %v1024
        %v3155 = vsel %vm2045, %v740, %v1028
        %v3156 = vsel %vm2045, %v744, %v1032
        %v3157 = vsel %vm2045, %v748, %v1036
        %v3158 = vsel %vm2045, %v752, %v1040
        %v3159 = vsel %vm2045, %v756, %v1044
        %v3160 = vsel %vm2045, %v760, %v1048
        %v3161 = vsel %vm2045, %v764, %v1052
        %v3162 = vsel %vm2045, %v768, %v1056
        %v3163 = vsel %vm2045, %v772, %v1060
        %v3164 = vsel %vm2045, %v776, %v1064
        %v3165 = vsel %vm2045, %v780, %v1068
        %v3166 = vsel %vm2045, %v784, %v1072
        %v3167 = vsel %vm2045, %v788, %v1076
        %v3168 = vsel %vm2045, %v792, %v1080
        %v3169 = vsel %vm2045, %v796, %v1084
        %v3170 = vsel %vm2045, %v800, %v1088
        %v3171 = vsel %vm2045, %v804, %v1092
        %v3172 = vsel %vm2045, %v808, %v1096
        %v3173 = vsel %vm2045, %v812, %v1100
        %v3174 = vsel %vm2045, %v816, %v1104
        %v3175 = vsel %vm2045, %v820, %v1108
        %v3176 = vsel %vm2045, %v824, %v1112
        %v3177 = vsel %vm2045, %v828, %v1116
        %v3178 = vsel %vm2045, %v832, %v1120
        %v3179 = vsel %vm2045, %v836, %v1124
        %v3180 = vsel %vm2045, %v840, %v1128
        %v3181 = vsel %vm2045, %v844, %v1132
        %v3182 = vsel %vm2045, %v848, %v1136
        %v3183 = vsel %vm2045, %v852, %v1140
        %v3184 = vsel %vm2045, %v856, %v1144
        %v3185 = vsel %vm2045, %v860, %v1148
        %v3186 = vsel %vm2045, %v864, %v1152
        %v3187 = vsel %vm2045, %v868, %v1156
        %v3188 = vsel %vm2045, %v872, %v1160
        %v3189 = vsel %vm2045, %v876, %v1164
        %v3190 = vsel %vm2045, %v880, %v1168
        %v3191 = vsel %vm2045, %v884, %v1172
        %v3192 = vsel %vm2045, %v888, %v1176
        %v3193 = vsel %vm2045, %v892, %v1180
        %v3194 = vsel %vm2045, %v896, %v1184
        %v3195 = vsel %vm2045, %v900, %v1188
        %v3196 = vsel %vm2045, %v904, %v1192
        %v3197 = vsel %vm2045, %v908, %v1196
        %v3198 = vsel %vm2045, %v912, %v1200
        %v3199 = vsel %vm2045, %v916, %v1204
        %v3200 = vsel %vm2045, %v920, %v1208
        %v3201 = vsel %vm2045, %v924, %v1212
        %v3202 = vsel %vm2045, %v928, %v1216
        %v3203 = vsel %vm2045, %v1811, %v1823
        %v3204 = vsel %vm2045, %v1815, %v1827
        %v3205 = vsel %vm2045, %v1819, %v1831
        %v3206 = vsel %vm2045, %v1874, %v1886
        %v3207 = vsel %vm2045, %v1878, %v1890
        %v3208 = vsel %vm2045, %v1882, %v1894
        %v3209 = vsel %vm2045, %v1937, %v1949
        %v3210 = vsel %vm2045, %v1941, %v1953
        %v3211 = vsel %vm2045, %v1945, %v1957
        %v3212 = vsel %vm2118, %v3140, %v1256
        %v3213 = vsel %vm2118, %v3141, %v1260
        %v3214 = vsel %vm2118, %v3142, %v1264
        %v3215 = vsel %vm2118, %v3143, %v1268
        %v3216 = vsel %vm2118, %v3144, %v1272
        %v3217 = vsel %vm2118, %v3145, %v1276
        %v3218 = vsel %vm2118, %v3146, %v1280
        %v3219 = vsel %vm2118, %v3147, %v1284
        %v3220 = vsel %vm2118, %v3148, %v1288
        %v3221 = vsel %vm2118, %v3149, %v1292
        %v3222 = vsel %vm2118, %v3150, %v1296
        %v3223 = vsel %vm2118, %v3151, %v1300
        %v3224 = vsel %vm2118, %v3152, %v1304
        %v3225 = vsel %vm2118, %v3153, %v1308
        %v3226 = vsel %vm2118, %v3154, %v1312
        %v3227 = vsel %vm2118, %v3155, %v1316
        %v3228 = vsel %vm2118, %v3156, %v1320
        %v3229 = vsel %vm2118, %v3157, %v1324
        %v3230 = vsel %vm2118, %v3158, %v1328
        %v3231 = vsel %vm2118, %v3159, %v1332
        %v3232 = vsel %vm2118, %v3160, %v1336
        %v3233 = vsel %vm2118, %v3161, %v1340
        %v3234 = vsel %vm2118, %v3162, %v1344
        %v3235 = vsel %vm2118, %v3163, %v1348
        %v3236 = vsel %vm2118, %v3164, %v1352
        %v3237 = vsel %vm2118, %v3165, %v1356
        %v3238 = vsel %vm2118, %v3166, %v1360
        %v3239 = vsel %vm2118, %v3167, %v1364
        %v3240 = vsel %vm2118, %v3168, %v1368
        %v3241 = vsel %vm2118, %v3169, %v1372
        %v3242 = vsel %vm2118, %v3170, %v1376
        %v3243 = vsel %vm2118, %v3171, %v1380
        %v3244 = vsel %vm2118, %v3172, %v1384
        %v3245 = vsel %vm2118, %v3173, %v1388
        %v3246 = vsel %vm2118, %v3174, %v1392
        %v3247 = vsel %vm2118, %v3175, %v1396
        %v3248 = vsel %vm2118, %v3176, %v1400
        %v3249 = vsel %vm2118, %v3177, %v1404
        %v3250 = vsel %vm2118, %v3178, %v1408
        %v3251 = vsel %vm2118, %v3179, %v1412
        %v3252 = vsel %vm2118, %v3180, %v1416
        %v3253 = vsel %vm2118, %v3181, %v1420
        %v3254 = vsel %vm2118, %v3182, %v1424
        %v3255 = vsel %vm2118, %v3183, %v1428
        %v3256 = vsel %vm2118, %v3184, %v1432
        %v3257 = vsel %vm2118, %v3185, %v1436
        %v3258 = vsel %vm2118, %v3186, %v1440
        %v3259 = vsel %vm2118, %v3187, %v1444
        %v3260 = vsel %vm2118, %v3188, %v1448
        %v3261 = vsel %vm2118, %v3189, %v1452
        %v3262 = vsel %vm2118, %v3190, %v1456
        %v3263 = vsel %vm2118, %v3191, %v1460
        %v3264 = vsel %vm2118, %v3192, %v1464
        %v3265 = vsel %vm2118, %v3193, %v1468
        %v3266 = vsel %vm2118, %v3194, %v1472
        %v3267 = vsel %vm2118, %v3195, %v1476
        %v3268 = vsel %vm2118, %v3196, %v1480
        %v3269 = vsel %vm2118, %v3197, %v1484
        %v3270 = vsel %vm2118, %v3198, %v1488
        %v3271 = vsel %vm2118, %v3199, %v1492
        %v3272 = vsel %vm2118, %v3200, %v1496
        %v3273 = vsel %vm2118, %v3201, %v1500
        %v3274 = vsel %vm2118, %v3202, %v1504
        %v3275 = vsel %vm2118, %v3203, %v1835
        %v3276 = vsel %vm2118, %v3204, %v1839
        %v3277 = vsel %vm2118, %v3205, %v1843
        %v3278 = vsel %vm2118, %v3206, %v1898
        %v3279 = vsel %vm2118, %v3207, %v1902
        %v3280 = vsel %vm2118, %v3208, %v1906
        %v3281 = vsel %vm2118, %v3209, %v1961
        %v3282 = vsel %vm2118, %v3210, %v1965
        %v3283 = vsel %vm2118, %v3211, %v1969
        %v3284 = vsel %vm2191, %v3212, %v1544
        %v3285 = vsel %vm2191, %v3213, %v1548
        %v3286 = vsel %vm2191, %v3214, %v1552
        %v3287 = vsel %vm2191, %v3215, %v1556
        %v3288 = vsel %vm2191, %v3216, %v1560
        %v3289 = vsel %vm2191, %v3217, %v1564
        %v3290 = vsel %vm2191, %v3218, %v1568
        %v3291 = vsel %vm2191, %v3219, %v1572
        %v3292 = vsel %vm2191, %v3220, %v1576
        %v3293 = vsel %vm2191, %v3221, %v1580
        %v3294 = vsel %vm2191, %v3222, %v1584
        %v3295 = vsel %vm2191, %v3223, %v1588
        %v3296 = vsel %vm2191, %v3224, %v1592
        %v3297 = vsel %vm2191, %v3225, %v1596
        %v3298 = vsel %vm2191, %v3226, %v1600
        %v3299 = vsel %vm2191, %v3227, %v1604
        %v3300 = vsel %vm2191, %v3228, %v1608
        %v3301 = vsel %vm2191, %v3229, %v1612
        %v3302 = vsel %vm2191, %v3230, %v1616
        %v3303 = vsel %vm2191, %v3231, %v1620
        %v3304 = vsel %vm2191, %v3232, %v1624
        %v3305 = vsel %vm2191, %v3233, %v1628
        %v3306 = vsel %vm2191, %v3234, %v1632
        %v3307 = vsel %vm2191, %v3235, %v1636
        %v3308 = vsel %vm2191, %v3236, %v1640
        %v3309 = vsel %vm2191, %v3237, %v1644
        %v3310 = vsel %vm2191, %v3238, %v1648
        %v3311 = vsel %vm2191, %v3239, %v1652
        %v3312 = vsel %vm2191, %v3240, %v1656
        %v3313 = vsel %vm2191, %v3241, %v1660
        %v3314 = vsel %vm2191, %v3242, %v1664
        %v3315 = vsel %vm2191, %v3243, %v1668
        %v3316 = vsel %vm2191, %v3244, %v1672
        %v3317 = vsel %vm2191, %v3245, %v1676
        %v3318 = vsel %vm2191, %v3246, %v1680
        %v3319 = vsel %vm2191, %v3247, %v1684
        %v3320 = vsel %vm2191, %v3248, %v1688
        %v3321 = vsel %vm2191, %v3249, %v1692
        %v3322 = vsel %vm2191, %v3250, %v1696
        %v3323 = vsel %vm2191, %v3251, %v1700
        %v3324 = vsel %vm2191, %v3252, %v1704
        %v3325 = vsel %vm2191, %v3253, %v1708
        %v3326 = vsel %vm2191, %v3254, %v1712
        %v3327 = vsel %vm2191, %v3255, %v1716
        %v3328 = vsel %vm2191, %v3256, %v1720
        %v3329 = vsel %vm2191, %v3257, %v1724
        %v3330 = vsel %vm2191, %v3258, %v1728
        %v3331 = vsel %vm2191, %v3259, %v1732
        %v3332 = vsel %vm2191, %v3260, %v1736
        %v3333 = vsel %vm2191, %v3261, %v1740
        %v3334 = vsel %vm2191, %v3262, %v1744
        %v3335 = vsel %vm2191, %v3263, %v1748
        %v3336 = vsel %vm2191, %v3264, %v1752
        %v3337 = vsel %vm2191, %v3265, %v1756
        %v3338 = vsel %vm2191, %v3266, %v1760
        %v3339 = vsel %vm2191, %v3267, %v1764
        %v3340 = vsel %vm2191, %v3268, %v1768
        %v3341 = vsel %vm2191, %v3269, %v1772
        %v3342 = vsel %vm2191, %v3270, %v1776
        %v3343 = vsel %vm2191, %v3271, %v1780
        %v3344 = vsel %vm2191, %v3272, %v1784
        %v3345 = vsel %vm2191, %v3273, %v1788
        %v3346 = vsel %vm2191, %v3274, %v1792
        %v3347 = vsel %vm2191, %v3275, %v1847
        %v3348 = vsel %vm2191, %v3276, %v1851
        %v3349 = vsel %vm2191, %v3277, %v1855
        %v3350 = vsel %vm2191, %v3278, %v1910
        %v3351 = vsel %vm2191, %v3279, %v1914
        %v3352 = vsel %vm2191, %v3280, %v1918
        %v3353 = vsel %vm2191, %v3281, %v1973
        %v3354 = vsel %vm2191, %v3282, %v1977
        %v3355 = vsel %vm2191, %v3283, %v1981
        %v3356 = vsel %vm2264, %v3284, %v347
        %v3357 = vsel %vm2264, %v3285, %v351
        %v3358 = vsel %vm2264, %v3286, %v355
        %v3359 = vsel %vm2264, %v3287, %v362
        %v3360 = vsel %vm2264, %v3288, %v366
        %v3361 = vsel %vm2264, %v3289, %v370
        %v3362 = vsel %vm2264, %v3290, %v377
        %v3363 = vsel %vm2264, %v3291, %v381
        %v3364 = vsel %vm2264, %v3292, %v385
        %v3365 = vsel %vm2264, %v3293, %v392
        %v3366 = vsel %vm2264, %v3294, %v396
        %v3367 = vsel %vm2264, %v3295, %v400
        %v3368 = vsel %vm2264, %v3296, %v407
        %v3369 = vsel %vm2264, %v3297, %v411
        %v3370 = vsel %vm2264, %v3298, %v415
        %v3371 = vsel %vm2264, %v3299, %v422
        %v3372 = vsel %vm2264, %v3300, %v426
        %v3373 = vsel %vm2264, %v3301, %v430
        %v3374 = vsel %vm2264, %v3302, %v437
        %v3375 = vsel %vm2264, %v3303, %v441
        %v3376 = vsel %vm2264, %v3304, %v445
        %v3377 = vsel %vm2264, %v3305, %v452
        %v3378 = vsel %vm2264, %v3306, %v456
        %v3379 = vsel %vm2264, %v3307, %v460
        %v3380 = vsel %vm2264, %v3308, %v467
        %v3381 = vsel %vm2264, %v3309, %v471
        %v3382 = vsel %vm2264, %v3310, %v475
        %v3383 = vsel %vm2264, %v3311, %v482
        %v3384 = vsel %vm2264, %v3312, %v486
        %v3385 = vsel %vm2264, %v3313, %v490
        %v3386 = vsel %vm2264, %v3314, %v497
        %v3387 = vsel %vm2264, %v3315, %v501
        %v3388 = vsel %vm2264, %v3316, %v505
        %v3389 = vsel %vm2264, %v3317, %v512
        %v3390 = vsel %vm2264, %v3318, %v516
        %v3391 = vsel %vm2264, %v3319, %v520
        %v3392 = vsel %vm2264, %v3320, %v527
        %v3393 = vsel %vm2264, %v3321, %v531
        %v3394 = vsel %vm2264, %v3322, %v535
        %v3395 = vsel %vm2264, %v3323, %v542
        %v3396 = vsel %vm2264, %v3324, %v546
        %v3397 = vsel %vm2264, %v3325, %v550
        %v3398 = vsel %vm2264, %v3326, %v557
        %v3399 = vsel %vm2264, %v3327, %v561
        %v3400 = vsel %vm2264, %v3328, %v565
        %v3401 = vsel %vm2264, %v3329, %v572
        %v3402 = vsel %vm2264, %v3330, %v576
        %v3403 = vsel %vm2264, %v3331, %v580
        %v3404 = vsel %vm2264, %v3332, %v587
        %v3405 = vsel %vm2264, %v3333, %v591
        %v3406 = vsel %vm2264, %v3334, %v595
        %v3407 = vsel %vm2264, %v3335, %v602
        %v3408 = vsel %vm2264, %v3336, %v606
        %v3409 = vsel %vm2264, %v3337, %v610
        %v3410 = vsel %vm2264, %v3338, %v617
        %v3411 = vsel %vm2264, %v3339, %v621
        %v3412 = vsel %vm2264, %v3340, %v625
        %v3413 = vsel %vm2264, %v3341, %v632
        %v3414 = vsel %vm2264, %v3342, %v636
        %v3415 = vsel %vm2264, %v3343, %v640
        %v3416 = vsel %vm2264, %v3344, %v1799
        %v3417 = vsel %vm2264, %v3345, %v1803
        %v3418 = vsel %vm2264, %v3346, %v1807
        %v3419 = vsel %vm2264, %v3347, %v1862
        %v3420 = vsel %vm2264, %v3348, %v1866
        %v3421 = vsel %vm2264, %v3349, %v1870
        %v3422 = vsel %vm2264, %v3350, %v1925
        %v3423 = vsel %vm2264, %v3351, %v1929
        %v3424 = vsel %vm2264, %v3352, %v1933
        %v3425 = vsel %vm2264, %v3353, %v1988
        %v3426 = vsel %vm2264, %v3354, %v1992
        %v3427 = vsel %vm2264, %v3355, %v1996
        %v3428 = vsel %vm2337, %v3356, %v692
        %v3429 = vsel %vm2337, %v3357, %v696
        %v3430 = vsel %vm2337, %v3358, %v700
        %v3431 = vsel %vm2337, %v3359, %v704
        %v3432 = vsel %vm2337, %v3360, %v708
        %v3433 = vsel %vm2337, %v3361, %v712
        %v3434 = vsel %vm2337, %v3362, %v716
        %v3435 = vsel %vm2337, %v3363, %v720
        %v3436 = vsel %vm2337, %v3364, %v724
        %v3437 = vsel %vm2337, %v3365, %v728
        %v3438 = vsel %vm2337, %v3366, %v732
        %v3439 = vsel %vm2337, %v3367, %v736
        %v3440 = vsel %vm2337, %v3368, %v740
        %v3441 = vsel %vm2337, %v3369, %v744
        %v3442 = vsel %vm2337, %v3370, %v748
        %v3443 = vsel %vm2337, %v3371, %v752
        %v3444 = vsel %vm2337, %v3372, %v756
        %v3445 = vsel %vm2337, %v3373, %v760
        %v3446 = vsel %vm2337, %v3374, %v764
        %v3447 = vsel %vm2337, %v3375, %v768
        %v3448 = vsel %vm2337, %v3376, %v772
        %v3449 = vsel %vm2337, %v3377, %v776
        %v3450 = vsel %vm2337, %v3378, %v780
        %v3451 = vsel %vm2337, %v3379, %v784
        %v3452 = vsel %vm2337, %v3380, %v788
        %v3453 = vsel %vm2337, %v3381, %v792
        %v3454 = vsel %vm2337, %v3382, %v796
        %v3455 = vsel %vm2337, %v3383, %v800
        %v3456 = vsel %vm2337, %v3384, %v804
        %v3457 = vsel %vm2337, %v3385, %v808
        %v3458 = vsel %vm2337, %v3386, %v812
        %v3459 = vsel %vm2337, %v3387, %v816
        %v3460 = vsel %vm2337, %v3388, %v820
        %v3461 = vsel %vm2337, %v3389, %v824
        %v3462 = vsel %vm2337, %v3390, %v828
        %v3463 = vsel %vm2337, %v3391, %v832
        %v3464 = vsel %vm2337, %v3392, %v836
        %v3465 = vsel %vm2337, %v3393, %v840
        %v3466 = vsel %vm2337, %v3394, %v844
        %v3467 = vsel %vm2337, %v3395, %v848
        %v3468 = vsel %vm2337, %v3396, %v852
        %v3469 = vsel %vm2337, %v3397, %v856
        %v3470 = vsel %vm2337, %v3398, %v860
        %v3471 = vsel %vm2337, %v3399, %v864
        %v3472 = vsel %vm2337, %v3400, %v868
        %v3473 = vsel %vm2337, %v3401, %v872
        %v3474 = vsel %vm2337, %v3402, %v876
        %v3475 = vsel %vm2337, %v3403, %v880
        %v3476 = vsel %vm2337, %v3404, %v884
        %v3477 = vsel %vm2337, %v3405, %v888
        %v3478 = vsel %vm2337, %v3406, %v892
        %v3479 = vsel %vm2337, %v3407, %v896
        %v3480 = vsel %vm2337, %v3408, %v900
        %v3481 = vsel %vm2337, %v3409, %v904
        %v3482 = vsel %vm2337, %v3410, %v908
        %v3483 = vsel %vm2337, %v3411, %v912
        %v3484 = vsel %vm2337, %v3412, %v916
        %v3485 = vsel %vm2337, %v3413, %v920
        %v3486 = vsel %vm2337, %v3414, %v924
        %v3487 = vsel %vm2337, %v3415, %v928
        %v3488 = vsel %vm2337, %v3416, %v1811
        %v3489 = vsel %vm2337, %v3417, %v1815
        %v3490 = vsel %vm2337, %v3418, %v1819
        %v3491 = vsel %vm2337, %v3419, %v1874
        %v3492 = vsel %vm2337, %v3420, %v1878
        %v3493 = vsel %vm2337, %v3421, %v1882
        %v3494 = vsel %vm2337, %v3422, %v1937
        %v3495 = vsel %vm2337, %v3423, %v1941
        %v3496 = vsel %vm2337, %v3424, %v1945
        %v3497 = vsel %vm2337, %v3425, %v2000
        %v3498 = vsel %vm2337, %v3426, %v2004
        %v3499 = vsel %vm2337, %v3427, %v2008
        %v3500 = vsel %vm2410, %v3428, %v980
        %v3501 = vsel %vm2410, %v3429, %v984
        %v3502 = vsel %vm2410, %v3430, %v988
        %v3503 = vsel %vm2410, %v3431, %v992
        %v3504 = vsel %vm2410, %v3432, %v996
        %v3505 = vsel %vm2410, %v3433, %v1000
        %v3506 = vsel %vm2410, %v3434, %v1004
        %v3507 = vsel %vm2410, %v3435, %v1008
        %v3508 = vsel %vm2410, %v3436, %v1012
        %v3509 = vsel %vm2410, %v3437, %v1016
        %v3510 = vsel %vm2410, %v3438, %v1020
        %v3511 = vsel %vm2410, %v3439, %v1024
        %v3512 = vsel %vm2410, %v3440, %v1028
        %v3513 = vsel %vm2410, %v3441, %v1032
        %v3514 = vsel %vm2410, %v3442, %v1036
        %v3515 = vsel %vm2410, %v3443, %v1040
        %v3516 = vsel %vm2410, %v3444, %v1044
        %v3517 = vsel %vm2410, %v3445, %v1048
        %v3518 = vsel %vm2410, %v3446, %v1052
        %v3519 = vsel %vm2410, %v3447, %v1056
        %v3520 = vsel %vm2410, %v3448, %v1060
        %v3521 = vsel %vm2410, %v3449, %v1064
        %v3522 = vsel %vm2410, %v3450, %v1068
        %v3523 = vsel %vm2410, %v3451, %v1072
        %v3524 = vsel %vm2410, %v3452, %v1076
        %v3525 = vsel %vm2410, %v3453, %v1080
        %v3526 = vsel %vm2410, %v3454, %v1084
        %v3527 = vsel %vm2410, %v3455, %v1088
        %v3528 = vsel %vm2410, %v3456, %v1092
        %v3529 = vsel %vm2410, %v3457, %v1096
        %v3530 = vsel %vm2410, %v3458, %v1100
        %v3531 = vsel %vm2410, %v3459, %v1104
        %v3532 = vsel %vm2410, %v3460, %v1108
        %v3533 = vsel %vm2410, %v3461, %v1112
        %v3534 = vsel %vm2410, %v3462, %v1116
        %v3535 = vsel %vm2410, %v3463, %v1120
        %v3536 = vsel %vm2410, %v3464, %v1124
        %v3537 = vsel %vm2410, %v3465, %v1128
        %v3538 = vsel %vm2410, %v3466, %v1132
        %v3539 = vsel %vm2410, %v3467, %v1136
        %v3540 = vsel %vm2410, %v3468, %v1140
        %v3541 = vsel %vm2410, %v3469, %v1144
        %v3542 = vsel %vm2410, %v3470, %v1148
        %v3543 = vsel %vm2410, %v3471, %v1152
        %v3544 = vsel %vm2410, %v3472, %v1156
        %v3545 = vsel %vm2410, %v3473, %v1160
        %v3546 = vsel %vm2410, %v3474, %v1164
        %v3547 = vsel %vm2410, %v3475, %v1168
        %v3548 = vsel %vm2410, %v3476, %v1172
        %v3549 = vsel %vm2410, %v3477, %v1176
        %v3550 = vsel %vm2410, %v3478, %v1180
        %v3551 = vsel %vm2410, %v3479, %v1184
        %v3552 = vsel %vm2410, %v3480, %v1188
        %v3553 = vsel %vm2410, %v3481, %v1192
        %v3554 = vsel %vm2410, %v3482, %v1196
        %v3555 = vsel %vm2410, %v3483, %v1200
        %v3556 = vsel %vm2410, %v3484, %v1204
        %v3557 = vsel %vm2410, %v3485, %v1208
        %v3558 = vsel %vm2410, %v3486, %v1212
        %v3559 = vsel %vm2410, %v3487, %v1216
        %v3560 = vsel %vm2410, %v3488, %v1823
        %v3561 = vsel %vm2410, %v3489, %v1827
        %v3562 = vsel %vm2410, %v3490, %v1831
        %v3563 = vsel %vm2410, %v3491, %v1886
        %v3564 = vsel %vm2410, %v3492, %v1890
        %v3565 = vsel %vm2410, %v3493, %v1894
        %v3566 = vsel %vm2410, %v3494, %v1949
        %v3567 = vsel %vm2410, %v3495, %v1953
        %v3568 = vsel %vm2410, %v3496, %v1957
        %v3569 = vsel %vm2410, %v3497, %v2012
        %v3570 = vsel %vm2410, %v3498, %v2016
        %v3571 = vsel %vm2410, %v3499, %v2020
        %v3572 = vsel %vm2483, %v3500, %v1268
        %v3573 = vsel %vm2483, %v3501, %v1272
        %v3574 = vsel %vm2483, %v3502, %v1276
        %v3575 = vsel %vm2483, %v3503, %v1280
        %v3576 = vsel %vm2483, %v3504, %v1284
        %v3577 = vsel %vm2483, %v3505, %v1288
        %v3578 = vsel %vm2483, %v3506, %v1292
        %v3579 = vsel %vm2483, %v3507, %v1296
        %v3580 = vsel %vm2483, %v3508, %v1300
        %v3581 = vsel %vm2483, %v3509, %v1304
        %v3582 = vsel %vm2483, %v3510, %v1308
        %v3583 = vsel %vm2483, %v3511, %v1312
        %v3584 = vsel %vm2483, %v3512, %v1316
        %v3585 = vsel %vm2483, %v3513, %v1320
        %v3586 = vsel %vm2483, %v3514, %v1324
        %v3587 = vsel %vm2483, %v3515, %v1328
        %v3588 = vsel %vm2483, %v3516, %v1332
        %v3589 = vsel %vm2483, %v3517, %v1336
        %v3590 = vsel %vm2483, %v3518, %v1340
        %v3591 = vsel %vm2483, %v3519, %v1344
        %v3592 = vsel %vm2483, %v3520, %v1348
        %v3593 = vsel %vm2483, %v3521, %v1352
        %v3594 = vsel %vm2483, %v3522, %v1356
        %v3595 = vsel %vm2483, %v3523, %v1360
        %v3596 = vsel %vm2483, %v3524, %v1364
        %v3597 = vsel %vm2483, %v3525, %v1368
        %v3598 = vsel %vm2483, %v3526, %v1372
        %v3599 = vsel %vm2483, %v3527, %v1376
        %v3600 = vsel %vm2483, %v3528, %v1380
        %v3601 = vsel %vm2483, %v3529, %v1384
        %v3602 = vsel %vm2483, %v3530, %v1388
        %v3603 = vsel %vm2483, %v3531, %v1392
        %v3604 = vsel %vm2483, %v3532, %v1396
        %v3605 = vsel %vm2483, %v3533, %v1400
        %v3606 = vsel %vm2483, %v3534, %v1404
        %v3607 = vsel %vm2483, %v3535, %v1408
        %v3608 = vsel %vm2483, %v3536, %v1412
        %v3609 = vsel %vm2483, %v3537, %v1416
        %v3610 = vsel %vm2483, %v3538, %v1420
        %v3611 = vsel %vm2483, %v3539, %v1424
        %v3612 = vsel %vm2483, %v3540, %v1428
        %v3613 = vsel %vm2483, %v3541, %v1432
        %v3614 = vsel %vm2483, %v3542, %v1436
        %v3615 = vsel %vm2483, %v3543, %v1440
        %v3616 = vsel %vm2483, %v3544, %v1444
        %v3617 = vsel %vm2483, %v3545, %v1448
        %v3618 = vsel %vm2483, %v3546, %v1452
        %v3619 = vsel %vm2483, %v3547, %v1456
        %v3620 = vsel %vm2483, %v3548, %v1460
        %v3621 = vsel %vm2483, %v3549, %v1464
        %v3622 = vsel %vm2483, %v3550, %v1468
        %v3623 = vsel %vm2483, %v3551, %v1472
        %v3624 = vsel %vm2483, %v3552, %v1476
        %v3625 = vsel %vm2483, %v3553, %v1480
        %v3626 = vsel %vm2483, %v3554, %v1484
        %v3627 = vsel %vm2483, %v3555, %v1488
        %v3628 = vsel %vm2483, %v3556, %v1492
        %v3629 = vsel %vm2483, %v3557, %v1496
        %v3630 = vsel %vm2483, %v3558, %v1500
        %v3631 = vsel %vm2483, %v3559, %v1504
        %v3632 = vsel %vm2483, %v3560, %v1835
        %v3633 = vsel %vm2483, %v3561, %v1839
        %v3634 = vsel %vm2483, %v3562, %v1843
        %v3635 = vsel %vm2483, %v3563, %v1898
        %v3636 = vsel %vm2483, %v3564, %v1902
        %v3637 = vsel %vm2483, %v3565, %v1906
        %v3638 = vsel %vm2483, %v3566, %v1961
        %v3639 = vsel %vm2483, %v3567, %v1965
        %v3640 = vsel %vm2483, %v3568, %v1969
        %v3641 = vsel %vm2483, %v3569, %v2024
        %v3642 = vsel %vm2483, %v3570, %v2028
        %v3643 = vsel %vm2483, %v3571, %v2032
        %v3644 = vsel %vm2556, %v3572, %v1556
        %v3645 = vsel %vm2556, %v3573, %v1560
        %v3646 = vsel %vm2556, %v3574, %v1564
        %v3647 = vsel %vm2556, %v3575, %v1568
        %v3648 = vsel %vm2556, %v3576, %v1572
        %v3649 = vsel %vm2556, %v3577, %v1576
        %v3650 = vsel %vm2556, %v3578, %v1580
        %v3651 = vsel %vm2556, %v3579, %v1584
        %v3652 = vsel %vm2556, %v3580, %v1588
        %v3653 = vsel %vm2556, %v3581, %v1592
        %v3654 = vsel %vm2556, %v3582, %v1596
        %v3655 = vsel %vm2556, %v3583, %v1600
        %v3656 = vsel %vm2556, %v3584, %v1604
        %v3657 = vsel %vm2556, %v3585, %v1608
        %v3658 = vsel %vm2556, %v3586, %v1612
        %v3659 = vsel %vm2556, %v3587, %v1616
        %v3660 = vsel %vm2556, %v3588, %v1620
        %v3661 = vsel %vm2556, %v3589, %v1624
        %v3662 = vsel %vm2556, %v3590, %v1628
        %v3663 = vsel %vm2556, %v3591, %v1632
        %v3664 = vsel %vm2556, %v3592, %v1636
        %v3665 = vsel %vm2556, %v3593, %v1640
        %v3666 = vsel %vm2556, %v3594, %v1644
        %v3667 = vsel %vm2556, %v3595, %v1648
        %v3668 = vsel %vm2556, %v3596, %v1652
        %v3669 = vsel %vm2556, %v3597, %v1656
        %v3670 = vsel %vm2556, %v3598, %v1660
        %v3671 = vsel %vm2556, %v3599, %v1664
        %v3672 = vsel %vm2556, %v3600, %v1668
        %v3673 = vsel %vm2556, %v3601, %v1672
        %v3674 = vsel %vm2556, %v3602, %v1676
        %v3675 = vsel %vm2556, %v3603, %v1680
        %v3676 = vsel %vm2556, %v3604, %v1684
        %v3677 = vsel %vm2556, %v3605, %v1688
        %v3678 = vsel %vm2556, %v3606, %v1692
        %v3679 = vsel %vm2556, %v3607, %v1696
        %v3680 = vsel %vm2556, %v3608, %v1700
        %v3681 = vsel %vm2556, %v3609, %v1704
        %v3682 = vsel %vm2556, %v3610, %v1708
        %v3683 = vsel %vm2556, %v3611, %v1712
        %v3684 = vsel %vm2556, %v3612, %v1716
        %v3685 = vsel %vm2556, %v3613, %v1720
        %v3686 = vsel %vm2556, %v3614, %v1724
        %v3687 = vsel %vm2556, %v3615, %v1728
        %v3688 = vsel %vm2556, %v3616, %v1732
        %v3689 = vsel %vm2556, %v3617, %v1736
        %v3690 = vsel %vm2556, %v3618, %v1740
        %v3691 = vsel %vm2556, %v3619, %v1744
        %v3692 = vsel %vm2556, %v3620, %v1748
        %v3693 = vsel %vm2556, %v3621, %v1752
        %v3694 = vsel %vm2556, %v3622, %v1756
        %v3695 = vsel %vm2556, %v3623, %v1760
        %v3696 = vsel %vm2556, %v3624, %v1764
        %v3697 = vsel %vm2556, %v3625, %v1768
        %v3698 = vsel %vm2556, %v3626, %v1772
        %v3699 = vsel %vm2556, %v3627, %v1776
        %v3700 = vsel %vm2556, %v3628, %v1780
        %v3701 = vsel %vm2556, %v3629, %v1784
        %v3702 = vsel %vm2556, %v3630, %v1788
        %v3703 = vsel %vm2556, %v3631, %v1792
        %v3704 = vsel %vm2556, %v3632, %v1847
        %v3705 = vsel %vm2556, %v3633, %v1851
        %v3706 = vsel %vm2556, %v3634, %v1855
        %v3707 = vsel %vm2556, %v3635, %v1910
        %v3708 = vsel %vm2556, %v3636, %v1914
        %v3709 = vsel %vm2556, %v3637, %v1918
        %v3710 = vsel %vm2556, %v3638, %v1973
        %v3711 = vsel %vm2556, %v3639, %v1977
        %v3712 = vsel %vm2556, %v3640, %v1981
        %v3713 = vsel %vm2556, %v3641, %v2036
        %v3714 = vsel %vm2556, %v3642, %v2040
        %v3715 = vsel %vm2556, %v3643, %v2044
        %3788 = vrot.lane.b32.xlu0 %v3644, 16
        %v3789 = vpop.permute.xlu0 %3788
        %3790 = vrot.lane.b32.xlu0 %v3645, 16
        %v3791 = vpop.permute.xlu0 %3790
        %3792 = vrot.lane.b32.xlu0 %v3646, 16
        %v3793 = vpop.permute.xlu0 %3792
        %3794 = vrot.lane.b32.xlu0 %v3647, 16
        %v3795 = vpop.permute.xlu0 %3794
        %3796 = vrot.lane.b32.xlu0 %v3648, 16
        %v3797 = vpop.permute.xlu0 %3796
        %3798 = vrot.lane.b32.xlu0 %v3649, 16
        %v3799 = vpop.permute.xlu0 %3798
        %3800 = vrot.lane.b32.xlu0 %v3650, 16
        %v3801 = vpop.permute.xlu0 %3800
        %3802 = vrot.lane.b32.xlu0 %v3651, 16
        %v3803 = vpop.permute.xlu0 %3802
        %3804 = vrot.lane.b32.xlu0 %v3652, 16
        %v3805 = vpop.permute.xlu0 %3804
        %3806 = vrot.lane.b32.xlu0 %v3653, 16
        %v3807 = vpop.permute.xlu0 %3806
        %3808 = vrot.lane.b32.xlu0 %v3654, 16
        %v3809 = vpop.permute.xlu0 %3808
        %3810 = vrot.lane.b32.xlu0 %v3655, 16
        %v3811 = vpop.permute.xlu0 %3810
        %3812 = vrot.lane.b32.xlu0 %v3656, 16
        %v3813 = vpop.permute.xlu0 %3812
        %3814 = vrot.lane.b32.xlu0 %v3657, 16
        %v3815 = vpop.permute.xlu0 %3814
        %3816 = vrot.lane.b32.xlu0 %v3658, 16
        %v3817 = vpop.permute.xlu0 %3816
        %3818 = vrot.lane.b32.xlu0 %v3659, 16
        %v3819 = vpop.permute.xlu0 %3818
        %3820 = vrot.lane.b32.xlu0 %v3660, 16
        %v3821 = vpop.permute.xlu0 %3820
        %3822 = vrot.lane.b32.xlu0 %v3661, 16
        %v3823 = vpop.permute.xlu0 %3822
        %3824 = vrot.lane.b32.xlu0 %v3662, 16
        %v3825 = vpop.permute.xlu0 %3824
        %3826 = vrot.lane.b32.xlu0 %v3663, 16
        %v3827 = vpop.permute.xlu0 %3826
        %3828 = vrot.lane.b32.xlu0 %v3664, 16
        %v3829 = vpop.permute.xlu0 %3828
        %3830 = vrot.lane.b32.xlu0 %v3665, 16
        %v3831 = vpop.permute.xlu0 %3830
        %3832 = vrot.lane.b32.xlu0 %v3666, 16
        %v3833 = vpop.permute.xlu0 %3832
        %3834 = vrot.lane.b32.xlu0 %v3667, 16
        %v3835 = vpop.permute.xlu0 %3834
        %3836 = vrot.lane.b32.xlu0 %v3668, 16
        %v3837 = vpop.permute.xlu0 %3836
        %3838 = vrot.lane.b32.xlu0 %v3669, 16
        %v3839 = vpop.permute.xlu0 %3838
        %3840 = vrot.lane.b32.xlu0 %v3670, 16
        %v3841 = vpop.permute.xlu0 %3840
        %3842 = vrot.lane.b32.xlu0 %v3671, 16
        %v3843 = vpop.permute.xlu0 %3842
        %3844 = vrot.lane.b32.xlu0 %v3672, 16
        %v3845 = vpop.permute.xlu0 %3844
        %3846 = vrot.lane.b32.xlu0 %v3673, 16
        %v3847 = vpop.permute.xlu0 %3846
        %3848 = vrot.lane.b32.xlu0 %v3674, 16
        %v3849 = vpop.permute.xlu0 %3848
        %3850 = vrot.lane.b32.xlu0 %v3675, 16
        %v3851 = vpop.permute.xlu0 %3850
        %3852 = vrot.lane.b32.xlu0 %v3676, 16
        %v3853 = vpop.permute.xlu0 %3852
        %3854 = vrot.lane.b32.xlu0 %v3677, 16
        %v3855 = vpop.permute.xlu0 %3854
        %3856 = vrot.lane.b32.xlu0 %v3678, 16
        %v3857 = vpop.permute.xlu0 %3856
        %3858 = vrot.lane.b32.xlu0 %v3679, 16
        %v3859 = vpop.permute.xlu0 %3858
        %3860 = vrot.lane.b32.xlu0 %v3680, 16
        %v3861 = vpop.permute.xlu0 %3860
        %3862 = vrot.lane.b32.xlu0 %v3681, 16
        %v3863 = vpop.permute.xlu0 %3862
        %3864 = vrot.lane.b32.xlu0 %v3682, 16
        %v3865 = vpop.permute.xlu0 %3864
        %3866 = vrot.lane.b32.xlu0 %v3683, 16
        %v3867 = vpop.permute.xlu0 %3866
        %3868 = vrot.lane.b32.xlu0 %v3684, 16
        %v3869 = vpop.permute.xlu0 %3868
        %3870 = vrot.lane.b32.xlu0 %v3685, 16
        %v3871 = vpop.permute.xlu0 %3870
        %3872 = vrot.lane.b32.xlu0 %v3686, 16
        %v3873 = vpop.permute.xlu0 %3872
        %3874 = vrot.lane.b32.xlu0 %v3687, 16
        %v3875 = vpop.permute.xlu0 %3874
        %3876 = vrot.lane.b32.xlu0 %v3688, 16
        %v3877 = vpop.permute.xlu0 %3876
        %3878 = vrot.lane.b32.xlu0 %v3689, 16
        %v3879 = vpop.permute.xlu0 %3878
        %3880 = vrot.lane.b32.xlu0 %v3690, 16
        %v3881 = vpop.permute.xlu0 %3880
        %3882 = vrot.lane.b32.xlu0 %v3691, 16
        %v3883 = vpop.permute.xlu0 %3882
        %3884 = vrot.lane.b32.xlu0 %v3692, 16
        %v3885 = vpop.permute.xlu0 %3884
        %3886 = vrot.lane.b32.xlu0 %v3693, 16
        %v3887 = vpop.permute.xlu0 %3886
        %3888 = vrot.lane.b32.xlu0 %v3694, 16
        %v3889 = vpop.permute.xlu0 %3888
        %3890 = vrot.lane.b32.xlu0 %v3695, 16
        %v3891 = vpop.permute.xlu0 %3890
        %3892 = vrot.lane.b32.xlu0 %v3696, 16
        %v3893 = vpop.permute.xlu0 %3892
        %3894 = vrot.lane.b32.xlu0 %v3697, 16
        %v3895 = vpop.permute.xlu0 %3894
        %3896 = vrot.lane.b32.xlu0 %v3698, 16
        %v3897 = vpop.permute.xlu0 %3896
        %3898 = vrot.lane.b32.xlu0 %v3699, 16
        %v3899 = vpop.permute.xlu0 %3898
        %3900 = vrot.lane.b32.xlu0 %v3700, 16
        %v3901 = vpop.permute.xlu0 %3900
        %3902 = vrot.lane.b32.xlu0 %v3701, 16
        %v3903 = vpop.permute.xlu0 %3902
        %3904 = vrot.lane.b32.xlu0 %v3702, 16
        %v3905 = vpop.permute.xlu0 %3904
        %3906 = vrot.lane.b32.xlu0 %v3703, 16
        %v3907 = vpop.permute.xlu0 %3906
        %3908 = vrot.lane.b32.xlu0 %v3704, 16
        %v3909 = vpop.permute.xlu0 %3908
        %3910 = vrot.lane.b32.xlu0 %v3705, 16
        %v3911 = vpop.permute.xlu0 %3910
        %3912 = vrot.lane.b32.xlu0 %v3706, 16
        %v3913 = vpop.permute.xlu0 %3912
        %3914 = vrot.lane.b32.xlu0 %v3707, 16
        %v3915 = vpop.permute.xlu0 %3914
        %3916 = vrot.lane.b32.xlu0 %v3708, 16
        %v3917 = vpop.permute.xlu0 %3916
        %3918 = vrot.lane.b32.xlu0 %v3709, 16
        %v3919 = vpop.permute.xlu0 %3918
        %3920 = vrot.lane.b32.xlu0 %v3710, 16
        %v3921 = vpop.permute.xlu0 %3920
        %3922 = vrot.lane.b32.xlu0 %v3711, 16
        %v3923 = vpop.permute.xlu0 %3922
        %3924 = vrot.lane.b32.xlu0 %v3712, 16
        %v3925 = vpop.permute.xlu0 %3924
        %3926 = vrot.lane.b32.xlu0 %v3713, 16
        %v3927 = vpop.permute.xlu0 %3926
        %3928 = vrot.lane.b32.xlu0 %v3714, 16
        %v3929 = vpop.permute.xlu0 %3928
        %3930 = vrot.lane.b32.xlu0 %v3715, 16
        %v3931 = vpop.permute.xlu0 %3930
        %vm4004 = vcmask 130048
        %v4005 = vsel %vm4004, %v3068, %v3789
        %v4006 = vsel %vm4004, %v3069, %v3791
        %v4007 = vsel %vm4004, %v3070, %v3793
        %v4008 = vsel %vm4004, %v3071, %v3795
        %v4009 = vsel %vm4004, %v3072, %v3797
        %v4010 = vsel %vm4004, %v3073, %v3799
        %v4011 = vsel %vm4004, %v3074, %v3801
        %v4012 = vsel %vm4004, %v3075, %v3803
        %v4013 = vsel %vm4004, %v3076, %v3805
        %v4014 = vsel %vm4004, %v3077, %v3807
        %v4015 = vsel %vm4004, %v3078, %v3809
        %v4016 = vsel %vm4004, %v3079, %v3811
        %v4017 = vsel %vm4004, %v3080, %v3813
        %v4018 = vsel %vm4004, %v3081, %v3815
        %v4019 = vsel %vm4004, %v3082, %v3817
        %v4020 = vsel %vm4004, %v3083, %v3819
        %v4021 = vsel %vm4004, %v3084, %v3821
        %v4022 = vsel %vm4004, %v3085, %v3823
        %v4023 = vsel %vm4004, %v3086, %v3825
        %v4024 = vsel %vm4004, %v3087, %v3827
        %v4025 = vsel %vm4004, %v3088, %v3829
        %v4026 = vsel %vm4004, %v3089, %v3831
        %v4027 = vsel %vm4004, %v3090, %v3833
        %v4028 = vsel %vm4004, %v3091, %v3835
        %v4029 = vsel %vm4004, %v3092, %v3837
        %v4030 = vsel %vm4004, %v3093, %v3839
        %v4031 = vsel %vm4004, %v3094, %v3841
        %v4032 = vsel %vm4004, %v3095, %v3843
        %v4033 = vsel %vm4004, %v3096, %v3845
        %v4034 = vsel %vm4004, %v3097, %v3847
        %v4035 = vsel %vm4004, %v3098, %v3849
        %v4036 = vsel %vm4004, %v3099, %v3851
        %v4037 = vsel %vm4004, %v3100, %v3853
        %v4038 = vsel %vm4004, %v3101, %v3855
        %v4039 = vsel %vm4004, %v3102, %v3857
        %v4040 = vsel %vm4004, %v3103, %v3859
        %v4041 = vsel %vm4004, %v3104, %v3861
        %v4042 = vsel %vm4004, %v3105, %v3863
        %v4043 = vsel %vm4004, %v3106, %v3865
        %v4044 = vsel %vm4004, %v3107, %v3867
        %v4045 = vsel %vm4004, %v3108, %v3869
        %v4046 = vsel %vm4004, %v3109, %v3871
        %v4047 = vsel %vm4004, %v3110, %v3873
        %v4048 = vsel %vm4004, %v3111, %v3875
        %v4049 = vsel %vm4004, %v3112, %v3877
        %v4050 = vsel %vm4004, %v3113, %v3879
        %v4051 = vsel %vm4004, %v3114, %v3881
        %v4052 = vsel %vm4004, %v3115, %v3883
        %v4053 = vsel %vm4004, %v3116, %v3885
        %v4054 = vsel %vm4004, %v3117, %v3887
        %v4055 = vsel %vm4004, %v3118, %v3889
        %v4056 = vsel %vm4004, %v3119, %v3891
        %v4057 = vsel %vm4004, %v3120, %v3893
        %v4058 = vsel %vm4004, %v3121, %v3895
        %v4059 = vsel %vm4004, %v3122, %v3897
        %v4060 = vsel %vm4004, %v3123, %v3899
        %v4061 = vsel %vm4004, %v3124, %v3901
        %v4062 = vsel %vm4004, %v3125, %v3903
        %v4063 = vsel %vm4004, %v3126, %v3905
        %v4064 = vsel %vm4004, %v3127, %v3907
        %v4065 = vsel %vm4004, %v3128, %v3909
        %v4066 = vsel %vm4004, %v3129, %v3911
        %v4067 = vsel %vm4004, %v3130, %v3913
        %v4068 = vsel %vm4004, %v3131, %v3915
        %v4069 = vsel %vm4004, %v3132, %v3917
        %v4070 = vsel %vm4004, %v3133, %v3919
        %v4071 = vsel %vm4004, %v3134, %v3921
        %v4072 = vsel %vm4004, %v3135, %v3923
        %v4073 = vsel %vm4004, %v3136, %v3925
        %v4074 = vsel %vm4004, %v3137, %v3927
        %v4075 = vsel %vm4004, %v3138, %v3929
        %v4076 = vsel %vm4004, %v3139, %v3931
        %v4077 = vpack.c.bf16 %v4006, %v4005
        %v4078 = vpack.c.bf16 %v4008, %v4007
        %v4079 = vpack.c.bf16 %v4010, %v4009
        %v4080 = vpack.c.bf16 %v4012, %v4011
        %v4081 = vpack.c.bf16 %v4014, %v4013
        %v4082 = vpack.c.bf16 %v4016, %v4015
        %v4083 = vpack.c.bf16 %v4018, %v4017
        %v4084 = vpack.c.bf16 %v4020, %v4019
        %v4085 = vpack.c.bf16 %v4022, %v4021
        %v4086 = vpack.c.bf16 %v4024, %v4023
        %v4087 = vpack.c.bf16 %v4026, %v4025
        %v4088 = vpack.c.bf16 %v4028, %v4027
        %v4089 = vpack.c.bf16 %v4030, %v4029
        %v4090 = vpack.c.bf16 %v4032, %v4031
        %v4091 = vpack.c.bf16 %v4034, %v4033
        %v4092 = vpack.c.bf16 %v4036, %v4035
        %v4093 = vpack.c.bf16 %v4038, %v4037
        %v4094 = vpack.c.bf16 %v4040, %v4039
        %v4095 = vpack.c.bf16 %v4042, %v4041
        %v4096 = vpack.c.bf16 %v4044, %v4043
        %v4097 = vpack.c.bf16 %v4046, %v4045
        %v4098 = vpack.c.bf16 %v4048, %v4047
        %v4099 = vpack.c.bf16 %v4050, %v4049
        %v4100 = vpack.c.bf16 %v4052, %v4051
        %v4101 = vpack.c.bf16 %v4054, %v4053
        %v4102 = vpack.c.bf16 %v4056, %v4055
        %v4103 = vpack.c.bf16 %v4058, %v4057
        %v4104 = vpack.c.bf16 %v4060, %v4059
        %v4105 = vpack.c.bf16 %v4062, %v4061
        %v4106 = vpack.c.bf16 %v4064, %v4063
        %v4107 = vpack.c.bf16 %v4066, %v4065
        %v4108 = vpack.c.bf16 %v4068, %v4067
        %v4109 = vpack.c.bf16 %v4070, %v4069
        %v4110 = vpack.c.bf16 %v4072, %v4071
        %v4111 = vpack.c.bf16 %v4074, %v4073
        %v4112 = vpack.c.bf16 %v4076, %v4075
        %v4113 = vld [vmem:[%s1] sm:$0xf]
        %v4114 = vld [vmem:[%s1 + $0x4] sm:$0xf]
        %v4115 = vld [vmem:[%s1 + $0x8] sm:$0xf]
        %v4116 = vld [vmem:[%s1 + $0xc] sm:$0x1]
        %v4117 = vld [vmem:[%s2] sm:$0x1]
        %v4119 = vlaneseq
        %v4120 = vshrl.u32 %v4119, 7
        %v4121 = vsub.s32 0, %v4120
        %v4122 = vrot.slane %v4117, %v4121
        %v4128 = vunpack.c.l.b16 %v4113
        %v4129 = vunpack.c.l.b16 %v4114
        %v4130 = vunpack.c.l.b16 %v4115
        %v4131 = vunpack.c.l.b16 %v4116
        %v4132 = vpack.c.b16 %v4129, %v4128
        %v4133 = vpack.c.b16 %v4131, %v4130
        %vm4135 = vcmask 203776
        %v4137 = vsel %vm4135, %v4077, 0
        %v4140 = vsel %vm4135, %v4078, 0
        %v4143 = vsel %vm4135, %v4079, 0
        %v4146 = vsel %vm4135, %v4080, 0
        %v4149 = vsel %vm4135, %v4081, 0
        %v4152 = vsel %vm4135, %v4082, 0
        %v4155 = vsel %vm4135, %v4083, 0
        %v4158 = vsel %vm4135, %v4084, 0
        %v4161 = vsel %vm4135, %v4085, 0
        %v4164 = vsel %vm4135, %v4086, 0
        %v4167 = vsel %vm4135, %v4087, 0
        %v4170 = vsel %vm4135, %v4088, 0
        %v4173 = vsel %vm4135, %v4089, 0
        %v4176 = vsel %vm4135, %v4090, 0
        %v4179 = vsel %vm4135, %v4091, 0
        %v4182 = vsel %vm4135, %v4092, 0
        %v4185 = vsel %vm4135, %v4093, 0
        %v4188 = vsel %vm4135, %v4094, 0
        %v4191 = vsel %vm4135, %v4095, 0
        %v4194 = vsel %vm4135, %v4096, 0
        %v4197 = vsel %vm4135, %v4097, 0
        %v4200 = vsel %vm4135, %v4098, 0
        %v4203 = vsel %vm4135, %v4099, 0
        %v4206 = vsel %vm4135, %v4100, 0
        %v4209 = vsel %vm4135, %v4101, 0
        %v4212 = vsel %vm4135, %v4102, 0
        %v4215 = vsel %vm4135, %v4103, 0
        %v4218 = vsel %vm4135, %v4104, 0
        %v4221 = vsel %vm4135, %v4105, 0
        %v4224 = vsel %vm4135, %v4106, 0
        %v4227 = vsel %vm4135, %v4107, 0
        %v4230 = vsel %vm4135, %v4108, 0
        %v4233 = vsel %vm4135, %v4109, 0
        %v4236 = vsel %vm4135, %v4110, 0
        %v4239 = vsel %vm4135, %v4111, 0
        %v4242 = vsel %vm4135, %v4112, 0
        %vm4244 = vcmask 1043456
        %vm4245 = vcmask 1044480
        %v4246 = vsel %vm4244, 4294967295, 65535
        %v4247 = vsel %vm4245, %v4246, 0
        %v4249 = vand.u32 %v4133, %v4247
        %4251 = vmatprep.subr.bf16.mxu0 0
        %4252 = vmatpush1.bf16.msra.mxu0 0
        %4253 = vmatprep.subr.bf16.mxu0 0
        %4254 = vmatpush1.bf16.msra.mxu0 0
        %4255 = vmatprep.subr.bf16.mxu0 0
        %4256 = vmatpush1.bf16.msra.mxu0 0
        %4257 = vmatprep.subr.bf16.mxu0 0
        %4258 = vmatpush1.bf16.msra.mxu0 0
        %4259 = vmatprep.subr.bf16.mxu0 0
        %4260 = vmatpush1.bf16.msra.mxu0 0
        %4261 = vmatprep.subr.bf16.mxu0 0
        %4262 = vmatpush1.bf16.msra.mxu0 0
        %4263 = vmatprep.subr.bf16.mxu0 0
        %4264 = vmatpush1.bf16.msra.mxu0 %v4249
        %4265 = vmatprep.subr.bf16.mxu0 0
        %4266 = vmatpush1.bf16.msra.mxu0 %v4132
        %4267 = vmatprep.subr.bf16.mxu0 0
        %4268 = vmatpush2.bf16.msra.mxu0 0
        %4269 = vmatprep.subr.bf16.mxu0 0
        %4270 = vmatpush2.bf16.msra.mxu0 0
        %4271 = vmatprep.subr.bf16.mxu0 0
        %4272 = vmatpush2.bf16.msra.mxu0 0
        %4273 = vmatprep.subr.bf16.mxu0 0
        %4274 = vmatpush2.bf16.msra.mxu0 0
        %4275 = vmatprep.subr.bf16.mxu0 0
        %4276 = vmatpush2.bf16.msra.mxu0 0
        %4277 = vmatprep.subr.bf16.mxu0 0
        %4278 = vmatpush2.bf16.msra.mxu0 0
        %4279 = vmatprep.subr.bf16.mxu0 0
        %4280 = vmatpush2.bf16.msra.mxu0 0
        %4281 = vmatprep.subr.bf16.mxu0 0
        %4282 = vmatpush2.bf16.msra.mxu0 0
        %4283 = vmatprep.mubr.bf16.mxu0 0
        %4284 = vmatmul.mubr.bf16.gmra.mxu0 %v4137
        %v4285 = vpop.f32.mrf.mxu0
        %v4286 = vadd.f32 %v4122, %v4285
        %v4287 = vpop.f32.mrf.mxu0
        %v4288 = vpop.f32.mrf.mxu0
        %v4289 = vadd.f32 %v4122, %v4288
        %v4290 = vpop.f32.mrf.mxu0
        %4291 = vmatprep.mubr.bf16.mxu0 0
        %4292 = vmatmul.mubr.bf16.gmra.mxu0 %v4140
        %v4293 = vpop.f32.mrf.mxu0
        %v4294 = vadd.f32 %v4122, %v4293
        %v4295 = vpop.f32.mrf.mxu0
        %v4296 = vpop.f32.mrf.mxu0
        %v4297 = vadd.f32 %v4122, %v4296
        %v4298 = vpop.f32.mrf.mxu0
        %4299 = vmatprep.mubr.bf16.mxu0 0
        %4300 = vmatmul.mubr.bf16.gmra.mxu0 %v4143
        %v4301 = vpop.f32.mrf.mxu0
        %v4302 = vadd.f32 %v4122, %v4301
        %v4303 = vpop.f32.mrf.mxu0
        %v4304 = vpop.f32.mrf.mxu0
        %v4305 = vadd.f32 %v4122, %v4304
        %v4306 = vpop.f32.mrf.mxu0
        %4307 = vmatprep.mubr.bf16.mxu0 0
        %4308 = vmatmul.mubr.bf16.gmra.mxu0 %v4146
        %v4309 = vpop.f32.mrf.mxu0
        %v4310 = vadd.f32 %v4122, %v4309
        %v4311 = vpop.f32.mrf.mxu0
        %v4312 = vpop.f32.mrf.mxu0
        %v4313 = vadd.f32 %v4122, %v4312
        %v4314 = vpop.f32.mrf.mxu0
        %4315 = vmatprep.mubr.bf16.mxu0 0
        %4316 = vmatmul.mubr.bf16.gmra.mxu0 %v4149
        %v4317 = vpop.f32.mrf.mxu0
        %v4318 = vadd.f32 %v4122, %v4317
        %v4319 = vpop.f32.mrf.mxu0
        %v4320 = vpop.f32.mrf.mxu0
        %v4321 = vadd.f32 %v4122, %v4320
        %v4322 = vpop.f32.mrf.mxu0
        %4323 = vmatprep.mubr.bf16.mxu0 0
        %4324 = vmatmul.mubr.bf16.gmra.mxu0 %v4152
        %v4325 = vpop.f32.mrf.mxu0
        %v4326 = vadd.f32 %v4122, %v4325
        %v4327 = vpop.f32.mrf.mxu0
        %v4328 = vpop.f32.mrf.mxu0
        %v4329 = vadd.f32 %v4122, %v4328
        %v4330 = vpop.f32.mrf.mxu0
        %4331 = vmatprep.mubr.bf16.mxu0 0
        %4332 = vmatmul.mubr.bf16.gmra.mxu0 %v4155
        %v4333 = vpop.f32.mrf.mxu0
        %v4334 = vadd.f32 %v4122, %v4333
        %v4335 = vpop.f32.mrf.mxu0
        %v4336 = vpop.f32.mrf.mxu0
        %v4337 = vadd.f32 %v4122, %v4336
        %v4338 = vpop.f32.mrf.mxu0
        %4339 = vmatprep.mubr.bf16.mxu0 0
        %4340 = vmatmul.mubr.bf16.gmra.mxu0 %v4158
        %v4341 = vpop.f32.mrf.mxu0
        %v4342 = vadd.f32 %v4122, %v4341
        %v4343 = vpop.f32.mrf.mxu0
        %v4344 = vpop.f32.mrf.mxu0
        %v4345 = vadd.f32 %v4122, %v4344
        %v4346 = vpop.f32.mrf.mxu0
        %4347 = vmatprep.mubr.bf16.mxu0 0
        %4348 = vmatmul.mubr.bf16.gmra.mxu0 %v4161
        %v4349 = vpop.f32.mrf.mxu0
        %v4350 = vadd.f32 %v4122, %v4349
        %v4351 = vpop.f32.mrf.mxu0
        %v4352 = vpop.f32.mrf.mxu0
        %v4353 = vadd.f32 %v4122, %v4352
        %v4354 = vpop.f32.mrf.mxu0
        %4355 = vmatprep.mubr.bf16.mxu0 0
        %4356 = vmatmul.mubr.bf16.gmra.mxu0 %v4164
        %v4357 = vpop.f32.mrf.mxu0
        %v4358 = vadd.f32 %v4122, %v4357
        %v4359 = vpop.f32.mrf.mxu0
        %v4360 = vpop.f32.mrf.mxu0
        %v4361 = vadd.f32 %v4122, %v4360
        %v4362 = vpop.f32.mrf.mxu0
        %4363 = vmatprep.mubr.bf16.mxu0 0
        %4364 = vmatmul.mubr.bf16.gmra.mxu0 %v4167
        %v4365 = vpop.f32.mrf.mxu0
        %v4366 = vadd.f32 %v4122, %v4365
        %v4367 = vpop.f32.mrf.mxu0
        %v4368 = vpop.f32.mrf.mxu0
        %v4369 = vadd.f32 %v4122, %v4368
        %v4370 = vpop.f32.mrf.mxu0
        %4371 = vmatprep.mubr.bf16.mxu0 0
        %4372 = vmatmul.mubr.bf16.gmra.mxu0 %v4170
        %v4373 = vpop.f32.mrf.mxu0
        %v4374 = vadd.f32 %v4122, %v4373
        %v4375 = vpop.f32.mrf.mxu0
        %v4376 = vpop.f32.mrf.mxu0
        %v4377 = vadd.f32 %v4122, %v4376
        %v4378 = vpop.f32.mrf.mxu0
        %4379 = vmatprep.mubr.bf16.mxu0 0
        %4380 = vmatmul.mubr.bf16.gmra.mxu0 %v4173
        %v4381 = vpop.f32.mrf.mxu0
        %v4382 = vadd.f32 %v4122, %v4381
        %v4383 = vpop.f32.mrf.mxu0
        %v4384 = vpop.f32.mrf.mxu0
        %v4385 = vadd.f32 %v4122, %v4384
        %v4386 = vpop.f32.mrf.mxu0
        %4387 = vmatprep.mubr.bf16.mxu0 0
        %4388 = vmatmul.mubr.bf16.gmra.mxu0 %v4176
        %v4389 = vpop.f32.mrf.mxu0
        %v4390 = vadd.f32 %v4122, %v4389
        %v4391 = vpop.f32.mrf.mxu0
        %v4392 = vpop.f32.mrf.mxu0
        %v4393 = vadd.f32 %v4122, %v4392
        %v4394 = vpop.f32.mrf.mxu0
        %4395 = vmatprep.mubr.bf16.mxu0 0
        %4396 = vmatmul.mubr.bf16.gmra.mxu0 %v4179
        %v4397 = vpop.f32.mrf.mxu0
        %v4398 = vadd.f32 %v4122, %v4397
        %v4399 = vpop.f32.mrf.mxu0
        %v4400 = vpop.f32.mrf.mxu0
        %v4401 = vadd.f32 %v4122, %v4400
        %v4402 = vpop.f32.mrf.mxu0
        %4403 = vmatprep.mubr.bf16.mxu0 0
        %4404 = vmatmul.mubr.bf16.gmra.mxu0 %v4182
        %v4405 = vpop.f32.mrf.mxu0
        %v4406 = vadd.f32 %v4122, %v4405
        %v4407 = vpop.f32.mrf.mxu0
        %v4408 = vpop.f32.mrf.mxu0
        %v4409 = vadd.f32 %v4122, %v4408
        %v4410 = vpop.f32.mrf.mxu0
        %4411 = vmatprep.mubr.bf16.mxu0 0
        %4412 = vmatmul.mubr.bf16.gmra.mxu0 %v4185
        %v4413 = vpop.f32.mrf.mxu0
        %v4414 = vadd.f32 %v4122, %v4413
        %v4415 = vpop.f32.mrf.mxu0
        %v4416 = vpop.f32.mrf.mxu0
        %v4417 = vadd.f32 %v4122, %v4416
        %v4418 = vpop.f32.mrf.mxu0
        %4419 = vmatprep.mubr.bf16.mxu0 0
        %4420 = vmatmul.mubr.bf16.gmra.mxu0 %v4188
        %v4421 = vpop.f32.mrf.mxu0
        %v4422 = vadd.f32 %v4122, %v4421
        %v4423 = vpop.f32.mrf.mxu0
        %v4424 = vpop.f32.mrf.mxu0
        %v4425 = vadd.f32 %v4122, %v4424
        %v4426 = vpop.f32.mrf.mxu0
        %4427 = vmatprep.mubr.bf16.mxu0 0
        %4428 = vmatmul.mubr.bf16.gmra.mxu0 %v4191
        %v4429 = vpop.f32.mrf.mxu0
        %v4430 = vadd.f32 %v4122, %v4429
        %v4431 = vpop.f32.mrf.mxu0
        %v4432 = vpop.f32.mrf.mxu0
        %v4433 = vadd.f32 %v4122, %v4432
        %v4434 = vpop.f32.mrf.mxu0
        %4435 = vmatprep.mubr.bf16.mxu0 0
        %4436 = vmatmul.mubr.bf16.gmra.mxu0 %v4194
        %v4437 = vpop.f32.mrf.mxu0
        %v4438 = vadd.f32 %v4122, %v4437
        %v4439 = vpop.f32.mrf.mxu0
        %v4440 = vpop.f32.mrf.mxu0
        %v4441 = vadd.f32 %v4122, %v4440
        %v4442 = vpop.f32.mrf.mxu0
        %4443 = vmatprep.mubr.bf16.mxu0 0
        %4444 = vmatmul.mubr.bf16.gmra.mxu0 %v4197
        %v4445 = vpop.f32.mrf.mxu0
        %v4446 = vadd.f32 %v4122, %v4445
        %v4447 = vpop.f32.mrf.mxu0
        %v4448 = vpop.f32.mrf.mxu0
        %v4449 = vadd.f32 %v4122, %v4448
        %v4450 = vpop.f32.mrf.mxu0
        %4451 = vmatprep.mubr.bf16.mxu0 0
        %4452 = vmatmul.mubr.bf16.gmra.mxu0 %v4200
        %v4453 = vpop.f32.mrf.mxu0
        %v4454 = vadd.f32 %v4122, %v4453
        %v4455 = vpop.f32.mrf.mxu0
        %v4456 = vpop.f32.mrf.mxu0
        %v4457 = vadd.f32 %v4122, %v4456
        %v4458 = vpop.f32.mrf.mxu0
        %4459 = vmatprep.mubr.bf16.mxu0 0
        %4460 = vmatmul.mubr.bf16.gmra.mxu0 %v4203
        %v4461 = vpop.f32.mrf.mxu0
        %v4462 = vadd.f32 %v4122, %v4461
        %v4463 = vpop.f32.mrf.mxu0
        %v4464 = vpop.f32.mrf.mxu0
        %v4465 = vadd.f32 %v4122, %v4464
        %v4466 = vpop.f32.mrf.mxu0
        %4467 = vmatprep.mubr.bf16.mxu0 0
        %4468 = vmatmul.mubr.bf16.gmra.mxu0 %v4206
        %v4469 = vpop.f32.mrf.mxu0
        %v4470 = vadd.f32 %v4122, %v4469
        %v4471 = vpop.f32.mrf.mxu0
        %v4472 = vpop.f32.mrf.mxu0
        %v4473 = vadd.f32 %v4122, %v4472
        %v4474 = vpop.f32.mrf.mxu0
        %4475 = vmatprep.mubr.bf16.mxu0 0
        %4476 = vmatmul.mubr.bf16.gmra.mxu0 %v4209
        %v4477 = vpop.f32.mrf.mxu0
        %v4478 = vadd.f32 %v4122, %v4477
        %v4479 = vpop.f32.mrf.mxu0
        %v4480 = vpop.f32.mrf.mxu0
        %v4481 = vadd.f32 %v4122, %v4480
        %v4482 = vpop.f32.mrf.mxu0
        %4483 = vmatprep.mubr.bf16.mxu0 0
        %4484 = vmatmul.mubr.bf16.gmra.mxu0 %v4212
        %v4485 = vpop.f32.mrf.mxu0
        %v4486 = vadd.f32 %v4122, %v4485
        %v4487 = vpop.f32.mrf.mxu0
        %v4488 = vpop.f32.mrf.mxu0
        %v4489 = vadd.f32 %v4122, %v4488
        %v4490 = vpop.f32.mrf.mxu0
        %4491 = vmatprep.mubr.bf16.mxu0 0
        %4492 = vmatmul.mubr.bf16.gmra.mxu0 %v4215
        %v4493 = vpop.f32.mrf.mxu0
        %v4494 = vadd.f32 %v4122, %v4493
        %v4495 = vpop.f32.mrf.mxu0
        %v4496 = vpop.f32.mrf.mxu0
        %v4497 = vadd.f32 %v4122, %v4496
        %v4498 = vpop.f32.mrf.mxu0
        %4499 = vmatprep.mubr.bf16.mxu0 0
        %4500 = vmatmul.mubr.bf16.gmra.mxu0 %v4218
        %v4501 = vpop.f32.mrf.mxu0
        %v4502 = vadd.f32 %v4122, %v4501
        %v4503 = vpop.f32.mrf.mxu0
        %v4504 = vpop.f32.mrf.mxu0
        %v4505 = vadd.f32 %v4122, %v4504
        %v4506 = vpop.f32.mrf.mxu0
        %4507 = vmatprep.mubr.bf16.mxu0 0
        %4508 = vmatmul.mubr.bf16.gmra.mxu0 %v4221
        %v4509 = vpop.f32.mrf.mxu0
        %v4510 = vadd.f32 %v4122, %v4509
        %v4511 = vpop.f32.mrf.mxu0
        %v4512 = vpop.f32.mrf.mxu0
        %v4513 = vadd.f32 %v4122, %v4512
        %v4514 = vpop.f32.mrf.mxu0
        %4515 = vmatprep.mubr.bf16.mxu0 0
        %4516 = vmatmul.mubr.bf16.gmra.mxu0 %v4224
        %v4517 = vpop.f32.mrf.mxu0
        %v4518 = vadd.f32 %v4122, %v4517
        %v4519 = vpop.f32.mrf.mxu0
        %v4520 = vpop.f32.mrf.mxu0
        %v4521 = vadd.f32 %v4122, %v4520
        %v4522 = vpop.f32.mrf.mxu0
        %4523 = vmatprep.mubr.bf16.mxu0 0
        %4524 = vmatmul.mubr.bf16.gmra.mxu0 %v4227
        %v4525 = vpop.f32.mrf.mxu0
        %v4526 = vadd.f32 %v4122, %v4525
        %v4527 = vpop.f32.mrf.mxu0
        %v4528 = vpop.f32.mrf.mxu0
        %v4529 = vadd.f32 %v4122, %v4528
        %v4530 = vpop.f32.mrf.mxu0
        %4531 = vmatprep.mubr.bf16.mxu0 0
        %4532 = vmatmul.mubr.bf16.gmra.mxu0 %v4230
        %v4533 = vpop.f32.mrf.mxu0
        %v4534 = vadd.f32 %v4122, %v4533
        %v4535 = vpop.f32.mrf.mxu0
        %v4536 = vpop.f32.mrf.mxu0
        %v4537 = vadd.f32 %v4122, %v4536
        %v4538 = vpop.f32.mrf.mxu0
        %4539 = vmatprep.mubr.bf16.mxu0 0
        %4540 = vmatmul.mubr.bf16.gmra.mxu0 %v4233
        %v4541 = vpop.f32.mrf.mxu0
        %v4542 = vadd.f32 %v4122, %v4541
        %v4543 = vpop.f32.mrf.mxu0
        %v4544 = vpop.f32.mrf.mxu0
        %v4545 = vadd.f32 %v4122, %v4544
        %v4546 = vpop.f32.mrf.mxu0
        %4547 = vmatprep.mubr.bf16.mxu0 0
        %4548 = vmatmul.mubr.bf16.gmra.mxu0 %v4236
        %v4549 = vpop.f32.mrf.mxu0
        %v4550 = vadd.f32 %v4122, %v4549
        %v4551 = vpop.f32.mrf.mxu0
        %v4552 = vpop.f32.mrf.mxu0
        %v4553 = vadd.f32 %v4122, %v4552
        %v4554 = vpop.f32.mrf.mxu0
        %4555 = vmatprep.mubr.bf16.mxu0 0
        %4556 = vmatmul.mubr.bf16.gmra.mxu0 %v4239
        %v4557 = vpop.f32.mrf.mxu0
        %v4558 = vadd.f32 %v4122, %v4557
        %v4559 = vpop.f32.mrf.mxu0
        %v4560 = vpop.f32.mrf.mxu0
        %v4561 = vadd.f32 %v4122, %v4560
        %v4562 = vpop.f32.mrf.mxu0
        %4563 = vmatprep.mubr.bf16.mxu0 0
        %4564 = vmatmul.mubr.bf16.gmra.mxu0 %v4242
        %v4565 = vpop.f32.mrf.mxu0
        %v4566 = vadd.f32 %v4122, %v4565
        %v4567 = vpop.f32.mrf.mxu0
        %v4568 = vpop.f32.mrf.mxu0
        %v4569 = vadd.f32 %v4122, %v4568
        %v4570 = vpop.f32.mrf.mxu0
        %4571 = vdwg.mxu0
        %v4572 = vmax.f32 %v4286, 0.0
        %v4573 = vmax.f32 %v4289, 0.0
        %v4574 = vmax.f32 %v4294, 0.0
        %v4575 = vmax.f32 %v4297, 0.0
        %v4576 = vmax.f32 %v4302, 0.0
        %v4577 = vmax.f32 %v4305, 0.0
        %v4578 = vmax.f32 %v4310, 0.0
        %v4579 = vmax.f32 %v4313, 0.0
        %v4580 = vmax.f32 %v4318, 0.0
        %v4581 = vmax.f32 %v4321, 0.0
        %v4582 = vmax.f32 %v4326, 0.0
        %v4583 = vmax.f32 %v4329, 0.0
        %v4584 = vmax.f32 %v4334, 0.0
        %v4585 = vmax.f32 %v4337, 0.0
        %v4586 = vmax.f32 %v4342, 0.0
        %v4587 = vmax.f32 %v4345, 0.0
        %v4588 = vmax.f32 %v4350, 0.0
        %v4589 = vmax.f32 %v4353, 0.0
        %v4590 = vmax.f32 %v4358, 0.0
        %v4591 = vmax.f32 %v4361, 0.0
        %v4592 = vmax.f32 %v4366, 0.0
        %v4593 = vmax.f32 %v4369, 0.0
        %v4594 = vmax.f32 %v4374, 0.0
        %v4595 = vmax.f32 %v4377, 0.0
        %v4596 = vmax.f32 %v4382, 0.0
        %v4597 = vmax.f32 %v4385, 0.0
        %v4598 = vmax.f32 %v4390, 0.0
        %v4599 = vmax.f32 %v4393, 0.0
        %v4600 = vmax.f32 %v4398, 0.0
        %v4601 = vmax.f32 %v4401, 0.0
        %v4602 = vmax.f32 %v4406, 0.0
        %v4603 = vmax.f32 %v4409, 0.0
        %v4604 = vmax.f32 %v4414, 0.0
        %v4605 = vmax.f32 %v4417, 0.0
        %v4606 = vmax.f32 %v4422, 0.0
        %v4607 = vmax.f32 %v4425, 0.0
        %v4608 = vmax.f32 %v4430, 0.0
        %v4609 = vmax.f32 %v4433, 0.0
        %v4610 = vmax.f32 %v4438, 0.0
        %v4611 = vmax.f32 %v4441, 0.0
        %v4612 = vmax.f32 %v4446, 0.0
        %v4613 = vmax.f32 %v4449, 0.0
        %v4614 = vmax.f32 %v4454, 0.0
        %v4615 = vmax.f32 %v4457, 0.0
        %v4616 = vmax.f32 %v4462, 0.0
        %v4617 = vmax.f32 %v4465, 0.0
        %v4618 = vmax.f32 %v4470, 0.0
        %v4619 = vmax.f32 %v4473, 0.0
        %v4620 = vmax.f32 %v4478, 0.0
        %v4621 = vmax.f32 %v4481, 0.0
        %v4622 = vmax.f32 %v4486, 0.0
        %v4623 = vmax.f32 %v4489, 0.0
        %v4624 = vmax.f32 %v4494, 0.0
        %v4625 = vmax.f32 %v4497, 0.0
        %v4626 = vmax.f32 %v4502, 0.0
        %v4627 = vmax.f32 %v4505, 0.0
        %v4628 = vmax.f32 %v4510, 0.0
        %v4629 = vmax.f32 %v4513, 0.0
        %v4630 = vmax.f32 %v4518, 0.0
        %v4631 = vmax.f32 %v4521, 0.0
        %v4632 = vmax.f32 %v4526, 0.0
        %v4633 = vmax.f32 %v4529, 0.0
        %v4634 = vmax.f32 %v4534, 0.0
        %v4635 = vmax.f32 %v4537, 0.0
        %v4636 = vmax.f32 %v4542, 0.0
        %v4637 = vmax.f32 %v4545, 0.0
        %v4638 = vmax.f32 %v4550, 0.0
        %v4639 = vmax.f32 %v4553, 0.0
        %v4640 = vmax.f32 %v4558, 0.0
        %v4641 = vmax.f32 %v4561, 0.0
        %v4642 = vmax.f32 %v4566, 0.0
        %v4643 = vmax.f32 %v4569, 0.0
        %4644 = vst [vmem:[#allocation2] sm:$0xff] %v4572
        %4645 = vst [vmem:[#allocation2 + $0x8] sm:$0xff] %v4573
        %4646 = vst [vmem:[#allocation2 + $0x10] sm:$0xff] %v4574
        %4647 = vst [vmem:[#allocation2 + $0x18] sm:$0xff] %v4575
        %4648 = vst [vmem:[#allocation2 + $0x20] sm:$0xff] %v4576
        %4649 = vst [vmem:[#allocation2 + $0x28] sm:$0xff] %v4577
        %4650 = vst [vmem:[#allocation2 + $0x30] sm:$0xff] %v4578
        %4651 = vst [vmem:[#allocation2 + $0x38] sm:$0xff] %v4579
        %4652 = vst [vmem:[#allocation2 + $0x40] sm:$0xff] %v4580
        %4653 = vst [vmem:[#allocation2 + $0x48] sm:$0xff] %v4581
        %4654 = vst [vmem:[#allocation2 + $0x50] sm:$0xff] %v4582
        %4655 = vst [vmem:[#allocation2 + $0x58] sm:$0xff] %v4583
        %4656 = vst [vmem:[#allocation2 + $0x60] sm:$0xff] %v4584
        %4657 = vst [vmem:[#allocation2 + $0x68] sm:$0xff] %v4585
        %4658 = vst [vmem:[#allocation2 + $0x70] sm:$0xff] %v4586
        %4659 = vst [vmem:[#allocation2 + $0x78] sm:$0xff] %v4587
        %4660 = vst [vmem:[#allocation2 + $0x80] sm:$0xff] %v4588
        %4661 = vst [vmem:[#allocation2 + $0x88] sm:$0xff] %v4589
        %4662 = vst [vmem:[#allocation2 + $0x90] sm:$0xff] %v4590
        %4663 = vst [vmem:[#allocation2 + $0x98] sm:$0xff] %v4591
        %4664 = vst [vmem:[#allocation2 + $0xa0] sm:$0xff] %v4592
        %4665 = vst [vmem:[#allocation2 + $0xa8] sm:$0xff] %v4593
        %4666 = vst [vmem:[#allocation2 + $0xb0] sm:$0xff] %v4594
        %4667 = vst [vmem:[#allocation2 + $0xb8] sm:$0xff] %v4595
        %4668 = vst [vmem:[#allocation2 + $0xc0] sm:$0xff] %v4596
        %4669 = vst [vmem:[#allocation2 + $0xc8] sm:$0xff] %v4597
        %4670 = vst [vmem:[#allocation2 + $0xd0] sm:$0xff] %v4598
        %4671 = vst [vmem:[#allocation2 + $0xd8] sm:$0xff] %v4599
        %4672 = vst [vmem:[#allocation2 + $0xe0] sm:$0xff] %v4600
        %4673 = vst [vmem:[#allocation2 + $0xe8] sm:$0xff] %v4601
        %4674 = vst [vmem:[#allocation2 + $0xf0] sm:$0xff] %v4602
        %4675 = vst [vmem:[#allocation2 + $0xf8] sm:$0xff] %v4603
        %4676 = vst [vmem:[#allocation2 + $0x100] sm:$0xff] %v4604
        %4677 = vst [vmem:[#allocation2 + $0x108] sm:$0xff] %v4605
        %4678 = vst [vmem:[#allocation2 + $0x110] sm:$0xff] %v4606
        %4679 = vst [vmem:[#allocation2 + $0x118] sm:$0xff] %v4607
        %4680 = vst [vmem:[#allocation2 + $0x120] sm:$0xff] %v4608
        %4681 = vst [vmem:[#allocation2 + $0x128] sm:$0xff] %v4609
        %4682 = vst [vmem:[#allocation2 + $0x130] sm:$0xff] %v4610
        %4683 = vst [vmem:[#allocation2 + $0x138] sm:$0xff] %v4611
        %4684 = vst [vmem:[#allocation2 + $0x140] sm:$0xff] %v4612
        %4685 = vst [vmem:[#allocation2 + $0x148] sm:$0xff] %v4613
        %4686 = vst [vmem:[#allocation2 + $0x150] sm:$0xff] %v4614
        %4687 = vst [vmem:[#allocation2 + $0x158] sm:$0xff] %v4615
        %4688 = vst [vmem:[#allocation2 + $0x160] sm:$0xff] %v4616
        %4689 = vst [vmem:[#allocation2 + $0x168] sm:$0xff] %v4617
        %4690 = vst [vmem:[#allocation2 + $0x170] sm:$0xff] %v4618
        %4691 = vst [vmem:[#allocation2 + $0x178] sm:$0xff] %v4619
        %4692 = vst [vmem:[#allocation2 + $0x180] sm:$0xff] %v4620
        %4693 = vst [vmem:[#allocation2 + $0x188] sm:$0xff] %v4621
        %4694 = vst [vmem:[#allocation2 + $0x190] sm:$0xff] %v4622
        %4695 = vst [vmem:[#allocation2 + $0x198] sm:$0xff] %v4623
        %4696 = vst [vmem:[#allocation2 + $0x1a0] sm:$0xff] %v4624
        %4697 = vst [vmem:[#allocation2 + $0x1a8] sm:$0xff] %v4625
        %4698 = vst [vmem:[#allocation2 + $0x1b0] sm:$0xff] %v4626
        %4699 = vst [vmem:[#allocation2 + $0x1b8] sm:$0xff] %v4627
        %4700 = vst [vmem:[#allocation2 + $0x1c0] sm:$0xff] %v4628
        %4701 = vst [vmem:[#allocation2 + $0x1c8] sm:$0xff] %v4629
        %4702 = vst [vmem:[#allocation2 + $0x1d0] sm:$0xff] %v4630
        %4703 = vst [vmem:[#allocation2 + $0x1d8] sm:$0xff] %v4631
        %4704 = vst [vmem:[#allocation2 + $0x1e0] sm:$0xff] %v4632
        %4705 = vst [vmem:[#allocation2 + $0x1e8] sm:$0xff] %v4633
        %4706 = vst [vmem:[#allocation2 + $0x1f0] sm:$0xff] %v4634
        %4707 = vst [vmem:[#allocation2 + $0x1f8] sm:$0xff] %v4635
        %4708 = vst [vmem:[#allocation2 + $0x200] sm:$0xff] %v4636
        %4709 = vst [vmem:[#allocation2 + $0x208] sm:$0xff] %v4637
        %4710 = vst [vmem:[#allocation2 + $0x210] sm:$0xff] %v4638
        %4711 = vst [vmem:[#allocation2 + $0x218] sm:$0xff] %v4639
        %4712 = vst [vmem:[#allocation2 + $0x220] sm:$0xff] %v4640
        %4713 = vst [vmem:[#allocation2 + $0x228] sm:$0xff] %v4641
        %4714 = vst [vmem:[#allocation2 + $0x230] sm:$0xff] %v4642
        %4715 = vst [vmem:[#allocation2 + $0x238] sm:$0xff] %v4643
        %v4716 = vld [vmem:[#allocation2] sm:$0xff]
        %v4717 = vld [vmem:[#allocation2 + $0x8] sm:$0xff]
        %v4718 = vld [vmem:[#allocation2 + $0x10] sm:$0xff]
        %v4719 = vld [vmem:[#allocation2 + $0x30] sm:$0xff]
        %v4720 = vld [vmem:[#allocation2 + $0x38] sm:$0xff]
        %v4721 = vld [vmem:[#allocation2 + $0x40] sm:$0xff]
        %v4722 = vld [vmem:[#allocation2 + $0x60] sm:$0xff]
        %v4723 = vld [vmem:[#allocation2 + $0x68] sm:$0xff]
        %v4724 = vld [vmem:[#allocation2 + $0x70] sm:$0xff]
        %v4725 = vld [vmem:[#allocation2 + $0x90] sm:$0xff]
        %v4726 = vld [vmem:[#allocation2 + $0x98] sm:$0xff]
        %v4727 = vld [vmem:[#allocation2 + $0xa0] sm:$0xff]
        %v4728 = vld [vmem:[#allocation2 + $0xc0] sm:$0xff]
        %v4729 = vld [vmem:[#allocation2 + $0xc8] sm:$0xff]
        %v4730 = vld [vmem:[#allocation2 + $0xd0] sm:$0xff]
        %v4731 = vld [vmem:[#allocation2 + $0xf0] sm:$0xff]
        %v4732 = vld [vmem:[#allocation2 + $0xf8] sm:$0xff]
        %v4733 = vld [vmem:[#allocation2 + $0x100] sm:$0xff]
        %v4734 = vld [vmem:[#allocation2 + $0x120] sm:$0xff]
        %v4735 = vld [vmem:[#allocation2 + $0x128] sm:$0xff]
        %v4736 = vld [vmem:[#allocation2 + $0x130] sm:$0xff]
        %v4737 = vld [vmem:[#allocation2 + $0x150] sm:$0xff]
        %v4738 = vld [vmem:[#allocation2 + $0x158] sm:$0xff]
        %v4739 = vld [vmem:[#allocation2 + $0x160] sm:$0xff]
        %v4740 = vld [vmem:[#allocation2 + $0x180] sm:$0xff]
        %v4741 = vld [vmem:[#allocation2 + $0x188] sm:$0xff]
        %v4742 = vld [vmem:[#allocation2 + $0x190] sm:$0xff]
        %v4743 = vld [vmem:[#allocation2 + $0x1b0] sm:$0xff]
        %v4744 = vld [vmem:[#allocation2 + $0x1b8] sm:$0xff]
        %v4745 = vld [vmem:[#allocation2 + $0x1c0] sm:$0xff]
        %v4746 = vld [vmem:[#allocation2 + $0x1e0] sm:$0xff]
        %v4747 = vld [vmem:[#allocation2 + $0x1e8] sm:$0xff]
        %v4748 = vld [vmem:[#allocation2 + $0x1f0] sm:$0xff]
        %v4749 = vld [vmem:[#allocation2 + $0x210] sm:$0xff]
        %v4750 = vld [vmem:[#allocation2 + $0x218] sm:$0xff]
        %v4751 = vld [vmem:[#allocation2 + $0x220] sm:$0xff]
        %s4752 = scalar_lea.vmem [#allocation2], 24
        %v4753 = vld [vmem:[%s4752] sm:$0xff]
        %v4754 = vld [vmem:[%s4752 + $0x8] sm:$0xff]
        %v4755 = vld [vmem:[%s4752 + $0x10] sm:$0xff]
        %v4756 = vld [vmem:[%s4752 + $0x30] sm:$0xff]
        %v4757 = vld [vmem:[%s4752 + $0x38] sm:$0xff]
        %v4758 = vld [vmem:[%s4752 + $0x40] sm:$0xff]
        %v4759 = vld [vmem:[%s4752 + $0x60] sm:$0xff]
        %v4760 = vld [vmem:[%s4752 + $0x68] sm:$0xff]
        %v4761 = vld [vmem:[%s4752 + $0x70] sm:$0xff]
        %v4762 = vld [vmem:[%s4752 + $0x90] sm:$0xff]
        %v4763 = vld [vmem:[%s4752 + $0x98] sm:$0xff]
        %v4764 = vld [vmem:[%s4752 + $0xa0] sm:$0xff]
        %v4765 = vld [vmem:[%s4752 + $0xc0] sm:$0xff]
        %v4766 = vld [vmem:[%s4752 + $0xc8] sm:$0xff]
        %v4767 = vld [vmem:[%s4752 + $0xd0] sm:$0xff]
        %v4768 = vld [vmem:[%s4752 + $0xf0] sm:$0xff]
        %v4769 = vld [vmem:[%s4752 + $0xf8] sm:$0xff]
        %v4770 = vld [vmem:[%s4752 + $0x100] sm:$0xff]
        %v4771 = vld [vmem:[%s4752 + $0x120] sm:$0xff]
        %v4772 = vld [vmem:[%s4752 + $0x128] sm:$0xff]
        %v4773 = vld [vmem:[%s4752 + $0x130] sm:$0xff]
        %v4774 = vld [vmem:[%s4752 + $0x150] sm:$0xff]
        %v4775 = vld [vmem:[%s4752 + $0x158] sm:$0xff]
        %v4776 = vld [vmem:[%s4752 + $0x160] sm:$0xff]
        %v4777 = vld [vmem:[%s4752 + $0x180] sm:$0xff]
        %v4778 = vld [vmem:[%s4752 + $0x188] sm:$0xff]
        %v4779 = vld [vmem:[%s4752 + $0x190] sm:$0xff]
        %v4780 = vld [vmem:[%s4752 + $0x1b0] sm:$0xff]
        %v4781 = vld [vmem:[%s4752 + $0x1b8] sm:$0xff]
        %v4782 = vld [vmem:[%s4752 + $0x1c0] sm:$0xff]
        %v4783 = vld [vmem:[%s4752 + $0x1e0] sm:$0xff]
        %v4784 = vld [vmem:[%s4752 + $0x1e8] sm:$0xff]
        %v4785 = vld [vmem:[%s4752 + $0x1f0] sm:$0xff]
        %v4786 = vld [vmem:[%s4752 + $0x210] sm:$0xff]
        %v4787 = vld [vmem:[%s4752 + $0x218] sm:$0xff]
        %v4788 = vld [vmem:[%s4752 + $0x220] sm:$0xff]
        %v4789 = vmax.f32 %v4716, %v4753
        %v4790 = vmax.f32 %v4717, %v4754
        %v4791 = vmax.f32 %v4718, %v4755
        %v4792 = vmax.f32 %v4719, %v4756
        %v4793 = vmax.f32 %v4720, %v4757
        %v4794 = vmax.f32 %v4721, %v4758
        %v4795 = vmax.f32 %v4722, %v4759
        %v4796 = vmax.f32 %v4723, %v4760
        %v4797 = vmax.f32 %v4724, %v4761
        %v4798 = vmax.f32 %v4725, %v4762
        %v4799 = vmax.f32 %v4726, %v4763
        %v4800 = vmax.f32 %v4727, %v4764
        %v4801 = vmax.f32 %v4728, %v4765
        %v4802 = vmax.f32 %v4729, %v4766
        %v4803 = vmax.f32 %v4730, %v4767
        %v4804 = vmax.f32 %v4731, %v4768
        %v4805 = vmax.f32 %v4732, %v4769
        %v4806 = vmax.f32 %v4733, %v4770
        %v4807 = vmax.f32 %v4734, %v4771
        %v4808 = vmax.f32 %v4735, %v4772
        %v4809 = vmax.f32 %v4736, %v4773
        %v4810 = vmax.f32 %v4737, %v4774
        %v4811 = vmax.f32 %v4738, %v4775
        %v4812 = vmax.f32 %v4739, %v4776
        %v4813 = vmax.f32 %v4740, %v4777
        %v4814 = vmax.f32 %v4741, %v4778
        %v4815 = vmax.f32 %v4742, %v4779
        %v4816 = vmax.f32 %v4743, %v4780
        %v4817 = vmax.f32 %v4744, %v4781
        %v4818 = vmax.f32 %v4745, %v4782
        %v4819 = vmax.f32 %v4746, %v4783
        %v4820 = vmax.f32 %v4747, %v4784
        %v4821 = vmax.f32 %v4748, %v4785
        %v4822 = vmax.f32 %v4749, %v4786
        %v4823 = vmax.f32 %v4750, %v4787
        %v4824 = vmax.f32 %v4751, %v4788
        %4825 = vst [vmem:[#allocation3] sm:$0xff] %v4789
        %4826 = vst [vmem:[#allocation3 + $0x8] sm:$0xff] %v4790
        %4827 = vst [vmem:[#allocation3 + $0x10] sm:$0xff] %v4791
        %4828 = vst [vmem:[#allocation3 + $0x18] sm:$0xff] %v4792
        %4829 = vst [vmem:[#allocation3 + $0x20] sm:$0xff] %v4793
        %4830 = vst [vmem:[#allocation3 + $0x28] sm:$0xff] %v4794
        %4831 = vst [vmem:[#allocation3 + $0x30] sm:$0xff] %v4795
        %4832 = vst [vmem:[#allocation3 + $0x38] sm:$0xff] %v4796
        %4833 = vst [vmem:[#allocation3 + $0x40] sm:$0xff] %v4797
        %4834 = vst [vmem:[#allocation3 + $0x48] sm:$0xff] %v4798
        %4835 = vst [vmem:[#allocation3 + $0x50] sm:$0xff] %v4799
        %4836 = vst [vmem:[#allocation3 + $0x58] sm:$0xff] %v4800
        %4837 = vst [vmem:[#allocation3 + $0x60] sm:$0xff] %v4801
        %4838 = vst [vmem:[#allocation3 + $0x68] sm:$0xff] %v4802
        %4839 = vst [vmem:[#allocation3 + $0x70] sm:$0xff] %v4803
        %4840 = vst [vmem:[#allocation3 + $0x78] sm:$0xff] %v4804
        %4841 = vst [vmem:[#allocation3 + $0x80] sm:$0xff] %v4805
        %4842 = vst [vmem:[#allocation3 + $0x88] sm:$0xff] %v4806
        %4843 = vst [vmem:[#allocation3 + $0x90] sm:$0xff] %v4807
        %4844 = vst [vmem:[#allocation3 + $0x98] sm:$0xff] %v4808
        %4845 = vst [vmem:[#allocation3 + $0xa0] sm:$0xff] %v4809
        %4846 = vst [vmem:[#allocation3 + $0xa8] sm:$0xff] %v4810
        %4847 = vst [vmem:[#allocation3 + $0xb0] sm:$0xff] %v4811
        %4848 = vst [vmem:[#allocation3 + $0xb8] sm:$0xff] %v4812
        %4849 = vst [vmem:[#allocation3 + $0xc0] sm:$0xff] %v4813
        %4850 = vst [vmem:[#allocation3 + $0xc8] sm:$0xff] %v4814
        %4851 = vst [vmem:[#allocation3 + $0xd0] sm:$0xff] %v4815
        %4852 = vst [vmem:[#allocation3 + $0xd8] sm:$0xff] %v4816
        %4853 = vst [vmem:[#allocation3 + $0xe0] sm:$0xff] %v4817
        %4854 = vst [vmem:[#allocation3 + $0xe8] sm:$0xff] %v4818
        %4855 = vst [vmem:[#allocation3 + $0xf0] sm:$0xff] %v4819
        %4856 = vst [vmem:[#allocation3 + $0xf8] sm:$0xff] %v4820
        %4857 = vst [vmem:[#allocation3 + $0x100] sm:$0xff] %v4821
        %4858 = vst [vmem:[#allocation3 + $0x108] sm:$0xff] %v4822
        %4859 = vst [vmem:[#allocation3 + $0x110] sm:$0xff] %v4823
        %4860 = vst [vmem:[#allocation3 + $0x118] sm:$0xff] %v4824
        %v4861 = vld [vmem:[#allocation3] ss:$2 sm:$0xff]
        %s4862 = scalar_lea.vmem [#allocation3], 16
        %v4863 = vld [vmem:[%s4862] ss:$2 sm:$0xf]
        %s4864 = scalar_lea.vmem [#allocation3], 24
        %v4865 = vld [vmem:[%s4864] ss:$2 sm:$0xff]
        %s4866 = scalar_lea.vmem [#allocation3], 40
        %v4867 = vld [vmem:[%s4866] ss:$2 sm:$0xf]
        %s4868 = scalar_lea.vmem [#allocation3], 48
        %v4869 = vld [vmem:[%s4868] ss:$2 sm:$0xff]
        %s4870 = scalar_lea.vmem [#allocation3], 64
        %v4871 = vld [vmem:[%s4870] ss:$2 sm:$0xf]
        %s4872 = scalar_lea.vmem [#allocation3], 72
        %v4873 = vld [vmem:[%s4872] ss:$2 sm:$0xff]
        %s4874 = scalar_lea.vmem [#allocation3], 88
        %v4875 = vld [vmem:[%s4874] ss:$2 sm:$0xf]
        %s4876 = scalar_lea.vmem [#allocation3], 96
        %v4877 = vld [vmem:[%s4876] ss:$2 sm:$0xff]
        %s4878 = scalar_lea.vmem [#allocation3], 112
        %v4879 = vld [vmem:[%s4878] ss:$2 sm:$0xf]
        %s4880 = scalar_lea.vmem [#allocation3], 120
        %v4881 = vld [vmem:[%s4880] ss:$2 sm:$0xff]
        %s4882 = scalar_lea.vmem [#allocation3], 136
        %v4883 = vld [vmem:[%s4882] ss:$2 sm:$0xf]
        %s4884 = scalar_lea.vmem [#allocation3], 144
        %v4885 = vld [vmem:[%s4884] ss:$2 sm:$0xff]
        %s4886 = scalar_lea.vmem [#allocation3], 160
        %v4887 = vld [vmem:[%s4886] ss:$2 sm:$0xf]
        %s4888 = scalar_lea.vmem [#allocation3], 168
        %v4889 = vld [vmem:[%s4888] ss:$2 sm:$0xff]
        %s4890 = scalar_lea.vmem [#allocation3], 184
        %v4891 = vld [vmem:[%s4890] ss:$2 sm:$0xf]
        %s4892 = scalar_lea.vmem [#allocation3], 192
        %v4893 = vld [vmem:[%s4892] ss:$2 sm:$0xff]
        %s4894 = scalar_lea.vmem [#allocation3], 208
        %v4895 = vld [vmem:[%s4894] ss:$2 sm:$0xf]
        %s4896 = scalar_lea.vmem [#allocation3], 216
        %v4897 = vld [vmem:[%s4896] ss:$2 sm:$0xff]
        %s4898 = scalar_lea.vmem [#allocation3], 232
        %v4899 = vld [vmem:[%s4898] ss:$2 sm:$0xf]
        %s4900 = scalar_lea.vmem [#allocation3], 240
        %v4901 = vld [vmem:[%s4900] ss:$2 sm:$0xff]
        %s4902 = scalar_lea.vmem [#allocation3], 256
        %v4903 = vld [vmem:[%s4902] ss:$2 sm:$0xf]
        %s4904 = scalar_lea.vmem [#allocation3], 264
        %v4905 = vld [vmem:[%s4904] ss:$2 sm:$0xff]
        %s4906 = scalar_lea.vmem [#allocation3], 280
        %v4907 = vld [vmem:[%s4906] ss:$2 sm:$0xf]
        %s4908 = scalar_lea.vmem [#allocation3], 1
        %v4909 = vld [vmem:[%s4908] ss:$2 sm:$0xff]
        %s4910 = scalar_lea.vmem [#allocation3], 17
        %v4911 = vld [vmem:[%s4910] ss:$2 sm:$0xf]
        %s4912 = scalar_lea.vmem [#allocation3], 25
        %v4913 = vld [vmem:[%s4912] ss:$2 sm:$0xff]
        %s4914 = scalar_lea.vmem [#allocation3], 41
        %v4915 = vld [vmem:[%s4914] ss:$2 sm:$0xf]
        %s4916 = scalar_lea.vmem [#allocation3], 49
        %v4917 = vld [vmem:[%s4916] ss:$2 sm:$0xff]
        %s4918 = scalar_lea.vmem [#allocation3], 65
        %v4919 = vld [vmem:[%s4918] ss:$2 sm:$0xf]
        %s4920 = scalar_lea.vmem [#allocation3], 73
        %v4921 = vld [vmem:[%s4920] ss:$2 sm:$0xff]
        %s4922 = scalar_lea.vmem [#allocation3], 89
        %v4923 = vld [vmem:[%s4922] ss:$2 sm:$0xf]
        %s4924 = scalar_lea.vmem [#allocation3], 97
        %v4925 = vld [vmem:[%s4924] ss:$2 sm:$0xff]
        %s4926 = scalar_lea.vmem [#allocation3], 113
        %v4927 = vld [vmem:[%s4926] ss:$2 sm:$0xf]
        %s4928 = scalar_lea.vmem [#allocation3], 121
        %v4929 = vld [vmem:[%s4928] ss:$2 sm:$0xff]
        %s4930 = scalar_lea.vmem [#allocation3], 137
        %v4931 = vld [vmem:[%s4930] ss:$2 sm:$0xf]
        %s4932 = scalar_lea.vmem [#allocation3], 145
        %v4933 = vld [vmem:[%s4932] ss:$2 sm:$0xff]
        %s4934 = scalar_lea.vmem [#allocation3], 161
        %v4935 = vld [vmem:[%s4934] ss:$2 sm:$0xf]
        %s4936 = scalar_lea.vmem [#allocation3], 169
        %v4937 = vld [vmem:[%s4936] ss:$2 sm:$0xff]
        %s4938 = scalar_lea.vmem [#allocation3], 185
        %v4939 = vld [vmem:[%s4938] ss:$2 sm:$0xf]
        %s4940 = scalar_lea.vmem [#allocation3], 193
        %v4941 = vld [vmem:[%s4940] ss:$2 sm:$0xff]
        %s4942 = scalar_lea.vmem [#allocation3], 209
        %v4943 = vld [vmem:[%s4942] ss:$2 sm:$0xf]
        %s4944 = scalar_lea.vmem [#allocation3], 217
        %v4945 = vld [vmem:[%s4944] ss:$2 sm:$0xff]
        %s4946 = scalar_lea.vmem [#allocation3], 233
        %v4947 = vld [vmem:[%s4946] ss:$2 sm:$0xf]
        %s4948 = scalar_lea.vmem [#allocation3], 241
        %v4949 = vld [vmem:[%s4948] ss:$2 sm:$0xff]
        %s4950 = scalar_lea.vmem [#allocation3], 257
        %v4951 = vld [vmem:[%s4950] ss:$2 sm:$0xf]
        %s4952 = scalar_lea.vmem [#allocation3], 265
        %v4953 = vld [vmem:[%s4952] ss:$2 sm:$0xff]
        %s4954 = scalar_lea.vmem [#allocation3], 281
        %v4955 = vld [vmem:[%s4954] ss:$2 sm:$0xf]
        %v4956 = vmax.f32 %v4861, %v4909
        %v4957 = vmax.f32 %v4863, %v4911
        %v4958 = vmax.f32 %v4865, %v4913
        %v4959 = vmax.f32 %v4867, %v4915
        %v4960 = vmax.f32 %v4869, %v4917
        %v4961 = vmax.f32 %v4871, %v4919
        %v4962 = vmax.f32 %v4873, %v4921
        %v4963 = vmax.f32 %v4875, %v4923
        %v4964 = vmax.f32 %v4877, %v4925
        %v4965 = vmax.f32 %v4879, %v4927
        %v4966 = vmax.f32 %v4881, %v4929
        %v4967 = vmax.f32 %v4883, %v4931
        %v4968 = vmax.f32 %v4885, %v4933
        %v4969 = vmax.f32 %v4887, %v4935
        %v4970 = vmax.f32 %v4889, %v4937
        %v4971 = vmax.f32 %v4891, %v4939
        %v4972 = vmax.f32 %v4893, %v4941
        %v4973 = vmax.f32 %v4895, %v4943
        %v4974 = vmax.f32 %v4897, %v4945
        %v4975 = vmax.f32 %v4899, %v4947
        %v4976 = vmax.f32 %v4901, %v4949
        %v4977 = vmax.f32 %v4903, %v4951
        %v4978 = vmax.f32 %v4905, %v4953
        %v4979 = vmax.f32 %v4907, %v4955
        %v4980 = vpack.c.bf16 %v4958, %v4956
        %v4981 = vpack.c.bf16 %v4962, %v4960
        %v4982 = vpack.c.bf16 %v4966, %v4964
        %v4983 = vpack.c.bf16 %v4970, %v4968
        %v4984 = vld [vmem:[%s3] sm:$0xf]
        %v4985 = vld [vmem:[%s3 + $0x4] sm:$0x1]
        %vm5002 = vcmask 1046528
        %v5003 = vrot.slane %v4956, 1
        %v5004 = vrot.slane %v4957, 1
        %v5005 = vsel %vm5002, %v5003, %v5004
        %v5006 = vrot.slane %v4958, 1
        %v5007 = vrot.slane %v4959, 1
        %v5008 = vsel %vm5002, %v5006, %v5007
        %v5009 = vrot.slane %v4960, 1
        %v5010 = vrot.slane %v4961, 1
        %v5011 = vsel %vm5002, %v5009, %v5010
        %v5012 = vrot.slane %v4962, 1
        %v5013 = vrot.slane %v4963, 1
        %v5014 = vsel %vm5002, %v5012, %v5013
        %v5015 = vrot.slane %v4964, 1
        %v5016 = vrot.slane %v4965, 1
        %v5017 = vsel %vm5002, %v5015, %v5016
        %v5018 = vrot.slane %v4966, 1
        %v5019 = vrot.slane %v4967, 1
        %v5020 = vsel %vm5002, %v5018, %v5019
        %v5021 = vrot.slane %v4968, 1
        %v5022 = vrot.slane %v4969, 1
        %v5023 = vsel %vm5002, %v5021, %v5022
        %v5024 = vrot.slane %v4970, 1
        %v5025 = vrot.slane %v4971, 1
        %v5026 = vsel %vm5002, %v5024, %v5025
        %v5035 = vpack.c.bf16 %v5008, %v5005
        %v5036 = vpack.c.bf16 %v5014, %v5011
        %v5037 = vpack.c.bf16 %v5020, %v5017
        %v5038 = vpack.c.bf16 %v5026, %v5023
        %s5039 = scalar_lea.vmem %s3, 8
        %v5040 = vld [vmem:[%s5039] sm:$0xf]
        %v5041 = vld [vmem:[%s5039 + $0x4] sm:$0x1]
        %v5044 = vunpack.c.l.b16 %v5040
        %v5045 = vunpack.c.l.b16 %v5041
        %v5046 = vpack.c.b16 %v5045, %v5044
        %v5048 = vsel %vm2702, %v5035, 0
        %v5051 = vsel %vm2702, %v5036, 0
        %v5054 = vsel %vm2702, %v5037, 0
        %v5057 = vsel %vm2702, %v5038, 0
        %v5060 = vsel %vm4245, %v5046, 0
        %5062 = vmatprep.subr.bf16.mxu0 0
        %5063 = vmatpush1.bf16.msra.mxu0 0
        %5064 = vmatprep.subr.bf16.mxu0 0
        %5065 = vmatpush1.bf16.msra.mxu0 0
        %5066 = vmatprep.subr.bf16.mxu0 0
        %5067 = vmatpush1.bf16.msra.mxu0 0
        %5068 = vmatprep.subr.bf16.mxu0 0
        %5069 = vmatpush1.bf16.msra.mxu0 0
        %5070 = vmatprep.subr.bf16.mxu0 0
        %5071 = vmatpush1.bf16.msra.mxu0 0
        %5072 = vmatprep.subr.bf16.mxu0 0
        %5073 = vmatpush1.bf16.msra.mxu0 0
        %5074 = vmatprep.subr.bf16.mxu0 0
        %5075 = vmatpush1.bf16.msra.mxu0 0
        %5076 = vmatprep.subr.bf16.mxu0 0
        %5077 = vmatpush1.bf16.msra.mxu0 %v5060
        %5078 = vmatprep.subr.bf16.mxu0 0
        %5079 = vmatpush2.bf16.msra.mxu0 0
        %5080 = vmatprep.subr.bf16.mxu0 0
        %5081 = vmatpush2.bf16.msra.mxu0 0
        %5082 = vmatprep.subr.bf16.mxu0 0
        %5083 = vmatpush2.bf16.msra.mxu0 0
        %5084 = vmatprep.subr.bf16.mxu0 0
        %5085 = vmatpush2.bf16.msra.mxu0 0
        %5086 = vmatprep.subr.bf16.mxu0 0
        %5087 = vmatpush2.bf16.msra.mxu0 0
        %5088 = vmatprep.subr.bf16.mxu0 0
        %5089 = vmatpush2.bf16.msra.mxu0 0
        %5090 = vmatprep.subr.bf16.mxu0 0
        %5091 = vmatpush2.bf16.msra.mxu0 0
        %5092 = vmatprep.subr.bf16.mxu0 0
        %5093 = vmatpush2.bf16.msra.mxu0 0
        %5094 = vmatprep.mubr.bf16.mxu0 0
        %5095 = vmatmul.mubr.bf16.gmra.mxu0 %v5048
        %v5096 = vpop.f32.mrf.mxu0
        %v5097 = vadd.f32 0.0, %v5096
        %v5098 = vpop.f32.mrf.mxu0
        %v5099 = vpop.f32.mrf.mxu0
        %v5100 = vadd.f32 0.0, %v5099
        %v5101 = vpop.f32.mrf.mxu0
        %5102 = vmatprep.mubr.bf16.mxu0 0
        %5103 = vmatmul.mubr.bf16.gmra.mxu0 %v5051
        %v5104 = vpop.f32.mrf.mxu0
        %v5105 = vadd.f32 0.0, %v5104
        %v5106 = vpop.f32.mrf.mxu0
        %v5107 = vpop.f32.mrf.mxu0
        %v5108 = vadd.f32 0.0, %v5107
        %v5109 = vpop.f32.mrf.mxu0
        %5110 = vmatprep.mubr.bf16.mxu0 0
        %5111 = vmatmul.mubr.bf16.gmra.mxu0 %v5054
        %v5112 = vpop.f32.mrf.mxu0
        %v5113 = vadd.f32 0.0, %v5112
        %v5114 = vpop.f32.mrf.mxu0
        %v5115 = vpop.f32.mrf.mxu0
        %v5116 = vadd.f32 0.0, %v5115
        %v5117 = vpop.f32.mrf.mxu0
        %5118 = vmatprep.mubr.bf16.mxu0 0
        %5119 = vmatmul.mubr.bf16.gmra.mxu0 %v5057
        %v5120 = vpop.f32.mrf.mxu0
        %v5121 = vadd.f32 0.0, %v5120
        %v5122 = vpop.f32.mrf.mxu0
        %v5123 = vpop.f32.mrf.mxu0
        %v5124 = vadd.f32 0.0, %v5123
        %v5125 = vpop.f32.mrf.mxu0
        %5126 = vdwg.mxu0
        %v5129 = vunpack.c.l.b16 %v4984
        %v5130 = vunpack.c.l.b16 %v4985
        %v5131 = vpack.c.b16 %v5130, %v5129
        %v5133 = vsel %vm2702, %v4980, 0
        %v5136 = vsel %vm2702, %v4981, 0
        %v5139 = vsel %vm2702, %v4982, 0
        %v5142 = vsel %vm2702, %v4983, 0
        %v5145 = vsel %vm4245, %v5131, 0
        %5147 = vmatprep.subr.bf16.mxu0 0
        %5148 = vmatpush1.bf16.msra.mxu0 0
        %5149 = vmatprep.subr.bf16.mxu0 0
        %5150 = vmatpush1.bf16.msra.mxu0 0
        %5151 = vmatprep.subr.bf16.mxu0 0
        %5152 = vmatpush1.bf16.msra.mxu0 0
        %5153 = vmatprep.subr.bf16.mxu0 0
        %5154 = vmatpush1.bf16.msra.mxu0 0
        %5155 = vmatprep.subr.bf16.mxu0 0
        %5156 = vmatpush1.bf16.msra.mxu0 0
        %5157 = vmatprep.subr.bf16.mxu0 0
        %5158 = vmatpush1.bf16.msra.mxu0 0
        %5159 = vmatprep.subr.bf16.mxu0 0
        %5160 = vmatpush1.bf16.msra.mxu0 0
        %5161 = vmatprep.subr.bf16.mxu0 0
        %5162 = vmatpush1.bf16.msra.mxu0 %v5145
        %5163 = vmatprep.subr.bf16.mxu0 0
        %5164 = vmatpush2.bf16.msra.mxu0 0
        %5165 = vmatprep.subr.bf16.mxu0 0
        %5166 = vmatpush2.bf16.msra.mxu0 0
        %5167 = vmatprep.subr.bf16.mxu0 0
        %5168 = vmatpush2.bf16.msra.mxu0 0
        %5169 = vmatprep.subr.bf16.mxu0 0
        %5170 = vmatpush2.bf16.msra.mxu0 0
        %5171 = vmatprep.subr.bf16.mxu0 0
        %5172 = vmatpush2.bf16.msra.mxu0 0
        %5173 = vmatprep.subr.bf16.mxu0 0
        %5174 = vmatpush2.bf16.msra.mxu0 0
        %5175 = vmatprep.subr.bf16.mxu0 0
        %5176 = vmatpush2.bf16.msra.mxu0 0
        %5177 = vmatprep.subr.bf16.mxu0 0
        %5178 = vmatpush2.bf16.msra.mxu0 0
        %5179 = vmatprep.mubr.bf16.mxu0 0
        %5180 = vmatmul.mubr.bf16.gmra.mxu0 %v5133
        %v5181 = vpop.f32.mrf.mxu0
        %v5182 = vadd.f32 %v5097, %v5181
        %v5183 = vpop.f32.mrf.mxu0
        %v5184 = vpop.f32.mrf.mxu0
        %v5185 = vadd.f32 %v5100, %v5184
        %v5186 = vpop.f32.mrf.mxu0
        %5187 = vmatprep.mubr.bf16.mxu0 0
        %5188 = vmatmul.mubr.bf16.gmra.mxu0 %v5136
        %v5189 = vpop.f32.mrf.mxu0
        %v5190 = vadd.f32 %v5105, %v5189
        %v5191 = vpop.f32.mrf.mxu0
        %v5192 = vpop.f32.mrf.mxu0
        %v5193 = vadd.f32 %v5108, %v5192
        %v5194 = vpop.f32.mrf.mxu0
        %5195 = vmatprep.mubr.bf16.mxu0 0
        %5196 = vmatmul.mubr.bf16.gmra.mxu0 %v5139
        %v5197 = vpop.f32.mrf.mxu0
        %v5198 = vadd.f32 %v5113, %v5197
        %v5199 = vpop.f32.mrf.mxu0
        %v5200 = vpop.f32.mrf.mxu0
        %v5201 = vadd.f32 %v5116, %v5200
        %v5202 = vpop.f32.mrf.mxu0
        %5203 = vmatprep.mubr.bf16.mxu0 0
        %5204 = vmatmul.mubr.bf16.gmra.mxu0 %v5142
        %v5205 = vpop.f32.mrf.mxu0
        %v5206 = vadd.f32 %v5121, %v5205
        %v5207 = vpop.f32.mrf.mxu0
        %v5208 = vpop.f32.mrf.mxu0
        %v5209 = vadd.f32 %v5124, %v5208
        %v5210 = vpop.f32.mrf.mxu0
        %5211 = vdwg.mxu0
        %vm5212 = vcmask 1045504
        %v5213 = vrot.slane %v4956, 2
        %v5214 = vrot.slane %v4957, 2
        %v5215 = vsel %vm5212, %v5213, %v5214
        %v5216 = vrot.slane %v4958, 2
        %v5217 = vrot.slane %v4959, 2
        %v5218 = vsel %vm5212, %v5216, %v5217
        %v5219 = vrot.slane %v4960, 2
        %v5220 = vrot.slane %v4961, 2
        %v5221 = vsel %vm5212, %v5219, %v5220
        %v5222 = vrot.slane %v4962, 2
        %v5223 = vrot.slane %v4963, 2
        %v5224 = vsel %vm5212, %v5222, %v5223
        %v5225 = vrot.slane %v4964, 2
        %v5226 = vrot.slane %v4965, 2
        %v5227 = vsel %vm5212, %v5225, %v5226
        %v5228 = vrot.slane %v4966, 2
        %v5229 = vrot.slane %v4967, 2
        %v5230 = vsel %vm5212, %v5228, %v5229
        %v5231 = vrot.slane %v4968, 2
        %v5232 = vrot.slane %v4969, 2
        %v5233 = vsel %vm5212, %v5231, %v5232
        %v5234 = vrot.slane %v4970, 2
        %v5235 = vrot.slane %v4971, 2
        %v5236 = vsel %vm5212, %v5234, %v5235
        %v5245 = vpack.c.bf16 %v5218, %v5215
        %v5246 = vpack.c.bf16 %v5224, %v5221
        %v5247 = vpack.c.bf16 %v5230, %v5227
        %v5248 = vpack.c.bf16 %v5236, %v5233
        %s5249 = scalar_lea.vmem %s3, 16
        %v5250 = vld [vmem:[%s5249] sm:$0xf]
        %v5251 = vld [vmem:[%s5249 + $0x4] sm:$0x1]
        %v5254 = vunpack.c.l.b16 %v5250
        %v5255 = vunpack.c.l.b16 %v5251
        %v5256 = vpack.c.b16 %v5255, %v5254
        %v5258 = vsel %vm2702, %v5245, 0
        %v5261 = vsel %vm2702, %v5246, 0
        %v5264 = vsel %vm2702, %v5247, 0
        %v5267 = vsel %vm2702, %v5248, 0
        %v5270 = vsel %vm4245, %v5256, 0
        %5272 = vmatprep.subr.bf16.mxu0 0
        %5273 = vmatpush1.bf16.msra.mxu0 0
        %5274 = vmatprep.subr.bf16.mxu0 0
        %5275 = vmatpush1.bf16.msra.mxu0 0
        %5276 = vmatprep.subr.bf16.mxu0 0
        %5277 = vmatpush1.bf16.msra.mxu0 0
        %5278 = vmatprep.subr.bf16.mxu0 0
        %5279 = vmatpush1.bf16.msra.mxu0 0
        %5280 = vmatprep.subr.bf16.mxu0 0
        %5281 = vmatpush1.bf16.msra.mxu0 0
        %5282 = vmatprep.subr.bf16.mxu0 0
        %5283 = vmatpush1.bf16.msra.mxu0 0
        %5284 = vmatprep.subr.bf16.mxu0 0
        %5285 = vmatpush1.bf16.msra.mxu0 0
        %5286 = vmatprep.subr.bf16.mxu0 0
        %5287 = vmatpush1.bf16.msra.mxu0 %v5270
        %5288 = vmatprep.subr.bf16.mxu0 0
        %5289 = vmatpush2.bf16.msra.mxu0 0
        %5290 = vmatprep.subr.bf16.mxu0 0
        %5291 = vmatpush2.bf16.msra.mxu0 0
        %5292 = vmatprep.subr.bf16.mxu0 0
        %5293 = vmatpush2.bf16.msra.mxu0 0
        %5294 = vmatprep.subr.bf16.mxu0 0
        %5295 = vmatpush2.bf16.msra.mxu0 0
        %5296 = vmatprep.subr.bf16.mxu0 0
        %5297 = vmatpush2.bf16.msra.mxu0 0
        %5298 = vmatprep.subr.bf16.mxu0 0
        %5299 = vmatpush2.bf16.msra.mxu0 0
        %5300 = vmatprep.subr.bf16.mxu0 0
        %5301 = vmatpush2.bf16.msra.mxu0 0
        %5302 = vmatprep.subr.bf16.mxu0 0
        %5303 = vmatpush2.bf16.msra.mxu0 0
        %5304 = vmatprep.mubr.bf16.mxu0 0
        %5305 = vmatmul.mubr.bf16.gmra.mxu0 %v5258
        %v5306 = vpop.f32.mrf.mxu0
        %v5307 = vadd.f32 0.0, %v5306
        %v5308 = vpop.f32.mrf.mxu0
        %v5309 = vpop.f32.mrf.mxu0
        %v5310 = vadd.f32 0.0, %v5309
        %v5311 = vpop.f32.mrf.mxu0
        %5312 = vmatprep.mubr.bf16.mxu0 0
        %5313 = vmatmul.mubr.bf16.gmra.mxu0 %v5261
        %v5314 = vpop.f32.mrf.mxu0
        %v5315 = vadd.f32 0.0, %v5314
        %v5316 = vpop.f32.mrf.mxu0
        %v5317 = vpop.f32.mrf.mxu0
        %v5318 = vadd.f32 0.0, %v5317
        %v5319 = vpop.f32.mrf.mxu0
        %5320 = vmatprep.mubr.bf16.mxu0 0
        %5321 = vmatmul.mubr.bf16.gmra.mxu0 %v5264
        %v5322 = vpop.f32.mrf.mxu0
        %v5323 = vadd.f32 0.0, %v5322
        %v5324 = vpop.f32.mrf.mxu0
        %v5325 = vpop.f32.mrf.mxu0
        %v5326 = vadd.f32 0.0, %v5325
        %v5327 = vpop.f32.mrf.mxu0
        %5328 = vmatprep.mubr.bf16.mxu0 0
        %5329 = vmatmul.mubr.bf16.gmra.mxu0 %v5267
        %v5330 = vpop.f32.mrf.mxu0
        %v5331 = vadd.f32 0.0, %v5330
        %v5332 = vpop.f32.mrf.mxu0
        %v5333 = vpop.f32.mrf.mxu0
        %v5334 = vadd.f32 0.0, %v5333
        %v5335 = vpop.f32.mrf.mxu0
        %5336 = vdwg.mxu0
        %v5337 = vadd.f32 %v5182, %v5307
        %v5338 = vadd.f32 %v5185, %v5310
        %v5339 = vadd.f32 %v5190, %v5315
        %v5340 = vadd.f32 %v5193, %v5318
        %v5341 = vadd.f32 %v5198, %v5323
        %v5342 = vadd.f32 %v5201, %v5326
        %v5343 = vadd.f32 %v5206, %v5331
        %v5344 = vadd.f32 %v5209, %v5334
        %v5345 = vrot.slane %v4956, 3
        %v5346 = vrot.slane %v4957, 3
        %v5347 = vsel %vm4245, %v5345, %v5346
        %v5348 = vrot.slane %v4958, 3
        %v5349 = vrot.slane %v4959, 3
        %v5350 = vsel %vm4245, %v5348, %v5349
        %v5351 = vrot.slane %v4960, 3
        %v5352 = vrot.slane %v4961, 3
        %v5353 = vsel %vm4245, %v5351, %v5352
        %v5354 = vrot.slane %v4962, 3
        %v5355 = vrot.slane %v4963, 3
        %v5356 = vsel %vm4245, %v5354, %v5355
        %v5357 = vrot.slane %v4964, 3
        %v5358 = vrot.slane %v4965, 3
        %v5359 = vsel %vm4245, %v5357, %v5358
        %v5360 = vrot.slane %v4966, 3
        %v5361 = vrot.slane %v4967, 3
        %v5362 = vsel %vm4245, %v5360, %v5361
        %v5363 = vrot.slane %v4968, 3
        %v5364 = vrot.slane %v4969, 3
        %v5365 = vsel %vm4245, %v5363, %v5364
        %v5366 = vrot.slane %v4970, 3
        %v5367 = vrot.slane %v4971, 3
        %v5368 = vsel %vm4245, %v5366, %v5367
        %v5377 = vpack.c.bf16 %v5350, %v5347
        %v5378 = vpack.c.bf16 %v5356, %v5353
        %v5379 = vpack.c.bf16 %v5362, %v5359
        %v5380 = vpack.c.bf16 %v5368, %v5365
        %s5381 = scalar_lea.vmem %s3, 24
        %v5382 = vld [vmem:[%s5381] sm:$0xf]
        %v5383 = vld [vmem:[%s5381 + $0x4] sm:$0x1]
        %v5386 = vunpack.c.l.b16 %v5382
        %v5387 = vunpack.c.l.b16 %v5383
        %v5388 = vpack.c.b16 %v5387, %v5386
        %v5390 = vsel %vm2702, %v5377, 0
        %v5393 = vsel %vm2702, %v5378, 0
        %v5396 = vsel %vm2702, %v5379, 0
        %v5399 = vsel %vm2702, %v5380, 0
        %v5402 = vsel %vm4245, %v5388, 0
        %5404 = vmatprep.subr.bf16.mxu0 0
        %5405 = vmatpush1.bf16.msra.mxu0 0
        %5406 = vmatprep.subr.bf16.mxu0 0
        %5407 = vmatpush1.bf16.msra.mxu0 0
        %5408 = vmatprep.subr.bf16.mxu0 0
        %5409 = vmatpush1.bf16.msra.mxu0 0
        %5410 = vmatprep.subr.bf16.mxu0 0
        %5411 = vmatpush1.bf16.msra.mxu0 0
        %5412 = vmatprep.subr.bf16.mxu0 0
        %5413 = vmatpush1.bf16.msra.mxu0 0
        %5414 = vmatprep.subr.bf16.mxu0 0
        %5415 = vmatpush1.bf16.msra.mxu0 0
        %5416 = vmatprep.subr.bf16.mxu0 0
        %5417 = vmatpush1.bf16.msra.mxu0 0
        %5418 = vmatprep.subr.bf16.mxu0 0
        %5419 = vmatpush1.bf16.msra.mxu0 %v5402
        %5420 = vmatprep.subr.bf16.mxu0 0
        %5421 = vmatpush2.bf16.msra.mxu0 0
        %5422 = vmatprep.subr.bf16.mxu0 0
        %5423 = vmatpush2.bf16.msra.mxu0 0
        %5424 = vmatprep.subr.bf16.mxu0 0
        %5425 = vmatpush2.bf16.msra.mxu0 0
        %5426 = vmatprep.subr.bf16.mxu0 0
        %5427 = vmatpush2.bf16.msra.mxu0 0
        %5428 = vmatprep.subr.bf16.mxu0 0
        %5429 = vmatpush2.bf16.msra.mxu0 0
        %5430 = vmatprep.subr.bf16.mxu0 0
        %5431 = vmatpush2.bf16.msra.mxu0 0
        %5432 = vmatprep.subr.bf16.mxu0 0
        %5433 = vmatpush2.bf16.msra.mxu0 0
        %5434 = vmatprep.subr.bf16.mxu0 0
        %5435 = vmatpush2.bf16.msra.mxu0 0
        %5436 = vmatprep.mubr.bf16.mxu0 0
        %5437 = vmatmul.mubr.bf16.gmra.mxu0 %v5390
        %v5438 = vpop.f32.mrf.mxu0
        %v5439 = vadd.f32 0.0, %v5438
        %v5440 = vpop.f32.mrf.mxu0
        %v5441 = vpop.f32.mrf.mxu0
        %v5442 = vadd.f32 0.0, %v5441
        %v5443 = vpop.f32.mrf.mxu0
        %5444 = vmatprep.mubr.bf16.mxu0 0
        %5445 = vmatmul.mubr.bf16.gmra.mxu0 %v5393
        %v5446 = vpop.f32.mrf.mxu0
        %v5447 = vadd.f32 0.0, %v5446
        %v5448 = vpop.f32.mrf.mxu0
        %v5449 = vpop.f32.mrf.mxu0
        %v5450 = vadd.f32 0.0, %v5449
        %v5451 = vpop.f32.mrf.mxu0
        %5452 = vmatprep.mubr.bf16.mxu0 0
        %5453 = vmatmul.mubr.bf16.gmra.mxu0 %v5396
        %v5454 = vpop.f32.mrf.mxu0
        %v5455 = vadd.f32 0.0, %v5454
        %v5456 = vpop.f32.mrf.mxu0
        %v5457 = vpop.f32.mrf.mxu0
        %v5458 = vadd.f32 0.0, %v5457
        %v5459 = vpop.f32.mrf.mxu0
        %5460 = vmatprep.mubr.bf16.mxu0 0
        %5461 = vmatmul.mubr.bf16.gmra.mxu0 %v5399
        %v5462 = vpop.f32.mrf.mxu0
        %v5463 = vadd.f32 0.0, %v5462
        %v5464 = vpop.f32.mrf.mxu0
        %v5465 = vpop.f32.mrf.mxu0
        %v5466 = vadd.f32 0.0, %v5465
        %v5467 = vpop.f32.mrf.mxu0
        %5468 = vdwg.mxu0
        %v5469 = vadd.f32 %v5337, %v5439
        %v5470 = vadd.f32 %v5338, %v5442
        %v5471 = vadd.f32 %v5339, %v5447
        %v5472 = vadd.f32 %v5340, %v5450
        %v5473 = vadd.f32 %v5341, %v5455
        %v5474 = vadd.f32 %v5342, %v5458
        %v5475 = vadd.f32 %v5343, %v5463
        %v5476 = vadd.f32 %v5344, %v5466
        %v5477 = vrot.slane %v4956, 4
        %v5478 = vrot.slane %v4957, 4
        %v5479 = vsel %vm4244, %v5477, %v5478
        %v5480 = vrot.slane %v4958, 4
        %v5481 = vrot.slane %v4959, 4
        %v5482 = vsel %vm4244, %v5480, %v5481
        %v5483 = vrot.slane %v4960, 4
        %v5484 = vrot.slane %v4961, 4
        %v5485 = vsel %vm4244, %v5483, %v5484
        %v5486 = vrot.slane %v4962, 4
        %v5487 = vrot.slane %v4963, 4
        %v5488 = vsel %vm4244, %v5486, %v5487
        %v5489 = vrot.slane %v4964, 4
        %v5490 = vrot.slane %v4965, 4
        %v5491 = vsel %vm4244, %v5489, %v5490
        %v5492 = vrot.slane %v4966, 4
        %v5493 = vrot.slane %v4967, 4
        %v5494 = vsel %vm4244, %v5492, %v5493
        %v5495 = vrot.slane %v4968, 4
        %v5496 = vrot.slane %v4969, 4
        %v5497 = vsel %vm4244, %v5495, %v5496
        %v5498 = vrot.slane %v4970, 4
        %v5499 = vrot.slane %v4971, 4
        %v5500 = vsel %vm4244, %v5498, %v5499
        %v5509 = vpack.c.bf16 %v5482, %v5479
        %v5510 = vpack.c.bf16 %v5488, %v5485
        %v5511 = vpack.c.bf16 %v5494, %v5491
        %v5512 = vpack.c.bf16 %v5500, %v5497
        %s5513 = scalar_lea.vmem %s3, 32
        %v5514 = vld [vmem:[%s5513] sm:$0xf]
        %v5515 = vld [vmem:[%s5513 + $0x4] sm:$0x1]
        %v5518 = vunpack.c.l.b16 %v5514
        %v5519 = vunpack.c.l.b16 %v5515
        %v5520 = vpack.c.b16 %v5519, %v5518
        %v5522 = vsel %vm2702, %v5509, 0
        %v5525 = vsel %vm2702, %v5510, 0
        %v5528 = vsel %vm2702, %v5511, 0
        %v5531 = vsel %vm2702, %v5512, 0
        %v5534 = vsel %vm4245, %v5520, 0
        %5536 = vmatprep.subr.bf16.mxu0 0
        %5537 = vmatpush1.bf16.msra.mxu0 0
        %5538 = vmatprep.subr.bf16.mxu0 0
        %5539 = vmatpush1.bf16.msra.mxu0 0
        %5540 = vmatprep.subr.bf16.mxu0 0
        %5541 = vmatpush1.bf16.msra.mxu0 0
        %5542 = vmatprep.subr.bf16.mxu0 0
        %5543 = vmatpush1.bf16.msra.mxu0 0
        %5544 = vmatprep.subr.bf16.mxu0 0
        %5545 = vmatpush1.bf16.msra.mxu0 0
        %5546 = vmatprep.subr.bf16.mxu0 0
        %5547 = vmatpush1.bf16.msra.mxu0 0
        %5548 = vmatprep.subr.bf16.mxu0 0
        %5549 = vmatpush1.bf16.msra.mxu0 0
        %5550 = vmatprep.subr.bf16.mxu0 0
        %5551 = vmatpush1.bf16.msra.mxu0 %v5534
        %5552 = vmatprep.subr.bf16.mxu0 0
        %5553 = vmatpush2.bf16.msra.mxu0 0
        %5554 = vmatprep.subr.bf16.mxu0 0
        %5555 = vmatpush2.bf16.msra.mxu0 0
        %5556 = vmatprep.subr.bf16.mxu0 0
        %5557 = vmatpush2.bf16.msra.mxu0 0
        %5558 = vmatprep.subr.bf16.mxu0 0
        %5559 = vmatpush2.bf16.msra.mxu0 0
        %5560 = vmatprep.subr.bf16.mxu0 0
        %5561 = vmatpush2.bf16.msra.mxu0 0
        %5562 = vmatprep.subr.bf16.mxu0 0
        %5563 = vmatpush2.bf16.msra.mxu0 0
        %5564 = vmatprep.subr.bf16.mxu0 0
        %5565 = vmatpush2.bf16.msra.mxu0 0
        %5566 = vmatprep.subr.bf16.mxu0 0
        %5567 = vmatpush2.bf16.msra.mxu0 0
        %5568 = vmatprep.mubr.bf16.mxu0 0
        %5569 = vmatmul.mubr.bf16.gmra.mxu0 %v5522
        %v5570 = vpop.f32.mrf.mxu0
        %v5571 = vadd.f32 0.0, %v5570
        %v5572 = vpop.f32.mrf.mxu0
        %v5573 = vpop.f32.mrf.mxu0
        %v5574 = vadd.f32 0.0, %v5573
        %v5575 = vpop.f32.mrf.mxu0
        %5576 = vmatprep.mubr.bf16.mxu0 0
        %5577 = vmatmul.mubr.bf16.gmra.mxu0 %v5525
        %v5578 = vpop.f32.mrf.mxu0
        %v5579 = vadd.f32 0.0, %v5578
        %v5580 = vpop.f32.mrf.mxu0
        %v5581 = vpop.f32.mrf.mxu0
        %v5582 = vadd.f32 0.0, %v5581
        %v5583 = vpop.f32.mrf.mxu0
        %5584 = vmatprep.mubr.bf16.mxu0 0
        %5585 = vmatmul.mubr.bf16.gmra.mxu0 %v5528
        %v5586 = vpop.f32.mrf.mxu0
        %v5587 = vadd.f32 0.0, %v5586
        %v5588 = vpop.f32.mrf.mxu0
        %v5589 = vpop.f32.mrf.mxu0
        %v5590 = vadd.f32 0.0, %v5589
        %v5591 = vpop.f32.mrf.mxu0
        %5592 = vmatprep.mubr.bf16.mxu0 0
        %5593 = vmatmul.mubr.bf16.gmra.mxu0 %v5531
        %v5594 = vpop.f32.mrf.mxu0
        %v5595 = vadd.f32 0.0, %v5594
        %v5596 = vpop.f32.mrf.mxu0
        %v5597 = vpop.f32.mrf.mxu0
        %v5598 = vadd.f32 0.0, %v5597
        %v5599 = vpop.f32.mrf.mxu0
        %5600 = vdwg.mxu0
        %v5601 = vadd.f32 %v5469, %v5571
        %v5602 = vadd.f32 %v5470, %v5574
        %v5603 = vadd.f32 %v5471, %v5579
        %v5604 = vadd.f32 %v5472, %v5582
        %v5605 = vadd.f32 %v5473, %v5587
        %v5606 = vadd.f32 %v5474, %v5590
        %v5607 = vadd.f32 %v5475, %v5595
        %v5608 = vadd.f32 %v5476, %v5598
        %v5609 = vpack.c.bf16 %v4960, %v4958
        %v5610 = vpack.c.bf16 %v4964, %v4962
        %v5611 = vpack.c.bf16 %v4968, %v4966
        %v5612 = vpack.c.bf16 %v4972, %v4970
        %s5613 = scalar_lea.vmem %s3, 40
        %v5614 = vld [vmem:[%s5613] sm:$0xf]
        %v5615 = vld [vmem:[%s5613 + $0x4] sm:$0x1]
        %v5618 = vunpack.c.l.b16 %v5614
        %v5619 = vunpack.c.l.b16 %v5615
        %v5620 = vpack.c.b16 %v5619, %v5618
        %v5622 = vsel %vm2702, %v5609, 0
        %v5625 = vsel %vm2702, %v5610, 0
        %v5628 = vsel %vm2702, %v5611, 0
        %v5631 = vsel %vm2702, %v5612, 0
        %v5634 = vsel %vm4245, %v5620, 0
        %5636 = vmatprep.subr.bf16.mxu0 0
        %5637 = vmatpush1.bf16.msra.mxu0 0
        %5638 = vmatprep.subr.bf16.mxu0 0
        %5639 = vmatpush1.bf16.msra.mxu0 0
        %5640 = vmatprep.subr.bf16.mxu0 0
        %5641 = vmatpush1.bf16.msra.mxu0 0
        %5642 = vmatprep.subr.bf16.mxu0 0
        %5643 = vmatpush1.bf16.msra.mxu0 0
        %5644 = vmatprep.subr.bf16.mxu0 0
        %5645 = vmatpush1.bf16.msra.mxu0 0
        %5646 = vmatprep.subr.bf16.mxu0 0
        %5647 = vmatpush1.bf16.msra.mxu0 0
        %5648 = vmatprep.subr.bf16.mxu0 0
        %5649 = vmatpush1.bf16.msra.mxu0 0
        %5650 = vmatprep.subr.bf16.mxu0 0
        %5651 = vmatpush1.bf16.msra.mxu0 %v5634
        %5652 = vmatprep.subr.bf16.mxu0 0
        %5653 = vmatpush2.bf16.msra.mxu0 0
        %5654 = vmatprep.subr.bf16.mxu0 0
        %5655 = vmatpush2.bf16.msra.mxu0 0
        %5656 = vmatprep.subr.bf16.mxu0 0
        %5657 = vmatpush2.bf16.msra.mxu0 0
        %5658 = vmatprep.subr.bf16.mxu0 0
        %5659 = vmatpush2.bf16.msra.mxu0 0
        %5660 = vmatprep.subr.bf16.mxu0 0
        %5661 = vmatpush2.bf16.msra.mxu0 0
        %5662 = vmatprep.subr.bf16.mxu0 0
        %5663 = vmatpush2.bf16.msra.mxu0 0
        %5664 = vmatprep.subr.bf16.mxu0 0
        %5665 = vmatpush2.bf16.msra.mxu0 0
        %5666 = vmatprep.subr.bf16.mxu0 0
        %5667 = vmatpush2.bf16.msra.mxu0 0
        %5668 = vmatprep.mubr.bf16.mxu0 0
        %5669 = vmatmul.mubr.bf16.gmra.mxu0 %v5622
        %v5670 = vpop.f32.mrf.mxu0
        %v5671 = vadd.f32 0.0, %v5670
        %v5672 = vpop.f32.mrf.mxu0
        %v5673 = vpop.f32.mrf.mxu0
        %v5674 = vadd.f32 0.0, %v5673
        %v5675 = vpop.f32.mrf.mxu0
        %5676 = vmatprep.mubr.bf16.mxu0 0
        %5677 = vmatmul.mubr.bf16.gmra.mxu0 %v5625
        %v5678 = vpop.f32.mrf.mxu0
        %v5679 = vadd.f32 0.0, %v5678
        %v5680 = vpop.f32.mrf.mxu0
        %v5681 = vpop.f32.mrf.mxu0
        %v5682 = vadd.f32 0.0, %v5681
        %v5683 = vpop.f32.mrf.mxu0
        %5684 = vmatprep.mubr.bf16.mxu0 0
        %5685 = vmatmul.mubr.bf16.gmra.mxu0 %v5628
        %v5686 = vpop.f32.mrf.mxu0
        %v5687 = vadd.f32 0.0, %v5686
        %v5688 = vpop.f32.mrf.mxu0
        %v5689 = vpop.f32.mrf.mxu0
        %v5690 = vadd.f32 0.0, %v5689
        %v5691 = vpop.f32.mrf.mxu0
        %5692 = vmatprep.mubr.bf16.mxu0 0
        %5693 = vmatmul.mubr.bf16.gmra.mxu0 %v5631
        %v5694 = vpop.f32.mrf.mxu0
        %v5695 = vadd.f32 0.0, %v5694
        %v5696 = vpop.f32.mrf.mxu0
        %v5697 = vpop.f32.mrf.mxu0
        %v5698 = vadd.f32 0.0, %v5697
        %v5699 = vpop.f32.mrf.mxu0
        %5700 = vdwg.mxu0
        %v5701 = vadd.f32 %v5601, %v5671
        %v5702 = vadd.f32 %v5602, %v5674
        %v5703 = vadd.f32 %v5603, %v5679
        %v5704 = vadd.f32 %v5604, %v5682
        %v5705 = vadd.f32 %v5605, %v5687
        %v5706 = vadd.f32 %v5606, %v5690
        %v5707 = vadd.f32 %v5607, %v5695
        %v5708 = vadd.f32 %v5608, %v5698
        %v5711 = vrot.slane %v4972, 1
        %v5712 = vrot.slane %v4973, 1
        %v5713 = vsel %vm5002, %v5711, %v5712
        %v5715 = vpack.c.bf16 %v5011, %v5008
        %v5716 = vpack.c.bf16 %v5017, %v5014
        %v5717 = vpack.c.bf16 %v5023, %v5020
        %v5718 = vpack.c.bf16 %v5713, %v5026
        %s5719 = scalar_lea.vmem %s3, 48
        %v5720 = vld [vmem:[%s5719] sm:$0xf]
        %v5721 = vld [vmem:[%s5719 + $0x4] sm:$0x1]
        %v5724 = vunpack.c.l.b16 %v5720
        %v5725 = vunpack.c.l.b16 %v5721
        %v5726 = vpack.c.b16 %v5725, %v5724
        %v5728 = vsel %vm2702, %v5715, 0
        %v5731 = vsel %vm2702, %v5716, 0
        %v5734 = vsel %vm2702, %v5717, 0
        %v5737 = vsel %vm2702, %v5718, 0
        %v5740 = vsel %vm4245, %v5726, 0
        %5742 = vmatprep.subr.bf16.mxu0 0
        %5743 = vmatpush1.bf16.msra.mxu0 0
        %5744 = vmatprep.subr.bf16.mxu0 0
        %5745 = vmatpush1.bf16.msra.mxu0 0
        %5746 = vmatprep.subr.bf16.mxu0 0
        %5747 = vmatpush1.bf16.msra.mxu0 0
        %5748 = vmatprep.subr.bf16.mxu0 0
        %5749 = vmatpush1.bf16.msra.mxu0 0
        %5750 = vmatprep.subr.bf16.mxu0 0
        %5751 = vmatpush1.bf16.msra.mxu0 0
        %5752 = vmatprep.subr.bf16.mxu0 0
        %5753 = vmatpush1.bf16.msra.mxu0 0
        %5754 = vmatprep.subr.bf16.mxu0 0
        %5755 = vmatpush1.bf16.msra.mxu0 0
        %5756 = vmatprep.subr.bf16.mxu0 0
        %5757 = vmatpush1.bf16.msra.mxu0 %v5740
        %5758 = vmatprep.subr.bf16.mxu0 0
        %5759 = vmatpush2.bf16.msra.mxu0 0
        %5760 = vmatprep.subr.bf16.mxu0 0
        %5761 = vmatpush2.bf16.msra.mxu0 0
        %5762 = vmatprep.subr.bf16.mxu0 0
        %5763 = vmatpush2.bf16.msra.mxu0 0
        %5764 = vmatprep.subr.bf16.mxu0 0
        %5765 = vmatpush2.bf16.msra.mxu0 0
        %5766 = vmatprep.subr.bf16.mxu0 0
        %5767 = vmatpush2.bf16.msra.mxu0 0
        %5768 = vmatprep.subr.bf16.mxu0 0
        %5769 = vmatpush2.bf16.msra.mxu0 0
        %5770 = vmatprep.subr.bf16.mxu0 0
        %5771 = vmatpush2.bf16.msra.mxu0 0
        %5772 = vmatprep.subr.bf16.mxu0 0
        %5773 = vmatpush2.bf16.msra.mxu0 0
        %5774 = vmatprep.mubr.bf16.mxu0 0
        %5775 = vmatmul.mubr.bf16.gmra.mxu0 %v5728
        %v5776 = vpop.f32.mrf.mxu0
        %v5777 = vadd.f32 0.0, %v5776
        %v5778 = vpop.f32.mrf.mxu0
        %v5779 = vpop.f32.mrf.mxu0
        %v5780 = vadd.f32 0.0, %v5779
        %v5781 = vpop.f32.mrf.mxu0
        %5782 = vmatprep.mubr.bf16.mxu0 0
        %5783 = vmatmul.mubr.bf16.gmra.mxu0 %v5731
        %v5784 = vpop.f32.mrf.mxu0
        %v5785 = vadd.f32 0.0, %v5784
        %v5786 = vpop.f32.mrf.mxu0
        %v5787 = vpop.f32.mrf.mxu0
        %v5788 = vadd.f32 0.0, %v5787
        %v5789 = vpop.f32.mrf.mxu0
        %5790 = vmatprep.mubr.bf16.mxu0 0
        %5791 = vmatmul.mubr.bf16.gmra.mxu0 %v5734
        %v5792 = vpop.f32.mrf.mxu0
        %v5793 = vadd.f32 0.0, %v5792
        %v5794 = vpop.f32.mrf.mxu0
        %v5795 = vpop.f32.mrf.mxu0
        %v5796 = vadd.f32 0.0, %v5795
        %v5797 = vpop.f32.mrf.mxu0
        %5798 = vmatprep.mubr.bf16.mxu0 0
        %5799 = vmatmul.mubr.bf16.gmra.mxu0 %v5737
        %v5800 = vpop.f32.mrf.mxu0
        %v5801 = vadd.f32 0.0, %v5800
        %v5802 = vpop.f32.mrf.mxu0
        %v5803 = vpop.f32.mrf.mxu0
        %v5804 = vadd.f32 0.0, %v5803
        %v5805 = vpop.f32.mrf.mxu0
        %5806 = vdwg.mxu0
        %v5807 = vadd.f32 %v5701, %v5777
        %v5808 = vadd.f32 %v5702, %v5780
        %v5809 = vadd.f32 %v5703, %v5785
        %v5810 = vadd.f32 %v5704, %v5788
        %v5811 = vadd.f32 %v5705, %v5793
        %v5812 = vadd.f32 %v5706, %v5796
        %v5813 = vadd.f32 %v5707, %v5801
        %v5814 = vadd.f32 %v5708, %v5804
        %v5815 = vrot.slane %v4972, 2
        %v5816 = vrot.slane %v4973, 2
        %v5817 = vsel %vm5212, %v5815, %v5816
        %v5819 = vpack.c.bf16 %v5221, %v5218
        %v5820 = vpack.c.bf16 %v5227, %v5224
        %v5821 = vpack.c.bf16 %v5233, %v5230
        %v5822 = vpack.c.bf16 %v5817, %v5236
        %s5823 = scalar_lea.vmem %s3, 56
        %v5824 = vld [vmem:[%s5823] sm:$0xf]
        %v5825 = vld [vmem:[%s5823 + $0x4] sm:$0x1]
        %v5828 = vunpack.c.l.b16 %v5824
        %v5829 = vunpack.c.l.b16 %v5825
        %v5830 = vpack.c.b16 %v5829, %v5828
        %v5832 = vsel %vm2702, %v5819, 0
        %v5835 = vsel %vm2702, %v5820, 0
        %v5838 = vsel %vm2702, %v5821, 0
        %v5841 = vsel %vm2702, %v5822, 0
        %v5844 = vsel %vm4245, %v5830, 0
        %5846 = vmatprep.subr.bf16.mxu0 0
        %5847 = vmatpush1.bf16.msra.mxu0 0
        %5848 = vmatprep.subr.bf16.mxu0 0
        %5849 = vmatpush1.bf16.msra.mxu0 0
        %5850 = vmatprep.subr.bf16.mxu0 0
        %5851 = vmatpush1.bf16.msra.mxu0 0
        %5852 = vmatprep.subr.bf16.mxu0 0
        %5853 = vmatpush1.bf16.msra.mxu0 0
        %5854 = vmatprep.subr.bf16.mxu0 0
        %5855 = vmatpush1.bf16.msra.mxu0 0
        %5856 = vmatprep.subr.bf16.mxu0 0
        %5857 = vmatpush1.bf16.msra.mxu0 0
        %5858 = vmatprep.subr.bf16.mxu0 0
        %5859 = vmatpush1.bf16.msra.mxu0 0
        %5860 = vmatprep.subr.bf16.mxu0 0
        %5861 = vmatpush1.bf16.msra.mxu0 %v5844
        %5862 = vmatprep.subr.bf16.mxu0 0
        %5863 = vmatpush2.bf16.msra.mxu0 0
        %5864 = vmatprep.subr.bf16.mxu0 0
        %5865 = vmatpush2.bf16.msra.mxu0 0
        %5866 = vmatprep.subr.bf16.mxu0 0
        %5867 = vmatpush2.bf16.msra.mxu0 0
        %5868 = vmatprep.subr.bf16.mxu0 0
        %5869 = vmatpush2.bf16.msra.mxu0 0
        %5870 = vmatprep.subr.bf16.mxu0 0
        %5871 = vmatpush2.bf16.msra.mxu0 0
        %5872 = vmatprep.subr.bf16.mxu0 0
        %5873 = vmatpush2.bf16.msra.mxu0 0
        %5874 = vmatprep.subr.bf16.mxu0 0
        %5875 = vmatpush2.bf16.msra.mxu0 0
        %5876 = vmatprep.subr.bf16.mxu0 0
        %5877 = vmatpush2.bf16.msra.mxu0 0
        %5878 = vmatprep.mubr.bf16.mxu0 0
        %5879 = vmatmul.mubr.bf16.gmra.mxu0 %v5832
        %v5880 = vpop.f32.mrf.mxu0
        %v5881 = vadd.f32 0.0, %v5880
        %v5882 = vpop.f32.mrf.mxu0
        %v5883 = vpop.f32.mrf.mxu0
        %v5884 = vadd.f32 0.0, %v5883
        %v5885 = vpop.f32.mrf.mxu0
        %5886 = vmatprep.mubr.bf16.mxu0 0
        %5887 = vmatmul.mubr.bf16.gmra.mxu0 %v5835
        %v5888 = vpop.f32.mrf.mxu0
        %v5889 = vadd.f32 0.0, %v5888
        %v5890 = vpop.f32.mrf.mxu0
        %v5891 = vpop.f32.mrf.mxu0
        %v5892 = vadd.f32 0.0, %v5891
        %v5893 = vpop.f32.mrf.mxu0
        %5894 = vmatprep.mubr.bf16.mxu0 0
        %5895 = vmatmul.mubr.bf16.gmra.mxu0 %v5838
        %v5896 = vpop.f32.mrf.mxu0
        %v5897 = vadd.f32 0.0, %v5896
        %v5898 = vpop.f32.mrf.mxu0
        %v5899 = vpop.f32.mrf.mxu0
        %v5900 = vadd.f32 0.0, %v5899
        %v5901 = vpop.f32.mrf.mxu0
        %5902 = vmatprep.mubr.bf16.mxu0 0
        %5903 = vmatmul.mubr.bf16.gmra.mxu0 %v5841
        %v5904 = vpop.f32.mrf.mxu0
        %v5905 = vadd.f32 0.0, %v5904
        %v5906 = vpop.f32.mrf.mxu0
        %v5907 = vpop.f32.mrf.mxu0
        %v5908 = vadd.f32 0.0, %v5907
        %v5909 = vpop.f32.mrf.mxu0
        %5910 = vdwg.mxu0
        %v5911 = vadd.f32 %v5807, %v5881
        %v5912 = vadd.f32 %v5808, %v5884
        %v5913 = vadd.f32 %v5809, %v5889
        %v5914 = vadd.f32 %v5810, %v5892
        %v5915 = vadd.f32 %v5811, %v5897
        %v5916 = vadd.f32 %v5812, %v5900
        %v5917 = vadd.f32 %v5813, %v5905
        %v5918 = vadd.f32 %v5814, %v5908
        %v5919 = vrot.slane %v4972, 3
        %v5920 = vrot.slane %v4973, 3
        %v5921 = vsel %vm4245, %v5919, %v5920
        %v5923 = vpack.c.bf16 %v5353, %v5350
        %v5924 = vpack.c.bf16 %v5359, %v5356
        %v5925 = vpack.c.bf16 %v5365, %v5362
        %v5926 = vpack.c.bf16 %v5921, %v5368
        %s5927 = scalar_lea.vmem %s3, 64
        %v5928 = vld [vmem:[%s5927] sm:$0xf]
        %v5929 = vld [vmem:[%s5927 + $0x4] sm:$0x1]
        %v5932 = vunpack.c.l.b16 %v5928
        %v5933 = vunpack.c.l.b16 %v5929
        %v5934 = vpack.c.b16 %v5933, %v5932
        %v5936 = vsel %vm2702, %v5923, 0
        %v5939 = vsel %vm2702, %v5924, 0
        %v5942 = vsel %vm2702, %v5925, 0
        %v5945 = vsel %vm2702, %v5926, 0
        %v5948 = vsel %vm4245, %v5934, 0
        %5950 = vmatprep.subr.bf16.mxu0 0
        %5951 = vmatpush1.bf16.msra.mxu0 0
        %5952 = vmatprep.subr.bf16.mxu0 0
        %5953 = vmatpush1.bf16.msra.mxu0 0
        %5954 = vmatprep.subr.bf16.mxu0 0
        %5955 = vmatpush1.bf16.msra.mxu0 0
        %5956 = vmatprep.subr.bf16.mxu0 0
        %5957 = vmatpush1.bf16.msra.mxu0 0
        %5958 = vmatprep.subr.bf16.mxu0 0
        %5959 = vmatpush1.bf16.msra.mxu0 0
        %5960 = vmatprep.subr.bf16.mxu0 0
        %5961 = vmatpush1.bf16.msra.mxu0 0
        %5962 = vmatprep.subr.bf16.mxu0 0
        %5963 = vmatpush1.bf16.msra.mxu0 0
        %5964 = vmatprep.subr.bf16.mxu0 0
        %5965 = vmatpush1.bf16.msra.mxu0 %v5948
        %5966 = vmatprep.subr.bf16.mxu0 0
        %5967 = vmatpush2.bf16.msra.mxu0 0
        %5968 = vmatprep.subr.bf16.mxu0 0
        %5969 = vmatpush2.bf16.msra.mxu0 0
        %5970 = vmatprep.subr.bf16.mxu0 0
        %5971 = vmatpush2.bf16.msra.mxu0 0
        %5972 = vmatprep.subr.bf16.mxu0 0
        %5973 = vmatpush2.bf16.msra.mxu0 0
        %5974 = vmatprep.subr.bf16.mxu0 0
        %5975 = vmatpush2.bf16.msra.mxu0 0
        %5976 = vmatprep.subr.bf16.mxu0 0
        %5977 = vmatpush2.bf16.msra.mxu0 0
        %5978 = vmatprep.subr.bf16.mxu0 0
        %5979 = vmatpush2.bf16.msra.mxu0 0
        %5980 = vmatprep.subr.bf16.mxu0 0
        %5981 = vmatpush2.bf16.msra.mxu0 0
        %5982 = vmatprep.mubr.bf16.mxu0 0
        %5983 = vmatmul.mubr.bf16.gmra.mxu0 %v5936
        %v5984 = vpop.f32.mrf.mxu0
        %v5985 = vadd.f32 0.0, %v5984
        %v5986 = vpop.f32.mrf.mxu0
        %v5987 = vpop.f32.mrf.mxu0
        %v5988 = vadd.f32 0.0, %v5987
        %v5989 = vpop.f32.mrf.mxu0
        %5990 = vmatprep.mubr.bf16.mxu0 0
        %5991 = vmatmul.mubr.bf16.gmra.mxu0 %v5939
        %v5992 = vpop.f32.mrf.mxu0
        %v5993 = vadd.f32 0.0, %v5992
        %v5994 = vpop.f32.mrf.mxu0
        %v5995 = vpop.f32.mrf.mxu0
        %v5996 = vadd.f32 0.0, %v5995
        %v5997 = vpop.f32.mrf.mxu0
        %5998 = vmatprep.mubr.bf16.mxu0 0
        %5999 = vmatmul.mubr.bf16.gmra.mxu0 %v5942
        %v6000 = vpop.f32.mrf.mxu0
        %v6001 = vadd.f32 0.0, %v6000
        %v6002 = vpop.f32.mrf.mxu0
        %v6003 = vpop.f32.mrf.mxu0
        %v6004 = vadd.f32 0.0, %v6003
        %v6005 = vpop.f32.mrf.mxu0
        %6006 = vmatprep.mubr.bf16.mxu0 0
        %6007 = vmatmul.mubr.bf16.gmra.mxu0 %v5945
        %v6008 = vpop.f32.mrf.mxu0
        %v6009 = vadd.f32 0.0, %v6008
        %v6010 = vpop.f32.mrf.mxu0
        %v6011 = vpop.f32.mrf.mxu0
        %v6012 = vadd.f32 0.0, %v6011
        %v6013 = vpop.f32.mrf.mxu0
        %6014 = vdwg.mxu0
        %v6015 = vadd.f32 %v5911, %v5985
        %v6016 = vadd.f32 %v5912, %v5988
        %v6017 = vadd.f32 %v5913, %v5993
        %v6018 = vadd.f32 %v5914, %v5996
        %v6019 = vadd.f32 %v5915, %v6001
        %v6020 = vadd.f32 %v5916, %v6004
        %v6021 = vadd.f32 %v5917, %v6009
        %v6022 = vadd.f32 %v5918, %v6012
        %v6023 = vrot.slane %v4972, 4
        %v6024 = vrot.slane %v4973, 4
        %v6025 = vsel %vm4244, %v6023, %v6024
        %v6027 = vpack.c.bf16 %v5485, %v5482
        %v6028 = vpack.c.bf16 %v5491, %v5488
        %v6029 = vpack.c.bf16 %v5497, %v5494
        %v6030 = vpack.c.bf16 %v6025, %v5500
        %s6031 = scalar_lea.vmem %s3, 72
        %v6032 = vld [vmem:[%s6031] sm:$0xf]
        %v6033 = vld [vmem:[%s6031 + $0x4] sm:$0x1]
        %v6036 = vunpack.c.l.b16 %v6032
        %v6037 = vunpack.c.l.b16 %v6033
        %v6038 = vpack.c.b16 %v6037, %v6036
        %v6040 = vsel %vm2702, %v6027, 0
        %v6043 = vsel %vm2702, %v6028, 0
        %v6046 = vsel %vm2702, %v6029, 0
        %v6049 = vsel %vm2702, %v6030, 0
        %v6052 = vsel %vm4245, %v6038, 0
        %6054 = vmatprep.subr.bf16.mxu0 0
        %6055 = vmatpush1.bf16.msra.mxu0 0
        %6056 = vmatprep.subr.bf16.mxu0 0
        %6057 = vmatpush1.bf16.msra.mxu0 0
        %6058 = vmatprep.subr.bf16.mxu0 0
        %6059 = vmatpush1.bf16.msra.mxu0 0
        %6060 = vmatprep.subr.bf16.mxu0 0
        %6061 = vmatpush1.bf16.msra.mxu0 0
        %6062 = vmatprep.subr.bf16.mxu0 0
        %6063 = vmatpush1.bf16.msra.mxu0 0
        %6064 = vmatprep.subr.bf16.mxu0 0
        %6065 = vmatpush1.bf16.msra.mxu0 0
        %6066 = vmatprep.subr.bf16.mxu0 0
        %6067 = vmatpush1.bf16.msra.mxu0 0
        %6068 = vmatprep.subr.bf16.mxu0 0
        %6069 = vmatpush1.bf16.msra.mxu0 %v6052
        %6070 = vmatprep.subr.bf16.mxu0 0
        %6071 = vmatpush2.bf16.msra.mxu0 0
        %6072 = vmatprep.subr.bf16.mxu0 0
        %6073 = vmatpush2.bf16.msra.mxu0 0
        %6074 = vmatprep.subr.bf16.mxu0 0
        %6075 = vmatpush2.bf16.msra.mxu0 0
        %6076 = vmatprep.subr.bf16.mxu0 0
        %6077 = vmatpush2.bf16.msra.mxu0 0
        %6078 = vmatprep.subr.bf16.mxu0 0
        %6079 = vmatpush2.bf16.msra.mxu0 0
        %6080 = vmatprep.subr.bf16.mxu0 0
        %6081 = vmatpush2.bf16.msra.mxu0 0
        %6082 = vmatprep.subr.bf16.mxu0 0
        %6083 = vmatpush2.bf16.msra.mxu0 0
        %6084 = vmatprep.subr.bf16.mxu0 0
        %6085 = vmatpush2.bf16.msra.mxu0 0
        %6086 = vmatprep.mubr.bf16.mxu0 0
        %6087 = vmatmul.mubr.bf16.gmra.mxu0 %v6040
        %v6088 = vpop.f32.mrf.mxu0
        %v6089 = vadd.f32 0.0, %v6088
        %v6090 = vpop.f32.mrf.mxu0
        %v6091 = vpop.f32.mrf.mxu0
        %v6092 = vadd.f32 0.0, %v6091
        %v6093 = vpop.f32.mrf.mxu0
        %6094 = vmatprep.mubr.bf16.mxu0 0
        %6095 = vmatmul.mubr.bf16.gmra.mxu0 %v6043
        %v6096 = vpop.f32.mrf.mxu0
        %v6097 = vadd.f32 0.0, %v6096
        %v6098 = vpop.f32.mrf.mxu0
        %v6099 = vpop.f32.mrf.mxu0
        %v6100 = vadd.f32 0.0, %v6099
        %v6101 = vpop.f32.mrf.mxu0
        %6102 = vmatprep.mubr.bf16.mxu0 0
        %6103 = vmatmul.mubr.bf16.gmra.mxu0 %v6046
        %v6104 = vpop.f32.mrf.mxu0
        %v6105 = vadd.f32 0.0, %v6104
        %v6106 = vpop.f32.mrf.mxu0
        %v6107 = vpop.f32.mrf.mxu0
        %v6108 = vadd.f32 0.0, %v6107
        %v6109 = vpop.f32.mrf.mxu0
        %6110 = vmatprep.mubr.bf16.mxu0 0
        %6111 = vmatmul.mubr.bf16.gmra.mxu0 %v6049
        %v6112 = vpop.f32.mrf.mxu0
        %v6113 = vadd.f32 0.0, %v6112
        %v6114 = vpop.f32.mrf.mxu0
        %v6115 = vpop.f32.mrf.mxu0
        %v6116 = vadd.f32 0.0, %v6115
        %v6117 = vpop.f32.mrf.mxu0
        %6118 = vdwg.mxu0
        %v6119 = vadd.f32 %v6015, %v6089
        %v6120 = vadd.f32 %v6016, %v6092
        %v6121 = vadd.f32 %v6017, %v6097
        %v6122 = vadd.f32 %v6018, %v6100
        %v6123 = vadd.f32 %v6019, %v6105
        %v6124 = vadd.f32 %v6020, %v6108
        %v6125 = vadd.f32 %v6021, %v6113
        %v6126 = vadd.f32 %v6022, %v6116
        %v6127 = vpack.c.bf16 %v4974, %v4972
        %s6128 = scalar_lea.vmem %s3, 80
        %v6129 = vld [vmem:[%s6128] sm:$0xf]
        %v6130 = vld [vmem:[%s6128 + $0x4] sm:$0x1]
        %v6133 = vunpack.c.l.b16 %v6129
        %v6134 = vunpack.c.l.b16 %v6130
        %v6135 = vpack.c.b16 %v6134, %v6133
        %v6137 = vsel %vm2702, %v6127, 0
        %v6140 = vsel %vm4245, %v6135, 0
        %6142 = vmatprep.subr.bf16.mxu0 0
        %6143 = vmatpush1.bf16.msra.mxu0 0
        %6144 = vmatprep.subr.bf16.mxu0 0
        %6145 = vmatpush1.bf16.msra.mxu0 0
        %6146 = vmatprep.subr.bf16.mxu0 0
        %6147 = vmatpush1.bf16.msra.mxu0 0
        %6148 = vmatprep.subr.bf16.mxu0 0
        %6149 = vmatpush1.bf16.msra.mxu0 0
        %6150 = vmatprep.subr.bf16.mxu0 0
        %6151 = vmatpush1.bf16.msra.mxu0 0
        %6152 = vmatprep.subr.bf16.mxu0 0
        %6153 = vmatpush1.bf16.msra.mxu0 0
        %6154 = vmatprep.subr.bf16.mxu0 0
        %6155 = vmatpush1.bf16.msra.mxu0 0
        %6156 = vmatprep.subr.bf16.mxu0 0
        %6157 = vmatpush1.bf16.msra.mxu0 %v6140
        %6158 = vmatprep.subr.bf16.mxu0 0
        %6159 = vmatpush2.bf16.msra.mxu0 0
        %6160 = vmatprep.subr.bf16.mxu0 0
        %6161 = vmatpush2.bf16.msra.mxu0 0
        %6162 = vmatprep.subr.bf16.mxu0 0
        %6163 = vmatpush2.bf16.msra.mxu0 0
        %6164 = vmatprep.subr.bf16.mxu0 0
        %6165 = vmatpush2.bf16.msra.mxu0 0
        %6166 = vmatprep.subr.bf16.mxu0 0
        %6167 = vmatpush2.bf16.msra.mxu0 0
        %6168 = vmatprep.subr.bf16.mxu0 0
        %6169 = vmatpush2.bf16.msra.mxu0 0
        %6170 = vmatprep.subr.bf16.mxu0 0
        %6171 = vmatpush2.bf16.msra.mxu0 0
        %6172 = vmatprep.subr.bf16.mxu0 0
        %6173 = vmatpush2.bf16.msra.mxu0 0
        %6174 = vmatprep.mubr.bf16.mxu0 0
        %6175 = vmatmul.mubr.bf16.gmra.mxu0 %v5136
        %v6176 = vpop.f32.mrf.mxu0
        %v6177 = vadd.f32 0.0, %v6176
        %v6178 = vpop.f32.mrf.mxu0
        %v6179 = vpop.f32.mrf.mxu0
        %v6180 = vadd.f32 0.0, %v6179
        %v6181 = vpop.f32.mrf.mxu0
        %6182 = vmatprep.mubr.bf16.mxu0 0
        %6183 = vmatmul.mubr.bf16.gmra.mxu0 %v5139
        %v6184 = vpop.f32.mrf.mxu0
        %v6185 = vadd.f32 0.0, %v6184
        %v6186 = vpop.f32.mrf.mxu0
        %v6187 = vpop.f32.mrf.mxu0
        %v6188 = vadd.f32 0.0, %v6187
        %v6189 = vpop.f32.mrf.mxu0
        %6190 = vmatprep.mubr.bf16.mxu0 0
        %6191 = vmatmul.mubr.bf16.gmra.mxu0 %v5142
        %v6192 = vpop.f32.mrf.mxu0
        %v6193 = vadd.f32 0.0, %v6192
        %v6194 = vpop.f32.mrf.mxu0
        %v6195 = vpop.f32.mrf.mxu0
        %v6196 = vadd.f32 0.0, %v6195
        %v6197 = vpop.f32.mrf.mxu0
        %6198 = vmatprep.mubr.bf16.mxu0 0
        %6199 = vmatmul.mubr.bf16.gmra.mxu0 %v6137
        %v6200 = vpop.f32.mrf.mxu0
        %v6201 = vadd.f32 0.0, %v6200
        %v6202 = vpop.f32.mrf.mxu0
        %v6203 = vpop.f32.mrf.mxu0
        %v6204 = vadd.f32 0.0, %v6203
        %v6205 = vpop.f32.mrf.mxu0
        %6206 = vdwg.mxu0
        %v6207 = vadd.f32 %v6119, %v6177
        %v6208 = vadd.f32 %v6120, %v6180
        %v6209 = vadd.f32 %v6121, %v6185
        %v6210 = vadd.f32 %v6122, %v6188
        %v6211 = vadd.f32 %v6123, %v6193
        %v6212 = vadd.f32 %v6124, %v6196
        %v6213 = vadd.f32 %v6125, %v6201
        %v6214 = vadd.f32 %v6126, %v6204
        %v6217 = vrot.slane %v4974, 1
        %v6218 = vrot.slane %v4975, 1
        %v6219 = vsel %vm5002, %v6217, %v6218
        %v6221 = vpack.c.bf16 %v6219, %v5713
        %s6222 = scalar_lea.vmem %s3, 88
        %v6223 = vld [vmem:[%s6222] sm:$0xf]
        %v6224 = vld [vmem:[%s6222 + $0x4] sm:$0x1]
        %v6227 = vunpack.c.l.b16 %v6223
        %v6228 = vunpack.c.l.b16 %v6224
        %v6229 = vpack.c.b16 %v6228, %v6227
        %v6231 = vsel %vm2702, %v6221, 0
        %v6234 = vsel %vm4245, %v6229, 0
        %6236 = vmatprep.subr.bf16.mxu0 0
        %6237 = vmatpush1.bf16.msra.mxu0 0
        %6238 = vmatprep.subr.bf16.mxu0 0
        %6239 = vmatpush1.bf16.msra.mxu0 0
        %6240 = vmatprep.subr.bf16.mxu0 0
        %6241 = vmatpush1.bf16.msra.mxu0 0
        %6242 = vmatprep.subr.bf16.mxu0 0
        %6243 = vmatpush1.bf16.msra.mxu0 0
        %6244 = vmatprep.subr.bf16.mxu0 0
        %6245 = vmatpush1.bf16.msra.mxu0 0
        %6246 = vmatprep.subr.bf16.mxu0 0
        %6247 = vmatpush1.bf16.msra.mxu0 0
        %6248 = vmatprep.subr.bf16.mxu0 0
        %6249 = vmatpush1.bf16.msra.mxu0 0
        %6250 = vmatprep.subr.bf16.mxu0 0
        %6251 = vmatpush1.bf16.msra.mxu0 %v6234
        %6252 = vmatprep.subr.bf16.mxu0 0
        %6253 = vmatpush2.bf16.msra.mxu0 0
        %6254 = vmatprep.subr.bf16.mxu0 0
        %6255 = vmatpush2.bf16.msra.mxu0 0
        %6256 = vmatprep.subr.bf16.mxu0 0
        %6257 = vmatpush2.bf16.msra.mxu0 0
        %6258 = vmatprep.subr.bf16.mxu0 0
        %6259 = vmatpush2.bf16.msra.mxu0 0
        %6260 = vmatprep.subr.bf16.mxu0 0
        %6261 = vmatpush2.bf16.msra.mxu0 0
        %6262 = vmatprep.subr.bf16.mxu0 0
        %6263 = vmatpush2.bf16.msra.mxu0 0
        %6264 = vmatprep.subr.bf16.mxu0 0
        %6265 = vmatpush2.bf16.msra.mxu0 0
        %6266 = vmatprep.subr.bf16.mxu0 0
        %6267 = vmatpush2.bf16.msra.mxu0 0
        %6268 = vmatprep.mubr.bf16.mxu0 0
        %6269 = vmatmul.mubr.bf16.gmra.mxu0 %v5051
        %v6270 = vpop.f32.mrf.mxu0
        %v6271 = vadd.f32 0.0, %v6270
        %v6272 = vpop.f32.mrf.mxu0
        %v6273 = vpop.f32.mrf.mxu0
        %v6274 = vadd.f32 0.0, %v6273
        %v6275 = vpop.f32.mrf.mxu0
        %6276 = vmatprep.mubr.bf16.mxu0 0
        %6277 = vmatmul.mubr.bf16.gmra.mxu0 %v5054
        %v6278 = vpop.f32.mrf.mxu0
        %v6279 = vadd.f32 0.0, %v6278
        %v6280 = vpop.f32.mrf.mxu0
        %v6281 = vpop.f32.mrf.mxu0
        %v6282 = vadd.f32 0.0, %v6281
        %v6283 = vpop.f32.mrf.mxu0
        %6284 = vmatprep.mubr.bf16.mxu0 0
        %6285 = vmatmul.mubr.bf16.gmra.mxu0 %v5057
        %v6286 = vpop.f32.mrf.mxu0
        %v6287 = vadd.f32 0.0, %v6286
        %v6288 = vpop.f32.mrf.mxu0
        %v6289 = vpop.f32.mrf.mxu0
        %v6290 = vadd.f32 0.0, %v6289
        %v6291 = vpop.f32.mrf.mxu0
        %6292 = vmatprep.mubr.bf16.mxu0 0
        %6293 = vmatmul.mubr.bf16.gmra.mxu0 %v6231
        %v6294 = vpop.f32.mrf.mxu0
        %v6295 = vadd.f32 0.0, %v6294
        %v6296 = vpop.f32.mrf.mxu0
        %v6297 = vpop.f32.mrf.mxu0
        %v6298 = vadd.f32 0.0, %v6297
        %v6299 = vpop.f32.mrf.mxu0
        %6300 = vdwg.mxu0
        %v6301 = vadd.f32 %v6207, %v6271
        %v6302 = vadd.f32 %v6208, %v6274
        %v6303 = vadd.f32 %v6209, %v6279
        %v6304 = vadd.f32 %v6210, %v6282
        %v6305 = vadd.f32 %v6211, %v6287
        %v6306 = vadd.f32 %v6212, %v6290
        %v6307 = vadd.f32 %v6213, %v6295
        %v6308 = vadd.f32 %v6214, %v6298
        %v6309 = vrot.slane %v4974, 2
        %v6310 = vrot.slane %v4975, 2
        %v6311 = vsel %vm5212, %v6309, %v6310
        %v6313 = vpack.c.bf16 %v6311, %v5817
        %s6314 = scalar_lea.vmem %s3, 96
        %v6315 = vld [vmem:[%s6314] sm:$0xf]
        %v6316 = vld [vmem:[%s6314 + $0x4] sm:$0x1]
        %v6319 = vunpack.c.l.b16 %v6315
        %v6320 = vunpack.c.l.b16 %v6316
        %v6321 = vpack.c.b16 %v6320, %v6319
        %v6323 = vsel %vm2702, %v6313, 0
        %v6326 = vsel %vm4245, %v6321, 0
        %6328 = vmatprep.subr.bf16.mxu0 0
        %6329 = vmatpush1.bf16.msra.mxu0 0
        %6330 = vmatprep.subr.bf16.mxu0 0
        %6331 = vmatpush1.bf16.msra.mxu0 0
        %6332 = vmatprep.subr.bf16.mxu0 0
        %6333 = vmatpush1.bf16.msra.mxu0 0
        %6334 = vmatprep.subr.bf16.mxu0 0
        %6335 = vmatpush1.bf16.msra.mxu0 0
        %6336 = vmatprep.subr.bf16.mxu0 0
        %6337 = vmatpush1.bf16.msra.mxu0 0
        %6338 = vmatprep.subr.bf16.mxu0 0
        %6339 = vmatpush1.bf16.msra.mxu0 0
        %6340 = vmatprep.subr.bf16.mxu0 0
        %6341 = vmatpush1.bf16.msra.mxu0 0
        %6342 = vmatprep.subr.bf16.mxu0 0
        %6343 = vmatpush1.bf16.msra.mxu0 %v6326
        %6344 = vmatprep.subr.bf16.mxu0 0
        %6345 = vmatpush2.bf16.msra.mxu0 0
        %6346 = vmatprep.subr.bf16.mxu0 0
        %6347 = vmatpush2.bf16.msra.mxu0 0
        %6348 = vmatprep.subr.bf16.mxu0 0
        %6349 = vmatpush2.bf16.msra.mxu0 0
        %6350 = vmatprep.subr.bf16.mxu0 0
        %6351 = vmatpush2.bf16.msra.mxu0 0
        %6352 = vmatprep.subr.bf16.mxu0 0
        %6353 = vmatpush2.bf16.msra.mxu0 0
        %6354 = vmatprep.subr.bf16.mxu0 0
        %6355 = vmatpush2.bf16.msra.mxu0 0
        %6356 = vmatprep.subr.bf16.mxu0 0
        %6357 = vmatpush2.bf16.msra.mxu0 0
        %6358 = vmatprep.subr.bf16.mxu0 0
        %6359 = vmatpush2.bf16.msra.mxu0 0
        %6360 = vmatprep.mubr.bf16.mxu0 0
        %6361 = vmatmul.mubr.bf16.gmra.mxu0 %v5261
        %v6362 = vpop.f32.mrf.mxu0
        %v6363 = vadd.f32 0.0, %v6362
        %v6364 = vpop.f32.mrf.mxu0
        %v6365 = vpop.f32.mrf.mxu0
        %v6366 = vadd.f32 0.0, %v6365
        %v6367 = vpop.f32.mrf.mxu0
        %6368 = vmatprep.mubr.bf16.mxu0 0
        %6369 = vmatmul.mubr.bf16.gmra.mxu0 %v5264
        %v6370 = vpop.f32.mrf.mxu0
        %v6371 = vadd.f32 0.0, %v6370
        %v6372 = vpop.f32.mrf.mxu0
        %v6373 = vpop.f32.mrf.mxu0
        %v6374 = vadd.f32 0.0, %v6373
        %v6375 = vpop.f32.mrf.mxu0
        %6376 = vmatprep.mubr.bf16.mxu0 0
        %6377 = vmatmul.mubr.bf16.gmra.mxu0 %v5267
        %v6378 = vpop.f32.mrf.mxu0
        %v6379 = vadd.f32 0.0, %v6378
        %v6380 = vpop.f32.mrf.mxu0
        %v6381 = vpop.f32.mrf.mxu0
        %v6382 = vadd.f32 0.0, %v6381
        %v6383 = vpop.f32.mrf.mxu0
        %6384 = vmatprep.mubr.bf16.mxu0 0
        %6385 = vmatmul.mubr.bf16.gmra.mxu0 %v6323
        %v6386 = vpop.f32.mrf.mxu0
        %v6387 = vadd.f32 0.0, %v6386
        %v6388 = vpop.f32.mrf.mxu0
        %v6389 = vpop.f32.mrf.mxu0
        %v6390 = vadd.f32 0.0, %v6389
        %v6391 = vpop.f32.mrf.mxu0
        %6392 = vdwg.mxu0
        %v6393 = vadd.f32 %v6301, %v6363
        %v6394 = vadd.f32 %v6302, %v6366
        %v6395 = vadd.f32 %v6303, %v6371
        %v6396 = vadd.f32 %v6304, %v6374
        %v6397 = vadd.f32 %v6305, %v6379
        %v6398 = vadd.f32 %v6306, %v6382
        %v6399 = vadd.f32 %v6307, %v6387
        %v6400 = vadd.f32 %v6308, %v6390
        %v6401 = vrot.slane %v4974, 3
        %v6402 = vrot.slane %v4975, 3
        %v6403 = vsel %vm4245, %v6401, %v6402
        %v6405 = vpack.c.bf16 %v6403, %v5921
        %s6406 = scalar_lea.vmem %s3, 104
        %v6407 = vld [vmem:[%s6406] sm:$0xf]
        %v6408 = vld [vmem:[%s6406 + $0x4] sm:$0x1]
        %v6411 = vunpack.c.l.b16 %v6407
        %v6412 = vunpack.c.l.b16 %v6408
        %v6413 = vpack.c.b16 %v6412, %v6411
        %v6415 = vsel %vm2702, %v6405, 0
        %v6418 = vsel %vm4245, %v6413, 0
        %6420 = vmatprep.subr.bf16.mxu0 0
        %6421 = vmatpush1.bf16.msra.mxu0 0
        %6422 = vmatprep.subr.bf16.mxu0 0
        %6423 = vmatpush1.bf16.msra.mxu0 0
        %6424 = vmatprep.subr.bf16.mxu0 0
        %6425 = vmatpush1.bf16.msra.mxu0 0
        %6426 = vmatprep.subr.bf16.mxu0 0
        %6427 = vmatpush1.bf16.msra.mxu0 0
        %6428 = vmatprep.subr.bf16.mxu0 0
        %6429 = vmatpush1.bf16.msra.mxu0 0
        %6430 = vmatprep.subr.bf16.mxu0 0
        %6431 = vmatpush1.bf16.msra.mxu0 0
        %6432 = vmatprep.subr.bf16.mxu0 0
        %6433 = vmatpush1.bf16.msra.mxu0 0
        %6434 = vmatprep.subr.bf16.mxu0 0
        %6435 = vmatpush1.bf16.msra.mxu0 %v6418
        %6436 = vmatprep.subr.bf16.mxu0 0
        %6437 = vmatpush2.bf16.msra.mxu0 0
        %6438 = vmatprep.subr.bf16.mxu0 0
        %6439 = vmatpush2.bf16.msra.mxu0 0
        %6440 = vmatprep.subr.bf16.mxu0 0
        %6441 = vmatpush2.bf16.msra.mxu0 0
        %6442 = vmatprep.subr.bf16.mxu0 0
        %6443 = vmatpush2.bf16.msra.mxu0 0
        %6444 = vmatprep.subr.bf16.mxu0 0
        %6445 = vmatpush2.bf16.msra.mxu0 0
        %6446 = vmatprep.subr.bf16.mxu0 0
        %6447 = vmatpush2.bf16.msra.mxu0 0
        %6448 = vmatprep.subr.bf16.mxu0 0
        %6449 = vmatpush2.bf16.msra.mxu0 0
        %6450 = vmatprep.subr.bf16.mxu0 0
        %6451 = vmatpush2.bf16.msra.mxu0 0
        %6452 = vmatprep.mubr.bf16.mxu0 0
        %6453 = vmatmul.mubr.bf16.gmra.mxu0 %v5393
        %v6454 = vpop.f32.mrf.mxu0
        %v6455 = vadd.f32 0.0, %v6454
        %v6456 = vpop.f32.mrf.mxu0
        %v6457 = vpop.f32.mrf.mxu0
        %v6458 = vadd.f32 0.0, %v6457
        %v6459 = vpop.f32.mrf.mxu0
        %6460 = vmatprep.mubr.bf16.mxu0 0
        %6461 = vmatmul.mubr.bf16.gmra.mxu0 %v5396
        %v6462 = vpop.f32.mrf.mxu0
        %v6463 = vadd.f32 0.0, %v6462
        %v6464 = vpop.f32.mrf.mxu0
        %v6465 = vpop.f32.mrf.mxu0
        %v6466 = vadd.f32 0.0, %v6465
        %v6467 = vpop.f32.mrf.mxu0
        %6468 = vmatprep.mubr.bf16.mxu0 0
        %6469 = vmatmul.mubr.bf16.gmra.mxu0 %v5399
        %v6470 = vpop.f32.mrf.mxu0
        %v6471 = vadd.f32 0.0, %v6470
        %v6472 = vpop.f32.mrf.mxu0
        %v6473 = vpop.f32.mrf.mxu0
        %v6474 = vadd.f32 0.0, %v6473
        %v6475 = vpop.f32.mrf.mxu0
        %6476 = vmatprep.mubr.bf16.mxu0 0
        %6477 = vmatmul.mubr.bf16.gmra.mxu0 %v6415
        %v6478 = vpop.f32.mrf.mxu0
        %v6479 = vadd.f32 0.0, %v6478
        %v6480 = vpop.f32.mrf.mxu0
        %v6481 = vpop.f32.mrf.mxu0
        %v6482 = vadd.f32 0.0, %v6481
        %v6483 = vpop.f32.mrf.mxu0
        %6484 = vdwg.mxu0
        %v6485 = vadd.f32 %v6393, %v6455
        %v6486 = vadd.f32 %v6394, %v6458
        %v6487 = vadd.f32 %v6395, %v6463
        %v6488 = vadd.f32 %v6396, %v6466
        %v6489 = vadd.f32 %v6397, %v6471
        %v6490 = vadd.f32 %v6398, %v6474
        %v6491 = vadd.f32 %v6399, %v6479
        %v6492 = vadd.f32 %v6400, %v6482
        %v6493 = vrot.slane %v4974, 4
        %v6494 = vrot.slane %v4975, 4
        %v6495 = vsel %vm4244, %v6493, %v6494
        %v6497 = vpack.c.bf16 %v6495, %v6025
        %s6498 = scalar_lea.vmem %s3, 112
        %v6499 = vld [vmem:[%s6498] sm:$0xf]
        %v6500 = vld [vmem:[%s6498 + $0x4] sm:$0x1]
        %v6503 = vunpack.c.l.b16 %v6499
        %v6504 = vunpack.c.l.b16 %v6500
        %v6505 = vpack.c.b16 %v6504, %v6503
        %v6507 = vsel %vm2702, %v6497, 0
        %v6510 = vsel %vm4245, %v6505, 0
        %6512 = vmatprep.subr.bf16.mxu0 0
        %6513 = vmatpush1.bf16.msra.mxu0 0
        %6514 = vmatprep.subr.bf16.mxu0 0
        %6515 = vmatpush1.bf16.msra.mxu0 0
        %6516 = vmatprep.subr.bf16.mxu0 0
        %6517 = vmatpush1.bf16.msra.mxu0 0
        %6518 = vmatprep.subr.bf16.mxu0 0
        %6519 = vmatpush1.bf16.msra.mxu0 0
        %6520 = vmatprep.subr.bf16.mxu0 0
        %6521 = vmatpush1.bf16.msra.mxu0 0
        %6522 = vmatprep.subr.bf16.mxu0 0
        %6523 = vmatpush1.bf16.msra.mxu0 0
        %6524 = vmatprep.subr.bf16.mxu0 0
        %6525 = vmatpush1.bf16.msra.mxu0 0
        %6526 = vmatprep.subr.bf16.mxu0 0
        %6527 = vmatpush1.bf16.msra.mxu0 %v6510
        %6528 = vmatprep.subr.bf16.mxu0 0
        %6529 = vmatpush2.bf16.msra.mxu0 0
        %6530 = vmatprep.subr.bf16.mxu0 0
        %6531 = vmatpush2.bf16.msra.mxu0 0
        %6532 = vmatprep.subr.bf16.mxu0 0
        %6533 = vmatpush2.bf16.msra.mxu0 0
        %6534 = vmatprep.subr.bf16.mxu0 0
        %6535 = vmatpush2.bf16.msra.mxu0 0
        %6536 = vmatprep.subr.bf16.mxu0 0
        %6537 = vmatpush2.bf16.msra.mxu0 0
        %6538 = vmatprep.subr.bf16.mxu0 0
        %6539 = vmatpush2.bf16.msra.mxu0 0
        %6540 = vmatprep.subr.bf16.mxu0 0
        %6541 = vmatpush2.bf16.msra.mxu0 0
        %6542 = vmatprep.subr.bf16.mxu0 0
        %6543 = vmatpush2.bf16.msra.mxu0 0
        %6544 = vmatprep.mubr.bf16.mxu0 0
        %6545 = vmatmul.mubr.bf16.gmra.mxu0 %v5525
        %v6546 = vpop.f32.mrf.mxu0
        %v6547 = vadd.f32 0.0, %v6546
        %v6548 = vpop.f32.mrf.mxu0
        %v6549 = vpop.f32.mrf.mxu0
        %v6550 = vadd.f32 0.0, %v6549
        %v6551 = vpop.f32.mrf.mxu0
        %6552 = vmatprep.mubr.bf16.mxu0 0
        %6553 = vmatmul.mubr.bf16.gmra.mxu0 %v5528
        %v6554 = vpop.f32.mrf.mxu0
        %v6555 = vadd.f32 0.0, %v6554
        %v6556 = vpop.f32.mrf.mxu0
        %v6557 = vpop.f32.mrf.mxu0
        %v6558 = vadd.f32 0.0, %v6557
        %v6559 = vpop.f32.mrf.mxu0
        %6560 = vmatprep.mubr.bf16.mxu0 0
        %6561 = vmatmul.mubr.bf16.gmra.mxu0 %v5531
        %v6562 = vpop.f32.mrf.mxu0
        %v6563 = vadd.f32 0.0, %v6562
        %v6564 = vpop.f32.mrf.mxu0
        %v6565 = vpop.f32.mrf.mxu0
        %v6566 = vadd.f32 0.0, %v6565
        %v6567 = vpop.f32.mrf.mxu0
        %6568 = vmatprep.mubr.bf16.mxu0 0
        %6569 = vmatmul.mubr.bf16.gmra.mxu0 %v6507
        %v6570 = vpop.f32.mrf.mxu0
        %v6571 = vadd.f32 0.0, %v6570
        %v6572 = vpop.f32.mrf.mxu0
        %v6573 = vpop.f32.mrf.mxu0
        %v6574 = vadd.f32 0.0, %v6573
        %v6575 = vpop.f32.mrf.mxu0
        %6576 = vdwg.mxu0
        %v6577 = vadd.f32 %v6485, %v6547
        %v6578 = vadd.f32 %v6486, %v6550
        %v6579 = vadd.f32 %v6487, %v6555
        %v6580 = vadd.f32 %v6488, %v6558
        %v6581 = vadd.f32 %v6489, %v6563
        %v6582 = vadd.f32 %v6490, %v6566
        %v6583 = vadd.f32 %v6491, %v6571
        %v6584 = vadd.f32 %v6492, %v6574
        %v6585 = vpack.c.bf16 %v4976, %v4974
        %s6586 = scalar_lea.vmem %s3, 120
        %v6587 = vld [vmem:[%s6586] sm:$0xf]
        %v6588 = vld [vmem:[%s6586 + $0x4] sm:$0x1]
        %v6591 = vunpack.c.l.b16 %v6587
        %v6592 = vunpack.c.l.b16 %v6588
        %v6593 = vpack.c.b16 %v6592, %v6591
        %v6595 = vsel %vm2702, %v6585, 0
        %v6598 = vsel %vm4245, %v6593, 0
        %6600 = vmatprep.subr.bf16.mxu0 0
        %6601 = vmatpush1.bf16.msra.mxu0 0
        %6602 = vmatprep.subr.bf16.mxu0 0
        %6603 = vmatpush1.bf16.msra.mxu0 0
        %6604 = vmatprep.subr.bf16.mxu0 0
        %6605 = vmatpush1.bf16.msra.mxu0 0
        %6606 = vmatprep.subr.bf16.mxu0 0
        %6607 = vmatpush1.bf16.msra.mxu0 0
        %6608 = vmatprep.subr.bf16.mxu0 0
        %6609 = vmatpush1.bf16.msra.mxu0 0
        %6610 = vmatprep.subr.bf16.mxu0 0
        %6611 = vmatpush1.bf16.msra.mxu0 0
        %6612 = vmatprep.subr.bf16.mxu0 0
        %6613 = vmatpush1.bf16.msra.mxu0 0
        %6614 = vmatprep.subr.bf16.mxu0 0
        %6615 = vmatpush1.bf16.msra.mxu0 %v6598
        %6616 = vmatprep.subr.bf16.mxu0 0
        %6617 = vmatpush2.bf16.msra.mxu0 0
        %6618 = vmatprep.subr.bf16.mxu0 0
        %6619 = vmatpush2.bf16.msra.mxu0 0
        %6620 = vmatprep.subr.bf16.mxu0 0
        %6621 = vmatpush2.bf16.msra.mxu0 0
        %6622 = vmatprep.subr.bf16.mxu0 0
        %6623 = vmatpush2.bf16.msra.mxu0 0
        %6624 = vmatprep.subr.bf16.mxu0 0
        %6625 = vmatpush2.bf16.msra.mxu0 0
        %6626 = vmatprep.subr.bf16.mxu0 0
        %6627 = vmatpush2.bf16.msra.mxu0 0
        %6628 = vmatprep.subr.bf16.mxu0 0
        %6629 = vmatpush2.bf16.msra.mxu0 0
        %6630 = vmatprep.subr.bf16.mxu0 0
        %6631 = vmatpush2.bf16.msra.mxu0 0
        %6632 = vmatprep.mubr.bf16.mxu0 0
        %6633 = vmatmul.mubr.bf16.gmra.mxu0 %v5625
        %v6634 = vpop.f32.mrf.mxu0
        %v6635 = vadd.f32 0.0, %v6634
        %v6636 = vpop.f32.mrf.mxu0
        %v6637 = vpop.f32.mrf.mxu0
        %v6638 = vadd.f32 0.0, %v6637
        %v6639 = vpop.f32.mrf.mxu0
        %6640 = vmatprep.mubr.bf16.mxu0 0
        %6641 = vmatmul.mubr.bf16.gmra.mxu0 %v5628
        %v6642 = vpop.f32.mrf.mxu0
        %v6643 = vadd.f32 0.0, %v6642
        %v6644 = vpop.f32.mrf.mxu0
        %v6645 = vpop.f32.mrf.mxu0
        %v6646 = vadd.f32 0.0, %v6645
        %v6647 = vpop.f32.mrf.mxu0
        %6648 = vmatprep.mubr.bf16.mxu0 0
        %6649 = vmatmul.mubr.bf16.gmra.mxu0 %v5631
        %v6650 = vpop.f32.mrf.mxu0
        %v6651 = vadd.f32 0.0, %v6650
        %v6652 = vpop.f32.mrf.mxu0
        %v6653 = vpop.f32.mrf.mxu0
        %v6654 = vadd.f32 0.0, %v6653
        %v6655 = vpop.f32.mrf.mxu0
        %6656 = vmatprep.mubr.bf16.mxu0 0
        %6657 = vmatmul.mubr.bf16.gmra.mxu0 %v6595
        %v6658 = vpop.f32.mrf.mxu0
        %v6659 = vadd.f32 0.0, %v6658
        %v6660 = vpop.f32.mrf.mxu0
        %v6661 = vpop.f32.mrf.mxu0
        %v6662 = vadd.f32 0.0, %v6661
        %v6663 = vpop.f32.mrf.mxu0
        %6664 = vdwg.mxu0
        %v6665 = vadd.f32 %v6577, %v6635
        %v6666 = vadd.f32 %v6578, %v6638
        %v6667 = vadd.f32 %v6579, %v6643
        %v6668 = vadd.f32 %v6580, %v6646
        %v6669 = vadd.f32 %v6581, %v6651
        %v6670 = vadd.f32 %v6582, %v6654
        %v6671 = vadd.f32 %v6583, %v6659
        %v6672 = vadd.f32 %v6584, %v6662
        %v6675 = vrot.slane %v4976, 1
        %v6676 = vrot.slane %v4977, 1
        %v6677 = vsel %vm5002, %v6675, %v6676
        %v6679 = vpack.c.bf16 %v6677, %v6219
        %s6680 = scalar_lea.vmem %s3, 128
        %v6681 = vld [vmem:[%s6680] sm:$0xf]
        %v6682 = vld [vmem:[%s6680 + $0x4] sm:$0x1]
        %v6685 = vunpack.c.l.b16 %v6681
        %v6686 = vunpack.c.l.b16 %v6682
        %v6687 = vpack.c.b16 %v6686, %v6685
        %v6689 = vsel %vm2702, %v6679, 0
        %v6692 = vsel %vm4245, %v6687, 0
        %6694 = vmatprep.subr.bf16.mxu0 0
        %6695 = vmatpush1.bf16.msra.mxu0 0
        %6696 = vmatprep.subr.bf16.mxu0 0
        %6697 = vmatpush1.bf16.msra.mxu0 0
        %6698 = vmatprep.subr.bf16.mxu0 0
        %6699 = vmatpush1.bf16.msra.mxu0 0
        %6700 = vmatprep.subr.bf16.mxu0 0
        %6701 = vmatpush1.bf16.msra.mxu0 0
        %6702 = vmatprep.subr.bf16.mxu0 0
        %6703 = vmatpush1.bf16.msra.mxu0 0
        %6704 = vmatprep.subr.bf16.mxu0 0
        %6705 = vmatpush1.bf16.msra.mxu0 0
        %6706 = vmatprep.subr.bf16.mxu0 0
        %6707 = vmatpush1.bf16.msra.mxu0 0
        %6708 = vmatprep.subr.bf16.mxu0 0
        %6709 = vmatpush1.bf16.msra.mxu0 %v6692
        %6710 = vmatprep.subr.bf16.mxu0 0
        %6711 = vmatpush2.bf16.msra.mxu0 0
        %6712 = vmatprep.subr.bf16.mxu0 0
        %6713 = vmatpush2.bf16.msra.mxu0 0
        %6714 = vmatprep.subr.bf16.mxu0 0
        %6715 = vmatpush2.bf16.msra.mxu0 0
        %6716 = vmatprep.subr.bf16.mxu0 0
        %6717 = vmatpush2.bf16.msra.mxu0 0
        %6718 = vmatprep.subr.bf16.mxu0 0
        %6719 = vmatpush2.bf16.msra.mxu0 0
        %6720 = vmatprep.subr.bf16.mxu0 0
        %6721 = vmatpush2.bf16.msra.mxu0 0
        %6722 = vmatprep.subr.bf16.mxu0 0
        %6723 = vmatpush2.bf16.msra.mxu0 0
        %6724 = vmatprep.subr.bf16.mxu0 0
        %6725 = vmatpush2.bf16.msra.mxu0 0
        %6726 = vmatprep.mubr.bf16.mxu0 0
        %6727 = vmatmul.mubr.bf16.gmra.mxu0 %v5731
        %v6728 = vpop.f32.mrf.mxu0
        %v6729 = vadd.f32 0.0, %v6728
        %v6730 = vpop.f32.mrf.mxu0
        %v6731 = vpop.f32.mrf.mxu0
        %v6732 = vadd.f32 0.0, %v6731
        %v6733 = vpop.f32.mrf.mxu0
        %6734 = vmatprep.mubr.bf16.mxu0 0
        %6735 = vmatmul.mubr.bf16.gmra.mxu0 %v5734
        %v6736 = vpop.f32.mrf.mxu0
        %v6737 = vadd.f32 0.0, %v6736
        %v6738 = vpop.f32.mrf.mxu0
        %v6739 = vpop.f32.mrf.mxu0
        %v6740 = vadd.f32 0.0, %v6739
        %v6741 = vpop.f32.mrf.mxu0
        %6742 = vmatprep.mubr.bf16.mxu0 0
        %6743 = vmatmul.mubr.bf16.gmra.mxu0 %v5737
        %v6744 = vpop.f32.mrf.mxu0
        %v6745 = vadd.f32 0.0, %v6744
        %v6746 = vpop.f32.mrf.mxu0
        %v6747 = vpop.f32.mrf.mxu0
        %v6748 = vadd.f32 0.0, %v6747
        %v6749 = vpop.f32.mrf.mxu0
        %6750 = vmatprep.mubr.bf16.mxu0 0
        %6751 = vmatmul.mubr.bf16.gmra.mxu0 %v6689
        %v6752 = vpop.f32.mrf.mxu0
        %v6753 = vadd.f32 0.0, %v6752
        %v6754 = vpop.f32.mrf.mxu0
        %v6755 = vpop.f32.mrf.mxu0
        %v6756 = vadd.f32 0.0, %v6755
        %v6757 = vpop.f32.mrf.mxu0
        %6758 = vdwg.mxu0
        %v6759 = vadd.f32 %v6665, %v6729
        %v6760 = vadd.f32 %v6666, %v6732
        %v6761 = vadd.f32 %v6667, %v6737
        %v6762 = vadd.f32 %v6668, %v6740
        %v6763 = vadd.f32 %v6669, %v6745
        %v6764 = vadd.f32 %v6670, %v6748
        %v6765 = vadd.f32 %v6671, %v6753
        %v6766 = vadd.f32 %v6672, %v6756
        %v6767 = vrot.slane %v4976, 2
        %v6768 = vrot.slane %v4977, 2
        %v6769 = vsel %vm5212, %v6767, %v6768
        %v6771 = vpack.c.bf16 %v6769, %v6311
        %s6772 = scalar_lea.vmem %s3, 136
        %v6773 = vld [vmem:[%s6772] sm:$0xf]
        %v6774 = vld [vmem:[%s6772 + $0x4] sm:$0x1]
        %v6777 = vunpack.c.l.b16 %v6773
        %v6778 = vunpack.c.l.b16 %v6774
        %v6779 = vpack.c.b16 %v6778, %v6777
        %v6781 = vsel %vm2702, %v6771, 0
        %v6784 = vsel %vm4245, %v6779, 0
        %6786 = vmatprep.subr.bf16.mxu0 0
        %6787 = vmatpush1.bf16.msra.mxu0 0
        %6788 = vmatprep.subr.bf16.mxu0 0
        %6789 = vmatpush1.bf16.msra.mxu0 0
        %6790 = vmatprep.subr.bf16.mxu0 0
        %6791 = vmatpush1.bf16.msra.mxu0 0
        %6792 = vmatprep.subr.bf16.mxu0 0
        %6793 = vmatpush1.bf16.msra.mxu0 0
        %6794 = vmatprep.subr.bf16.mxu0 0
        %6795 = vmatpush1.bf16.msra.mxu0 0
        %6796 = vmatprep.subr.bf16.mxu0 0
        %6797 = vmatpush1.bf16.msra.mxu0 0
        %6798 = vmatprep.subr.bf16.mxu0 0
        %6799 = vmatpush1.bf16.msra.mxu0 0
        %6800 = vmatprep.subr.bf16.mxu0 0
        %6801 = vmatpush1.bf16.msra.mxu0 %v6784
        %6802 = vmatprep.subr.bf16.mxu0 0
        %6803 = vmatpush2.bf16.msra.mxu0 0
        %6804 = vmatprep.subr.bf16.mxu0 0
        %6805 = vmatpush2.bf16.msra.mxu0 0
        %6806 = vmatprep.subr.bf16.mxu0 0
        %6807 = vmatpush2.bf16.msra.mxu0 0
        %6808 = vmatprep.subr.bf16.mxu0 0
        %6809 = vmatpush2.bf16.msra.mxu0 0
        %6810 = vmatprep.subr.bf16.mxu0 0
        %6811 = vmatpush2.bf16.msra.mxu0 0
        %6812 = vmatprep.subr.bf16.mxu0 0
        %6813 = vmatpush2.bf16.msra.mxu0 0
        %6814 = vmatprep.subr.bf16.mxu0 0
        %6815 = vmatpush2.bf16.msra.mxu0 0
        %6816 = vmatprep.subr.bf16.mxu0 0
        %6817 = vmatpush2.bf16.msra.mxu0 0
        %6818 = vmatprep.mubr.bf16.mxu0 0
        %6819 = vmatmul.mubr.bf16.gmra.mxu0 %v5835
        %v6820 = vpop.f32.mrf.mxu0
        %v6821 = vadd.f32 0.0, %v6820
        %v6822 = vpop.f32.mrf.mxu0
        %v6823 = vpop.f32.mrf.mxu0
        %v6824 = vadd.f32 0.0, %v6823
        %v6825 = vpop.f32.mrf.mxu0
        %6826 = vmatprep.mubr.bf16.mxu0 0
        %6827 = vmatmul.mubr.bf16.gmra.mxu0 %v5838
        %v6828 = vpop.f32.mrf.mxu0
        %v6829 = vadd.f32 0.0, %v6828
        %v6830 = vpop.f32.mrf.mxu0
        %v6831 = vpop.f32.mrf.mxu0
        %v6832 = vadd.f32 0.0, %v6831
        %v6833 = vpop.f32.mrf.mxu0
        %6834 = vmatprep.mubr.bf16.mxu0 0
        %6835 = vmatmul.mubr.bf16.gmra.mxu0 %v5841
        %v6836 = vpop.f32.mrf.mxu0
        %v6837 = vadd.f32 0.0, %v6836
        %v6838 = vpop.f32.mrf.mxu0
        %v6839 = vpop.f32.mrf.mxu0
        %v6840 = vadd.f32 0.0, %v6839
        %v6841 = vpop.f32.mrf.mxu0
        %6842 = vmatprep.mubr.bf16.mxu0 0
        %6843 = vmatmul.mubr.bf16.gmra.mxu0 %v6781
        %v6844 = vpop.f32.mrf.mxu0
        %v6845 = vadd.f32 0.0, %v6844
        %v6846 = vpop.f32.mrf.mxu0
        %v6847 = vpop.f32.mrf.mxu0
        %v6848 = vadd.f32 0.0, %v6847
        %v6849 = vpop.f32.mrf.mxu0
        %6850 = vdwg.mxu0
        %v6851 = vadd.f32 %v6759, %v6821
        %v6852 = vadd.f32 %v6760, %v6824
        %v6853 = vadd.f32 %v6761, %v6829
        %v6854 = vadd.f32 %v6762, %v6832
        %v6855 = vadd.f32 %v6763, %v6837
        %v6856 = vadd.f32 %v6764, %v6840
        %v6857 = vadd.f32 %v6765, %v6845
        %v6858 = vadd.f32 %v6766, %v6848
        %v6859 = vrot.slane %v4976, 3
        %v6860 = vrot.slane %v4977, 3
        %v6861 = vsel %vm4245, %v6859, %v6860
        %v6863 = vpack.c.bf16 %v6861, %v6403
        %s6864 = scalar_lea.vmem %s3, 144
        %v6865 = vld [vmem:[%s6864] sm:$0xf]
        %v6866 = vld [vmem:[%s6864 + $0x4] sm:$0x1]
        %v6869 = vunpack.c.l.b16 %v6865
        %v6870 = vunpack.c.l.b16 %v6866
        %v6871 = vpack.c.b16 %v6870, %v6869
        %v6873 = vsel %vm2702, %v6863, 0
        %v6876 = vsel %vm4245, %v6871, 0
        %6878 = vmatprep.subr.bf16.mxu0 0
        %6879 = vmatpush1.bf16.msra.mxu0 0
        %6880 = vmatprep.subr.bf16.mxu0 0
        %6881 = vmatpush1.bf16.msra.mxu0 0
        %6882 = vmatprep.subr.bf16.mxu0 0
        %6883 = vmatpush1.bf16.msra.mxu0 0
        %6884 = vmatprep.subr.bf16.mxu0 0
        %6885 = vmatpush1.bf16.msra.mxu0 0
        %6886 = vmatprep.subr.bf16.mxu0 0
        %6887 = vmatpush1.bf16.msra.mxu0 0
        %6888 = vmatprep.subr.bf16.mxu0 0
        %6889 = vmatpush1.bf16.msra.mxu0 0
        %6890 = vmatprep.subr.bf16.mxu0 0
        %6891 = vmatpush1.bf16.msra.mxu0 0
        %6892 = vmatprep.subr.bf16.mxu0 0
        %6893 = vmatpush1.bf16.msra.mxu0 %v6876
        %6894 = vmatprep.subr.bf16.mxu0 0
        %6895 = vmatpush2.bf16.msra.mxu0 0
        %6896 = vmatprep.subr.bf16.mxu0 0
        %6897 = vmatpush2.bf16.msra.mxu0 0
        %6898 = vmatprep.subr.bf16.mxu0 0
        %6899 = vmatpush2.bf16.msra.mxu0 0
        %6900 = vmatprep.subr.bf16.mxu0 0
        %6901 = vmatpush2.bf16.msra.mxu0 0
        %6902 = vmatprep.subr.bf16.mxu0 0
        %6903 = vmatpush2.bf16.msra.mxu0 0
        %6904 = vmatprep.subr.bf16.mxu0 0
        %6905 = vmatpush2.bf16.msra.mxu0 0
        %6906 = vmatprep.subr.bf16.mxu0 0
        %6907 = vmatpush2.bf16.msra.mxu0 0
        %6908 = vmatprep.subr.bf16.mxu0 0
        %6909 = vmatpush2.bf16.msra.mxu0 0
        %6910 = vmatprep.mubr.bf16.mxu0 0
        %6911 = vmatmul.mubr.bf16.gmra.mxu0 %v5939
        %v6912 = vpop.f32.mrf.mxu0
        %v6913 = vadd.f32 0.0, %v6912
        %v6914 = vpop.f32.mrf.mxu0
        %v6915 = vpop.f32.mrf.mxu0
        %v6916 = vadd.f32 0.0, %v6915
        %v6917 = vpop.f32.mrf.mxu0
        %6918 = vmatprep.mubr.bf16.mxu0 0
        %6919 = vmatmul.mubr.bf16.gmra.mxu0 %v5942
        %v6920 = vpop.f32.mrf.mxu0
        %v6921 = vadd.f32 0.0, %v6920
        %v6922 = vpop.f32.mrf.mxu0
        %v6923 = vpop.f32.mrf.mxu0
        %v6924 = vadd.f32 0.0, %v6923
        %v6925 = vpop.f32.mrf.mxu0
        %6926 = vmatprep.mubr.bf16.mxu0 0
        %6927 = vmatmul.mubr.bf16.gmra.mxu0 %v5945
        %v6928 = vpop.f32.mrf.mxu0
        %v6929 = vadd.f32 0.0, %v6928
        %v6930 = vpop.f32.mrf.mxu0
        %v6931 = vpop.f32.mrf.mxu0
        %v6932 = vadd.f32 0.0, %v6931
        %v6933 = vpop.f32.mrf.mxu0
        %6934 = vmatprep.mubr.bf16.mxu0 0
        %6935 = vmatmul.mubr.bf16.gmra.mxu0 %v6873
        %v6936 = vpop.f32.mrf.mxu0
        %v6937 = vadd.f32 0.0, %v6936
        %v6938 = vpop.f32.mrf.mxu0
        %v6939 = vpop.f32.mrf.mxu0
        %v6940 = vadd.f32 0.0, %v6939
        %v6941 = vpop.f32.mrf.mxu0
        %6942 = vdwg.mxu0
        %v6943 = vadd.f32 %v6851, %v6913
        %v6944 = vadd.f32 %v6852, %v6916
        %v6945 = vadd.f32 %v6853, %v6921
        %v6946 = vadd.f32 %v6854, %v6924
        %v6947 = vadd.f32 %v6855, %v6929
        %v6948 = vadd.f32 %v6856, %v6932
        %v6949 = vadd.f32 %v6857, %v6937
        %v6950 = vadd.f32 %v6858, %v6940
        %v6951 = vrot.slane %v4976, 4
        %v6952 = vrot.slane %v4977, 4
        %v6953 = vsel %vm4244, %v6951, %v6952
        %v6955 = vpack.c.bf16 %v6953, %v6495
        %s6956 = scalar_lea.vmem %s3, 152
        %v6957 = vld [vmem:[%s6956] sm:$0xf]
        %v6958 = vld [vmem:[%s6956 + $0x4] sm:$0x1]
        %v6961 = vunpack.c.l.b16 %v6957
        %v6962 = vunpack.c.l.b16 %v6958
        %v6963 = vpack.c.b16 %v6962, %v6961
        %v6965 = vsel %vm2702, %v6955, 0
        %v6968 = vsel %vm4245, %v6963, 0
        %6970 = vmatprep.subr.bf16.mxu0 0
        %6971 = vmatpush1.bf16.msra.mxu0 0
        %6972 = vmatprep.subr.bf16.mxu0 0
        %6973 = vmatpush1.bf16.msra.mxu0 0
        %6974 = vmatprep.subr.bf16.mxu0 0
        %6975 = vmatpush1.bf16.msra.mxu0 0
        %6976 = vmatprep.subr.bf16.mxu0 0
        %6977 = vmatpush1.bf16.msra.mxu0 0
        %6978 = vmatprep.subr.bf16.mxu0 0
        %6979 = vmatpush1.bf16.msra.mxu0 0
        %6980 = vmatprep.subr.bf16.mxu0 0
        %6981 = vmatpush1.bf16.msra.mxu0 0
        %6982 = vmatprep.subr.bf16.mxu0 0
        %6983 = vmatpush1.bf16.msra.mxu0 0
        %6984 = vmatprep.subr.bf16.mxu0 0
        %6985 = vmatpush1.bf16.msra.mxu0 %v6968
        %6986 = vmatprep.subr.bf16.mxu0 0
        %6987 = vmatpush2.bf16.msra.mxu0 0
        %6988 = vmatprep.subr.bf16.mxu0 0
        %6989 = vmatpush2.bf16.msra.mxu0 0
        %6990 = vmatprep.subr.bf16.mxu0 0
        %6991 = vmatpush2.bf16.msra.mxu0 0
        %6992 = vmatprep.subr.bf16.mxu0 0
        %6993 = vmatpush2.bf16.msra.mxu0 0
        %6994 = vmatprep.subr.bf16.mxu0 0
        %6995 = vmatpush2.bf16.msra.mxu0 0
        %6996 = vmatprep.subr.bf16.mxu0 0
        %6997 = vmatpush2.bf16.msra.mxu0 0
        %6998 = vmatprep.subr.bf16.mxu0 0
        %6999 = vmatpush2.bf16.msra.mxu0 0
        %7000 = vmatprep.subr.bf16.mxu0 0
        %7001 = vmatpush2.bf16.msra.mxu0 0
        %7002 = vmatprep.mubr.bf16.mxu0 0
        %7003 = vmatmul.mubr.bf16.gmra.mxu0 %v6043
        %v7004 = vpop.f32.mrf.mxu0
        %v7005 = vadd.f32 0.0, %v7004
        %v7006 = vpop.f32.mrf.mxu0
        %v7007 = vpop.f32.mrf.mxu0
        %v7008 = vadd.f32 0.0, %v7007
        %v7009 = vpop.f32.mrf.mxu0
        %7010 = vmatprep.mubr.bf16.mxu0 0
        %7011 = vmatmul.mubr.bf16.gmra.mxu0 %v6046
        %v7012 = vpop.f32.mrf.mxu0
        %v7013 = vadd.f32 0.0, %v7012
        %v7014 = vpop.f32.mrf.mxu0
        %v7015 = vpop.f32.mrf.mxu0
        %v7016 = vadd.f32 0.0, %v7015
        %v7017 = vpop.f32.mrf.mxu0
        %7018 = vmatprep.mubr.bf16.mxu0 0
        %7019 = vmatmul.mubr.bf16.gmra.mxu0 %v6049
        %v7020 = vpop.f32.mrf.mxu0
        %v7021 = vadd.f32 0.0, %v7020
        %v7022 = vpop.f32.mrf.mxu0
        %v7023 = vpop.f32.mrf.mxu0
        %v7024 = vadd.f32 0.0, %v7023
        %v7025 = vpop.f32.mrf.mxu0
        %7026 = vmatprep.mubr.bf16.mxu0 0
        %7027 = vmatmul.mubr.bf16.gmra.mxu0 %v6965
        %v7028 = vpop.f32.mrf.mxu0
        %v7029 = vadd.f32 0.0, %v7028
        %v7030 = vpop.f32.mrf.mxu0
        %v7031 = vpop.f32.mrf.mxu0
        %v7032 = vadd.f32 0.0, %v7031
        %v7033 = vpop.f32.mrf.mxu0
        %7034 = vdwg.mxu0
        %v7035 = vadd.f32 %v6943, %v7005
        %v7036 = vadd.f32 %v6944, %v7008
        %v7037 = vadd.f32 %v6945, %v7013
        %v7038 = vadd.f32 %v6946, %v7016
        %v7039 = vadd.f32 %v6947, %v7021
        %v7040 = vadd.f32 %v6948, %v7024
        %v7041 = vadd.f32 %v6949, %v7029
        %v7042 = vadd.f32 %v6950, %v7032
        %v7043 = vpack.c.bf16 %v4978, %v4976
        %s7044 = scalar_lea.vmem %s3, 160
        %v7045 = vld [vmem:[%s7044] sm:$0xf]
        %v7046 = vld [vmem:[%s7044 + $0x4] sm:$0x1]
        %v7049 = vunpack.c.l.b16 %v7045
        %v7050 = vunpack.c.l.b16 %v7046
        %v7051 = vpack.c.b16 %v7050, %v7049
        %v7053 = vsel %vm2702, %v7043, 0
        %v7056 = vsel %vm4245, %v7051, 0
        %7058 = vmatprep.subr.bf16.mxu0 0
        %7059 = vmatpush1.bf16.msra.mxu0 0
        %7060 = vmatprep.subr.bf16.mxu0 0
        %7061 = vmatpush1.bf16.msra.mxu0 0
        %7062 = vmatprep.subr.bf16.mxu0 0
        %7063 = vmatpush1.bf16.msra.mxu0 0
        %7064 = vmatprep.subr.bf16.mxu0 0
        %7065 = vmatpush1.bf16.msra.mxu0 0
        %7066 = vmatprep.subr.bf16.mxu0 0
        %7067 = vmatpush1.bf16.msra.mxu0 0
        %7068 = vmatprep.subr.bf16.mxu0 0
        %7069 = vmatpush1.bf16.msra.mxu0 0
        %7070 = vmatprep.subr.bf16.mxu0 0
        %7071 = vmatpush1.bf16.msra.mxu0 0
        %7072 = vmatprep.subr.bf16.mxu0 0
        %7073 = vmatpush1.bf16.msra.mxu0 %v7056
        %7074 = vmatprep.subr.bf16.mxu0 0
        %7075 = vmatpush2.bf16.msra.mxu0 0
        %7076 = vmatprep.subr.bf16.mxu0 0
        %7077 = vmatpush2.bf16.msra.mxu0 0
        %7078 = vmatprep.subr.bf16.mxu0 0
        %7079 = vmatpush2.bf16.msra.mxu0 0
        %7080 = vmatprep.subr.bf16.mxu0 0
        %7081 = vmatpush2.bf16.msra.mxu0 0
        %7082 = vmatprep.subr.bf16.mxu0 0
        %7083 = vmatpush2.bf16.msra.mxu0 0
        %7084 = vmatprep.subr.bf16.mxu0 0
        %7085 = vmatpush2.bf16.msra.mxu0 0
        %7086 = vmatprep.subr.bf16.mxu0 0
        %7087 = vmatpush2.bf16.msra.mxu0 0
        %7088 = vmatprep.subr.bf16.mxu0 0
        %7089 = vmatpush2.bf16.msra.mxu0 0
        %7090 = vmatprep.mubr.bf16.mxu0 0
        %7091 = vmatmul.mubr.bf16.gmra.mxu0 %v5139
        %v7092 = vpop.f32.mrf.mxu0
        %v7093 = vadd.f32 0.0, %v7092
        %v7094 = vpop.f32.mrf.mxu0
        %v7095 = vpop.f32.mrf.mxu0
        %v7096 = vadd.f32 0.0, %v7095
        %v7097 = vpop.f32.mrf.mxu0
        %7098 = vmatprep.mubr.bf16.mxu0 0
        %7099 = vmatmul.mubr.bf16.gmra.mxu0 %v5142
        %v7100 = vpop.f32.mrf.mxu0
        %v7101 = vadd.f32 0.0, %v7100
        %v7102 = vpop.f32.mrf.mxu0
        %v7103 = vpop.f32.mrf.mxu0
        %v7104 = vadd.f32 0.0, %v7103
        %v7105 = vpop.f32.mrf.mxu0
        %7106 = vmatprep.mubr.bf16.mxu0 0
        %7107 = vmatmul.mubr.bf16.gmra.mxu0 %v6137
        %v7108 = vpop.f32.mrf.mxu0
        %v7109 = vadd.f32 0.0, %v7108
        %v7110 = vpop.f32.mrf.mxu0
        %v7111 = vpop.f32.mrf.mxu0
        %v7112 = vadd.f32 0.0, %v7111
        %v7113 = vpop.f32.mrf.mxu0
        %7114 = vmatprep.mubr.bf16.mxu0 0
        %7115 = vmatmul.mubr.bf16.gmra.mxu0 %v7053
        %v7116 = vpop.f32.mrf.mxu0
        %v7117 = vadd.f32 0.0, %v7116
        %v7118 = vpop.f32.mrf.mxu0
        %v7119 = vpop.f32.mrf.mxu0
        %v7120 = vadd.f32 0.0, %v7119
        %v7121 = vpop.f32.mrf.mxu0
        %7122 = vdwg.mxu0
        %v7123 = vadd.f32 %v7035, %v7093
        %v7124 = vadd.f32 %v7036, %v7096
        %v7125 = vadd.f32 %v7037, %v7101
        %v7126 = vadd.f32 %v7038, %v7104
        %v7127 = vadd.f32 %v7039, %v7109
        %v7128 = vadd.f32 %v7040, %v7112
        %v7129 = vadd.f32 %v7041, %v7117
        %v7130 = vadd.f32 %v7042, %v7120
        %v7133 = vrot.slane %v4978, 1
        %v7134 = vrot.slane %v4979, 1
        %v7135 = vsel %vm5002, %v7133, %v7134
        %v7137 = vpack.c.bf16 %v7135, %v6677
        %s7138 = scalar_lea.vmem %s3, 168
        %v7139 = vld [vmem:[%s7138] sm:$0xf]
        %v7140 = vld [vmem:[%s7138 + $0x4] sm:$0x1]
        %v7143 = vunpack.c.l.b16 %v7139
        %v7144 = vunpack.c.l.b16 %v7140
        %v7145 = vpack.c.b16 %v7144, %v7143
        %v7147 = vsel %vm2702, %v7137, 0
        %v7150 = vsel %vm4245, %v7145, 0
        %7152 = vmatprep.subr.bf16.mxu0 0
        %7153 = vmatpush1.bf16.msra.mxu0 0
        %7154 = vmatprep.subr.bf16.mxu0 0
        %7155 = vmatpush1.bf16.msra.mxu0 0
        %7156 = vmatprep.subr.bf16.mxu0 0
        %7157 = vmatpush1.bf16.msra.mxu0 0
        %7158 = vmatprep.subr.bf16.mxu0 0
        %7159 = vmatpush1.bf16.msra.mxu0 0
        %7160 = vmatprep.subr.bf16.mxu0 0
        %7161 = vmatpush1.bf16.msra.mxu0 0
        %7162 = vmatprep.subr.bf16.mxu0 0
        %7163 = vmatpush1.bf16.msra.mxu0 0
        %7164 = vmatprep.subr.bf16.mxu0 0
        %7165 = vmatpush1.bf16.msra.mxu0 0
        %7166 = vmatprep.subr.bf16.mxu0 0
        %7167 = vmatpush1.bf16.msra.mxu0 %v7150
        %7168 = vmatprep.subr.bf16.mxu0 0
        %7169 = vmatpush2.bf16.msra.mxu0 0
        %7170 = vmatprep.subr.bf16.mxu0 0
        %7171 = vmatpush2.bf16.msra.mxu0 0
        %7172 = vmatprep.subr.bf16.mxu0 0
        %7173 = vmatpush2.bf16.msra.mxu0 0
        %7174 = vmatprep.subr.bf16.mxu0 0
        %7175 = vmatpush2.bf16.msra.mxu0 0
        %7176 = vmatprep.subr.bf16.mxu0 0
        %7177 = vmatpush2.bf16.msra.mxu0 0
        %7178 = vmatprep.subr.bf16.mxu0 0
        %7179 = vmatpush2.bf16.msra.mxu0 0
        %7180 = vmatprep.subr.bf16.mxu0 0
        %7181 = vmatpush2.bf16.msra.mxu0 0
        %7182 = vmatprep.subr.bf16.mxu0 0
        %7183 = vmatpush2.bf16.msra.mxu0 0
        %7184 = vmatprep.mubr.bf16.mxu0 0
        %7185 = vmatmul.mubr.bf16.gmra.mxu0 %v5054
        %v7186 = vpop.f32.mrf.mxu0
        %v7187 = vadd.f32 0.0, %v7186
        %v7188 = vpop.f32.mrf.mxu0
        %v7189 = vpop.f32.mrf.mxu0
        %v7190 = vadd.f32 0.0, %v7189
        %v7191 = vpop.f32.mrf.mxu0
        %7192 = vmatprep.mubr.bf16.mxu0 0
        %7193 = vmatmul.mubr.bf16.gmra.mxu0 %v5057
        %v7194 = vpop.f32.mrf.mxu0
        %v7195 = vadd.f32 0.0, %v7194
        %v7196 = vpop.f32.mrf.mxu0
        %v7197 = vpop.f32.mrf.mxu0
        %v7198 = vadd.f32 0.0, %v7197
        %v7199 = vpop.f32.mrf.mxu0
        %7200 = vmatprep.mubr.bf16.mxu0 0
        %7201 = vmatmul.mubr.bf16.gmra.mxu0 %v6231
        %v7202 = vpop.f32.mrf.mxu0
        %v7203 = vadd.f32 0.0, %v7202
        %v7204 = vpop.f32.mrf.mxu0
        %v7205 = vpop.f32.mrf.mxu0
        %v7206 = vadd.f32 0.0, %v7205
        %v7207 = vpop.f32.mrf.mxu0
        %7208 = vmatprep.mubr.bf16.mxu0 0
        %7209 = vmatmul.mubr.bf16.gmra.mxu0 %v7147
        %v7210 = vpop.f32.mrf.mxu0
        %v7211 = vadd.f32 0.0, %v7210
        %v7212 = vpop.f32.mrf.mxu0
        %v7213 = vpop.f32.mrf.mxu0
        %v7214 = vadd.f32 0.0, %v7213
        %v7215 = vpop.f32.mrf.mxu0
        %7216 = vdwg.mxu0
        %v7217 = vadd.f32 %v7123, %v7187
        %v7218 = vadd.f32 %v7124, %v7190
        %v7219 = vadd.f32 %v7125, %v7195
        %v7220 = vadd.f32 %v7126, %v7198
        %v7221 = vadd.f32 %v7127, %v7203
        %v7222 = vadd.f32 %v7128, %v7206
        %v7223 = vadd.f32 %v7129, %v7211
        %v7224 = vadd.f32 %v7130, %v7214
        %v7225 = vrot.slane %v4978, 2
        %v7226 = vrot.slane %v4979, 2
        %v7227 = vsel %vm5212, %v7225, %v7226
        %v7229 = vpack.c.bf16 %v7227, %v6769
        %s7230 = scalar_lea.vmem %s3, 176
        %v7231 = vld [vmem:[%s7230] sm:$0xf]
        %v7232 = vld [vmem:[%s7230 + $0x4] sm:$0x1]
        %v7235 = vunpack.c.l.b16 %v7231
        %v7236 = vunpack.c.l.b16 %v7232
        %v7237 = vpack.c.b16 %v7236, %v7235
        %v7239 = vsel %vm2702, %v7229, 0
        %v7242 = vsel %vm4245, %v7237, 0
        %7244 = vmatprep.subr.bf16.mxu0 0
        %7245 = vmatpush1.bf16.msra.mxu0 0
        %7246 = vmatprep.subr.bf16.mxu0 0
        %7247 = vmatpush1.bf16.msra.mxu0 0
        %7248 = vmatprep.subr.bf16.mxu0 0
        %7249 = vmatpush1.bf16.msra.mxu0 0
        %7250 = vmatprep.subr.bf16.mxu0 0
        %7251 = vmatpush1.bf16.msra.mxu0 0
        %7252 = vmatprep.subr.bf16.mxu0 0
        %7253 = vmatpush1.bf16.msra.mxu0 0
        %7254 = vmatprep.subr.bf16.mxu0 0
        %7255 = vmatpush1.bf16.msra.mxu0 0
        %7256 = vmatprep.subr.bf16.mxu0 0
        %7257 = vmatpush1.bf16.msra.mxu0 0
        %7258 = vmatprep.subr.bf16.mxu0 0
        %7259 = vmatpush1.bf16.msra.mxu0 %v7242
        %7260 = vmatprep.subr.bf16.mxu0 0
        %7261 = vmatpush2.bf16.msra.mxu0 0
        %7262 = vmatprep.subr.bf16.mxu0 0
        %7263 = vmatpush2.bf16.msra.mxu0 0
        %7264 = vmatprep.subr.bf16.mxu0 0
        %7265 = vmatpush2.bf16.msra.mxu0 0
        %7266 = vmatprep.subr.bf16.mxu0 0
        %7267 = vmatpush2.bf16.msra.mxu0 0
        %7268 = vmatprep.subr.bf16.mxu0 0
        %7269 = vmatpush2.bf16.msra.mxu0 0
        %7270 = vmatprep.subr.bf16.mxu0 0
        %7271 = vmatpush2.bf16.msra.mxu0 0
        %7272 = vmatprep.subr.bf16.mxu0 0
        %7273 = vmatpush2.bf16.msra.mxu0 0
        %7274 = vmatprep.subr.bf16.mxu0 0
        %7275 = vmatpush2.bf16.msra.mxu0 0
        %7276 = vmatprep.mubr.bf16.mxu0 0
        %7277 = vmatmul.mubr.bf16.gmra.mxu0 %v5264
        %v7278 = vpop.f32.mrf.mxu0
        %v7279 = vadd.f32 0.0, %v7278
        %v7280 = vpop.f32.mrf.mxu0
        %v7281 = vpop.f32.mrf.mxu0
        %v7282 = vadd.f32 0.0, %v7281
        %v7283 = vpop.f32.mrf.mxu0
        %7284 = vmatprep.mubr.bf16.mxu0 0
        %7285 = vmatmul.mubr.bf16.gmra.mxu0 %v5267
        %v7286 = vpop.f32.mrf.mxu0
        %v7287 = vadd.f32 0.0, %v7286
        %v7288 = vpop.f32.mrf.mxu0
        %v7289 = vpop.f32.mrf.mxu0
        %v7290 = vadd.f32 0.0, %v7289
        %v7291 = vpop.f32.mrf.mxu0
        %7292 = vmatprep.mubr.bf16.mxu0 0
        %7293 = vmatmul.mubr.bf16.gmra.mxu0 %v6323
        %v7294 = vpop.f32.mrf.mxu0
        %v7295 = vadd.f32 0.0, %v7294
        %v7296 = vpop.f32.mrf.mxu0
        %v7297 = vpop.f32.mrf.mxu0
        %v7298 = vadd.f32 0.0, %v7297
        %v7299 = vpop.f32.mrf.mxu0
        %7300 = vmatprep.mubr.bf16.mxu0 0
        %7301 = vmatmul.mubr.bf16.gmra.mxu0 %v7239
        %v7302 = vpop.f32.mrf.mxu0
        %v7303 = vadd.f32 0.0, %v7302
        %v7304 = vpop.f32.mrf.mxu0
        %v7305 = vpop.f32.mrf.mxu0
        %v7306 = vadd.f32 0.0, %v7305
        %v7307 = vpop.f32.mrf.mxu0
        %7308 = vdwg.mxu0
        %v7309 = vadd.f32 %v7217, %v7279
        %v7310 = vadd.f32 %v7218, %v7282
        %v7311 = vadd.f32 %v7219, %v7287
        %v7312 = vadd.f32 %v7220, %v7290
        %v7313 = vadd.f32 %v7221, %v7295
        %v7314 = vadd.f32 %v7222, %v7298
        %v7315 = vadd.f32 %v7223, %v7303
        %v7316 = vadd.f32 %v7224, %v7306
        %v7317 = vrot.slane %v4978, 3
        %v7318 = vrot.slane %v4979, 3
        %v7319 = vsel %vm4245, %v7317, %v7318
        %v7321 = vpack.c.bf16 %v7319, %v6861
        %s7322 = scalar_lea.vmem %s3, 184
        %v7323 = vld [vmem:[%s7322] sm:$0xf]
        %v7324 = vld [vmem:[%s7322 + $0x4] sm:$0x1]
        %v7327 = vunpack.c.l.b16 %v7323
        %v7328 = vunpack.c.l.b16 %v7324
        %v7329 = vpack.c.b16 %v7328, %v7327
        %v7331 = vsel %vm2702, %v7321, 0
        %v7334 = vsel %vm4245, %v7329, 0
        %7336 = vmatprep.subr.bf16.mxu0 0
        %7337 = vmatpush1.bf16.msra.mxu0 0
        %7338 = vmatprep.subr.bf16.mxu0 0
        %7339 = vmatpush1.bf16.msra.mxu0 0
        %7340 = vmatprep.subr.bf16.mxu0 0
        %7341 = vmatpush1.bf16.msra.mxu0 0
        %7342 = vmatprep.subr.bf16.mxu0 0
        %7343 = vmatpush1.bf16.msra.mxu0 0
        %7344 = vmatprep.subr.bf16.mxu0 0
        %7345 = vmatpush1.bf16.msra.mxu0 0
        %7346 = vmatprep.subr.bf16.mxu0 0
        %7347 = vmatpush1.bf16.msra.mxu0 0
        %7348 = vmatprep.subr.bf16.mxu0 0
        %7349 = vmatpush1.bf16.msra.mxu0 0
        %7350 = vmatprep.subr.bf16.mxu0 0
        %7351 = vmatpush1.bf16.msra.mxu0 %v7334
        %7352 = vmatprep.subr.bf16.mxu0 0
        %7353 = vmatpush2.bf16.msra.mxu0 0
        %7354 = vmatprep.subr.bf16.mxu0 0
        %7355 = vmatpush2.bf16.msra.mxu0 0
        %7356 = vmatprep.subr.bf16.mxu0 0
        %7357 = vmatpush2.bf16.msra.mxu0 0
        %7358 = vmatprep.subr.bf16.mxu0 0
        %7359 = vmatpush2.bf16.msra.mxu0 0
        %7360 = vmatprep.subr.bf16.mxu0 0
        %7361 = vmatpush2.bf16.msra.mxu0 0
        %7362 = vmatprep.subr.bf16.mxu0 0
        %7363 = vmatpush2.bf16.msra.mxu0 0
        %7364 = vmatprep.subr.bf16.mxu0 0
        %7365 = vmatpush2.bf16.msra.mxu0 0
        %7366 = vmatprep.subr.bf16.mxu0 0
        %7367 = vmatpush2.bf16.msra.mxu0 0
        %7368 = vmatprep.mubr.bf16.mxu0 0
        %7369 = vmatmul.mubr.bf16.gmra.mxu0 %v5396
        %v7370 = vpop.f32.mrf.mxu0
        %v7371 = vadd.f32 0.0, %v7370
        %v7372 = vpop.f32.mrf.mxu0
        %v7373 = vpop.f32.mrf.mxu0
        %v7374 = vadd.f32 0.0, %v7373
        %v7375 = vpop.f32.mrf.mxu0
        %7376 = vmatprep.mubr.bf16.mxu0 0
        %7377 = vmatmul.mubr.bf16.gmra.mxu0 %v5399
        %v7378 = vpop.f32.mrf.mxu0
        %v7379 = vadd.f32 0.0, %v7378
        %v7380 = vpop.f32.mrf.mxu0
        %v7381 = vpop.f32.mrf.mxu0
        %v7382 = vadd.f32 0.0, %v7381
        %v7383 = vpop.f32.mrf.mxu0
        %7384 = vmatprep.mubr.bf16.mxu0 0
        %7385 = vmatmul.mubr.bf16.gmra.mxu0 %v6415
        %v7386 = vpop.f32.mrf.mxu0
        %v7387 = vadd.f32 0.0, %v7386
        %v7388 = vpop.f32.mrf.mxu0
        %v7389 = vpop.f32.mrf.mxu0
        %v7390 = vadd.f32 0.0, %v7389
        %v7391 = vpop.f32.mrf.mxu0
        %7392 = vmatprep.mubr.bf16.mxu0 0
        %7393 = vmatmul.mubr.bf16.gmra.mxu0 %v7331
        %v7394 = vpop.f32.mrf.mxu0
        %v7395 = vadd.f32 0.0, %v7394
        %v7396 = vpop.f32.mrf.mxu0
        %v7397 = vpop.f32.mrf.mxu0
        %v7398 = vadd.f32 0.0, %v7397
        %v7399 = vpop.f32.mrf.mxu0
        %7400 = vdwg.mxu0
        %v7401 = vadd.f32 %v7309, %v7371
        %v7402 = vadd.f32 %v7310, %v7374
        %v7403 = vadd.f32 %v7311, %v7379
        %v7404 = vadd.f32 %v7312, %v7382
        %v7405 = vadd.f32 %v7313, %v7387
        %v7406 = vadd.f32 %v7314, %v7390
        %v7407 = vadd.f32 %v7315, %v7395
        %v7408 = vadd.f32 %v7316, %v7398
        %v7409 = vrot.slane %v4978, 4
        %v7410 = vrot.slane %v4979, 4
        %v7411 = vsel %vm4244, %v7409, %v7410
        %v7413 = vpack.c.bf16 %v7411, %v6953
        %s7414 = scalar_lea.vmem %s3, 192
        %v7415 = vld [vmem:[%s7414] sm:$0xf]
        %v7416 = vld [vmem:[%s7414 + $0x4] sm:$0x1]
        %v7419 = vunpack.c.l.b16 %v7415
        %v7420 = vunpack.c.l.b16 %v7416
        %v7421 = vpack.c.b16 %v7420, %v7419
        %v7423 = vsel %vm2702, %v7413, 0
        %v7426 = vsel %vm4245, %v7421, 0
        %7428 = vmatprep.subr.bf16.mxu0 0
        %7429 = vmatpush1.bf16.msra.mxu0 0
        %7430 = vmatprep.subr.bf16.mxu0 0
        %7431 = vmatpush1.bf16.msra.mxu0 0
        %7432 = vmatprep.subr.bf16.mxu0 0
        %7433 = vmatpush1.bf16.msra.mxu0 0
        %7434 = vmatprep.subr.bf16.mxu0 0
        %7435 = vmatpush1.bf16.msra.mxu0 0
        %7436 = vmatprep.subr.bf16.mxu0 0
        %7437 = vmatpush1.bf16.msra.mxu0 0
        %7438 = vmatprep.subr.bf16.mxu0 0
        %7439 = vmatpush1.bf16.msra.mxu0 0
        %7440 = vmatprep.subr.bf16.mxu0 0
        %7441 = vmatpush1.bf16.msra.mxu0 0
        %7442 = vmatprep.subr.bf16.mxu0 0
        %7443 = vmatpush1.bf16.msra.mxu0 %v7426
        %7444 = vmatprep.subr.bf16.mxu0 0
        %7445 = vmatpush2.bf16.msra.mxu0 0
        %7446 = vmatprep.subr.bf16.mxu0 0
        %7447 = vmatpush2.bf16.msra.mxu0 0
        %7448 = vmatprep.subr.bf16.mxu0 0
        %7449 = vmatpush2.bf16.msra.mxu0 0
        %7450 = vmatprep.subr.bf16.mxu0 0
        %7451 = vmatpush2.bf16.msra.mxu0 0
        %7452 = vmatprep.subr.bf16.mxu0 0
        %7453 = vmatpush2.bf16.msra.mxu0 0
        %7454 = vmatprep.subr.bf16.mxu0 0
        %7455 = vmatpush2.bf16.msra.mxu0 0
        %7456 = vmatprep.subr.bf16.mxu0 0
        %7457 = vmatpush2.bf16.msra.mxu0 0
        %7458 = vmatprep.subr.bf16.mxu0 0
        %7459 = vmatpush2.bf16.msra.mxu0 0
        %7460 = vmatprep.mubr.bf16.mxu0 0
        %7461 = vmatmul.mubr.bf16.gmra.mxu0 %v5528
        %v7462 = vpop.f32.mrf.mxu0
        %v7463 = vadd.f32 0.0, %v7462
        %v7464 = vpop.f32.mrf.mxu0
        %v7465 = vpop.f32.mrf.mxu0
        %v7466 = vadd.f32 0.0, %v7465
        %v7467 = vpop.f32.mrf.mxu0
        %7468 = vmatprep.mubr.bf16.mxu0 0
        %7469 = vmatmul.mubr.bf16.gmra.mxu0 %v5531
        %v7470 = vpop.f32.mrf.mxu0
        %v7471 = vadd.f32 0.0, %v7470
        %v7472 = vpop.f32.mrf.mxu0
        %v7473 = vpop.f32.mrf.mxu0
        %v7474 = vadd.f32 0.0, %v7473
        %v7475 = vpop.f32.mrf.mxu0
        %7476 = vmatprep.mubr.bf16.mxu0 0
        %7477 = vmatmul.mubr.bf16.gmra.mxu0 %v6507
        %v7478 = vpop.f32.mrf.mxu0
        %v7479 = vadd.f32 0.0, %v7478
        %v7480 = vpop.f32.mrf.mxu0
        %v7481 = vpop.f32.mrf.mxu0
        %v7482 = vadd.f32 0.0, %v7481
        %v7483 = vpop.f32.mrf.mxu0
        %7484 = vmatprep.mubr.bf16.mxu0 0
        %7485 = vmatmul.mubr.bf16.gmra.mxu0 %v7423
        %v7486 = vpop.f32.mrf.mxu0
        %v7487 = vadd.f32 0.0, %v7486
        %v7488 = vpop.f32.mrf.mxu0
        %v7489 = vpop.f32.mrf.mxu0
        %v7490 = vadd.f32 0.0, %v7489
        %v7491 = vpop.f32.mrf.mxu0
        %7492 = vdwg.mxu0
        %v7493 = vadd.f32 %v7401, %v7463
        %v7494 = vadd.f32 %v7402, %v7466
        %v7495 = vadd.f32 %v7403, %v7471
        %v7496 = vadd.f32 %v7404, %v7474
        %v7497 = vadd.f32 %v7405, %v7479
        %v7498 = vadd.f32 %v7406, %v7482
        %v7499 = vadd.f32 %v7407, %v7487
        %v7500 = vadd.f32 %v7408, %v7490
        %v7501 = vld [vmem:[%s4] sm:$0x1]
        %v7503 = vlaneseq
        %v7504 = vshrl.u32 %v7503, 7
        %v7505 = vsub.s32 0, %v7504
        %v7506 = vrot.slane %v7501, %v7505
        %v7508 = vadd.f32 %v7493, %v7506
        %v7509 = vadd.f32 %v7494, %v7506
        %v7510 = vadd.f32 %v7495, %v7506
        %v7511 = vadd.f32 %v7496, %v7506
        %v7512 = vadd.f32 %v7497, %v7506
        %v7513 = vadd.f32 %v7498, %v7506
        %v7514 = vadd.f32 %v7499, %v7506
        %v7515 = vadd.f32 %v7500, %v7506
        %v7516 = vmax.f32 %v7508, 0.0
        %v7517 = vmax.f32 %v7509, 0.0
        %v7518 = vmax.f32 %v7510, 0.0
        %v7519 = vmax.f32 %v7511, 0.0
        %v7520 = vmax.f32 %v7512, 0.0
        %v7521 = vmax.f32 %v7513, 0.0
        %v7522 = vmax.f32 %v7514, 0.0
        %v7523 = vmax.f32 %v7515, 0.0
        %7524 = vst [vmem:[#allocation4] sm:$0xff] %v7516
        %7525 = vst [vmem:[#allocation4 + $0x8] sm:$0xff] %v7517
        %7526 = vst [vmem:[#allocation4 + $0x10] sm:$0xff] %v7518
        %7527 = vst [vmem:[#allocation4 + $0x18] sm:$0xff] %v7519
        %7528 = vst [vmem:[#allocation4 + $0x20] sm:$0xff] %v7520
        %7529 = vst [vmem:[#allocation4 + $0x28] sm:$0xff] %v7521
        %7530 = vst [vmem:[#allocation4 + $0x30] sm:$0xff] %v7522
        %7531 = vst [vmem:[#allocation4 + $0x38] sm:$0xff] %v7523
        %v7532 = vld [vmem:[#allocation4] sm:$0xff]
        %v7533 = vld [vmem:[#allocation4 + $0x10] sm:$0xff]
        %v7534 = vld [vmem:[#allocation4 + $0x20] sm:$0xff]
        %v7535 = vld [vmem:[#allocation4 + $0x30] sm:$0xff]
        %s7536 = scalar_lea.vmem [#allocation4], 8
        %v7537 = vld [vmem:[%s7536] sm:$0xff]
        %v7538 = vld [vmem:[%s7536 + $0x10] sm:$0xff]
        %v7539 = vld [vmem:[%s7536 + $0x20] sm:$0xff]
        %v7540 = vld [vmem:[%s7536 + $0x30] sm:$0xff]
        %v7541 = vmax.f32 %v7532, %v7537
        %v7542 = vmax.f32 %v7533, %v7538
        %v7543 = vmax.f32 %v7534, %v7539
        %v7544 = vmax.f32 %v7535, %v7540
        %7545 = vst [vmem:[#allocation5] sm:$0xff] %v7541
        %7546 = vst [vmem:[#allocation5 + $0x8] sm:$0xff] %v7542
        %7547 = vst [vmem:[#allocation5 + $0x10] sm:$0xff] %v7543
        %7548 = vst [vmem:[#allocation5 + $0x18] sm:$0xff] %v7544
        %v7549 = vld [vmem:[#allocation5] ss:$2 sm:$0xf]
        %s7550 = scalar_lea.vmem [#allocation5], 8
        %v7551 = vld [vmem:[%s7550] ss:$2 sm:$0xf]
        %s7552 = scalar_lea.vmem [#allocation5], 16
        %v7553 = vld [vmem:[%s7552] ss:$2 sm:$0xf]
        %s7554 = scalar_lea.vmem [#allocation5], 24
        %v7555 = vld [vmem:[%s7554] ss:$2 sm:$0xf]
        %s7556 = scalar_lea.vmem [#allocation5], 1
        %v7557 = vld [vmem:[%s7556] ss:$2 sm:$0xf]
        %s7558 = scalar_lea.vmem [#allocation5], 9
        %v7559 = vld [vmem:[%s7558] ss:$2 sm:$0xf]
        %s7560 = scalar_lea.vmem [#allocation5], 17
        %v7561 = vld [vmem:[%s7560] ss:$2 sm:$0xf]
        %s7562 = scalar_lea.vmem [#allocation5], 25
        %v7563 = vld [vmem:[%s7562] ss:$2 sm:$0xf]
        %v7564 = vmax.f32 %v7549, %v7557
        %v7565 = vmax.f32 %v7551, %v7559
        %v7566 = vmax.f32 %v7553, %v7561
        %v7567 = vmax.f32 %v7555, %v7563
        %v7568 = vpack.c.bf16 %v7564, %v7564
        %v7569 = vld [vmem:[%s5] sm:$0xf]
        %v7570 = vld [vmem:[%s5 + $0x4] sm:$0xf]
        %v7571 = vld [vmem:[%s5 + $0x8] sm:$0xf]
        %v7572 = vld [vmem:[%s5 + $0xc] sm:$0xf]
        %v7573 = vld [vmem:[%s5 + $0x10] sm:$0xf]
        %v7574 = vld [vmem:[%s5 + $0x14] sm:$0xf]
        %v7575 = vld [vmem:[%s5 + $0x18] sm:$0xf]
        %v7576 = vld [vmem:[%s5 + $0x1c] sm:$0xf]
        %v7577 = vld [vmem:[%s5 + $0x20] sm:$0xf]
        %v7578 = vld [vmem:[%s5 + $0x24] sm:$0xf]
        %v7579 = vld [vmem:[%s5 + $0x28] sm:$0xf]
        %v7580 = vld [vmem:[%s5 + $0x2c] sm:$0xf]
        %v7581 = vld [vmem:[%s5 + $0x30] sm:$0xf]
        %v7582 = vld [vmem:[%s5 + $0x34] sm:$0xf]
        %v7583 = vld [vmem:[%s5 + $0x38] sm:$0xf]
        %v7584 = vld [vmem:[%s5 + $0x3c] sm:$0xf]
        %s7585 = scalar_lea.vmem %s5, 64
        %v7586 = vld [vmem:[%s7585] sm:$0xf]
        %v7587 = vld [vmem:[%s7585 + $0x4] sm:$0xf]
        %v7588 = vld [vmem:[%s7585 + $0x8] sm:$0xf]
        %v7589 = vld [vmem:[%s7585 + $0xc] sm:$0xf]
        %v7590 = vld [vmem:[%s7585 + $0x10] sm:$0xf]
        %v7591 = vld [vmem:[%s7585 + $0x14] sm:$0xf]
        %v7592 = vld [vmem:[%s7585 + $0x18] sm:$0xf]
        %v7593 = vld [vmem:[%s7585 + $0x1c] sm:$0xf]
        %v7594 = vld [vmem:[%s7585 + $0x20] sm:$0xf]
        %v7595 = vld [vmem:[%s7585 + $0x24] sm:$0xf]
        %v7596 = vld [vmem:[%s7585 + $0x28] sm:$0xf]
        %v7597 = vld [vmem:[%s7585 + $0x2c] sm:$0xf]
        %v7598 = vld [vmem:[%s7585 + $0x30] sm:$0xf]
        %v7599 = vld [vmem:[%s7585 + $0x34] sm:$0xf]
        %v7600 = vld [vmem:[%s7585 + $0x38] sm:$0xf]
        %v7601 = vld [vmem:[%s7585 + $0x3c] sm:$0xf]
        %v7603 = vshrl.u32 %v7568, 16
        %v7622 = vunpack.c.l.b16 %v7586
        %v7623 = vunpack.c.l.b16 %v7587
        %v7624 = vunpack.c.l.b16 %v7588
        %v7625 = vunpack.c.l.b16 %v7589
        %v7626 = vunpack.c.l.b16 %v7590
        %v7627 = vunpack.c.l.b16 %v7591
        %v7628 = vunpack.c.l.b16 %v7592
        %v7629 = vunpack.c.l.b16 %v7593
        %v7630 = vunpack.c.l.b16 %v7594
        %v7631 = vunpack.c.l.b16 %v7595
        %v7632 = vunpack.c.l.b16 %v7596
        %v7633 = vunpack.c.l.b16 %v7597
        %v7634 = vunpack.c.l.b16 %v7598
        %v7635 = vunpack.c.l.b16 %v7599
        %v7636 = vunpack.c.l.b16 %v7600
        %v7637 = vunpack.c.l.b16 %v7601
        %v7638 = vpack.c.b16 %v7623, %v7622
        %v7639 = vpack.c.b16 %v7625, %v7624
        %v7640 = vpack.c.b16 %v7627, %v7626
        %v7641 = vpack.c.b16 %v7629, %v7628
        %v7642 = vpack.c.b16 %v7631, %v7630
        %v7643 = vpack.c.b16 %v7633, %v7632
        %v7644 = vpack.c.b16 %v7635, %v7634
        %v7645 = vpack.c.b16 %v7637, %v7636
        %7654 = vmatprep.subr.bf16.mxu0 0
        %7655 = vmatpush1.bf16.msra.mxu0 %v7645
        %7656 = vmatprep.subr.bf16.mxu0 0
        %7657 = vmatpush1.bf16.msra.mxu0 %v7644
        %7658 = vmatprep.subr.bf16.mxu0 0
        %7659 = vmatpush1.bf16.msra.mxu0 %v7643
        %7660 = vmatprep.subr.bf16.mxu0 0
        %7661 = vmatpush1.bf16.msra.mxu0 %v7642
        %7662 = vmatprep.subr.bf16.mxu0 0
        %7663 = vmatpush1.bf16.msra.mxu0 %v7641
        %7664 = vmatprep.subr.bf16.mxu0 0
        %7665 = vmatpush1.bf16.msra.mxu0 %v7640
        %7666 = vmatprep.subr.bf16.mxu0 0
        %7667 = vmatpush1.bf16.msra.mxu0 %v7639
        %7668 = vmatprep.subr.bf16.mxu0 0
        %7669 = vmatpush1.bf16.msra.mxu0 %v7638
        %7670 = vmatprep.subr.bf16.mxu0 0
        %7671 = vmatpush2.bf16.msra.mxu0 0
        %7672 = vmatprep.subr.bf16.mxu0 0
        %7673 = vmatpush2.bf16.msra.mxu0 0
        %7674 = vmatprep.subr.bf16.mxu0 0
        %7675 = vmatpush2.bf16.msra.mxu0 0
        %7676 = vmatprep.subr.bf16.mxu0 0
        %7677 = vmatpush2.bf16.msra.mxu0 0
        %7678 = vmatprep.subr.bf16.mxu0 0
        %7679 = vmatpush2.bf16.msra.mxu0 0
        %7680 = vmatprep.subr.bf16.mxu0 0
        %7681 = vmatpush2.bf16.msra.mxu0 0
        %7682 = vmatprep.subr.bf16.mxu0 0
        %7683 = vmatpush2.bf16.msra.mxu0 0
        %7684 = vmatprep.subr.bf16.mxu0 0
        %7685 = vmatpush2.bf16.msra.mxu0 0
        %7686 = vmatprep.mubr.bf16.mxu0 0
        %7687 = vmatmul.mubr.bf16.gmra.mxu0 %v7603
        %v7688 = vpop.f32.mrf.mxu0
        %v7689 = vadd.f32 0.0, %v7688
        %v7690 = vpop.f32.mrf.mxu0
        %v7691 = vpop.f32.mrf.mxu0
        %v7692 = vpop.f32.mrf.mxu0
        %7693 = vdwg.mxu0
        %v7710 = vunpack.c.l.b16 %v7569
        %v7711 = vunpack.c.l.b16 %v7570
        %v7712 = vunpack.c.l.b16 %v7571
        %v7713 = vunpack.c.l.b16 %v7572
        %v7714 = vunpack.c.l.b16 %v7573
        %v7715 = vunpack.c.l.b16 %v7574
        %v7716 = vunpack.c.l.b16 %v7575
        %v7717 = vunpack.c.l.b16 %v7576
        %v7718 = vunpack.c.l.b16 %v7577
        %v7719 = vunpack.c.l.b16 %v7578
        %v7720 = vunpack.c.l.b16 %v7579
        %v7721 = vunpack.c.l.b16 %v7580
        %v7722 = vunpack.c.l.b16 %v7581
        %v7723 = vunpack.c.l.b16 %v7582
        %v7724 = vunpack.c.l.b16 %v7583
        %v7725 = vunpack.c.l.b16 %v7584
        %v7726 = vpack.c.b16 %v7711, %v7710
        %v7727 = vpack.c.b16 %v7713, %v7712
        %v7728 = vpack.c.b16 %v7715, %v7714
        %v7729 = vpack.c.b16 %v7717, %v7716
        %v7730 = vpack.c.b16 %v7719, %v7718
        %v7731 = vpack.c.b16 %v7721, %v7720
        %v7732 = vpack.c.b16 %v7723, %v7722
        %v7733 = vpack.c.b16 %v7725, %v7724
        %7742 = vmatprep.subr.bf16.mxu0 0
        %7743 = vmatpush1.bf16.msra.mxu0 %v7733
        %7744 = vmatprep.subr.bf16.mxu0 0
        %7745 = vmatpush1.bf16.msra.mxu0 %v7732
        %7746 = vmatprep.subr.bf16.mxu0 0
        %7747 = vmatpush1.bf16.msra.mxu0 %v7731
        %7748 = vmatprep.subr.bf16.mxu0 0
        %7749 = vmatpush1.bf16.msra.mxu0 %v7730
        %7750 = vmatprep.subr.bf16.mxu0 0
        %7751 = vmatpush1.bf16.msra.mxu0 %v7729
        %7752 = vmatprep.subr.bf16.mxu0 0
        %7753 = vmatpush1.bf16.msra.mxu0 %v7728
        %7754 = vmatprep.subr.bf16.mxu0 0
        %7755 = vmatpush1.bf16.msra.mxu0 %v7727
        %7756 = vmatprep.subr.bf16.mxu0 0
        %7757 = vmatpush1.bf16.msra.mxu0 %v7726
        %7758 = vmatprep.subr.bf16.mxu0 0
        %7759 = vmatpush2.bf16.msra.mxu0 0
        %7760 = vmatprep.subr.bf16.mxu0 0
        %7761 = vmatpush2.bf16.msra.mxu0 0
        %7762 = vmatprep.subr.bf16.mxu0 0
        %7763 = vmatpush2.bf16.msra.mxu0 0
        %7764 = vmatprep.subr.bf16.mxu0 0
        %7765 = vmatpush2.bf16.msra.mxu0 0
        %7766 = vmatprep.subr.bf16.mxu0 0
        %7767 = vmatpush2.bf16.msra.mxu0 0
        %7768 = vmatprep.subr.bf16.mxu0 0
        %7769 = vmatpush2.bf16.msra.mxu0 0
        %7770 = vmatprep.subr.bf16.mxu0 0
        %7771 = vmatpush2.bf16.msra.mxu0 0
        %7772 = vmatprep.subr.bf16.mxu0 0
        %7773 = vmatpush2.bf16.msra.mxu0 0
        %7774 = vmatprep.mubr.bf16.mxu0 0
        %7775 = vmatmul.mubr.bf16.gmra.mxu0 %v7568
        %v7776 = vpop.f32.mrf.mxu0
        %v7777 = vadd.f32 %v7689, %v7776
        %v7778 = vpop.f32.mrf.mxu0
        %v7779 = vpop.f32.mrf.mxu0
        %v7780 = vpop.f32.mrf.mxu0
        %7781 = vdwg.mxu0
        %s7782 = scalar_lea.vmem %s5, 128
        %v7783 = vld [vmem:[%s7782] sm:$0xf]
        %v7784 = vld [vmem:[%s7782 + $0x4] sm:$0xf]
        %v7785 = vld [vmem:[%s7782 + $0x8] sm:$0xf]
        %v7786 = vld [vmem:[%s7782 + $0xc] sm:$0xf]
        %v7787 = vld [vmem:[%s7782 + $0x10] sm:$0xf]
        %v7788 = vld [vmem:[%s7782 + $0x14] sm:$0xf]
        %v7789 = vld [vmem:[%s7782 + $0x18] sm:$0xf]
        %v7790 = vld [vmem:[%s7782 + $0x1c] sm:$0xf]
        %v7791 = vld [vmem:[%s7782 + $0x20] sm:$0xf]
        %v7792 = vld [vmem:[%s7782 + $0x24] sm:$0xf]
        %v7793 = vld [vmem:[%s7782 + $0x28] sm:$0xf]
        %v7794 = vld [vmem:[%s7782 + $0x2c] sm:$0xf]
        %v7795 = vld [vmem:[%s7782 + $0x30] sm:$0xf]
        %v7796 = vld [vmem:[%s7782 + $0x34] sm:$0xf]
        %v7797 = vld [vmem:[%s7782 + $0x38] sm:$0xf]
        %v7798 = vld [vmem:[%s7782 + $0x3c] sm:$0xf]
        %v7800 = vrot.slane %v7568, 1
        %v7818 = vunpack.c.l.b16 %v7783
        %v7819 = vunpack.c.l.b16 %v7784
        %v7820 = vunpack.c.l.b16 %v7785
        %v7821 = vunpack.c.l.b16 %v7786
        %v7822 = vunpack.c.l.b16 %v7787
        %v7823 = vunpack.c.l.b16 %v7788
        %v7824 = vunpack.c.l.b16 %v7789
        %v7825 = vunpack.c.l.b16 %v7790
        %v7826 = vunpack.c.l.b16 %v7791
        %v7827 = vunpack.c.l.b16 %v7792
        %v7828 = vunpack.c.l.b16 %v7793
        %v7829 = vunpack.c.l.b16 %v7794
        %v7830 = vunpack.c.l.b16 %v7795
        %v7831 = vunpack.c.l.b16 %v7796
        %v7832 = vunpack.c.l.b16 %v7797
        %v7833 = vunpack.c.l.b16 %v7798
        %v7834 = vpack.c.b16 %v7819, %v7818
        %v7835 = vpack.c.b16 %v7821, %v7820
        %v7836 = vpack.c.b16 %v7823, %v7822
        %v7837 = vpack.c.b16 %v7825, %v7824
        %v7838 = vpack.c.b16 %v7827, %v7826
        %v7839 = vpack.c.b16 %v7829, %v7828
        %v7840 = vpack.c.b16 %v7831, %v7830
        %v7841 = vpack.c.b16 %v7833, %v7832
        %7850 = vmatprep.subr.bf16.mxu0 0
        %7851 = vmatpush1.bf16.msra.mxu0 %v7841
        %7852 = vmatprep.subr.bf16.mxu0 0
        %7853 = vmatpush1.bf16.msra.mxu0 %v7840
        %7854 = vmatprep.subr.bf16.mxu0 0
        %7855 = vmatpush1.bf16.msra.mxu0 %v7839
        %7856 = vmatprep.subr.bf16.mxu0 0
        %7857 = vmatpush1.bf16.msra.mxu0 %v7838
        %7858 = vmatprep.subr.bf16.mxu0 0
        %7859 = vmatpush1.bf16.msra.mxu0 %v7837
        %7860 = vmatprep.subr.bf16.mxu0 0
        %7861 = vmatpush1.bf16.msra.mxu0 %v7836
        %7862 = vmatprep.subr.bf16.mxu0 0
        %7863 = vmatpush1.bf16.msra.mxu0 %v7835
        %7864 = vmatprep.subr.bf16.mxu0 0
        %7865 = vmatpush1.bf16.msra.mxu0 %v7834
        %7866 = vmatprep.subr.bf16.mxu0 0
        %7867 = vmatpush2.bf16.msra.mxu0 0
        %7868 = vmatprep.subr.bf16.mxu0 0
        %7869 = vmatpush2.bf16.msra.mxu0 0
        %7870 = vmatprep.subr.bf16.mxu0 0
        %7871 = vmatpush2.bf16.msra.mxu0 0
        %7872 = vmatprep.subr.bf16.mxu0 0
        %7873 = vmatpush2.bf16.msra.mxu0 0
        %7874 = vmatprep.subr.bf16.mxu0 0
        %7875 = vmatpush2.bf16.msra.mxu0 0
        %7876 = vmatprep.subr.bf16.mxu0 0
        %7877 = vmatpush2.bf16.msra.mxu0 0
        %7878 = vmatprep.subr.bf16.mxu0 0
        %7879 = vmatpush2.bf16.msra.mxu0 0
        %7880 = vmatprep.subr.bf16.mxu0 0
        %7881 = vmatpush2.bf16.msra.mxu0 0
        %7882 = vmatprep.mubr.bf16.mxu0 0
        %7883 = vmatmul.mubr.bf16.gmra.mxu0 %v7800
        %v7884 = vpop.f32.mrf.mxu0
        %v7885 = vadd.f32 0.0, %v7884
        %v7886 = vpop.f32.mrf.mxu0
        %v7887 = vpop.f32.mrf.mxu0
        %v7888 = vpop.f32.mrf.mxu0
        %7889 = vdwg.mxu0
        %v7890 = vadd.f32 %v7777, %v7885
        %s7891 = scalar_lea.vmem %s5, 192
        %v7892 = vld [vmem:[%s7891] sm:$0xf]
        %v7893 = vld [vmem:[%s7891 + $0x4] sm:$0xf]
        %v7894 = vld [vmem:[%s7891 + $0x8] sm:$0xf]
        %v7895 = vld [vmem:[%s7891 + $0xc] sm:$0xf]
        %v7896 = vld [vmem:[%s7891 + $0x10] sm:$0xf]
        %v7897 = vld [vmem:[%s7891 + $0x14] sm:$0xf]
        %v7898 = vld [vmem:[%s7891 + $0x18] sm:$0xf]
        %v7899 = vld [vmem:[%s7891 + $0x1c] sm:$0xf]
        %v7900 = vld [vmem:[%s7891 + $0x20] sm:$0xf]
        %v7901 = vld [vmem:[%s7891 + $0x24] sm:$0xf]
        %v7902 = vld [vmem:[%s7891 + $0x28] sm:$0xf]
        %v7903 = vld [vmem:[%s7891 + $0x2c] sm:$0xf]
        %v7904 = vld [vmem:[%s7891 + $0x30] sm:$0xf]
        %v7905 = vld [vmem:[%s7891 + $0x34] sm:$0xf]
        %v7906 = vld [vmem:[%s7891 + $0x38] sm:$0xf]
        %v7907 = vld [vmem:[%s7891 + $0x3c] sm:$0xf]
        %v7908 = vrot.slane %v7603, 1
        %v7926 = vunpack.c.l.b16 %v7892
        %v7927 = vunpack.c.l.b16 %v7893
        %v7928 = vunpack.c.l.b16 %v7894
        %v7929 = vunpack.c.l.b16 %v7895
        %v7930 = vunpack.c.l.b16 %v7896
        %v7931 = vunpack.c.l.b16 %v7897
        %v7932 = vunpack.c.l.b16 %v7898
        %v7933 = vunpack.c.l.b16 %v7899
        %v7934 = vunpack.c.l.b16 %v7900
        %v7935 = vunpack.c.l.b16 %v7901
        %v7936 = vunpack.c.l.b16 %v7902
        %v7937 = vunpack.c.l.b16 %v7903
        %v7938 = vunpack.c.l.b16 %v7904
        %v7939 = vunpack.c.l.b16 %v7905
        %v7940 = vunpack.c.l.b16 %v7906
        %v7941 = vunpack.c.l.b16 %v7907
        %v7942 = vpack.c.b16 %v7927, %v7926
        %v7943 = vpack.c.b16 %v7929, %v7928
        %v7944 = vpack.c.b16 %v7931, %v7930
        %v7945 = vpack.c.b16 %v7933, %v7932
        %v7946 = vpack.c.b16 %v7935, %v7934
        %v7947 = vpack.c.b16 %v7937, %v7936
        %v7948 = vpack.c.b16 %v7939, %v7938
        %v7949 = vpack.c.b16 %v7941, %v7940
        %7958 = vmatprep.subr.bf16.mxu0 0
        %7959 = vmatpush1.bf16.msra.mxu0 %v7949
        %7960 = vmatprep.subr.bf16.mxu0 0
        %7961 = vmatpush1.bf16.msra.mxu0 %v7948
        %7962 = vmatprep.subr.bf16.mxu0 0
        %7963 = vmatpush1.bf16.msra.mxu0 %v7947
        %7964 = vmatprep.subr.bf16.mxu0 0
        %7965 = vmatpush1.bf16.msra.mxu0 %v7946
        %7966 = vmatprep.subr.bf16.mxu0 0
        %7967 = vmatpush1.bf16.msra.mxu0 %v7945
        %7968 = vmatprep.subr.bf16.mxu0 0
        %7969 = vmatpush1.bf16.msra.mxu0 %v7944
        %7970 = vmatprep.subr.bf16.mxu0 0
        %7971 = vmatpush1.bf16.msra.mxu0 %v7943
        %7972 = vmatprep.subr.bf16.mxu0 0
        %7973 = vmatpush1.bf16.msra.mxu0 %v7942
        %7974 = vmatprep.subr.bf16.mxu0 0
        %7975 = vmatpush2.bf16.msra.mxu0 0
        %7976 = vmatprep.subr.bf16.mxu0 0
        %7977 = vmatpush2.bf16.msra.mxu0 0
        %7978 = vmatprep.subr.bf16.mxu0 0
        %7979 = vmatpush2.bf16.msra.mxu0 0
        %7980 = vmatprep.subr.bf16.mxu0 0
        %7981 = vmatpush2.bf16.msra.mxu0 0
        %7982 = vmatprep.subr.bf16.mxu0 0
        %7983 = vmatpush2.bf16.msra.mxu0 0
        %7984 = vmatprep.subr.bf16.mxu0 0
        %7985 = vmatpush2.bf16.msra.mxu0 0
        %7986 = vmatprep.subr.bf16.mxu0 0
        %7987 = vmatpush2.bf16.msra.mxu0 0
        %7988 = vmatprep.subr.bf16.mxu0 0
        %7989 = vmatpush2.bf16.msra.mxu0 0
        %7990 = vmatprep.mubr.bf16.mxu0 0
        %7991 = vmatmul.mubr.bf16.gmra.mxu0 %v7908
        %v7992 = vpop.f32.mrf.mxu0
        %v7993 = vadd.f32 0.0, %v7992
        %v7994 = vpop.f32.mrf.mxu0
        %v7995 = vpop.f32.mrf.mxu0
        %v7996 = vpop.f32.mrf.mxu0
        %7997 = vdwg.mxu0
        %v7998 = vadd.f32 %v7890, %v7993
        %v7999 = vpack.c.bf16 %v7565, %v7565
        %s8000 = scalar_lea.vmem %s5, 256
        %v8001 = vld [vmem:[%s8000] sm:$0xf]
        %v8002 = vld [vmem:[%s8000 + $0x4] sm:$0xf]
        %v8003 = vld [vmem:[%s8000 + $0x8] sm:$0xf]
        %v8004 = vld [vmem:[%s8000 + $0xc] sm:$0xf]
        %v8005 = vld [vmem:[%s8000 + $0x10] sm:$0xf]
        %v8006 = vld [vmem:[%s8000 + $0x14] sm:$0xf]
        %v8007 = vld [vmem:[%s8000 + $0x18] sm:$0xf]
        %v8008 = vld [vmem:[%s8000 + $0x1c] sm:$0xf]
        %v8009 = vld [vmem:[%s8000 + $0x20] sm:$0xf]
        %v8010 = vld [vmem:[%s8000 + $0x24] sm:$0xf]
        %v8011 = vld [vmem:[%s8000 + $0x28] sm:$0xf]
        %v8012 = vld [vmem:[%s8000 + $0x2c] sm:$0xf]
        %v8013 = vld [vmem:[%s8000 + $0x30] sm:$0xf]
        %v8014 = vld [vmem:[%s8000 + $0x34] sm:$0xf]
        %v8015 = vld [vmem:[%s8000 + $0x38] sm:$0xf]
        %v8016 = vld [vmem:[%s8000 + $0x3c] sm:$0xf]
        %v8033 = vunpack.c.l.b16 %v8001
        %v8034 = vunpack.c.l.b16 %v8002
        %v8035 = vunpack.c.l.b16 %v8003
        %v8036 = vunpack.c.l.b16 %v8004
        %v8037 = vunpack.c.l.b16 %v8005
        %v8038 = vunpack.c.l.b16 %v8006
        %v8039 = vunpack.c.l.b16 %v8007
        %v8040 = vunpack.c.l.b16 %v8008
        %v8041 = vunpack.c.l.b16 %v8009
        %v8042 = vunpack.c.l.b16 %v8010
        %v8043 = vunpack.c.l.b16 %v8011
        %v8044 = vunpack.c.l.b16 %v8012
        %v8045 = vunpack.c.l.b16 %v8013
        %v8046 = vunpack.c.l.b16 %v8014
        %v8047 = vunpack.c.l.b16 %v8015
        %v8048 = vunpack.c.l.b16 %v8016
        %v8049 = vpack.c.b16 %v8034, %v8033
        %v8050 = vpack.c.b16 %v8036, %v8035
        %v8051 = vpack.c.b16 %v8038, %v8037
        %v8052 = vpack.c.b16 %v8040, %v8039
        %v8053 = vpack.c.b16 %v8042, %v8041
        %v8054 = vpack.c.b16 %v8044, %v8043
        %v8055 = vpack.c.b16 %v8046, %v8045
        %v8056 = vpack.c.b16 %v8048, %v8047
        %8065 = vmatprep.subr.bf16.mxu0 0
        %8066 = vmatpush1.bf16.msra.mxu0 %v8056
        %8067 = vmatprep.subr.bf16.mxu0 0
        %8068 = vmatpush1.bf16.msra.mxu0 %v8055
        %8069 = vmatprep.subr.bf16.mxu0 0
        %8070 = vmatpush1.bf16.msra.mxu0 %v8054
        %8071 = vmatprep.subr.bf16.mxu0 0
        %8072 = vmatpush1.bf16.msra.mxu0 %v8053
        %8073 = vmatprep.subr.bf16.mxu0 0
        %8074 = vmatpush1.bf16.msra.mxu0 %v8052
        %8075 = vmatprep.subr.bf16.mxu0 0
        %8076 = vmatpush1.bf16.msra.mxu0 %v8051
        %8077 = vmatprep.subr.bf16.mxu0 0
        %8078 = vmatpush1.bf16.msra.mxu0 %v8050
        %8079 = vmatprep.subr.bf16.mxu0 0
        %8080 = vmatpush1.bf16.msra.mxu0 %v8049
        %8081 = vmatprep.subr.bf16.mxu0 0
        %8082 = vmatpush2.bf16.msra.mxu0 0
        %8083 = vmatprep.subr.bf16.mxu0 0
        %8084 = vmatpush2.bf16.msra.mxu0 0
        %8085 = vmatprep.subr.bf16.mxu0 0
        %8086 = vmatpush2.bf16.msra.mxu0 0
        %8087 = vmatprep.subr.bf16.mxu0 0
        %8088 = vmatpush2.bf16.msra.mxu0 0
        %8089 = vmatprep.subr.bf16.mxu0 0
        %8090 = vmatpush2.bf16.msra.mxu0 0
        %8091 = vmatprep.subr.bf16.mxu0 0
        %8092 = vmatpush2.bf16.msra.mxu0 0
        %8093 = vmatprep.subr.bf16.mxu0 0
        %8094 = vmatpush2.bf16.msra.mxu0 0
        %8095 = vmatprep.subr.bf16.mxu0 0
        %8096 = vmatpush2.bf16.msra.mxu0 0
        %8097 = vmatprep.mubr.bf16.mxu0 0
        %8098 = vmatmul.mubr.bf16.gmra.mxu0 %v7999
        %v8099 = vpop.f32.mrf.mxu0
        %v8100 = vadd.f32 0.0, %v8099
        %v8101 = vpop.f32.mrf.mxu0
        %v8102 = vpop.f32.mrf.mxu0
        %v8103 = vpop.f32.mrf.mxu0
        %8104 = vdwg.mxu0
        %v8105 = vadd.f32 %v7998, %v8100
        %s8106 = scalar_lea.vmem %s5, 320
        %v8107 = vld [vmem:[%s8106] sm:$0xf]
        %v8108 = vld [vmem:[%s8106 + $0x4] sm:$0xf]
        %v8109 = vld [vmem:[%s8106 + $0x8] sm:$0xf]
        %v8110 = vld [vmem:[%s8106 + $0xc] sm:$0xf]
        %v8111 = vld [vmem:[%s8106 + $0x10] sm:$0xf]
        %v8112 = vld [vmem:[%s8106 + $0x14] sm:$0xf]
        %v8113 = vld [vmem:[%s8106 + $0x18] sm:$0xf]
        %v8114 = vld [vmem:[%s8106 + $0x1c] sm:$0xf]
        %v8115 = vld [vmem:[%s8106 + $0x20] sm:$0xf]
        %v8116 = vld [vmem:[%s8106 + $0x24] sm:$0xf]
        %v8117 = vld [vmem:[%s8106 + $0x28] sm:$0xf]
        %v8118 = vld [vmem:[%s8106 + $0x2c] sm:$0xf]
        %v8119 = vld [vmem:[%s8106 + $0x30] sm:$0xf]
        %v8120 = vld [vmem:[%s8106 + $0x34] sm:$0xf]
        %v8121 = vld [vmem:[%s8106 + $0x38] sm:$0xf]
        %v8122 = vld [vmem:[%s8106 + $0x3c] sm:$0xf]
        %v8124 = vshrl.u32 %v7999, 16
        %v8143 = vunpack.c.l.b16 %v8107
        %v8144 = vunpack.c.l.b16 %v8108
        %v8145 = vunpack.c.l.b16 %v8109
        %v8146 = vunpack.c.l.b16 %v8110
        %v8147 = vunpack.c.l.b16 %v8111
        %v8148 = vunpack.c.l.b16 %v8112
        %v8149 = vunpack.c.l.b16 %v8113
        %v8150 = vunpack.c.l.b16 %v8114
        %v8151 = vunpack.c.l.b16 %v8115
        %v8152 = vunpack.c.l.b16 %v8116
        %v8153 = vunpack.c.l.b16 %v8117
        %v8154 = vunpack.c.l.b16 %v8118
        %v8155 = vunpack.c.l.b16 %v8119
        %v8156 = vunpack.c.l.b16 %v8120
        %v8157 = vunpack.c.l.b16 %v8121
        %v8158 = vunpack.c.l.b16 %v8122
        %v8159 = vpack.c.b16 %v8144, %v8143
        %v8160 = vpack.c.b16 %v8146, %v8145
        %v8161 = vpack.c.b16 %v8148, %v8147
        %v8162 = vpack.c.b16 %v8150, %v8149
        %v8163 = vpack.c.b16 %v8152, %v8151
        %v8164 = vpack.c.b16 %v8154, %v8153
        %v8165 = vpack.c.b16 %v8156, %v8155
        %v8166 = vpack.c.b16 %v8158, %v8157
        %8175 = vmatprep.subr.bf16.mxu0 0
        %8176 = vmatpush1.bf16.msra.mxu0 %v8166
        %8177 = vmatprep.subr.bf16.mxu0 0
        %8178 = vmatpush1.bf16.msra.mxu0 %v8165
        %8179 = vmatprep.subr.bf16.mxu0 0
        %8180 = vmatpush1.bf16.msra.mxu0 %v8164
        %8181 = vmatprep.subr.bf16.mxu0 0
        %8182 = vmatpush1.bf16.msra.mxu0 %v8163
        %8183 = vmatprep.subr.bf16.mxu0 0
        %8184 = vmatpush1.bf16.msra.mxu0 %v8162
        %8185 = vmatprep.subr.bf16.mxu0 0
        %8186 = vmatpush1.bf16.msra.mxu0 %v8161
        %8187 = vmatprep.subr.bf16.mxu0 0
        %8188 = vmatpush1.bf16.msra.mxu0 %v8160
        %8189 = vmatprep.subr.bf16.mxu0 0
        %8190 = vmatpush1.bf16.msra.mxu0 %v8159
        %8191 = vmatprep.subr.bf16.mxu0 0
        %8192 = vmatpush2.bf16.msra.mxu0 0
        %8193 = vmatprep.subr.bf16.mxu0 0
        %8194 = vmatpush2.bf16.msra.mxu0 0
        %8195 = vmatprep.subr.bf16.mxu0 0
        %8196 = vmatpush2.bf16.msra.mxu0 0
        %8197 = vmatprep.subr.bf16.mxu0 0
        %8198 = vmatpush2.bf16.msra.mxu0 0
        %8199 = vmatprep.subr.bf16.mxu0 0
        %8200 = vmatpush2.bf16.msra.mxu0 0
        %8201 = vmatprep.subr.bf16.mxu0 0
        %8202 = vmatpush2.bf16.msra.mxu0 0
        %8203 = vmatprep.subr.bf16.mxu0 0
        %8204 = vmatpush2.bf16.msra.mxu0 0
        %8205 = vmatprep.subr.bf16.mxu0 0
        %8206 = vmatpush2.bf16.msra.mxu0 0
        %8207 = vmatprep.mubr.bf16.mxu0 0
        %8208 = vmatmul.mubr.bf16.gmra.mxu0 %v8124
        %v8209 = vpop.f32.mrf.mxu0
        %v8210 = vadd.f32 0.0, %v8209
        %v8211 = vpop.f32.mrf.mxu0
        %v8212 = vpop.f32.mrf.mxu0
        %v8213 = vpop.f32.mrf.mxu0
        %8214 = vdwg.mxu0
        %v8215 = vadd.f32 %v8105, %v8210
        %s8216 = scalar_lea.vmem %s5, 384
        %v8217 = vld [vmem:[%s8216] sm:$0xf]
        %v8218 = vld [vmem:[%s8216 + $0x4] sm:$0xf]
        %v8219 = vld [vmem:[%s8216 + $0x8] sm:$0xf]
        %v8220 = vld [vmem:[%s8216 + $0xc] sm:$0xf]
        %v8221 = vld [vmem:[%s8216 + $0x10] sm:$0xf]
        %v8222 = vld [vmem:[%s8216 + $0x14] sm:$0xf]
        %v8223 = vld [vmem:[%s8216 + $0x18] sm:$0xf]
        %v8224 = vld [vmem:[%s8216 + $0x1c] sm:$0xf]
        %v8225 = vld [vmem:[%s8216 + $0x20] sm:$0xf]
        %v8226 = vld [vmem:[%s8216 + $0x24] sm:$0xf]
        %v8227 = vld [vmem:[%s8216 + $0x28] sm:$0xf]
        %v8228 = vld [vmem:[%s8216 + $0x2c] sm:$0xf]
        %v8229 = vld [vmem:[%s8216 + $0x30] sm:$0xf]
        %v8230 = vld [vmem:[%s8216 + $0x34] sm:$0xf]
        %v8231 = vld [vmem:[%s8216 + $0x38] sm:$0xf]
        %v8232 = vld [vmem:[%s8216 + $0x3c] sm:$0xf]
        %v8234 = vrot.slane %v7999, 1
        %v8252 = vunpack.c.l.b16 %v8217
        %v8253 = vunpack.c.l.b16 %v8218
        %v8254 = vunpack.c.l.b16 %v8219
        %v8255 = vunpack.c.l.b16 %v8220
        %v8256 = vunpack.c.l.b16 %v8221
        %v8257 = vunpack.c.l.b16 %v8222
        %v8258 = vunpack.c.l.b16 %v8223
        %v8259 = vunpack.c.l.b16 %v8224
        %v8260 = vunpack.c.l.b16 %v8225
        %v8261 = vunpack.c.l.b16 %v8226
        %v8262 = vunpack.c.l.b16 %v8227
        %v8263 = vunpack.c.l.b16 %v8228
        %v8264 = vunpack.c.l.b16 %v8229
        %v8265 = vunpack.c.l.b16 %v8230
        %v8266 = vunpack.c.l.b16 %v8231
        %v8267 = vunpack.c.l.b16 %v8232
        %v8268 = vpack.c.b16 %v8253, %v8252
        %v8269 = vpack.c.b16 %v8255, %v8254
        %v8270 = vpack.c.b16 %v8257, %v8256
        %v8271 = vpack.c.b16 %v8259, %v8258
        %v8272 = vpack.c.b16 %v8261, %v8260
        %v8273 = vpack.c.b16 %v8263, %v8262
        %v8274 = vpack.c.b16 %v8265, %v8264
        %v8275 = vpack.c.b16 %v8267, %v8266
        %8284 = vmatprep.subr.bf16.mxu0 0
        %8285 = vmatpush1.bf16.msra.mxu0 %v8275
        %8286 = vmatprep.subr.bf16.mxu0 0
        %8287 = vmatpush1.bf16.msra.mxu0 %v8274
        %8288 = vmatprep.subr.bf16.mxu0 0
        %8289 = vmatpush1.bf16.msra.mxu0 %v8273
        %8290 = vmatprep.subr.bf16.mxu0 0
        %8291 = vmatpush1.bf16.msra.mxu0 %v8272
        %8292 = vmatprep.subr.bf16.mxu0 0
        %8293 = vmatpush1.bf16.msra.mxu0 %v8271
        %8294 = vmatprep.subr.bf16.mxu0 0
        %8295 = vmatpush1.bf16.msra.mxu0 %v8270
        %8296 = vmatprep.subr.bf16.mxu0 0
        %8297 = vmatpush1.bf16.msra.mxu0 %v8269
        %8298 = vmatprep.subr.bf16.mxu0 0
        %8299 = vmatpush1.bf16.msra.mxu0 %v8268
        %8300 = vmatprep.subr.bf16.mxu0 0
        %8301 = vmatpush2.bf16.msra.mxu0 0
        %8302 = vmatprep.subr.bf16.mxu0 0
        %8303 = vmatpush2.bf16.msra.mxu0 0
        %8304 = vmatprep.subr.bf16.mxu0 0
        %8305 = vmatpush2.bf16.msra.mxu0 0
        %8306 = vmatprep.subr.bf16.mxu0 0
        %8307 = vmatpush2.bf16.msra.mxu0 0
        %8308 = vmatprep.subr.bf16.mxu0 0
        %8309 = vmatpush2.bf16.msra.mxu0 0
        %8310 = vmatprep.subr.bf16.mxu0 0
        %8311 = vmatpush2.bf16.msra.mxu0 0
        %8312 = vmatprep.subr.bf16.mxu0 0
        %8313 = vmatpush2.bf16.msra.mxu0 0
        %8314 = vmatprep.subr.bf16.mxu0 0
        %8315 = vmatpush2.bf16.msra.mxu0 0
        %8316 = vmatprep.mubr.bf16.mxu0 0
        %8317 = vmatmul.mubr.bf16.gmra.mxu0 %v8234
        %v8318 = vpop.f32.mrf.mxu0
        %v8319 = vadd.f32 0.0, %v8318
        %v8320 = vpop.f32.mrf.mxu0
        %v8321 = vpop.f32.mrf.mxu0
        %v8322 = vpop.f32.mrf.mxu0
        %8323 = vdwg.mxu0
        %v8324 = vadd.f32 %v8215, %v8319
        %s8325 = scalar_lea.vmem %s5, 448
        %v8326 = vld [vmem:[%s8325] sm:$0xf]
        %v8327 = vld [vmem:[%s8325 + $0x4] sm:$0xf]
        %v8328 = vld [vmem:[%s8325 + $0x8] sm:$0xf]
        %v8329 = vld [vmem:[%s8325 + $0xc] sm:$0xf]
        %v8330 = vld [vmem:[%s8325 + $0x10] sm:$0xf]
        %v8331 = vld [vmem:[%s8325 + $0x14] sm:$0xf]
        %v8332 = vld [vmem:[%s8325 + $0x18] sm:$0xf]
        %v8333 = vld [vmem:[%s8325 + $0x1c] sm:$0xf]
        %v8334 = vld [vmem:[%s8325 + $0x20] sm:$0xf]
        %v8335 = vld [vmem:[%s8325 + $0x24] sm:$0xf]
        %v8336 = vld [vmem:[%s8325 + $0x28] sm:$0xf]
        %v8337 = vld [vmem:[%s8325 + $0x2c] sm:$0xf]
        %v8338 = vld [vmem:[%s8325 + $0x30] sm:$0xf]
        %v8339 = vld [vmem:[%s8325 + $0x34] sm:$0xf]
        %v8340 = vld [vmem:[%s8325 + $0x38] sm:$0xf]
        %v8341 = vld [vmem:[%s8325 + $0x3c] sm:$0xf]
        %v8342 = vrot.slane %v8124, 1
        %v8360 = vunpack.c.l.b16 %v8326
        %v8361 = vunpack.c.l.b16 %v8327
        %v8362 = vunpack.c.l.b16 %v8328
        %v8363 = vunpack.c.l.b16 %v8329
        %v8364 = vunpack.c.l.b16 %v8330
        %v8365 = vunpack.c.l.b16 %v8331
        %v8366 = vunpack.c.l.b16 %v8332
        %v8367 = vunpack.c.l.b16 %v8333
        %v8368 = vunpack.c.l.b16 %v8334
        %v8369 = vunpack.c.l.b16 %v8335
        %v8370 = vunpack.c.l.b16 %v8336
        %v8371 = vunpack.c.l.b16 %v8337
        %v8372 = vunpack.c.l.b16 %v8338
        %v8373 = vunpack.c.l.b16 %v8339
        %v8374 = vunpack.c.l.b16 %v8340
        %v8375 = vunpack.c.l.b16 %v8341
        %v8376 = vpack.c.b16 %v8361, %v8360
        %v8377 = vpack.c.b16 %v8363, %v8362
        %v8378 = vpack.c.b16 %v8365, %v8364
        %v8379 = vpack.c.b16 %v8367, %v8366
        %v8380 = vpack.c.b16 %v8369, %v8368
        %v8381 = vpack.c.b16 %v8371, %v8370
        %v8382 = vpack.c.b16 %v8373, %v8372
        %v8383 = vpack.c.b16 %v8375, %v8374
        %8392 = vmatprep.subr.bf16.mxu0 0
        %8393 = vmatpush1.bf16.msra.mxu0 %v8383
        %8394 = vmatprep.subr.bf16.mxu0 0
        %8395 = vmatpush1.bf16.msra.mxu0 %v8382
        %8396 = vmatprep.subr.bf16.mxu0 0
        %8397 = vmatpush1.bf16.msra.mxu0 %v8381
        %8398 = vmatprep.subr.bf16.mxu0 0
        %8399 = vmatpush1.bf16.msra.mxu0 %v8380
        %8400 = vmatprep.subr.bf16.mxu0 0
        %8401 = vmatpush1.bf16.msra.mxu0 %v8379
        %8402 = vmatprep.subr.bf16.mxu0 0
        %8403 = vmatpush1.bf16.msra.mxu0 %v8378
        %8404 = vmatprep.subr.bf16.mxu0 0
        %8405 = vmatpush1.bf16.msra.mxu0 %v8377
        %8406 = vmatprep.subr.bf16.mxu0 0
        %8407 = vmatpush1.bf16.msra.mxu0 %v8376
        %8408 = vmatprep.subr.bf16.mxu0 0
        %8409 = vmatpush2.bf16.msra.mxu0 0
        %8410 = vmatprep.subr.bf16.mxu0 0
        %8411 = vmatpush2.bf16.msra.mxu0 0
        %8412 = vmatprep.subr.bf16.mxu0 0
        %8413 = vmatpush2.bf16.msra.mxu0 0
        %8414 = vmatprep.subr.bf16.mxu0 0
        %8415 = vmatpush2.bf16.msra.mxu0 0
        %8416 = vmatprep.subr.bf16.mxu0 0
        %8417 = vmatpush2.bf16.msra.mxu0 0
        %8418 = vmatprep.subr.bf16.mxu0 0
        %8419 = vmatpush2.bf16.msra.mxu0 0
        %8420 = vmatprep.subr.bf16.mxu0 0
        %8421 = vmatpush2.bf16.msra.mxu0 0
        %8422 = vmatprep.subr.bf16.mxu0 0
        %8423 = vmatpush2.bf16.msra.mxu0 0
        %8424 = vmatprep.mubr.bf16.mxu0 0
        %8425 = vmatmul.mubr.bf16.gmra.mxu0 %v8342
        %v8426 = vpop.f32.mrf.mxu0
        %v8427 = vadd.f32 0.0, %v8426
        %v8428 = vpop.f32.mrf.mxu0
        %v8429 = vpop.f32.mrf.mxu0
        %v8430 = vpop.f32.mrf.mxu0
        %8431 = vdwg.mxu0
        %v8432 = vadd.f32 %v8324, %v8427
        %v8433 = vpack.c.bf16 %v7566, %v7566
        %s8434 = scalar_lea.vmem %s5, 512
        %v8435 = vld [vmem:[%s8434] sm:$0xf]
        %v8436 = vld [vmem:[%s8434 + $0x4] sm:$0xf]
        %v8437 = vld [vmem:[%s8434 + $0x8] sm:$0xf]
        %v8438 = vld [vmem:[%s8434 + $0xc] sm:$0xf]
        %v8439 = vld [vmem:[%s8434 + $0x10] sm:$0xf]
        %v8440 = vld [vmem:[%s8434 + $0x14] sm:$0xf]
        %v8441 = vld [vmem:[%s8434 + $0x18] sm:$0xf]
        %v8442 = vld [vmem:[%s8434 + $0x1c] sm:$0xf]
        %v8443 = vld [vmem:[%s8434 + $0x20] sm:$0xf]
        %v8444 = vld [vmem:[%s8434 + $0x24] sm:$0xf]
        %v8445 = vld [vmem:[%s8434 + $0x28] sm:$0xf]
        %v8446 = vld [vmem:[%s8434 + $0x2c] sm:$0xf]
        %v8447 = vld [vmem:[%s8434 + $0x30] sm:$0xf]
        %v8448 = vld [vmem:[%s8434 + $0x34] sm:$0xf]
        %v8449 = vld [vmem:[%s8434 + $0x38] sm:$0xf]
        %v8450 = vld [vmem:[%s8434 + $0x3c] sm:$0xf]
        %v8467 = vunpack.c.l.b16 %v8435
        %v8468 = vunpack.c.l.b16 %v8436
        %v8469 = vunpack.c.l.b16 %v8437
        %v8470 = vunpack.c.l.b16 %v8438
        %v8471 = vunpack.c.l.b16 %v8439
        %v8472 = vunpack.c.l.b16 %v8440
        %v8473 = vunpack.c.l.b16 %v8441
        %v8474 = vunpack.c.l.b16 %v8442
        %v8475 = vunpack.c.l.b16 %v8443
        %v8476 = vunpack.c.l.b16 %v8444
        %v8477 = vunpack.c.l.b16 %v8445
        %v8478 = vunpack.c.l.b16 %v8446
        %v8479 = vunpack.c.l.b16 %v8447
        %v8480 = vunpack.c.l.b16 %v8448
        %v8481 = vunpack.c.l.b16 %v8449
        %v8482 = vunpack.c.l.b16 %v8450
        %v8483 = vpack.c.b16 %v8468, %v8467
        %v8484 = vpack.c.b16 %v8470, %v8469
        %v8485 = vpack.c.b16 %v8472, %v8471
        %v8486 = vpack.c.b16 %v8474, %v8473
        %v8487 = vpack.c.b16 %v8476, %v8475
        %v8488 = vpack.c.b16 %v8478, %v8477
        %v8489 = vpack.c.b16 %v8480, %v8479
        %v8490 = vpack.c.b16 %v8482, %v8481
        %8499 = vmatprep.subr.bf16.mxu0 0
        %8500 = vmatpush1.bf16.msra.mxu0 %v8490
        %8501 = vmatprep.subr.bf16.mxu0 0
        %8502 = vmatpush1.bf16.msra.mxu0 %v8489
        %8503 = vmatprep.subr.bf16.mxu0 0
        %8504 = vmatpush1.bf16.msra.mxu0 %v8488
        %8505 = vmatprep.subr.bf16.mxu0 0
        %8506 = vmatpush1.bf16.msra.mxu0 %v8487
        %8507 = vmatprep.subr.bf16.mxu0 0
        %8508 = vmatpush1.bf16.msra.mxu0 %v8486
        %8509 = vmatprep.subr.bf16.mxu0 0
        %8510 = vmatpush1.bf16.msra.mxu0 %v8485
        %8511 = vmatprep.subr.bf16.mxu0 0
        %8512 = vmatpush1.bf16.msra.mxu0 %v8484
        %8513 = vmatprep.subr.bf16.mxu0 0
        %8514 = vmatpush1.bf16.msra.mxu0 %v8483
        %8515 = vmatprep.subr.bf16.mxu0 0
        %8516 = vmatpush2.bf16.msra.mxu0 0
        %8517 = vmatprep.subr.bf16.mxu0 0
        %8518 = vmatpush2.bf16.msra.mxu0 0
        %8519 = vmatprep.subr.bf16.mxu0 0
        %8520 = vmatpush2.bf16.msra.mxu0 0
        %8521 = vmatprep.subr.bf16.mxu0 0
        %8522 = vmatpush2.bf16.msra.mxu0 0
        %8523 = vmatprep.subr.bf16.mxu0 0
        %8524 = vmatpush2.bf16.msra.mxu0 0
        %8525 = vmatprep.subr.bf16.mxu0 0
        %8526 = vmatpush2.bf16.msra.mxu0 0
        %8527 = vmatprep.subr.bf16.mxu0 0
        %8528 = vmatpush2.bf16.msra.mxu0 0
        %8529 = vmatprep.subr.bf16.mxu0 0
        %8530 = vmatpush2.bf16.msra.mxu0 0
        %8531 = vmatprep.mubr.bf16.mxu0 0
        %8532 = vmatmul.mubr.bf16.gmra.mxu0 %v8433
        %v8533 = vpop.f32.mrf.mxu0
        %v8534 = vadd.f32 0.0, %v8533
        %v8535 = vpop.f32.mrf.mxu0
        %v8536 = vpop.f32.mrf.mxu0
        %v8537 = vpop.f32.mrf.mxu0
        %8538 = vdwg.mxu0
        %v8539 = vadd.f32 %v8432, %v8534
        %s8540 = scalar_lea.vmem %s5, 576
        %v8541 = vld [vmem:[%s8540] sm:$0xf]
        %v8542 = vld [vmem:[%s8540 + $0x4] sm:$0xf]
        %v8543 = vld [vmem:[%s8540 + $0x8] sm:$0xf]
        %v8544 = vld [vmem:[%s8540 + $0xc] sm:$0xf]
        %v8545 = vld [vmem:[%s8540 + $0x10] sm:$0xf]
        %v8546 = vld [vmem:[%s8540 + $0x14] sm:$0xf]
        %v8547 = vld [vmem:[%s8540 + $0x18] sm:$0xf]
        %v8548 = vld [vmem:[%s8540 + $0x1c] sm:$0xf]
        %v8549 = vld [vmem:[%s8540 + $0x20] sm:$0xf]
        %v8550 = vld [vmem:[%s8540 + $0x24] sm:$0xf]
        %v8551 = vld [vmem:[%s8540 + $0x28] sm:$0xf]
        %v8552 = vld [vmem:[%s8540 + $0x2c] sm:$0xf]
        %v8553 = vld [vmem:[%s8540 + $0x30] sm:$0xf]
        %v8554 = vld [vmem:[%s8540 + $0x34] sm:$0xf]
        %v8555 = vld [vmem:[%s8540 + $0x38] sm:$0xf]
        %v8556 = vld [vmem:[%s8540 + $0x3c] sm:$0xf]
        %v8558 = vshrl.u32 %v8433, 16
        %v8577 = vunpack.c.l.b16 %v8541
        %v8578 = vunpack.c.l.b16 %v8542
        %v8579 = vunpack.c.l.b16 %v8543
        %v8580 = vunpack.c.l.b16 %v8544
        %v8581 = vunpack.c.l.b16 %v8545
        %v8582 = vunpack.c.l.b16 %v8546
        %v8583 = vunpack.c.l.b16 %v8547
        %v8584 = vunpack.c.l.b16 %v8548
        %v8585 = vunpack.c.l.b16 %v8549
        %v8586 = vunpack.c.l.b16 %v8550
        %v8587 = vunpack.c.l.b16 %v8551
        %v8588 = vunpack.c.l.b16 %v8552
        %v8589 = vunpack.c.l.b16 %v8553
        %v8590 = vunpack.c.l.b16 %v8554
        %v8591 = vunpack.c.l.b16 %v8555
        %v8592 = vunpack.c.l.b16 %v8556
        %v8593 = vpack.c.b16 %v8578, %v8577
        %v8594 = vpack.c.b16 %v8580, %v8579
        %v8595 = vpack.c.b16 %v8582, %v8581
        %v8596 = vpack.c.b16 %v8584, %v8583
        %v8597 = vpack.c.b16 %v8586, %v8585
        %v8598 = vpack.c.b16 %v8588, %v8587
        %v8599 = vpack.c.b16 %v8590, %v8589
        %v8600 = vpack.c.b16 %v8592, %v8591
        %8609 = vmatprep.subr.bf16.mxu0 0
        %8610 = vmatpush1.bf16.msra.mxu0 %v8600
        %8611 = vmatprep.subr.bf16.mxu0 0
        %8612 = vmatpush1.bf16.msra.mxu0 %v8599
        %8613 = vmatprep.subr.bf16.mxu0 0
        %8614 = vmatpush1.bf16.msra.mxu0 %v8598
        %8615 = vmatprep.subr.bf16.mxu0 0
        %8616 = vmatpush1.bf16.msra.mxu0 %v8597
        %8617 = vmatprep.subr.bf16.mxu0 0
        %8618 = vmatpush1.bf16.msra.mxu0 %v8596
        %8619 = vmatprep.subr.bf16.mxu0 0
        %8620 = vmatpush1.bf16.msra.mxu0 %v8595
        %8621 = vmatprep.subr.bf16.mxu0 0
        %8622 = vmatpush1.bf16.msra.mxu0 %v8594
        %8623 = vmatprep.subr.bf16.mxu0 0
        %8624 = vmatpush1.bf16.msra.mxu0 %v8593
        %8625 = vmatprep.subr.bf16.mxu0 0
        %8626 = vmatpush2.bf16.msra.mxu0 0
        %8627 = vmatprep.subr.bf16.mxu0 0
        %8628 = vmatpush2.bf16.msra.mxu0 0
        %8629 = vmatprep.subr.bf16.mxu0 0
        %8630 = vmatpush2.bf16.msra.mxu0 0
        %8631 = vmatprep.subr.bf16.mxu0 0
        %8632 = vmatpush2.bf16.msra.mxu0 0
        %8633 = vmatprep.subr.bf16.mxu0 0
        %8634 = vmatpush2.bf16.msra.mxu0 0
        %8635 = vmatprep.subr.bf16.mxu0 0
        %8636 = vmatpush2.bf16.msra.mxu0 0
        %8637 = vmatprep.subr.bf16.mxu0 0
        %8638 = vmatpush2.bf16.msra.mxu0 0
        %8639 = vmatprep.subr.bf16.mxu0 0
        %8640 = vmatpush2.bf16.msra.mxu0 0
        %8641 = vmatprep.mubr.bf16.mxu0 0
        %8642 = vmatmul.mubr.bf16.gmra.mxu0 %v8558
        %v8643 = vpop.f32.mrf.mxu0
        %v8644 = vadd.f32 0.0, %v8643
        %v8645 = vpop.f32.mrf.mxu0
        %v8646 = vpop.f32.mrf.mxu0
        %v8647 = vpop.f32.mrf.mxu0
        %8648 = vdwg.mxu0
        %v8649 = vadd.f32 %v8539, %v8644
        %s8650 = scalar_lea.vmem %s5, 640
        %v8651 = vld [vmem:[%s8650] sm:$0xf]
        %v8652 = vld [vmem:[%s8650 + $0x4] sm:$0xf]
        %v8653 = vld [vmem:[%s8650 + $0x8] sm:$0xf]
        %v8654 = vld [vmem:[%s8650 + $0xc] sm:$0xf]
        %v8655 = vld [vmem:[%s8650 + $0x10] sm:$0xf]
        %v8656 = vld [vmem:[%s8650 + $0x14] sm:$0xf]
        %v8657 = vld [vmem:[%s8650 + $0x18] sm:$0xf]
        %v8658 = vld [vmem:[%s8650 + $0x1c] sm:$0xf]
        %v8659 = vld [vmem:[%s8650 + $0x20] sm:$0xf]
        %v8660 = vld [vmem:[%s8650 + $0x24] sm:$0xf]
        %v8661 = vld [vmem:[%s8650 + $0x28] sm:$0xf]
        %v8662 = vld [vmem:[%s8650 + $0x2c] sm:$0xf]
        %v8663 = vld [vmem:[%s8650 + $0x30] sm:$0xf]
        %v8664 = vld [vmem:[%s8650 + $0x34] sm:$0xf]
        %v8665 = vld [vmem:[%s8650 + $0x38] sm:$0xf]
        %v8666 = vld [vmem:[%s8650 + $0x3c] sm:$0xf]
        %v8668 = vrot.slane %v8433, 1
        %v8686 = vunpack.c.l.b16 %v8651
        %v8687 = vunpack.c.l.b16 %v8652
        %v8688 = vunpack.c.l.b16 %v8653
        %v8689 = vunpack.c.l.b16 %v8654
        %v8690 = vunpack.c.l.b16 %v8655
        %v8691 = vunpack.c.l.b16 %v8656
        %v8692 = vunpack.c.l.b16 %v8657
        %v8693 = vunpack.c.l.b16 %v8658
        %v8694 = vunpack.c.l.b16 %v8659
        %v8695 = vunpack.c.l.b16 %v8660
        %v8696 = vunpack.c.l.b16 %v8661
        %v8697 = vunpack.c.l.b16 %v8662
        %v8698 = vunpack.c.l.b16 %v8663
        %v8699 = vunpack.c.l.b16 %v8664
        %v8700 = vunpack.c.l.b16 %v8665
        %v8701 = vunpack.c.l.b16 %v8666
        %v8702 = vpack.c.b16 %v8687, %v8686
        %v8703 = vpack.c.b16 %v8689, %v8688
        %v8704 = vpack.c.b16 %v8691, %v8690
        %v8705 = vpack.c.b16 %v8693, %v8692
        %v8706 = vpack.c.b16 %v8695, %v8694
        %v8707 = vpack.c.b16 %v8697, %v8696
        %v8708 = vpack.c.b16 %v8699, %v8698
        %v8709 = vpack.c.b16 %v8701, %v8700
        %8718 = vmatprep.subr.bf16.mxu0 0
        %8719 = vmatpush1.bf16.msra.mxu0 %v8709
        %8720 = vmatprep.subr.bf16.mxu0 0
        %8721 = vmatpush1.bf16.msra.mxu0 %v8708
        %8722 = vmatprep.subr.bf16.mxu0 0
        %8723 = vmatpush1.bf16.msra.mxu0 %v8707
        %8724 = vmatprep.subr.bf16.mxu0 0
        %8725 = vmatpush1.bf16.msra.mxu0 %v8706
        %8726 = vmatprep.subr.bf16.mxu0 0
        %8727 = vmatpush1.bf16.msra.mxu0 %v8705
        %8728 = vmatprep.subr.bf16.mxu0 0
        %8729 = vmatpush1.bf16.msra.mxu0 %v8704
        %8730 = vmatprep.subr.bf16.mxu0 0
        %8731 = vmatpush1.bf16.msra.mxu0 %v8703
        %8732 = vmatprep.subr.bf16.mxu0 0
        %8733 = vmatpush1.bf16.msra.mxu0 %v8702
        %8734 = vmatprep.subr.bf16.mxu0 0
        %8735 = vmatpush2.bf16.msra.mxu0 0
        %8736 = vmatprep.subr.bf16.mxu0 0
        %8737 = vmatpush2.bf16.msra.mxu0 0
        %8738 = vmatprep.subr.bf16.mxu0 0
        %8739 = vmatpush2.bf16.msra.mxu0 0
        %8740 = vmatprep.subr.bf16.mxu0 0
        %8741 = vmatpush2.bf16.msra.mxu0 0
        %8742 = vmatprep.subr.bf16.mxu0 0
        %8743 = vmatpush2.bf16.msra.mxu0 0
        %8744 = vmatprep.subr.bf16.mxu0 0
        %8745 = vmatpush2.bf16.msra.mxu0 0
        %8746 = vmatprep.subr.bf16.mxu0 0
        %8747 = vmatpush2.bf16.msra.mxu0 0
        %8748 = vmatprep.subr.bf16.mxu0 0
        %8749 = vmatpush2.bf16.msra.mxu0 0
        %8750 = vmatprep.mubr.bf16.mxu0 0
        %8751 = vmatmul.mubr.bf16.gmra.mxu0 %v8668
        %v8752 = vpop.f32.mrf.mxu0
        %v8753 = vadd.f32 0.0, %v8752
        %v8754 = vpop.f32.mrf.mxu0
        %v8755 = vpop.f32.mrf.mxu0
        %v8756 = vpop.f32.mrf.mxu0
        %8757 = vdwg.mxu0
        %v8758 = vadd.f32 %v8649, %v8753
        %s8759 = scalar_lea.vmem %s5, 704
        %v8760 = vld [vmem:[%s8759] sm:$0xf]
        %v8761 = vld [vmem:[%s8759 + $0x4] sm:$0xf]
        %v8762 = vld [vmem:[%s8759 + $0x8] sm:$0xf]
        %v8763 = vld [vmem:[%s8759 + $0xc] sm:$0xf]
        %v8764 = vld [vmem:[%s8759 + $0x10] sm:$0xf]
        %v8765 = vld [vmem:[%s8759 + $0x14] sm:$0xf]
        %v8766 = vld [vmem:[%s8759 + $0x18] sm:$0xf]
        %v8767 = vld [vmem:[%s8759 + $0x1c] sm:$0xf]
        %v8768 = vld [vmem:[%s8759 + $0x20] sm:$0xf]
        %v8769 = vld [vmem:[%s8759 + $0x24] sm:$0xf]
        %v8770 = vld [vmem:[%s8759 + $0x28] sm:$0xf]
        %v8771 = vld [vmem:[%s8759 + $0x2c] sm:$0xf]
        %v8772 = vld [vmem:[%s8759 + $0x30] sm:$0xf]
        %v8773 = vld [vmem:[%s8759 + $0x34] sm:$0xf]
        %v8774 = vld [vmem:[%s8759 + $0x38] sm:$0xf]
        %v8775 = vld [vmem:[%s8759 + $0x3c] sm:$0xf]
        %v8776 = vrot.slane %v8558, 1
        %v8794 = vunpack.c.l.b16 %v8760
        %v8795 = vunpack.c.l.b16 %v8761
        %v8796 = vunpack.c.l.b16 %v8762
        %v8797 = vunpack.c.l.b16 %v8763
        %v8798 = vunpack.c.l.b16 %v8764
        %v8799 = vunpack.c.l.b16 %v8765
        %v8800 = vunpack.c.l.b16 %v8766
        %v8801 = vunpack.c.l.b16 %v8767
        %v8802 = vunpack.c.l.b16 %v8768
        %v8803 = vunpack.c.l.b16 %v8769
        %v8804 = vunpack.c.l.b16 %v8770
        %v8805 = vunpack.c.l.b16 %v8771
        %v8806 = vunpack.c.l.b16 %v8772
        %v8807 = vunpack.c.l.b16 %v8773
        %v8808 = vunpack.c.l.b16 %v8774
        %v8809 = vunpack.c.l.b16 %v8775
        %v8810 = vpack.c.b16 %v8795, %v8794
        %v8811 = vpack.c.b16 %v8797, %v8796
        %v8812 = vpack.c.b16 %v8799, %v8798
        %v8813 = vpack.c.b16 %v8801, %v8800
        %v8814 = vpack.c.b16 %v8803, %v8802
        %v8815 = vpack.c.b16 %v8805, %v8804
        %v8816 = vpack.c.b16 %v8807, %v8806
        %v8817 = vpack.c.b16 %v8809, %v8808
        %8826 = vmatprep.subr.bf16.mxu0 0
        %8827 = vmatpush1.bf16.msra.mxu0 %v8817
        %8828 = vmatprep.subr.bf16.mxu0 0
        %8829 = vmatpush1.bf16.msra.mxu0 %v8816
        %8830 = vmatprep.subr.bf16.mxu0 0
        %8831 = vmatpush1.bf16.msra.mxu0 %v8815
        %8832 = vmatprep.subr.bf16.mxu0 0
        %8833 = vmatpush1.bf16.msra.mxu0 %v8814
        %8834 = vmatprep.subr.bf16.mxu0 0
        %8835 = vmatpush1.bf16.msra.mxu0 %v8813
        %8836 = vmatprep.subr.bf16.mxu0 0
        %8837 = vmatpush1.bf16.msra.mxu0 %v8812
        %8838 = vmatprep.subr.bf16.mxu0 0
        %8839 = vmatpush1.bf16.msra.mxu0 %v8811
        %8840 = vmatprep.subr.bf16.mxu0 0
        %8841 = vmatpush1.bf16.msra.mxu0 %v8810
        %8842 = vmatprep.subr.bf16.mxu0 0
        %8843 = vmatpush2.bf16.msra.mxu0 0
        %8844 = vmatprep.subr.bf16.mxu0 0
        %8845 = vmatpush2.bf16.msra.mxu0 0
        %8846 = vmatprep.subr.bf16.mxu0 0
        %8847 = vmatpush2.bf16.msra.mxu0 0
        %8848 = vmatprep.subr.bf16.mxu0 0
        %8849 = vmatpush2.bf16.msra.mxu0 0
        %8850 = vmatprep.subr.bf16.mxu0 0
        %8851 = vmatpush2.bf16.msra.mxu0 0
        %8852 = vmatprep.subr.bf16.mxu0 0
        %8853 = vmatpush2.bf16.msra.mxu0 0
        %8854 = vmatprep.subr.bf16.mxu0 0
        %8855 = vmatpush2.bf16.msra.mxu0 0
        %8856 = vmatprep.subr.bf16.mxu0 0
        %8857 = vmatpush2.bf16.msra.mxu0 0
        %8858 = vmatprep.mubr.bf16.mxu0 0
        %8859 = vmatmul.mubr.bf16.gmra.mxu0 %v8776
        %v8860 = vpop.f32.mrf.mxu0
        %v8861 = vadd.f32 0.0, %v8860
        %v8862 = vpop.f32.mrf.mxu0
        %v8863 = vpop.f32.mrf.mxu0
        %v8864 = vpop.f32.mrf.mxu0
        %8865 = vdwg.mxu0
        %v8866 = vadd.f32 %v8758, %v8861
        %v8867 = vpack.c.bf16 %v7567, %v7567
        %s8868 = scalar_lea.vmem %s5, 768
        %v8869 = vld [vmem:[%s8868] sm:$0xf]
        %v8870 = vld [vmem:[%s8868 + $0x4] sm:$0xf]
        %v8871 = vld [vmem:[%s8868 + $0x8] sm:$0xf]
        %v8872 = vld [vmem:[%s8868 + $0xc] sm:$0xf]
        %v8873 = vld [vmem:[%s8868 + $0x10] sm:$0xf]
        %v8874 = vld [vmem:[%s8868 + $0x14] sm:$0xf]
        %v8875 = vld [vmem:[%s8868 + $0x18] sm:$0xf]
        %v8876 = vld [vmem:[%s8868 + $0x1c] sm:$0xf]
        %v8877 = vld [vmem:[%s8868 + $0x20] sm:$0xf]
        %v8878 = vld [vmem:[%s8868 + $0x24] sm:$0xf]
        %v8879 = vld [vmem:[%s8868 + $0x28] sm:$0xf]
        %v8880 = vld [vmem:[%s8868 + $0x2c] sm:$0xf]
        %v8881 = vld [vmem:[%s8868 + $0x30] sm:$0xf]
        %v8882 = vld [vmem:[%s8868 + $0x34] sm:$0xf]
        %v8883 = vld [vmem:[%s8868 + $0x38] sm:$0xf]
        %v8884 = vld [vmem:[%s8868 + $0x3c] sm:$0xf]
        %v8901 = vunpack.c.l.b16 %v8869
        %v8902 = vunpack.c.l.b16 %v8870
        %v8903 = vunpack.c.l.b16 %v8871
        %v8904 = vunpack.c.l.b16 %v8872
        %v8905 = vunpack.c.l.b16 %v8873
        %v8906 = vunpack.c.l.b16 %v8874
        %v8907 = vunpack.c.l.b16 %v8875
        %v8908 = vunpack.c.l.b16 %v8876
        %v8909 = vunpack.c.l.b16 %v8877
        %v8910 = vunpack.c.l.b16 %v8878
        %v8911 = vunpack.c.l.b16 %v8879
        %v8912 = vunpack.c.l.b16 %v8880
        %v8913 = vunpack.c.l.b16 %v8881
        %v8914 = vunpack.c.l.b16 %v8882
        %v8915 = vunpack.c.l.b16 %v8883
        %v8916 = vunpack.c.l.b16 %v8884
        %v8917 = vpack.c.b16 %v8902, %v8901
        %v8918 = vpack.c.b16 %v8904, %v8903
        %v8919 = vpack.c.b16 %v8906, %v8905
        %v8920 = vpack.c.b16 %v8908, %v8907
        %v8921 = vpack.c.b16 %v8910, %v8909
        %v8922 = vpack.c.b16 %v8912, %v8911
        %v8923 = vpack.c.b16 %v8914, %v8913
        %v8924 = vpack.c.b16 %v8916, %v8915
        %8933 = vmatprep.subr.bf16.mxu0 0
        %8934 = vmatpush1.bf16.msra.mxu0 %v8924
        %8935 = vmatprep.subr.bf16.mxu0 0
        %8936 = vmatpush1.bf16.msra.mxu0 %v8923
        %8937 = vmatprep.subr.bf16.mxu0 0
        %8938 = vmatpush1.bf16.msra.mxu0 %v8922
        %8939 = vmatprep.subr.bf16.mxu0 0
        %8940 = vmatpush1.bf16.msra.mxu0 %v8921
        %8941 = vmatprep.subr.bf16.mxu0 0
        %8942 = vmatpush1.bf16.msra.mxu0 %v8920
        %8943 = vmatprep.subr.bf16.mxu0 0
        %8944 = vmatpush1.bf16.msra.mxu0 %v8919
        %8945 = vmatprep.subr.bf16.mxu0 0
        %8946 = vmatpush1.bf16.msra.mxu0 %v8918
        %8947 = vmatprep.subr.bf16.mxu0 0
        %8948 = vmatpush1.bf16.msra.mxu0 %v8917
        %8949 = vmatprep.subr.bf16.mxu0 0
        %8950 = vmatpush2.bf16.msra.mxu0 0
        %8951 = vmatprep.subr.bf16.mxu0 0
        %8952 = vmatpush2.bf16.msra.mxu0 0
        %8953 = vmatprep.subr.bf16.mxu0 0
        %8954 = vmatpush2.bf16.msra.mxu0 0
        %8955 = vmatprep.subr.bf16.mxu0 0
        %8956 = vmatpush2.bf16.msra.mxu0 0
        %8957 = vmatprep.subr.bf16.mxu0 0
        %8958 = vmatpush2.bf16.msra.mxu0 0
        %8959 = vmatprep.subr.bf16.mxu0 0
        %8960 = vmatpush2.bf16.msra.mxu0 0
        %8961 = vmatprep.subr.bf16.mxu0 0
        %8962 = vmatpush2.bf16.msra.mxu0 0
        %8963 = vmatprep.subr.bf16.mxu0 0
        %8964 = vmatpush2.bf16.msra.mxu0 0
        %8965 = vmatprep.mubr.bf16.mxu0 0
        %8966 = vmatmul.mubr.bf16.gmra.mxu0 %v8867
        %v8967 = vpop.f32.mrf.mxu0
        %v8968 = vadd.f32 0.0, %v8967
        %v8969 = vpop.f32.mrf.mxu0
        %v8970 = vpop.f32.mrf.mxu0
        %v8971 = vpop.f32.mrf.mxu0
        %8972 = vdwg.mxu0
        %v8973 = vadd.f32 %v8866, %v8968
        %s8974 = scalar_lea.vmem %s5, 832
        %v8975 = vld [vmem:[%s8974] sm:$0xf]
        %v8976 = vld [vmem:[%s8974 + $0x4] sm:$0xf]
        %v8977 = vld [vmem:[%s8974 + $0x8] sm:$0xf]
        %v8978 = vld [vmem:[%s8974 + $0xc] sm:$0xf]
        %v8979 = vld [vmem:[%s8974 + $0x10] sm:$0xf]
        %v8980 = vld [vmem:[%s8974 + $0x14] sm:$0xf]
        %v8981 = vld [vmem:[%s8974 + $0x18] sm:$0xf]
        %v8982 = vld [vmem:[%s8974 + $0x1c] sm:$0xf]
        %v8983 = vld [vmem:[%s8974 + $0x20] sm:$0xf]
        %v8984 = vld [vmem:[%s8974 + $0x24] sm:$0xf]
        %v8985 = vld [vmem:[%s8974 + $0x28] sm:$0xf]
        %v8986 = vld [vmem:[%s8974 + $0x2c] sm:$0xf]
        %v8987 = vld [vmem:[%s8974 + $0x30] sm:$0xf]
        %v8988 = vld [vmem:[%s8974 + $0x34] sm:$0xf]
        %v8989 = vld [vmem:[%s8974 + $0x38] sm:$0xf]
        %v8990 = vld [vmem:[%s8974 + $0x3c] sm:$0xf]
        %v8992 = vshrl.u32 %v8867, 16
        %v9011 = vunpack.c.l.b16 %v8975
        %v9012 = vunpack.c.l.b16 %v8976
        %v9013 = vunpack.c.l.b16 %v8977
        %v9014 = vunpack.c.l.b16 %v8978
        %v9015 = vunpack.c.l.b16 %v8979
        %v9016 = vunpack.c.l.b16 %v8980
        %v9017 = vunpack.c.l.b16 %v8981
        %v9018 = vunpack.c.l.b16 %v8982
        %v9019 = vunpack.c.l.b16 %v8983
        %v9020 = vunpack.c.l.b16 %v8984
        %v9021 = vunpack.c.l.b16 %v8985
        %v9022 = vunpack.c.l.b16 %v8986
        %v9023 = vunpack.c.l.b16 %v8987
        %v9024 = vunpack.c.l.b16 %v8988
        %v9025 = vunpack.c.l.b16 %v8989
        %v9026 = vunpack.c.l.b16 %v8990
        %v9027 = vpack.c.b16 %v9012, %v9011
        %v9028 = vpack.c.b16 %v9014, %v9013
        %v9029 = vpack.c.b16 %v9016, %v9015
        %v9030 = vpack.c.b16 %v9018, %v9017
        %v9031 = vpack.c.b16 %v9020, %v9019
        %v9032 = vpack.c.b16 %v9022, %v9021
        %v9033 = vpack.c.b16 %v9024, %v9023
        %v9034 = vpack.c.b16 %v9026, %v9025
        %9043 = vmatprep.subr.bf16.mxu0 0
        %9044 = vmatpush1.bf16.msra.mxu0 %v9034
        %9045 = vmatprep.subr.bf16.mxu0 0
        %9046 = vmatpush1.bf16.msra.mxu0 %v9033
        %9047 = vmatprep.subr.bf16.mxu0 0
        %9048 = vmatpush1.bf16.msra.mxu0 %v9032
        %9049 = vmatprep.subr.bf16.mxu0 0
        %9050 = vmatpush1.bf16.msra.mxu0 %v9031
        %9051 = vmatprep.subr.bf16.mxu0 0
        %9052 = vmatpush1.bf16.msra.mxu0 %v9030
        %9053 = vmatprep.subr.bf16.mxu0 0
        %9054 = vmatpush1.bf16.msra.mxu0 %v9029
        %9055 = vmatprep.subr.bf16.mxu0 0
        %9056 = vmatpush1.bf16.msra.mxu0 %v9028
        %9057 = vmatprep.subr.bf16.mxu0 0
        %9058 = vmatpush1.bf16.msra.mxu0 %v9027
        %9059 = vmatprep.subr.bf16.mxu0 0
        %9060 = vmatpush2.bf16.msra.mxu0 0
        %9061 = vmatprep.subr.bf16.mxu0 0
        %9062 = vmatpush2.bf16.msra.mxu0 0
        %9063 = vmatprep.subr.bf16.mxu0 0
        %9064 = vmatpush2.bf16.msra.mxu0 0
        %9065 = vmatprep.subr.bf16.mxu0 0
        %9066 = vmatpush2.bf16.msra.mxu0 0
        %9067 = vmatprep.subr.bf16.mxu0 0
        %9068 = vmatpush2.bf16.msra.mxu0 0
        %9069 = vmatprep.subr.bf16.mxu0 0
        %9070 = vmatpush2.bf16.msra.mxu0 0
        %9071 = vmatprep.subr.bf16.mxu0 0
        %9072 = vmatpush2.bf16.msra.mxu0 0
        %9073 = vmatprep.subr.bf16.mxu0 0
        %9074 = vmatpush2.bf16.msra.mxu0 0
        %9075 = vmatprep.mubr.bf16.mxu0 0
        %9076 = vmatmul.mubr.bf16.gmra.mxu0 %v8992
        %v9077 = vpop.f32.mrf.mxu0
        %v9078 = vadd.f32 0.0, %v9077
        %v9079 = vpop.f32.mrf.mxu0
        %v9080 = vpop.f32.mrf.mxu0
        %v9081 = vpop.f32.mrf.mxu0
        %9082 = vdwg.mxu0
        %v9083 = vadd.f32 %v8973, %v9078
        %s9084 = scalar_lea.vmem %s5, 896
        %v9085 = vld [vmem:[%s9084] sm:$0xf]
        %v9086 = vld [vmem:[%s9084 + $0x4] sm:$0xf]
        %v9087 = vld [vmem:[%s9084 + $0x8] sm:$0xf]
        %v9088 = vld [vmem:[%s9084 + $0xc] sm:$0xf]
        %v9089 = vld [vmem:[%s9084 + $0x10] sm:$0xf]
        %v9090 = vld [vmem:[%s9084 + $0x14] sm:$0xf]
        %v9091 = vld [vmem:[%s9084 + $0x18] sm:$0xf]
        %v9092 = vld [vmem:[%s9084 + $0x1c] sm:$0xf]
        %v9093 = vld [vmem:[%s9084 + $0x20] sm:$0xf]
        %v9094 = vld [vmem:[%s9084 + $0x24] sm:$0xf]
        %v9095 = vld [vmem:[%s9084 + $0x28] sm:$0xf]
        %v9096 = vld [vmem:[%s9084 + $0x2c] sm:$0xf]
        %v9097 = vld [vmem:[%s9084 + $0x30] sm:$0xf]
        %v9098 = vld [vmem:[%s9084 + $0x34] sm:$0xf]
        %v9099 = vld [vmem:[%s9084 + $0x38] sm:$0xf]
        %v9100 = vld [vmem:[%s9084 + $0x3c] sm:$0xf]
        %v9102 = vrot.slane %v8867, 1
        %v9120 = vunpack.c.l.b16 %v9085
        %v9121 = vunpack.c.l.b16 %v9086
        %v9122 = vunpack.c.l.b16 %v9087
        %v9123 = vunpack.c.l.b16 %v9088
        %v9124 = vunpack.c.l.b16 %v9089
        %v9125 = vunpack.c.l.b16 %v9090
        %v9126 = vunpack.c.l.b16 %v9091
        %v9127 = vunpack.c.l.b16 %v9092
        %v9128 = vunpack.c.l.b16 %v9093
        %v9129 = vunpack.c.l.b16 %v9094
        %v9130 = vunpack.c.l.b16 %v9095
        %v9131 = vunpack.c.l.b16 %v9096
        %v9132 = vunpack.c.l.b16 %v9097
        %v9133 = vunpack.c.l.b16 %v9098
        %v9134 = vunpack.c.l.b16 %v9099
        %v9135 = vunpack.c.l.b16 %v9100
        %v9136 = vpack.c.b16 %v9121, %v9120
        %v9137 = vpack.c.b16 %v9123, %v9122
        %v9138 = vpack.c.b16 %v9125, %v9124
        %v9139 = vpack.c.b16 %v9127, %v9126
        %v9140 = vpack.c.b16 %v9129, %v9128
        %v9141 = vpack.c.b16 %v9131, %v9130
        %v9142 = vpack.c.b16 %v9133, %v9132
        %v9143 = vpack.c.b16 %v9135, %v9134
        %9152 = vmatprep.subr.bf16.mxu0 0
        %9153 = vmatpush1.bf16.msra.mxu0 %v9143
        %9154 = vmatprep.subr.bf16.mxu0 0
        %9155 = vmatpush1.bf16.msra.mxu0 %v9142
        %9156 = vmatprep.subr.bf16.mxu0 0
        %9157 = vmatpush1.bf16.msra.mxu0 %v9141
        %9158 = vmatprep.subr.bf16.mxu0 0
        %9159 = vmatpush1.bf16.msra.mxu0 %v9140
        %9160 = vmatprep.subr.bf16.mxu0 0
        %9161 = vmatpush1.bf16.msra.mxu0 %v9139
        %9162 = vmatprep.subr.bf16.mxu0 0
        %9163 = vmatpush1.bf16.msra.mxu0 %v9138
        %9164 = vmatprep.subr.bf16.mxu0 0
        %9165 = vmatpush1.bf16.msra.mxu0 %v9137
        %9166 = vmatprep.subr.bf16.mxu0 0
        %9167 = vmatpush1.bf16.msra.mxu0 %v9136
        %9168 = vmatprep.subr.bf16.mxu0 0
        %9169 = vmatpush2.bf16.msra.mxu0 0
        %9170 = vmatprep.subr.bf16.mxu0 0
        %9171 = vmatpush2.bf16.msra.mxu0 0
        %9172 = vmatprep.subr.bf16.mxu0 0
        %9173 = vmatpush2.bf16.msra.mxu0 0
        %9174 = vmatprep.subr.bf16.mxu0 0
        %9175 = vmatpush2.bf16.msra.mxu0 0
        %9176 = vmatprep.subr.bf16.mxu0 0
        %9177 = vmatpush2.bf16.msra.mxu0 0
        %9178 = vmatprep.subr.bf16.mxu0 0
        %9179 = vmatpush2.bf16.msra.mxu0 0
        %9180 = vmatprep.subr.bf16.mxu0 0
        %9181 = vmatpush2.bf16.msra.mxu0 0
        %9182 = vmatprep.subr.bf16.mxu0 0
        %9183 = vmatpush2.bf16.msra.mxu0 0
        %9184 = vmatprep.mubr.bf16.mxu0 0
        %9185 = vmatmul.mubr.bf16.gmra.mxu0 %v9102
        %v9186 = vpop.f32.mrf.mxu0
        %v9187 = vadd.f32 0.0, %v9186
        %v9188 = vpop.f32.mrf.mxu0
        %v9189 = vpop.f32.mrf.mxu0
        %v9190 = vpop.f32.mrf.mxu0
        %9191 = vdwg.mxu0
        %v9192 = vadd.f32 %v9083, %v9187
        %s9193 = scalar_lea.vmem %s5, 960
        %v9194 = vld [vmem:[%s9193] sm:$0xf]
        %v9195 = vld [vmem:[%s9193 + $0x4] sm:$0xf]
        %v9196 = vld [vmem:[%s9193 + $0x8] sm:$0xf]
        %v9197 = vld [vmem:[%s9193 + $0xc] sm:$0xf]
        %v9198 = vld [vmem:[%s9193 + $0x10] sm:$0xf]
        %v9199 = vld [vmem:[%s9193 + $0x14] sm:$0xf]
        %v9200 = vld [vmem:[%s9193 + $0x18] sm:$0xf]
        %v9201 = vld [vmem:[%s9193 + $0x1c] sm:$0xf]
        %v9202 = vld [vmem:[%s9193 + $0x20] sm:$0xf]
        %v9203 = vld [vmem:[%s9193 + $0x24] sm:$0xf]
        %v9204 = vld [vmem:[%s9193 + $0x28] sm:$0xf]
        %v9205 = vld [vmem:[%s9193 + $0x2c] sm:$0xf]
        %v9206 = vld [vmem:[%s9193 + $0x30] sm:$0xf]
        %v9207 = vld [vmem:[%s9193 + $0x34] sm:$0xf]
        %v9208 = vld [vmem:[%s9193 + $0x38] sm:$0xf]
        %v9209 = vld [vmem:[%s9193 + $0x3c] sm:$0xf]
        %v9210 = vrot.slane %v8992, 1
        %v9228 = vunpack.c.l.b16 %v9194
        %v9229 = vunpack.c.l.b16 %v9195
        %v9230 = vunpack.c.l.b16 %v9196
        %v9231 = vunpack.c.l.b16 %v9197
        %v9232 = vunpack.c.l.b16 %v9198
        %v9233 = vunpack.c.l.b16 %v9199
        %v9234 = vunpack.c.l.b16 %v9200
        %v9235 = vunpack.c.l.b16 %v9201
        %v9236 = vunpack.c.l.b16 %v9202
        %v9237 = vunpack.c.l.b16 %v9203
        %v9238 = vunpack.c.l.b16 %v9204
        %v9239 = vunpack.c.l.b16 %v9205
        %v9240 = vunpack.c.l.b16 %v9206
        %v9241 = vunpack.c.l.b16 %v9207
        %v9242 = vunpack.c.l.b16 %v9208
        %v9243 = vunpack.c.l.b16 %v9209
        %v9244 = vpack.c.b16 %v9229, %v9228
        %v9245 = vpack.c.b16 %v9231, %v9230
        %v9246 = vpack.c.b16 %v9233, %v9232
        %v9247 = vpack.c.b16 %v9235, %v9234
        %v9248 = vpack.c.b16 %v9237, %v9236
        %v9249 = vpack.c.b16 %v9239, %v9238
        %v9250 = vpack.c.b16 %v9241, %v9240
        %v9251 = vpack.c.b16 %v9243, %v9242
        %9260 = vmatprep.subr.bf16.mxu0 0
        %9261 = vmatpush1.bf16.msra.mxu0 %v9251
        %9262 = vmatprep.subr.bf16.mxu0 0
        %9263 = vmatpush1.bf16.msra.mxu0 %v9250
        %9264 = vmatprep.subr.bf16.mxu0 0
        %9265 = vmatpush1.bf16.msra.mxu0 %v9249
        %9266 = vmatprep.subr.bf16.mxu0 0
        %9267 = vmatpush1.bf16.msra.mxu0 %v9248
        %9268 = vmatprep.subr.bf16.mxu0 0
        %9269 = vmatpush1.bf16.msra.mxu0 %v9247
        %9270 = vmatprep.subr.bf16.mxu0 0
        %9271 = vmatpush1.bf16.msra.mxu0 %v9246
        %9272 = vmatprep.subr.bf16.mxu0 0
        %9273 = vmatpush1.bf16.msra.mxu0 %v9245
        %9274 = vmatprep.subr.bf16.mxu0 0
        %9275 = vmatpush1.bf16.msra.mxu0 %v9244
        %9276 = vmatprep.subr.bf16.mxu0 0
        %9277 = vmatpush2.bf16.msra.mxu0 0
        %9278 = vmatprep.subr.bf16.mxu0 0
        %9279 = vmatpush2.bf16.msra.mxu0 0
        %9280 = vmatprep.subr.bf16.mxu0 0
        %9281 = vmatpush2.bf16.msra.mxu0 0
        %9282 = vmatprep.subr.bf16.mxu0 0
        %9283 = vmatpush2.bf16.msra.mxu0 0
        %9284 = vmatprep.subr.bf16.mxu0 0
        %9285 = vmatpush2.bf16.msra.mxu0 0
        %9286 = vmatprep.subr.bf16.mxu0 0
        %9287 = vmatpush2.bf16.msra.mxu0 0
        %9288 = vmatprep.subr.bf16.mxu0 0
        %9289 = vmatpush2.bf16.msra.mxu0 0
        %9290 = vmatprep.subr.bf16.mxu0 0
        %9291 = vmatpush2.bf16.msra.mxu0 0
        %9292 = vmatprep.mubr.bf16.mxu0 0
        %9293 = vmatmul.mubr.bf16.gmra.mxu0 %v9210
        %v9294 = vpop.f32.mrf.mxu0
        %v9295 = vadd.f32 0.0, %v9294
        %v9296 = vpop.f32.mrf.mxu0
        %v9297 = vpop.f32.mrf.mxu0
        %v9298 = vpop.f32.mrf.mxu0
        %9299 = vdwg.mxu0
        %v9300 = vadd.f32 %v9192, %v9295
        %v9301 = vld [vmem:[%s6] sm:$0x1]
        %v9302 = vadd.f32 %v9300, %v9301
        %vm9303 = vcmask 73728
        %v9304 = vsel %vm9303, %v9302, -inf
        %9305 = vmax.xlane.f32.xlu0 %v9304
        %v9306 = vpop.xlane.xlu0 %9305
        %v9307 = vsub.f32 %v9302, %v9306
        %v9308 = vmul.f32 %v9307, 1.442695
        %v9309 = vpow.pop %v9308
        %v9310 = vsel %vm9303, %v9309, 0.0
        %9311 = vadd.xlane.f32.xlu0 %v9310
        %v9312 = vpop.xlane.xlu0 %9311
        %v9313 = vlog2.pop %v9312
        %v9314 = vmul.f32 %v9313, 0.6931472
        %v9315 = vsub.f32 %v9307, %v9314
        %9316 = vst.msk [vmem:[%s270] sm:$0x1] %vm9303, %v9315
        %s9317 = sand.u32 %s181, 1
        %s9318 = scalar_lea.sflag [#allocation7], %s9317
        %s9319 = sand.u32 %s181, 1
        %s9320 = scalar_lea.vmem [#allocation6], %s9319
        // Predicated region
        $region49: #{net_forward.1} parent=47 // pred_check
          %p9321 = pneg %p191
        $region50: #{net_forward.1} parent=47 // pred_check_branch
          %9323 = sbr.rel (%p9321) target = $region52
        $region51: #{net_forward.1} parent=47 // pred_region
          %s9325 = ssub.s32 16, 16
          %9326 = vsyncadd %s9318, %s9325
          %s9327 = smul.addr %s21, 16
          %s9328 = scalar_lea.hbm %s7, %s9327
          %s9330 = sshll.u32 %s9320, 4
          %s9331 = int_to_ptr.vmem [resolvable:$true] %s9330
          %9333 = dma.vmem_to_hbm [thread:$0]  %s9331, 16, %s9328, %s9318
        $region52: #{net_forward.1} parent=47 // pred_fallthru
          _
      $region48: #{net_forward.1} parent=5 // pred_fallthru
        _
      %p9334 = scmp.le.s32.totalorder 2, %s16
      // Predicated region
      $region53: #{net_forward.1} parent=5 // pred_check
        %p9335 = pneg %p9334
      $region54: #{net_forward.1} parent=5 // pred_check_branch
        %9337 = sbr.rel (%p9335) target = $region56
      $region55: #{net_forward.1} parent=5 // pred_region
        %s9338 = ssub.s32 %s16, 2
        // Predicated region
        $region57: #{net_forward.1} parent=55 // pred_check
          %p9339 = pneg %p197
        $region58: #{net_forward.1} parent=55 // pred_check_branch
          %9341 = sbr.rel (%p9339) target = $region60
        $region59: #{net_forward.1} parent=55 // pred_region
          %s9342 = sand.u32 %s182, 1
          %s9343 = scalar_lea.sflag [#allocation7], %s9342
          %s9344 = sand.u32 %s182, 1
          %s9345 = scalar_lea.vmem [#allocation6], %s9344
          %9346 = dma.done %s9343, 16
        $region60: #{net_forward.1} parent=55 // pred_fallthru
          _
      $region56: #{net_forward.1} parent=5 // pred_fallthru
        _
    $region6: #{net_forward.1} parent=1 // loop_footer
      %s20 = sadd.s32 1, %s16
    $region7: #{net_forward.1} parent=1 // loop_footer_branch
      %15 = sbr.rel target = $region3
    $region8: #{net_forward.1} parent=1 // loop_exit
      _
    %9347 = vsyncpa [#allocation7], 1
    %s9348 = scalar_lea.sflag [#allocation7], 1
    %9349 = vsyncpa %s9348, 1

</llo_original>
